<compile_context>
chip_gen: v7x
topology: tpu7x:2x2x1
jax: 0.10.0
libtpu: 0.0.40
codegen_flags: <defaults>
</compile_context>

<pallas_src>
import functools

import jax
import jax.numpy as jnp
from jax import lax
from jax.experimental import pallas as pl
from jax.experimental.pallas import tpu as pltpu


# ----------------------------------------------------------------------------
# small helpers
# ----------------------------------------------------------------------------
def _round_up(x, m):
    return ((x + m - 1) // m) * m


def _stable_sigmoid(x):
    # numerically stable sigmoid built on tanh (EUP op, no overflow for large |x|)
    return 0.5 * (jnp.tanh(0.5 * x) + 1.0)


def _elu(x):
    # nn.ELU(alpha=1); exp on the clamped negative part avoids overflow.
    # (expm1 would be marginally more accurate for tiny |x|.)
    return jnp.where(x > 0.0, x, jnp.exp(jnp.minimum(x, 0.0)) - 1.0)


def _resident_spec(a):
    nd = a.ndim
    return pl.BlockSpec(a.shape, lambda c, t, _nd=nd: (0,) * _nd)


def _cluster_spec(a):
    nd = a.ndim
    return pl.BlockSpec((1,) + a.shape[1:], lambda c, t, _nd=nd: (c,) + (0,) * (_nd - 1))


# ----------------------------------------------------------------------------
# fused kernel: per-cluster phi + masked mean pool + attention MIL head +
#               genomic SNN + concat fusion + classifier
# ----------------------------------------------------------------------------
def _fused_kernel(
    # streamed / per-cluster inputs
    x_ref, cid_ref, w1_ref, b1_ref, w2_ref, b2_ref,
    # resident (head) inputs
    xo_ref, wfc_ref, bfc_ref, wa_ref, ba_ref, wb_ref, bb_ref, wc_ref,
    wr_ref, br_ref, ws1_ref, bs1_ref, ws2_ref, bs2_ref,
    wm1a_ref, wm1b_ref, bm1_ref, wm2_ref, bm2_ref, wcl_ref, bcl_ref,
    # output
    out_ref,
    # scratch
    hcl_ref, acc_ref, cnt_ref,
    *, num_clusters, nc_pad):

    c = pl.program_id(0)          # cluster index
    t = pl.program_id(1)          # patch-tile index
    n_t = pl.num_programs(1)

    # ---- one-time init of the resident cluster bag -------------------------
    @pl.when((c == 0) & (t == 0))
    def _():
        hcl_ref[...] = jnp.zeros_like(hcl_ref)

    # ---- per-cluster accumulator init ---------------------------------------
    @pl.when(t == 0)
    def _():
        acc_ref[...] = jnp.zeros_like(acc_ref)
        cnt_ref[...] = jnp.zeros_like(cnt_ref)

    # ---- phi_c on this patch tile, masked accumulate -------------------------
    x = x_ref[...]                                                       # (TN,1024) bf16
    h1 = jnp.dot(x, w1_ref[0], preferred_element_type=jnp.float32) + b1_ref[0]
    h1 = jnp.maximum(h1, 0.0)
    h2 = jnp.dot(h1.astype(jnp.bfloat16), w2_ref[0],
                 preferred_element_type=jnp.float32) + b2_ref[0]
    h2 = jnp.maximum(h2, 0.0)                                            # (TN,512) f32

    mask = (cid_ref[...] == c).astype(jnp.float32)                       # (TN,1)
    # masked row-sum as an MXU contraction: mask^T @ h2 -> (1,512)
    acc_ref[...] += lax.dot_general(mask, h2, (((0,), (0,)), ((), ())),
                                    preferred_element_type=jnp.float32)
    cnt_ref[...] = cnt_ref[...] + jnp.sum(mask)                          # count splat

    # ---- cluster finalize: masked mean -> row c of the cluster bag -----------
    @pl.when(t == n_t - 1)
    def _():
        mean_row = acc_ref[...] / jnp.maximum(cnt_ref[...], 1.0)         # (1,512)
        rows = lax.broadcasted_iota(jnp.int32, (nc_pad, 1), 0)
        hcl_ref[...] = jnp.where(rows == c, mean_row, hcl_ref[...])      # empty -> 0

    # ---- head: runs once on the very last grid step --------------------------
    @pl.when((c == num_clusters - 1) & (t == n_t - 1))
    def _():
        hc = hcl_ref[...].astype(jnp.bfloat16)                           # (16,512)
        # attention_net fc: Linear(512,512)+ReLU
        hfc = jnp.maximum(
            jnp.dot(hc, wfc_ref[...], preferred_element_type=jnp.float32)
            + bfc_ref[...], 0.0)                                         # (16,512) f32
        hfc_b = hfc.astype(jnp.bfloat16)
        # gated attention (final Linear(256,1) bias dropped: cancels in softmax)
        a = jnp.tanh(jnp.dot(hfc_b, wa_ref[...],
                             preferred_element_type=jnp.float32) + ba_ref[...])
        g = _stable_sigmoid(jnp.dot(hfc_b, wb_ref[...],
                                    preferred_element_type=jnp.float32) + bb_ref[...])
        A = jnp.sum(a * g * wc_ref[...], axis=-1, keepdims=True)         # (16,1)
        rows = lax.broadcasted_iota(jnp.int32, (nc_pad, 1), 0)
        A = jnp.where(rows < num_clusters, A, -1e30)                     # mask pad rows
        A = A - jnp.max(A, axis=0, keepdims=True)
        w = jnp.exp(A)
        w = w / jnp.sum(w, axis=0, keepdims=True)                        # softmax(clusters)
        # weighted pooling as MXU contraction: w^T @ hfc -> (1,512)
        h_path = lax.dot_general(w, hfc, (((0,), (0,)), ((), ())),
                                 preferred_element_type=jnp.float32)
        # rho: Linear(512,256)+ReLU
        h_path = jnp.maximum(
            jnp.dot(h_path.astype(jnp.bfloat16), wr_ref[...],
                    preferred_element_type=jnp.float32) + br_ref[...], 0.0)  # (1,256)

        # genomic SNN blocks (Linear+ELU, Linear+ELU)
        xo = xo_ref[...].astype(jnp.bfloat16)                            # (1,D_pad)
        o1 = _elu(jnp.dot(xo, ws1_ref[...],
                          preferred_element_type=jnp.float32) + bs1_ref[...])
        h_omic = _elu(jnp.dot(o1.astype(jnp.bfloat16), ws2_ref[...],
                              preferred_element_type=jnp.float32) + bs2_ref[...])

        # concat fusion mm: split matmul == Linear(cat([h_path,h_omic]))  (no lane concat)
        m1 = (jnp.dot(h_path.astype(jnp.bfloat16), wm1a_ref[...],
                      preferred_element_type=jnp.float32)
              + jnp.dot(h_omic.astype(jnp.bfloat16), wm1b_ref[...],
                        preferred_element_type=jnp.float32)
              + bm1_ref[...])
        m1 = jnp.maximum(m1, 0.0)
        m2 = jnp.maximum(
            jnp.dot(m1.astype(jnp.bfloat16), wm2_ref[...],
                    preferred_element_type=jnp.float32) + bm2_ref[...], 0.0)

        # classifier (output padded to 128 lanes -> unmasked full-vreg store)
        logits = jnp.dot(m2.astype(jnp.bfloat16), wcl_ref[...],
                         preferred_element_type=jnp.float32) + bcl_ref[...]   # (1,128)
        out_ref[...] = jnp.broadcast_to(logits, out_ref.shape)


# ----------------------------------------------------------------------------
# deterministic synthetic parameters (weights stored [in,out], bf16; biases f32)
# ----------------------------------------------------------------------------
def init_params(key, omic_input_dim, num_clusters=10, n_classes=4,
                size_arg='small', w_dtype=jnp.bfloat16):
    size = {'small': [1024, 512, 256], 'big': [1024, 512, 384]}[size_arg]
    d_in, d_mid, d_att = size
    assert n_classes <= 128

    keys = iter(jax.random.split(key, 4 * num_clusters + 24))

    def dense(din, dout):
        kw, kb = next(keys), next(keys)
        w = (jax.random.normal(kw, (din, dout), jnp.float32)
             / jnp.sqrt(float(din))).astype(w_dtype)
        b = 0.01 * jax.random.normal(kb, (1, dout), jnp.float32)
        return w, b

    # per-cluster phi MLPs, stacked so the kernel can index them by cluster id
    w1s, b1s, w2s, b2s = [], [], [], []
    for _ in range(num_clusters):
        w1, b1 = dense(d_in, d_mid)
        w2, b2 = dense(d_mid, d_mid)
        w1s.append(w1); b1s.append(b1); w2s.append(w2); b2s.append(b2)
    p = dict(
        phi_w1=jnp.stack(w1s, 0), phi_b1=jnp.stack(b1s, 0),
        phi_w2=jnp.stack(w2s, 0), phi_b2=jnp.stack(b2s, 0))

    # attention_net: fc + gated attention
    p['wfc'], p['bfc'] = dense(d_mid, d_mid)
    p['wa'], p['ba'] = dense(d_mid, d_att)
    p['wb'], p['bb'] = dense(d_mid, d_att)
    p['wc'] = (jax.random.normal(next(keys), (1, d_att), jnp.float32)
               / jnp.sqrt(float(d_att)))          # Linear(256,1) as a row vector (f32)

    # rho
    p['wr'], p['br'] = dense(d_mid, d_att)

    # fc_omic SNN blocks (first weight zero-padded to a 128-lane multiple)
    d_om_pad = _round_up(omic_input_dim, 128)
    ws1, p['bs1'] = dense(omic_input_dim, d_att)
    p['ws1'] = jnp.zeros((d_om_pad, d_att), w_dtype).at[:omic_input_dim].set(ws1)
    p['ws2'], p['bs2'] = dense(d_att, d_att)

    # mm (concat fusion): Linear(512,256) split into the h_path / h_omic halves
    wm1, p['bm1'] = dense(2 * d_att, d_att)
    p['wm1a'], p['wm1b'] = wm1[:d_att], wm1[d_att:]
    p['wm2'], p['bm2'] = dense(d_att, d_att)

    # classifier, padded to 128 output lanes
    wcl, bcl = dense(d_att, n_classes)
    p['wcl'] = jnp.zeros((d_att, 128), w_dtype).at[:, :n_classes].set(wcl)
    p['bcl'] = jnp.zeros((1, 128), jnp.float32).at[:, :n_classes].set(bcl)
    return p


# ----------------------------------------------------------------------------
# forward wrapper: pads inputs, builds specs, one pallas_call, tiny JAX epilogue
# ----------------------------------------------------------------------------
def mil_cluster_fc_surv_forward(x_path_features, path_clusters, x_omic, params,
                                *, num_clusters=10, n_classes=4, tile_n=512):
    p = params
    N, d_in = x_path_features.shape
    d_mid = p['phi_w1'].shape[2]
    d_att = p['wr'].shape[1]
    nc_pad = _round_up(num_clusters, 8)

    tn = min(_round_up(tile_n, 16), _round_up(N, 16))
    n_pad = _round_up(N, tn)
    n_tiles = n_pad // tn

    # pad the bag; padding rows get cluster id == num_clusters -> never matched
    x = jnp.zeros((n_pad, d_in), jnp.bfloat16).at[:N].set(
        x_path_features.astype(jnp.bfloat16))
    cid = jnp.full((n_pad, 1), num_clusters, jnp.int32).at[:N, 0].set(
        path_clusters.astype(jnp.int32))

    d_om_pad = p['ws1'].shape[0]
    xo = jnp.zeros((1, d_om_pad), jnp.float32).at[0, :x_omic.shape[-1]].set(
        x_omic.astype(jnp.float32))

    args = [x, cid, p['phi_w1'], p['phi_b1'], p['phi_w2'], p['phi_b2'], xo,
            p['wfc'], p['bfc'], p['wa'], p['ba'], p['wb'], p['bb'], p['wc'],
            p['wr'], p['br'], p['ws1'], p['bs1'], p['ws2'], p['bs2'],
            p['wm1a'], p['wm1b'], p['bm1'], p['wm2'], p['bm2'], p['wcl'], p['bcl']]
    in_specs = [
        pl.BlockSpec((tn, d_in), lambda c, t: (t, 0)),     # x tile
        pl.BlockSpec((tn, 1), lambda c, t: (t, 0)),        # cluster ids
        _cluster_spec(p['phi_w1']), _cluster_spec(p['phi_b1']),
        _cluster_spec(p['phi_w2']), _cluster_spec(p['phi_b2']),
    ] + [_resident_spec(a) for a in args[6:]]

    grid_spec = pltpu.PrefetchScalarGridSpec(
        num_scalar_prefetch=0,
        grid=(num_clusters, n_tiles),
        in_specs=in_specs,
        out_specs=pl.BlockSpec((8, 128), lambda c, t: (0, 0)),
        scratch_shapes=[
            pltpu.VMEM((nc_pad, d_mid), jnp.float32),      # cluster bag
            pltpu.VMEM((1, d_mid), jnp.float32),           # masked-sum accumulator
            pltpu.VMEM((1, d_mid), jnp.float32),           # count accumulator
        ],
    )

    flops = (2 * num_clusters * n_pad * (d_in * d_mid + d_mid * d_mid)
             + 2 * nc_pad * d_mid * (d_mid + 2 * d_att) + 2 * 8 * d_att * d_att)
    bytes_accessed = (num_clusters * n_pad * d_in * 2
                      + num_clusters * (d_in * d_mid + d_mid * d_mid) * 2
                      + 4 * 1024 * 1024)
    cost = pl.CostEstimate(flops=int(flops),
                           transcendentals=int(4 * nc_pad * d_att + 1024),
                           bytes_accessed=int(bytes_accessed))

    kernel = functools.partial(_fused_kernel,
                               num_clusters=num_clusters, nc_pad=nc_pad)

    logits_pad = pl.pallas_call(
        kernel,
        out_shape=jax.ShapeDtypeStruct((8, 128), jnp.float32),
        grid_spec=grid_spec,
        compiler_params=pltpu.CompilerParams(
            dimension_semantics=("arbitrary", "arbitrary"),
            vmem_limit_bytes=32 * 1024 * 1024),
        cost_estimate=cost,
    )(*args)

    logits = logits_pad[0:1, :n_classes]
    hazards = jax.nn.sigmoid(logits)
    survival = jnp.cumprod(1.0 - hazards, axis=1)
    y_hat = jnp.argmax(logits, axis=1)[:, None]
    return {'hazards': hazards, 'survival': survival, 'y_hat': y_hat,
            'logits': logits}


# ----------------------------------------------------------------------------
if __name__ == "__main__":
    num_clusters = 10
    n_classes = 4
    omic_dim = 80
    n_patches = 64

    key = jax.random.PRNGKey(0)
    k_par, k_x, k_c, k_o = jax.random.split(key, 4)

    params = init_params(k_par, omic_input_dim=omic_dim,
                         num_clusters=num_clusters, n_classes=n_classes)
    x_path = jax.random.normal(k_x, (n_patches, 1024), jnp.float32)
    clusters = jax.random.randint(k_c, (n_patches,), 0, num_clusters, jnp.int32)
    x_omic = jax.random.normal(k_o, (omic_dim,), jnp.float32)

    out = mil_cluster_fc_surv_forward(x_path, clusters, x_omic, params,
                                      num_clusters=num_clusters,
                                      n_classes=n_classes)
    jax.block_until_ready(out)

    assert out['hazards'].shape == (1, n_classes)
    assert out['survival'].shape == (1, n_classes)
    assert out['y_hat'].shape == (1, 1)
    print("KERNEL_OK")
</pallas_src>

<mosaic_0001>
module attributes {stable_mosaic.version = 11 : i64} {
  func.func @_fused_kernel(%arg0: i32, %arg1: i32, %arg2: memref<64x1024xbf16, #tpu.memory_space<vmem>>, %arg3: memref<64x1xi32, #tpu.memory_space<vmem>>, %arg4: memref<1x1024x512xbf16, #tpu.memory_space<vmem>>, %arg5: memref<1x1x512xf32, #tpu.memory_space<vmem>>, %arg6: memref<1x512x512xbf16, #tpu.memory_space<vmem>>, %arg7: memref<1x1x512xf32, #tpu.memory_space<vmem>>, %arg8: memref<1x128xf32, #tpu.memory_space<vmem>>, %arg9: memref<512x512xbf16, #tpu.memory_space<vmem>>, %arg10: memref<1x512xf32, #tpu.memory_space<vmem>>, %arg11: memref<512x256xbf16, #tpu.memory_space<vmem>>, %arg12: memref<1x256xf32, #tpu.memory_space<vmem>>, %arg13: memref<512x256xbf16, #tpu.memory_space<vmem>>, %arg14: memref<1x256xf32, #tpu.memory_space<vmem>>, %arg15: memref<1x256xf32, #tpu.memory_space<vmem>>, %arg16: memref<512x256xbf16, #tpu.memory_space<vmem>>, %arg17: memref<1x256xf32, #tpu.memory_space<vmem>>, %arg18: memref<128x256xbf16, #tpu.memory_space<vmem>>, %arg19: memref<1x256xf32, #tpu.memory_space<vmem>>, %arg20: memref<256x256xbf16, #tpu.memory_space<vmem>>, %arg21: memref<1x256xf32, #tpu.memory_space<vmem>>, %arg22: memref<256x256xbf16, #tpu.memory_space<vmem>>, %arg23: memref<256x256xbf16, #tpu.memory_space<vmem>>, %arg24: memref<1x256xf32, #tpu.memory_space<vmem>>, %arg25: memref<256x256xbf16, #tpu.memory_space<vmem>>, %arg26: memref<1x256xf32, #tpu.memory_space<vmem>>, %arg27: memref<256x128xbf16, #tpu.memory_space<vmem>>, %arg28: memref<1x128xf32, #tpu.memory_space<vmem>>, %arg29: memref<8x128xf32, #tpu.memory_space<vmem>>, %arg30: memref<16x512xf32, #tpu.memory_space<vmem>>, %arg31: memref<1x512xf32, #tpu.memory_space<vmem>>, %arg32: memref<1x512xf32, #tpu.memory_space<vmem>>) attributes {dimension_semantics = [#tpu.dimension_semantics<arbitrary>, #tpu.dimension_semantics<arbitrary>], iteration_bounds = array<i64: 10, 1>, scalar_prefetch = 0 : i64, scratch_operands = 3 : i64, tpu.core_type = #tpu.core_type<tc>, window_params = [{transform_indices = @transform_0, window_bounds = array<i64: 64, 1024>}, {transform_indices = @transform_1, window_bounds = array<i64: 64, 1>}, {transform_indices = @transform_2, window_bounds = array<i64: 1, 1024, 512>}, {transform_indices = @transform_3, window_bounds = array<i64: 1, 1, 512>}, {transform_indices = @transform_4, window_bounds = array<i64: 1, 512, 512>}, {transform_indices = @transform_5, window_bounds = array<i64: 1, 1, 512>}, {pipeline_mode = #tpu.pipeline_mode<synchronous>, transform_indices = @transform_6, window_bounds = array<i64: 1, 128>}, {pipeline_mode = #tpu.pipeline_mode<synchronous>, transform_indices = @transform_7, window_bounds = array<i64: 512, 512>}, {pipeline_mode = #tpu.pipeline_mode<synchronous>, transform_indices = @transform_8, window_bounds = array<i64: 1, 512>}, {pipeline_mode = #tpu.pipeline_mode<synchronous>, transform_indices = @transform_9, window_bounds = array<i64: 512, 256>}, {pipeline_mode = #tpu.pipeline_mode<synchronous>, transform_indices = @transform_10, window_bounds = array<i64: 1, 256>}, {pipeline_mode = #tpu.pipeline_mode<synchronous>, transform_indices = @transform_11, window_bounds = array<i64: 512, 256>}, {pipeline_mode = #tpu.pipeline_mode<synchronous>, transform_indices = @transform_12, window_bounds = array<i64: 1, 256>}, {pipeline_mode = #tpu.pipeline_mode<synchronous>, transform_indices = @transform_13, window_bounds = array<i64: 1, 256>}, {pipeline_mode = #tpu.pipeline_mode<synchronous>, transform_indices = @transform_14, window_bounds = array<i64: 512, 256>}, {pipeline_mode = #tpu.pipeline_mode<synchronous>, transform_indices = @transform_15, window_bounds = array<i64: 1, 256>}, {pipeline_mode = #tpu.pipeline_mode<synchronous>, transform_indices = @transform_16, window_bounds = array<i64: 128, 256>}, {pipeline_mode = #tpu.pipeline_mode<synchronous>, transform_indices = @transform_17, window_bounds = array<i64: 1, 256>}, {pipeline_mode = #tpu.pipeline_mode<synchronous>, transform_indices = @transform_18, window_bounds = array<i64: 256, 256>}, {pipeline_mode = #tpu.pipeline_mode<synchronous>, transform_indices = @transform_19, window_bounds = array<i64: 1, 256>}, {pipeline_mode = #tpu.pipeline_mode<synchronous>, transform_indices = @transform_20, window_bounds = array<i64: 256, 256>}, {pipeline_mode = #tpu.pipeline_mode<synchronous>, transform_indices = @transform_21, window_bounds = array<i64: 256, 256>}, {pipeline_mode = #tpu.pipeline_mode<synchronous>, transform_indices = @transform_22, window_bounds = array<i64: 1, 256>}, {pipeline_mode = #tpu.pipeline_mode<synchronous>, transform_indices = @transform_23, window_bounds = array<i64: 256, 256>}, {pipeline_mode = #tpu.pipeline_mode<synchronous>, transform_indices = @transform_24, window_bounds = array<i64: 1, 256>}, {pipeline_mode = #tpu.pipeline_mode<synchronous>, transform_indices = @transform_25, window_bounds = array<i64: 256, 128>}, {pipeline_mode = #tpu.pipeline_mode<synchronous>, transform_indices = @transform_26, window_bounds = array<i64: 1, 128>}, {pipeline_mode = #tpu.pipeline_mode<synchronous>, transform_indices = @transform_27, window_bounds = array<i64: 8, 128>}]} {
    %c0_i32 = arith.constant 0 : i32
    %0 = arith.cmpi eq, %arg0, %c0_i32 : i32
    %c0_i32_0 = arith.constant 0 : i32
    %1 = arith.cmpi eq, %arg1, %c0_i32_0 : i32
    %2 = arith.andi %0, %1 : i1
    %3 = arith.extui %2 : i1 to i32
    %c0_i32_1 = arith.constant 0 : i32
    %4 = arith.cmpi ne, %3, %c0_i32_1 : i32
    scf.if %4 {
      %cst_36 = arith.constant 0.000000e+00 : f32
      %53 = vector.broadcast %cst_36 : f32 to vector<16x512xf32>
      %c0_37 = arith.constant 0 : index
      %c0_38 = arith.constant 0 : index
      %54 = vector.load %arg30[%c0_37, %c0_38] : memref<16x512xf32, #tpu.memory_space<vmem>>, vector<16x512xf32>
      tpu.vector_store %arg30[%c0_37, %c0_38], %53 {strides = array<i32>} : memref<16x512xf32, #tpu.memory_space<vmem>>, vector<16x512xf32>,
    } else {
    }
    %c0_i32_2 = arith.constant 0 : i32
    %5 = arith.cmpi eq, %arg1, %c0_i32_2 : i32
    %6 = arith.extui %5 : i1 to i32
    %c0_i32_3 = arith.constant 0 : i32
    %7 = arith.cmpi ne, %6, %c0_i32_3 : i32
    scf.if %7 {
      %cst_36 = arith.constant 0.000000e+00 : f32
      %53 = vector.broadcast %cst_36 : f32 to vector<1x512xf32>
      %c0_37 = arith.constant 0 : index
      %c0_38 = arith.constant 0 : index
      %54 = vector.load %arg31[%c0_37, %c0_38] : memref<1x512xf32, #tpu.memory_space<vmem>>, vector<1x512xf32>
      tpu.vector_store %arg31[%c0_37, %c0_38], %53 {strides = array<i32>} : memref<1x512xf32, #tpu.memory_space<vmem>>, vector<1x512xf32>,
      %cst_39 = arith.constant 0.000000e+00 : f32
      %55 = vector.broadcast %cst_39 : f32 to vector<1x512xf32>
      %c0_40 = arith.constant 0 : index
      %c0_41 = arith.constant 0 : index
      %56 = vector.load %arg32[%c0_40, %c0_41] : memref<1x512xf32, #tpu.memory_space<vmem>>, vector<1x512xf32>
      tpu.vector_store %arg32[%c0_40, %c0_41], %55 {strides = array<i32>} : memref<1x512xf32, #tpu.memory_space<vmem>>, vector<1x512xf32>,
    } else {
    }
    %c0 = arith.constant 0 : index
    %c0_4 = arith.constant 0 : index
    %8 = vector.load %arg2[%c0, %c0_4] : memref<64x1024xbf16, #tpu.memory_space<vmem>>, vector<64x1024xbf16>
    %c0_5 = arith.constant 0 : index
    %c0_6 = arith.constant 0 : index
    %c0_7 = arith.constant 0 : index
    %9 = vector.load %arg4[%c0_5, %c0_6, %c0_7] : memref<1x1024x512xbf16, #tpu.memory_space<vmem>>, vector<1x1024x512xbf16>
    %10 = vector.shape_cast %9 : vector<1x1024x512xbf16> to vector<1024x512xbf16>
    %cst = arith.constant dense<0.000000e+00> : vector<64x512xf32>
    %11 = tpu.matmul %8, %10, %cst {dimension_numbers = #tpu.dot_dimension_numbers<[1], [0], [0], [1], [0, 0, 1, 1], [], []>} : vector<64x1024xbf16>, vector<1024x512xbf16>, vector<64x512xf32> -> vector<64x512xf32>
    %c0_8 = arith.constant 0 : index
    %c0_9 = arith.constant 0 : index
    %c0_10 = arith.constant 0 : index
    %12 = vector.load %arg5[%c0_8, %c0_9, %c0_10] : memref<1x1x512xf32, #tpu.memory_space<vmem>>, vector<1x1x512xf32>
    %13 = vector.shape_cast %12 : vector<1x1x512xf32> to vector<1x512xf32>
    %14 = vector.broadcast %13 : vector<1x512xf32> to vector<64x512xf32>
    %15 = arith.addf %11, %14 : vector<64x512xf32>
    %cst_11 = arith.constant 0.000000e+00 : f32
    %16 = vector.broadcast %cst_11 : f32 to vector<64x512xf32>
    %17 = arith.maximumf %15, %16 : vector<64x512xf32>
    %18 = arith.truncf %17 : vector<64x512xf32> to vector<64x512xbf16>
    %c0_12 = arith.constant 0 : index
    %c0_13 = arith.constant 0 : index
    %c0_14 = arith.constant 0 : index
    %19 = vector.load %arg6[%c0_12, %c0_13, %c0_14] : memref<1x512x512xbf16, #tpu.memory_space<vmem>>, vector<1x512x512xbf16>
    %20 = vector.shape_cast %19 : vector<1x512x512xbf16> to vector<512x512xbf16>
    %cst_15 = arith.constant dense<0.000000e+00> : vector<64x512xf32>
    %21 = tpu.matmul %18, %20, %cst_15 {dimension_numbers = #tpu.dot_dimension_numbers<[1], [0], [0], [1], [0, 0, 1, 1], [], []>} : vector<64x512xbf16>, vector<512x512xbf16>, vector<64x512xf32> -> vector<64x512xf32>
    %c0_16 = arith.constant 0 : index
    %c0_17 = arith.constant 0 : index
    %c0_18 = arith.constant 0 : index
    %22 = vector.load %arg7[%c0_16, %c0_17, %c0_18] : memref<1x1x512xf32, #tpu.memory_space<vmem>>, vector<1x1x512xf32>
    %23 = vector.shape_cast %22 : vector<1x1x512xf32> to vector<1x512xf32>
    %24 = vector.broadcast %23 : vector<1x512xf32> to vector<64x512xf32>
    %25 = arith.addf %21, %24 : vector<64x512xf32>
    %cst_19 = arith.constant 0.000000e+00 : f32
    %26 = vector.broadcast %cst_19 : f32 to vector<64x512xf32>
    %27 = arith.maximumf %25, %26 : vector<64x512xf32>
    %c0_20 = arith.constant 0 : index
    %c0_21 = arith.constant 0 : index
    %28 = vector.load %arg3[%c0_20, %c0_21] : memref<64x1xi32, #tpu.memory_space<vmem>>, vector<64x1xi32>
    %29 = vector.broadcast %arg0 : i32 to vector<64x1xi32>
    %30 = arith.cmpi eq, %28, %29 : vector<64x1xi32>
    %31 = arith.extui %30 : vector<64x1xi1> to vector<64x1xi32>
    %32 = arith.sitofp %31 : vector<64x1xi32> to vector<64x1xf32>
    %c0_22 = arith.constant 0 : index
    %c0_23 = arith.constant 0 : index
    %33 = vector.load %arg31[%c0_22, %c0_23] : memref<1x512xf32, #tpu.memory_space<vmem>>, vector<1x512xf32>
    %cst_24 = arith.constant dense<0.000000e+00> : vector<1x512xf32>
    %34 = tpu.matmul %32, %27, %cst_24 {dimension_numbers = #tpu.dot_dimension_numbers<[0], [0], [1], [1], [0, 1, 1, 1], [], []>} : vector<64x1xf32>, vector<64x512xf32>, vector<1x512xf32> -> vector<1x512xf32>
    %35 = arith.addf %33, %34 : vector<1x512xf32>
    %c0_25 = arith.constant 0 : index
    %c0_26 = arith.constant 0 : index
    %36 = vector.load %arg31[%c0_25, %c0_26] : memref<1x512xf32, #tpu.memory_space<vmem>>, vector<1x512xf32>
    tpu.vector_store %arg31[%c0_25, %c0_26], %35 {strides = array<i32>} : memref<1x512xf32, #tpu.memory_space<vmem>>, vector<1x512xf32>,
    %c0_27 = arith.constant 0 : index
    %c0_28 = arith.constant 0 : index
    %37 = vector.load %arg32[%c0_27, %c0_28] : memref<1x512xf32, #tpu.memory_space<vmem>>, vector<1x512xf32>
    %38 = vector.shape_cast %32 : vector<64x1xf32> to vector<1x64x1xf32>
    %cst_29 = arith.constant dense<0.000000e+00> : vector<1xf32>
    %39 = vector.multi_reduction <add>, %38, %cst_29 [1, 2] : vector<1x64x1xf32> to vector<1xf32>
    %40 = vector.shape_cast %39 : vector<1xf32> to vector<1x1x1xf32>
    %41 = vector.extract %40[0, 0, 0] : f32 from vector<1x1x1xf32>
    %42 = vector.broadcast %41 : f32 to vector<1x512xf32>
    %43 = arith.addf %37, %42 : vector<1x512xf32>
    %c0_30 = arith.constant 0 : index
    %c0_31 = arith.constant 0 : index
    %44 = vector.load %arg32[%c0_30, %c0_31] : memref<1x512xf32, #tpu.memory_space<vmem>>, vector<1x512xf32>
    tpu.vector_store %arg32[%c0_30, %c0_31], %43 {strides = array<i32>} : memref<1x512xf32, #tpu.memory_space<vmem>>, vector<1x512xf32>,
    %c0_i32_32 = arith.constant 0 : i32
    %45 = arith.cmpi eq, %arg1, %c0_i32_32 : i32
    %46 = arith.extui %45 : i1 to i32
    %c0_i32_33 = arith.constant 0 : i32
    %47 = arith.cmpi ne, %46, %c0_i32_33 : i32
    scf.if %47 {
      %c0_36 = arith.constant 0 : index
      %c0_37 = arith.constant 0 : index
      %53 = vector.load %arg31[%c0_36, %c0_37] : memref<1x512xf32, #tpu.memory_space<vmem>>, vector<1x512xf32>
      %c0_38 = arith.constant 0 : index
      %c0_39 = arith.constant 0 : index
      %54 = vector.load %arg32[%c0_38, %c0_39] : memref<1x512xf32, #tpu.memory_space<vmem>>, vector<1x512xf32>
      %cst_40 = arith.constant 1.000000e+00 : f32
      %55 = vector.broadcast %cst_40 : f32 to vector<1x512xf32>
      %56 = arith.maximumf %54, %55 : vector<1x512xf32>
      %57 = arith.divf %53, %56 : vector<1x512xf32>
      %58 = tpu.iota {dimensions = array<i32: 0>} : vector<16x1xi32>
      %59 = vector.broadcast %arg0 : i32 to vector<16x1xi32>
      %60 = arith.cmpi eq, %58, %59 : vector<16x1xi32>
      %c0_41 = arith.constant 0 : index
      %c0_42 = arith.constant 0 : index
      %61 = vector.load %arg30[%c0_41, %c0_42] : memref<16x512xf32, #tpu.memory_space<vmem>>, vector<16x512xf32>
      %62 = vector.shape_cast %60 : vector<16x1xi1> to vector<16x1xi1>
      %63 = vector.broadcast %62 : vector<16x1xi1> to vector<16x512xi1>
      %64 = vector.shape_cast %57 : vector<1x512xf32> to vector<1x512xf32>
      %65 = vector.broadcast %64 : vector<1x512xf32> to vector<16x512xf32>
      %66 = arith.select %63, %65, %61 : vector<16x512xi1>, vector<16x512xf32>
      %c0_43 = arith.constant 0 : index
      %c0_44 = arith.constant 0 : index
      %67 = vector.load %arg30[%c0_43, %c0_44] : memref<16x512xf32, #tpu.memory_space<vmem>>, vector<16x512xf32>
      tpu.vector_store %arg30[%c0_43, %c0_44], %66 {strides = array<i32>} : memref<16x512xf32, #tpu.memory_space<vmem>>, vector<16x512xf32>,
    } else {
    }
    %c9_i32 = arith.constant 9 : i32
    %48 = arith.cmpi eq, %arg0, %c9_i32 : i32
    %c0_i32_34 = arith.constant 0 : i32
    %49 = arith.cmpi eq, %arg1, %c0_i32_34 : i32
    %50 = arith.andi %48, %49 : i1
    %51 = arith.extui %50 : i1 to i32
    %c0_i32_35 = arith.constant 0 : i32
    %52 = arith.cmpi ne, %51, %c0_i32_35 : i32
    scf.if %52 {
      %c0_36 = arith.constant 0 : index
      %c0_37 = arith.constant 0 : index
      %53 = vector.load %arg30[%c0_36, %c0_37] : memref<16x512xf32, #tpu.memory_space<vmem>>, vector<16x512xf32>
      %54 = arith.truncf %53 : vector<16x512xf32> to vector<16x512xbf16>
      %c0_38 = arith.constant 0 : index
      %c0_39 = arith.constant 0 : index
      %55 = vector.load %arg9[%c0_38, %c0_39] : memref<512x512xbf16, #tpu.memory_space<vmem>>, vector<512x512xbf16>
      %cst_40 = arith.constant dense<0.000000e+00> : vector<16x512xf32>
      %56 = tpu.matmul %54, %55, %cst_40 {dimension_numbers = #tpu.dot_dimension_numbers<[1], [0], [0], [1], [0, 0, 1, 1], [], []>} : vector<16x512xbf16>, vector<512x512xbf16>, vector<16x512xf32> -> vector<16x512xf32>
      %c0_41 = arith.constant 0 : index
      %c0_42 = arith.constant 0 : index
      %57 = vector.load %arg10[%c0_41, %c0_42] : memref<1x512xf32, #tpu.memory_space<vmem>>, vector<1x512xf32>
      %58 = vector.broadcast %57 : vector<1x512xf32> to vector<16x512xf32>
      %59 = arith.addf %56, %58 : vector<16x512xf32>
      %cst_43 = arith.constant 0.000000e+00 : f32
      %60 = vector.broadcast %cst_43 : f32 to vector<16x512xf32>
      %61 = arith.maximumf %59, %60 : vector<16x512xf32>
      %62 = arith.truncf %61 : vector<16x512xf32> to vector<16x512xbf16>
      %c0_44 = arith.constant 0 : index
      %c0_45 = arith.constant 0 : index
      %63 = vector.load %arg11[%c0_44, %c0_45] : memref<512x256xbf16, #tpu.memory_space<vmem>>, vector<512x256xbf16>
      %cst_46 = arith.constant dense<0.000000e+00> : vector<16x256xf32>
      %64 = tpu.matmul %62, %63, %cst_46 {dimension_numbers = #tpu.dot_dimension_numbers<[1], [0], [0], [1], [0, 0, 1, 1], [], []>} : vector<16x512xbf16>, vector<512x256xbf16>, vector<16x256xf32> -> vector<16x256xf32>
      %c0_47 = arith.constant 0 : index
      %c0_48 = arith.constant 0 : index
      %65 = vector.load %arg12[%c0_47, %c0_48] : memref<1x256xf32, #tpu.memory_space<vmem>>, vector<1x256xf32>
      %66 = vector.broadcast %65 : vector<1x256xf32> to vector<16x256xf32>
      %67 = arith.addf %64, %66 : vector<16x256xf32>
      %68 = math.tanh %67 : vector<16x256xf32>
      %c0_49 = arith.constant 0 : index
      %c0_50 = arith.constant 0 : index
      %69 = vector.load %arg13[%c0_49, %c0_50] : memref<512x256xbf16, #tpu.memory_space<vmem>>, vector<512x256xbf16>
      %cst_51 = arith.constant dense<0.000000e+00> : vector<16x256xf32>
      %70 = tpu.matmul %62, %69, %cst_51 {dimension_numbers = #tpu.dot_dimension_numbers<[1], [0], [0], [1], [0, 0, 1, 1], [], []>} : vector<16x512xbf16>, vector<512x256xbf16>, vector<16x256xf32> -> vector<16x256xf32>
      %c0_52 = arith.constant 0 : index
      %c0_53 = arith.constant 0 : index
      %71 = vector.load %arg14[%c0_52, %c0_53] : memref<1x256xf32, #tpu.memory_space<vmem>>, vector<1x256xf32>
      %72 = vector.broadcast %71 : vector<1x256xf32> to vector<16x256xf32>
      %73 = arith.addf %70, %72 : vector<16x256xf32>
      %cst_54 = arith.constant 5.000000e-01 : f32
      %74 = vector.broadcast %cst_54 : f32 to vector<16x256xf32>
      %75 = arith.mulf %74, %73 : vector<16x256xf32>
      %76 = math.tanh %75 : vector<16x256xf32>
      %cst_55 = arith.constant 1.000000e+00 : f32
      %77 = vector.broadcast %cst_55 : f32 to vector<16x256xf32>
      %78 = arith.addf %76, %77 : vector<16x256xf32>
      %cst_56 = arith.constant 5.000000e-01 : f32
      %79 = vector.broadcast %cst_56 : f32 to vector<16x256xf32>
      %80 = arith.mulf %79, %78 : vector<16x256xf32>
      %81 = arith.mulf %68, %80 : vector<16x256xf32>
      %c0_57 = arith.constant 0 : index
      %c0_58 = arith.constant 0 : index
      %82 = vector.load %arg15[%c0_57, %c0_58] : memref<1x256xf32, #tpu.memory_space<vmem>>, vector<1x256xf32>
      %83 = vector.broadcast %82 : vector<1x256xf32> to vector<16x256xf32>
      %84 = arith.mulf %81, %83 : vector<16x256xf32>
      %cst_59 = arith.constant dense<0.000000e+00> : vector<16xf32>
      %85 = vector.multi_reduction <add>, %84, %cst_59 [1] : vector<16x256xf32> to vector<16xf32>
      %86 = vector.shape_cast %85 : vector<16xf32> to vector<16x1xf32>
      %87 = tpu.iota {dimensions = array<i32: 0>} : vector<16x1xi32>
      %c10_i32 = arith.constant 10 : i32
      %88 = vector.broadcast %c10_i32 : i32 to vector<16x1xi32>
      %89 = arith.cmpi slt, %87, %88 : vector<16x1xi32>
      %cst_60 = arith.constant -1.000000e+30 : f32
      %90 = vector.broadcast %cst_60 : f32 to vector<16x1xf32>
      %91 = arith.select %89, %86, %90 : vector<16x1xi1>, vector<16x1xf32>
      %cst_61 = arith.constant dense<0xFF800000> : vector<1xf32>
      %92 = vector.multi_reduction <maximumf>, %91, %cst_61 [0] : vector<16x1xf32> to vector<1xf32>
      %93 = vector.shape_cast %92 : vector<1xf32> to vector<1x1xf32>
      %94 = vector.broadcast %93 : vector<1x1xf32> to vector<16x1xf32>
      %95 = arith.subf %91, %94 : vector<16x1xf32>
      %96 = math.exp %95 : vector<16x1xf32>
      %cst_62 = arith.constant dense<0.000000e+00> : vector<1xf32>
      %97 = vector.multi_reduction <add>, %96, %cst_62 [0] : vector<16x1xf32> to vector<1xf32>
      %98 = vector.shape_cast %97 : vector<1xf32> to vector<1x1xf32>
      %99 = vector.broadcast %98 : vector<1x1xf32> to vector<16x1xf32>
      %100 = arith.divf %96, %99 : vector<16x1xf32>
      %cst_63 = arith.constant dense<0.000000e+00> : vector<1x512xf32>
      %101 = tpu.matmul %100, %61, %cst_63 {dimension_numbers = #tpu.dot_dimension_numbers<[0], [0], [1], [1], [0, 1, 1, 1], [], []>} : vector<16x1xf32>, vector<16x512xf32>, vector<1x512xf32> -> vector<1x512xf32>
      %102 = arith.truncf %101 : vector<1x512xf32> to vector<1x512xbf16>
      %c0_64 = arith.constant 0 : index
      %c0_65 = arith.constant 0 : index
      %103 = vector.load %arg16[%c0_64, %c0_65] : memref<512x256xbf16, #tpu.memory_space<vmem>>, vector<512x256xbf16>
      %cst_66 = arith.constant dense<0.000000e+00> : vector<1x256xf32>
      %104 = tpu.matmul %102, %103, %cst_66 {dimension_numbers = #tpu.dot_dimension_numbers<[1], [0], [0], [1], [0, 0, 1, 1], [], []>} : vector<1x512xbf16>, vector<512x256xbf16>, vector<1x256xf32> -> vector<1x256xf32>
      %c0_67 = arith.constant 0 : index
      %c0_68 = arith.constant 0 : index
      %105 = vector.load %arg17[%c0_67, %c0_68] : memref<1x256xf32, #tpu.memory_space<vmem>>, vector<1x256xf32>
      %106 = arith.addf %104, %105 : vector<1x256xf32>
      %cst_69 = arith.constant 0.000000e+00 : f32
      %107 = vector.broadcast %cst_69 : f32 to vector<1x256xf32>
      %108 = arith.maximumf %106, %107 : vector<1x256xf32>
      %c0_70 = arith.constant 0 : index
      %c0_71 = arith.constant 0 : index
      %109 = vector.load %arg8[%c0_70, %c0_71] : memref<1x128xf32, #tpu.memory_space<vmem>>, vector<1x128xf32>
      %110 = arith.truncf %109 : vector<1x128xf32> to vector<1x128xbf16>
      %c0_72 = arith.constant 0 : index
      %c0_73 = arith.constant 0 : index
      %111 = vector.load %arg18[%c0_72, %c0_73] : memref<128x256xbf16, #tpu.memory_space<vmem>>, vector<128x256xbf16>
      %cst_74 = arith.constant dense<0.000000e+00> : vector<1x256xf32>
      %112 = tpu.matmul %110, %111, %cst_74 {dimension_numbers = #tpu.dot_dimension_numbers<[1], [0], [0], [1], [0, 0, 1, 1], [], []>} : vector<1x128xbf16>, vector<128x256xbf16>, vector<1x256xf32> -> vector<1x256xf32>
      %c0_75 = arith.constant 0 : index
      %c0_76 = arith.constant 0 : index
      %113 = vector.load %arg19[%c0_75, %c0_76] : memref<1x256xf32, #tpu.memory_space<vmem>>, vector<1x256xf32>
      %114 = arith.addf %112, %113 : vector<1x256xf32>
      %cst_77 = arith.constant 0.000000e+00 : f32
      %115 = vector.broadcast %cst_77 : f32 to vector<1x256xf32>
      %116 = arith.cmpf ogt, %114, %115 : vector<1x256xf32>
      %cst_78 = arith.constant 0.000000e+00 : f32
      %117 = vector.broadcast %cst_78 : f32 to vector<1x256xf32>
      %118 = arith.minimumf %114, %117 : vector<1x256xf32>
      %119 = math.exp %118 : vector<1x256xf32>
      %cst_79 = arith.constant 1.000000e+00 : f32
      %120 = vector.broadcast %cst_79 : f32 to vector<1x256xf32>
      %121 = arith.subf %119, %120 : vector<1x256xf32>
      %122 = arith.select %116, %114, %121 : vector<1x256xi1>, vector<1x256xf32>
      %123 = arith.truncf %122 : vector<1x256xf32> to vector<1x256xbf16>
      %c0_80 = arith.constant 0 : index
      %c0_81 = arith.constant 0 : index
      %124 = vector.load %arg20[%c0_80, %c0_81] : memref<256x256xbf16, #tpu.memory_space<vmem>>, vector<256x256xbf16>
      %cst_82 = arith.constant dense<0.000000e+00> : vector<1x256xf32>
      %125 = tpu.matmul %123, %124, %cst_82 {dimension_numbers = #tpu.dot_dimension_numbers<[1], [0], [0], [1], [0, 0, 1, 1], [], []>} : vector<1x256xbf16>, vector<256x256xbf16>, vector<1x256xf32> -> vector<1x256xf32>
      %c0_83 = arith.constant 0 : index
      %c0_84 = arith.constant 0 : index
      %126 = vector.load %arg21[%c0_83, %c0_84] : memref<1x256xf32, #tpu.memory_space<vmem>>, vector<1x256xf32>
      %127 = arith.addf %125, %126 : vector<1x256xf32>
      %cst_85 = arith.constant 0.000000e+00 : f32
      %128 = vector.broadcast %cst_85 : f32 to vector<1x256xf32>
      %129 = arith.cmpf ogt, %127, %128 : vector<1x256xf32>
      %cst_86 = arith.constant 0.000000e+00 : f32
      %130 = vector.broadcast %cst_86 : f32 to vector<1x256xf32>
      %131 = arith.minimumf %127, %130 : vector<1x256xf32>
      %132 = math.exp %131 : vector<1x256xf32>
      %cst_87 = arith.constant 1.000000e+00 : f32
      %133 = vector.broadcast %cst_87 : f32 to vector<1x256xf32>
      %134 = arith.subf %132, %133 : vector<1x256xf32>
      %135 = arith.select %129, %127, %134 : vector<1x256xi1>, vector<1x256xf32>
      %136 = arith.truncf %108 : vector<1x256xf32> to vector<1x256xbf16>
      %c0_88 = arith.constant 0 : index
      %c0_89 = arith.constant 0 : index
      %137 = vector.load %arg22[%c0_88, %c0_89] : memref<256x256xbf16, #tpu.memory_space<vmem>>, vector<256x256xbf16>
      %cst_90 = arith.constant dense<0.000000e+00> : vector<1x256xf32>
      %138 = tpu.matmul %136, %137, %cst_90 {dimension_numbers = #tpu.dot_dimension_numbers<[1], [0], [0], [1], [0, 0, 1, 1], [], []>} : vector<1x256xbf16>, vector<256x256xbf16>, vector<1x256xf32> -> vector<1x256xf32>
      %139 = arith.truncf %135 : vector<1x256xf32> to vector<1x256xbf16>
      %c0_91 = arith.constant 0 : index
      %c0_92 = arith.constant 0 : index
      %140 = vector.load %arg23[%c0_91, %c0_92] : memref<256x256xbf16, #tpu.memory_space<vmem>>, vector<256x256xbf16>
      %cst_93 = arith.constant dense<0.000000e+00> : vector<1x256xf32>
      %141 = tpu.matmul %139, %140, %cst_93 {dimension_numbers = #tpu.dot_dimension_numbers<[1], [0], [0], [1], [0, 0, 1, 1], [], []>} : vector<1x256xbf16>, vector<256x256xbf16>, vector<1x256xf32> -> vector<1x256xf32>
      %142 = arith.addf %138, %141 : vector<1x256xf32>
      %c0_94 = arith.constant 0 : index
      %c0_95 = arith.constant 0 : index
      %143 = vector.load %arg24[%c0_94, %c0_95] : memref<1x256xf32, #tpu.memory_space<vmem>>, vector<1x256xf32>
      %144 = arith.addf %142, %143 : vector<1x256xf32>
      %cst_96 = arith.constant 0.000000e+00 : f32
      %145 = vector.broadcast %cst_96 : f32 to vector<1x256xf32>
      %146 = arith.maximumf %144, %145 : vector<1x256xf32>
      %147 = arith.truncf %146 : vector<1x256xf32> to vector<1x256xbf16>
      %c0_97 = arith.constant 0 : index
      %c0_98 = arith.constant 0 : index
      %148 = vector.load %arg25[%c0_97, %c0_98] : memref<256x256xbf16, #tpu.memory_space<vmem>>, vector<256x256xbf16>
      %cst_99 = arith.constant dense<0.000000e+00> : vector<1x256xf32>
      %149 = tpu.matmul %147, %148, %cst_99 {dimension_numbers = #tpu.dot_dimension_numbers<[1], [0], [0], [1], [0, 0, 1, 1], [], []>} : vector<1x256xbf16>, vector<256x256xbf16>, vector<1x256xf32> -> vector<1x256xf32>
      %c0_100 = arith.constant 0 : index
      %c0_101 = arith.constant 0 : index
      %150 = vector.load %arg26[%c0_100, %c0_101] : memref<1x256xf32, #tpu.memory_space<vmem>>, vector<1x256xf32>
      %151 = arith.addf %149, %150 : vector<1x256xf32>
      %cst_102 = arith.constant 0.000000e+00 : f32
      %152 = vector.broadcast %cst_102 : f32 to vector<1x256xf32>
      %153 = arith.maximumf %151, %152 : vector<1x256xf32>
      %154 = arith.truncf %153 : vector<1x256xf32> to vector<1x256xbf16>
      %c0_103 = arith.constant 0 : index
      %c0_104 = arith.constant 0 : index
      %155 = vector.load %arg27[%c0_103, %c0_104] : memref<256x128xbf16, #tpu.memory_space<vmem>>, vector<256x128xbf16>
      %cst_105 = arith.constant dense<0.000000e+00> : vector<1x128xf32>
      %156 = tpu.matmul %154, %155, %cst_105 {dimension_numbers = #tpu.dot_dimension_numbers<[1], [0], [0], [1], [0, 0, 1, 1], [], []>} : vector<1x256xbf16>, vector<256x128xbf16>, vector<1x128xf32> -> vector<1x128xf32>
      %c0_106 = arith.constant 0 : index
      %c0_107 = arith.constant 0 : index
      %157 = vector.load %arg28[%c0_106, %c0_107] : memref<1x128xf32, #tpu.memory_space<vmem>>, vector<1x128xf32>
      %158 = arith.addf %156, %157 : vector<1x128xf32>
      %159 = vector.shape_cast %158 : vector<1x128xf32> to vector<1x128xf32>
      %160 = vector.broadcast %159 : vector<1x128xf32> to vector<8x128xf32>
      %c0_108 = arith.constant 0 : index
      %c0_109 = arith.constant 0 : index
      %161 = vector.load %arg29[%c0_108, %c0_109] : memref<8x128xf32, #tpu.memory_space<vmem>>, vector<8x128xf32>
      tpu.vector_store %arg29[%c0_108, %c0_109], %160 {strides = array<i32>} : memref<8x128xf32, #tpu.memory_space<vmem>>, vector<8x128xf32>,
    } else {
    }
    return
  }
  func.func @transform_0(%arg0: i32, %arg1: i32) -> (i32, i32) {
    %c0_i32 = arith.constant 0 : i32
    %c0_i32_0 = arith.constant 0 : i32
    return %arg1, %c0_i32 : i32, i32
  }
  func.func @transform_1(%arg0: i32, %arg1: i32) -> (i32, i32) {
    %c0_i32 = arith.constant 0 : i32
    %c0_i32_0 = arith.constant 0 : i32
    return %arg1, %c0_i32 : i32, i32
  }
  func.func @transform_2(%arg0: i32, %arg1: i32) -> (i32, i32, i32) {
    %c0_i32 = arith.constant 0 : i32
    %c0_i32_0 = arith.constant 0 : i32
    %c0_i32_1 = arith.constant 0 : i32
    return %arg0, %c0_i32, %c0_i32_0 : i32, i32, i32
  }
  func.func @transform_3(%arg0: i32, %arg1: i32) -> (i32, i32, i32) {
    %c0_i32 = arith.constant 0 : i32
    %c0_i32_0 = arith.constant 0 : i32
    %c0_i32_1 = arith.constant 0 : i32
    return %arg0, %c0_i32, %c0_i32_0 : i32, i32, i32
  }
  func.func @transform_4(%arg0: i32, %arg1: i32) -> (i32, i32, i32) {
    %c0_i32 = arith.constant 0 : i32
    %c0_i32_0 = arith.constant 0 : i32
    %c0_i32_1 = arith.constant 0 : i32
    return %arg0, %c0_i32, %c0_i32_0 : i32, i32, i32
  }
  func.func @transform_5(%arg0: i32, %arg1: i32) -> (i32, i32, i32) {
    %c0_i32 = arith.constant 0 : i32
    %c0_i32_0 = arith.constant 0 : i32
    %c0_i32_1 = arith.constant 0 : i32
    return %arg0, %c0_i32, %c0_i32_0 : i32, i32, i32
  }
  func.func @transform_6(%arg0: i32, %arg1: i32) -> (i32, i32) {
    %c0_i32 = arith.constant 0 : i32
    %c0_i32_0 = arith.constant 0 : i32
    %c0_i32_1 = arith.constant 0 : i32
    return %c0_i32, %c0_i32_0 : i32, i32
  }
  func.func @transform_7(%arg0: i32, %arg1: i32) -> (i32, i32) {
    %c0_i32 = arith.constant 0 : i32
    %c0_i32_0 = arith.constant 0 : i32
    %c0_i32_1 = arith.constant 0 : i32
    return %c0_i32, %c0_i32_0 : i32, i32
  }
  func.func @transform_8(%arg0: i32, %arg1: i32) -> (i32, i32) {
    %c0_i32 = arith.constant 0 : i32
    %c0_i32_0 = arith.constant 0 : i32
    %c0_i32_1 = arith.constant 0 : i32
    return %c0_i32, %c0_i32_0 : i32, i32
  }
  func.func @transform_9(%arg0: i32, %arg1: i32) -> (i32, i32) {
    %c0_i32 = arith.constant 0 : i32
    %c0_i32_0 = arith.constant 0 : i32
    %c0_i32_1 = arith.constant 0 : i32
    return %c0_i32, %c0_i32_0 : i32, i32
  }
  func.func @transform_10(%arg0: i32, %arg1: i32) -> (i32, i32) {
    %c0_i32 = arith.constant 0 : i32
    %c0_i32_0 = arith.constant 0 : i32
    %c0_i32_1 = arith.constant 0 : i32
    return %c0_i32, %c0_i32_0 : i32, i32
  }
  func.func @transform_11(%arg0: i32, %arg1: i32) -> (i32, i32) {
    %c0_i32 = arith.constant 0 : i32
    %c0_i32_0 = arith.constant 0 : i32
    %c0_i32_1 = arith.constant 0 : i32
    return %c0_i32, %c0_i32_0 : i32, i32
  }
  func.func @transform_12(%arg0: i32, %arg1: i32) -> (i32, i32) {
    %c0_i32 = arith.constant 0 : i32
    %c0_i32_0 = arith.constant 0 : i32
    %c0_i32_1 = arith.constant 0 : i32
    return %c0_i32, %c0_i32_0 : i32, i32
  }
  func.func @transform_13(%arg0: i32, %arg1: i32) -> (i32, i32) {
    %c0_i32 = arith.constant 0 : i32
    %c0_i32_0 = arith.constant 0 : i32
    %c0_i32_1 = arith.constant 0 : i32
    return %c0_i32, %c0_i32_0 : i32, i32
  }
  func.func @transform_14(%arg0: i32, %arg1: i32) -> (i32, i32) {
    %c0_i32 = arith.constant 0 : i32
    %c0_i32_0 = arith.constant 0 : i32
    %c0_i32_1 = arith.constant 0 : i32
    return %c0_i32, %c0_i32_0 : i32, i32
  }
  func.func @transform_15(%arg0: i32, %arg1: i32) -> (i32, i32) {
    %c0_i32 = arith.constant 0 : i32
    %c0_i32_0 = arith.constant 0 : i32
    %c0_i32_1 = arith.constant 0 : i32
    return %c0_i32, %c0_i32_0 : i32, i32
  }
  func.func @transform_16(%arg0: i32, %arg1: i32) -> (i32, i32) {
    %c0_i32 = arith.constant 0 : i32
    %c0_i32_0 = arith.constant 0 : i32
    %c0_i32_1 = arith.constant 0 : i32
    return %c0_i32, %c0_i32_0 : i32, i32
  }
  func.func @transform_17(%arg0: i32, %arg1: i32) -> (i32, i32) {
    %c0_i32 = arith.constant 0 : i32
    %c0_i32_0 = arith.constant 0 : i32
    %c0_i32_1 = arith.constant 0 : i32
    return %c0_i32, %c0_i32_0 : i32, i32
  }
  func.func @transform_18(%arg0: i32, %arg1: i32) -> (i32, i32) {
    %c0_i32 = arith.constant 0 : i32
    %c0_i32_0 = arith.constant 0 : i32
    %c0_i32_1 = arith.constant 0 : i32
    return %c0_i32, %c0_i32_0 : i32, i32
  }
  func.func @transform_19(%arg0: i32, %arg1: i32) -> (i32, i32) {
    %c0_i32 = arith.constant 0 : i32
    %c0_i32_0 = arith.constant 0 : i32
    %c0_i32_1 = arith.constant 0 : i32
    return %c0_i32, %c0_i32_0 : i32, i32
  }
  func.func @transform_20(%arg0: i32, %arg1: i32) -> (i32, i32) {
    %c0_i32 = arith.constant 0 : i32
    %c0_i32_0 = arith.constant 0 : i32
    %c0_i32_1 = arith.constant 0 : i32
    return %c0_i32, %c0_i32_0 : i32, i32
  }
  func.func @transform_21(%arg0: i32, %arg1: i32) -> (i32, i32) {
    %c0_i32 = arith.constant 0 : i32
    %c0_i32_0 = arith.constant 0 : i32
    %c0_i32_1 = arith.constant 0 : i32
    return %c0_i32, %c0_i32_0 : i32, i32
  }
  func.func @transform_22(%arg0: i32, %arg1: i32) -> (i32, i32) {
    %c0_i32 = arith.constant 0 : i32
    %c0_i32_0 = arith.constant 0 : i32
    %c0_i32_1 = arith.constant 0 : i32
    return %c0_i32, %c0_i32_0 : i32, i32
  }
  func.func @transform_23(%arg0: i32, %arg1: i32) -> (i32, i32) {
    %c0_i32 = arith.constant 0 : i32
    %c0_i32_0 = arith.constant 0 : i32
    %c0_i32_1 = arith.constant 0 : i32
    return %c0_i32, %c0_i32_0 : i32, i32
  }
  func.func @transform_24(%arg0: i32, %arg1: i32) -> (i32, i32) {
    %c0_i32 = arith.constant 0 : i32
    %c0_i32_0 = arith.constant 0 : i32
    %c0_i32_1 = arith.constant 0 : i32
    return %c0_i32, %c0_i32_0 : i32, i32
  }
  func.func @transform_25(%arg0: i32, %arg1: i32) -> (i32, i32) {
    %c0_i32 = arith.constant 0 : i32
    %c0_i32_0 = arith.constant 0 : i32
    %c0_i32_1 = arith.constant 0 : i32
    return %c0_i32, %c0_i32_0 : i32, i32
  }
  func.func @transform_26(%arg0: i32, %arg1: i32) -> (i32, i32) {
    %c0_i32 = arith.constant 0 : i32
    %c0_i32_0 = arith.constant 0 : i32
    %c0_i32_1 = arith.constant 0 : i32
    return %c0_i32, %c0_i32_0 : i32, i32
  }
  func.func @transform_27(%arg0: i32, %arg1: i32) -> (i32, i32) {
    %c0_i32 = arith.constant 0 : i32
    %c0_i32_0 = arith.constant 0 : i32
    %c0_i32_1 = arith.constant 0 : i32
    return %c0_i32, %c0_i32_0 : i32, i32
  }
}

</mosaic_0001>

<llo_original>
// kernel: tpu_custom_call.1
$region0: #{tpu_custom_call.1}
  #allocation0 [shape = 'u32[]', space=smem, size = 0x4, offset = 0x4, fixed_abs, tag = 'smem constant byte address 0x4 - core index']
  #allocation1 [shape = 'u32[144,128]{1,0:T(1,128)}', space=vmem, size = 0x12000, scoped, tag = 'internal scratch']
  #allocation2 [shape = 'f32[16,512]{1,0:T(8,128)}', space=vmem, size = 0x8000, scoped, tag = 'scratch operand']
  #allocation3 [shape = 'f32[1,512]{1,0:T(1,128)}', space=vmem, size = 0x800, scoped, tag = 'scratch operand']
  #allocation4 [shape = 'f32[1,512]{1,0:T(1,128)}', space=vmem, size = 0x800, scoped, tag = 'scratch operand']
  %s0 = inlined_call_operand.hbm [shape: bf16[64,1024], index: 0, kind: input, shape index: {}]
  %s1 = inlined_call_operand.vmem [shape: s32[64,1], index: 1, kind: input, shape index: {}]
  %s2 = inlined_call_operand.hbm [shape: bf16[10,1024,512], index: 2, kind: input, shape index: {}]
  %s3 = inlined_call_operand.hbm [shape: f32[10,1,512], index: 3, kind: input, shape index: {}]
  %s4 = inlined_call_operand.hbm [shape: bf16[10,512,512], index: 4, kind: input, shape index: {}]
  %s5 = inlined_call_operand.hbm [shape: f32[10,1,512], index: 5, kind: input, shape index: {}]
  %s6 = inlined_call_operand.hbm [shape: f32[1,128], index: 6, kind: input, shape index: {}]
  %s7 = inlined_call_operand.hbm [shape: bf16[512,512], index: 7, kind: input, shape index: {}]
  %s8 = inlined_call_operand.hbm [shape: f32[1,512], index: 8, kind: input, shape index: {}]
  %s9 = inlined_call_operand.hbm [shape: bf16[512,256], index: 9, kind: input, shape index: {}]
  %s10 = inlined_call_operand.hbm [shape: f32[1,256], index: 10, kind: input, shape index: {}]
  %s11 = inlined_call_operand.hbm [shape: bf16[512,256], index: 11, kind: input, shape index: {}]
  %s12 = inlined_call_operand.hbm [shape: f32[1,256], index: 12, kind: input, shape index: {}]
  %s13 = inlined_call_operand.hbm [shape: f32[1,256], index: 13, kind: input, shape index: {}]
  %s14 = inlined_call_operand.hbm [shape: bf16[512,256], index: 14, kind: input, shape index: {}]
  %s15 = inlined_call_operand.hbm [shape: f32[1,256], index: 15, kind: input, shape index: {}]
  %s16 = inlined_call_operand.hbm [shape: bf16[128,256], index: 16, kind: input, shape index: {}]
  %s17 = inlined_call_operand.hbm [shape: f32[1,256], index: 17, kind: input, shape index: {}]
  %s18 = inlined_call_operand.hbm [shape: bf16[256,256], index: 18, kind: input, shape index: {}]
  %s19 = inlined_call_operand.hbm [shape: f32[1,256], index: 19, kind: input, shape index: {}]
  %s20 = inlined_call_operand.hbm [shape: bf16[256,256], index: 20, kind: input, shape index: {}]
  %s21 = inlined_call_operand.hbm [shape: bf16[256,256], index: 21, kind: input, shape index: {}]
  %s22 = inlined_call_operand.hbm [shape: f32[1,256], index: 22, kind: input, shape index: {}]
  %s23 = inlined_call_operand.hbm [shape: bf16[256,256], index: 23, kind: input, shape index: {}]
  %s24 = inlined_call_operand.hbm [shape: f32[1,256], index: 24, kind: input, shape index: {}]
  %s25 = inlined_call_operand.hbm [shape: bf16[256,128], index: 25, kind: input, shape index: {}]
  %s26 = inlined_call_operand.hbm [shape: f32[1,128], index: 26, kind: input, shape index: {}]
  %s27 = inlined_call_operand.hbm [shape: f32[8,128], index: 27, kind: output, shape index: {}]
  %s28 = sld [smem:[#allocation0]]
  $region261: #{tpu_custom_call.1} parent=0
    _
  %s30 = ssub.s32 1, %s28
  %s31 = scalar_select 0, %s30, %s28
  $region1: #{tpu_custom_call.1} parent=0
    #allocation5 [shape = 'u8[131072]{0}', space=vmem, size = 0x20000, scoped, tag = 'input window, operand 0, single buffered']
    #allocation6 [shape = 's32[2]{0}', space=sflag, size = 0x8, scoped, tag = 'scoped memory for tpu_custom_call.1']
    #allocation7 [shape = 's32[2]{0}', space=sflag, size = 0x8, scoped, tag = 'scoped memory for tpu_custom_call.1']
    #allocation8 [shape = 'u8[2097152]{0}', space=vmem, size = 0x200000, scoped, tag = 'input window, operand 2']
    #allocation9 [shape = 's32[2]{0}', space=sflag, size = 0x8, scoped, tag = 'scoped memory for tpu_custom_call.1']
    #allocation10 [shape = 'u8[4096]{0}', space=vmem, size = 0x1000, scoped, tag = 'input window, operand 3']
    #allocation11 [shape = 'u8[1048576]{0}', space=vmem, size = 0x100000, scoped, tag = 'input window, operand 4']
    #allocation12 [shape = 's32[2]{0}', space=sflag, size = 0x8, scoped, tag = 'scoped memory for tpu_custom_call.1']
    #allocation13 [shape = 'u8[4096]{0}', space=vmem, size = 0x1000, scoped, tag = 'input window, operand 5']
    #allocation14 [shape = 'u8[512]{0}', space=vmem, size = 0x400, scoped, tag = 'input window, operand 6, single buffered']
    #allocation15 [shape = 's32[1]{0}', space=sflag, size = 0x4, scoped, tag = 'scoped memory for tpu_custom_call.1']
    #allocation16 [shape = 'u8[524288]{0}', space=vmem, size = 0x80000, scoped, tag = 'input window, operand 7, single buffered']
    #allocation17 [shape = 'u8[2048]{0}', space=vmem, size = 0x800, scoped, tag = 'input window, operand 8, single buffered']
    #allocation18 [shape = 's32[1]{0}', space=sflag, size = 0x4, scoped, tag = 'scoped memory for tpu_custom_call.1']
    #allocation19 [shape = 'u8[262144]{0}', space=vmem, size = 0x40000, scoped, tag = 'input window, operand 9, single buffered']
    #allocation20 [shape = 'u8[1024]{0}', space=vmem, size = 0x400, scoped, tag = 'input window, operand 10, single buffered']
    #allocation21 [shape = 's32[1]{0}', space=sflag, size = 0x4, scoped, tag = 'scoped memory for tpu_custom_call.1']
    #allocation22 [shape = 'u8[262144]{0}', space=vmem, size = 0x40000, scoped, tag = 'input window, operand 11, single buffered']
    #allocation23 [shape = 'u8[1024]{0}', space=vmem, size = 0x400, scoped, tag = 'input window, operand 12, single buffered']
    #allocation24 [shape = 's32[1]{0}', space=sflag, size = 0x4, scoped, tag = 'scoped memory for tpu_custom_call.1']
    #allocation25 [shape = 'u8[1024]{0}', space=vmem, size = 0x400, scoped, tag = 'input window, operand 13, single buffered']
    #allocation26 [shape = 'u8[262144]{0}', space=vmem, size = 0x40000, scoped, tag = 'input window, operand 14, single buffered']
    #allocation27 [shape = 's32[1]{0}', space=sflag, size = 0x4, scoped, tag = 'scoped memory for tpu_custom_call.1']
    #allocation28 [shape = 'u8[1024]{0}', space=vmem, size = 0x400, scoped, tag = 'input window, operand 15, single buffered']
    #allocation29 [shape = 'u8[65536]{0}', space=vmem, size = 0x10000, scoped, tag = 'input window, operand 16, single buffered']
    #allocation30 [shape = 's32[1]{0}', space=sflag, size = 0x4, scoped, tag = 'scoped memory for tpu_custom_call.1']
    #allocation31 [shape = 'u8[1024]{0}', space=vmem, size = 0x400, scoped, tag = 'input window, operand 17, single buffered']
    #allocation32 [shape = 'u8[131072]{0}', space=vmem, size = 0x20000, scoped, tag = 'input window, operand 18, single buffered']
    #allocation33 [shape = 's32[1]{0}', space=sflag, size = 0x4, scoped, tag = 'scoped memory for tpu_custom_call.1']
    #allocation34 [shape = 'u8[1024]{0}', space=vmem, size = 0x400, scoped, tag = 'input window, operand 19, single buffered']
    #allocation35 [shape = 'u8[131072]{0}', space=vmem, size = 0x20000, scoped, tag = 'input window, operand 20, single buffered']
    #allocation36 [shape = 's32[1]{0}', space=sflag, size = 0x4, scoped, tag = 'scoped memory for tpu_custom_call.1']
    #allocation37 [shape = 'u8[131072]{0}', space=vmem, size = 0x20000, scoped, tag = 'input window, operand 21, single buffered']
    #allocation38 [shape = 'u8[1024]{0}', space=vmem, size = 0x400, scoped, tag = 'input window, operand 22, single buffered']
    #allocation39 [shape = 's32[1]{0}', space=sflag, size = 0x4, scoped, tag = 'scoped memory for tpu_custom_call.1']
    #allocation40 [shape = 'u8[131072]{0}', space=vmem, size = 0x20000, scoped, tag = 'input window, operand 23, single buffered']
    #allocation41 [shape = 'u8[1024]{0}', space=vmem, size = 0x400, scoped, tag = 'input window, operand 24, single buffered']
    #allocation42 [shape = 's32[1]{0}', space=sflag, size = 0x4, scoped, tag = 'scoped memory for tpu_custom_call.1']
    #allocation43 [shape = 'u8[65536]{0}', space=vmem, size = 0x10000, scoped, tag = 'input window, operand 25, single buffered']
    #allocation44 [shape = 'u8[512]{0}', space=vmem, size = 0x400, scoped, tag = 'input window, operand 26, single buffered']
    #allocation45 [shape = 's32[1]{0}', space=sflag, size = 0x4, scoped, tag = 'scoped memory for tpu_custom_call.1']
    #allocation46 [shape = 'u8[4096]{0}', space=vmem, size = 0x1000, scoped, tag = 'output window, operand 0, single buffered']
    %32 = vsyncpa [#allocation6], 0
    %33 = vsyncpa [#allocation9], 0
    %s34 = scalar_lea.sflag [#allocation9], 1
    %35 = vsyncpa %s34, 0
    %36 = vsyncpa [#allocation12], 0
    %s37 = scalar_lea.sflag [#allocation12], 1
    %38 = vsyncpa %s37, 0
    %39 = vsyncpa [#allocation15], 0
    %40 = vsyncpa [#allocation18], 0
    %41 = vsyncpa [#allocation21], 0
    %42 = vsyncpa [#allocation24], 0
    %43 = vsyncpa [#allocation27], 0
    %44 = vsyncpa [#allocation30], 0
    %45 = vsyncpa [#allocation33], 0
    %46 = vsyncpa [#allocation36], 0
    %47 = vsyncpa [#allocation39], 0
    %48 = vsyncpa [#allocation42], 0
    %49 = vsyncpa [#allocation45], 0
    %50 = vsyncpa [#allocation7], 0
    loop: start=0, step=1, limit=12
    $region2: #{tpu_custom_call.1} parent=1 // loop_pre_header
      _
    $region3: #{tpu_custom_call.1} parent=1 // loop_header
      %s52 = sphi 0, %s56
      %p53 = scmp.ge.s32.totalorder %s52, 12
      %s59 = sphi 0, %s71
      %s60 = sphi 0, %s67
      %s61 = sphi 0, %s59
      %s62 = sphi 0, %s60
      %s63 = sphi 0, %s61
      %s64 = sphi 0, %s62
      %s74 = sphi 0, %s76
      %s77 = sphi 0, %s74
      %s78 = sphi 0, %s77
      %s94 = sphi 0, %s78
      %s100 = sphi 0, %s102
      %s103 = sphi 0, %s100
      %s104 = sphi 0, %s103
      %s120 = sphi 0, %s104
      %s126 = sphi 0, %s128
      %s129 = sphi 0, %s126
      %s130 = sphi 0, %s129
      %s146 = sphi 0, %s130
      %s152 = sphi 0, %s154
      %s155 = sphi 0, %s152
      %s156 = sphi 0, %s155
      %s172 = sphi 0, %s156
      %s178 = sphi 0, %s180
      %s181 = sphi 0, %s178
      %s182 = sphi 0, %s181
      %s198 = sphi 0, %s182
      %s204 = sphi 0, %s206
      %s207 = sphi 0, %s204
      %s208 = sphi 0, %s207
      %s224 = sphi 0, %s208
      %s228 = sphi 0, %s228
      %s230 = sphi 0, %s228
      %s231 = sphi 0, %s230
      %s245 = sphi 0, %s231
      %s249 = sphi 0, %s249
      %s251 = sphi 0, %s249
      %s252 = sphi 0, %s251
      %s266 = sphi 0, %s252
      %s270 = sphi 0, %s270
      %s272 = sphi 0, %s270
      %s273 = sphi 0, %s272
      %s287 = sphi 0, %s273
      %s291 = sphi 0, %s291
      %s293 = sphi 0, %s291
      %s294 = sphi 0, %s293
      %s308 = sphi 0, %s294
      %s312 = sphi 0, %s312
      %s314 = sphi 0, %s312
      %s315 = sphi 0, %s314
      %s329 = sphi 0, %s315
      %s333 = sphi 0, %s333
      %s335 = sphi 0, %s333
      %s336 = sphi 0, %s335
      %s350 = sphi 0, %s336
      %s354 = sphi 0, %s354
      %s356 = sphi 0, %s354
      %s357 = sphi 0, %s356
      %s371 = sphi 0, %s357
      %s375 = sphi 0, %s375
      %s377 = sphi 0, %s375
      %s378 = sphi 0, %s377
      %s392 = sphi 0, %s378
      %s396 = sphi 0, %s396
      %s398 = sphi 0, %s396
      %s399 = sphi 0, %s398
      %s413 = sphi 0, %s399
      %s417 = sphi 0, %s417
      %s419 = sphi 0, %s417
      %s420 = sphi 0, %s419
      %s434 = sphi 0, %s420
      %s438 = sphi 0, %s438
      %s440 = sphi 0, %s438
      %s441 = sphi 0, %s440
      %s455 = sphi 0, %s441
      %s459 = sphi 0, %s459
      %s461 = sphi 0, %s459
      %s462 = sphi 0, %s461
      %s476 = sphi 0, %s462
      %s480 = sphi 0, %s480
      %s482 = sphi 0, %s480
      %s483 = sphi 0, %s482
      %s497 = sphi 0, %s483
      %s501 = sphi 0, %s501
      %s503 = sphi 0, %s501
      %s504 = sphi 0, %s503
      %s518 = sphi 0, %s504
      %s522 = sphi 0, %s522
      %s524 = sphi 0, %s522
      %s525 = sphi 0, %s524
      %s539 = sphi 0, %s525
      %s543 = sphi 0, %s543
      %s545 = sphi 0, %s543
      %s546 = sphi 0, %s545
      %s560 = sphi 0, %s546
      %s564 = sphi 0, %s564
      %s566 = sphi 0, %s564
      %s567 = sphi 0, %s566
      %s581 = sphi 0, %s567
      %s585 = sphi 0, %s585
      %s587 = sphi 0, %s585
      %s588 = sphi 0, %s587
      %s602 = sphi 0, %s588
      %s606 = sphi 0, %s606
      %s608 = sphi 0, %s606
      %s609 = sphi 0, %s608
      %s623 = sphi 0, %s609
      %s627 = sphi 0, %s627
      %s629 = sphi 0, %s627
      %s630 = sphi 0, %s629
      %s644 = sphi 0, %s630
      %s648 = sphi 0, %s648
      %s650 = sphi 0, %s648
      %s651 = sphi 0, %s650
      %s665 = sphi 0, %s651
      %s669 = sphi 0, %s669
      %s671 = sphi 0, %s669
      %s672 = sphi 0, %s671
      %s686 = sphi 0, %s672
    $region4: #{tpu_custom_call.1} parent=1 // loop_header_branch
      %55 = sbr.rel (%p53) target = $region8
    $region5: #{tpu_custom_call.1} parent=1 // loop_body
      %s57 = ssub.s32 %s52, 1
      %s58 = ssub.s32 %s52, 2
      %s65 = sadd.s32 1, %s60
      %p66 = scmp.ge.s32.totalorder %s65, 1
      %s67 = scalar_select %p66, 0, %s65
      %s68 = sadd.s32 1, %s59
      %s69 = scalar_select %p66, %s68, %s59
      %p70 = scmp.ge.s32.totalorder %s69, 10
      %s71 = scalar_select %p70, 0, %s69
      %s72 = ssub.s32 %s60, %s67
      %p73 = scmp.eq.s32.totalorder %s72, 0
      %s75 = sadd.s32 %s74, 1
      %s76 = scalar_select %p73, %s74, %s75
      %p79 = pneg %p73
      %p80 = scmp.eq.s32.totalorder %s52, 9
      %p81 = por %p79, %p80
      %p82 = scmp.ne.s32.totalorder %s74, %s77
      %p83 = scmp.eq.s32.totalorder %s52, 0
      %p84 = por %p82, %p83
      %p85 = scmp.ne.s32.totalorder %s74, %s77
      %p86 = scmp.eq.s32.totalorder %s57, 9
      %p87 = por %p85, %p86
      %p88 = scmp.ne.s32.totalorder %s77, %s78
      %p89 = scmp.eq.s32.totalorder %s57, 0
      %p90 = por %p88, %p89
      %p91 = scmp.ne.s32.totalorder %s77, %s78
      %p92 = scmp.eq.s32.totalorder %s58, 9
      %p93 = por %p91, %p92
      %p95 = scmp.ne.s32.totalorder %s78, %s94
      %p96 = scmp.eq.s32.totalorder %s58, 0
      %p97 = por %p95, %p96
      %s98 = ssub.s32 %s60, %s67
      %p99 = scmp.eq.s32.totalorder %s98, 0
      %s101 = sadd.s32 %s100, 1
      %s102 = scalar_select %p99, %s100, %s101
      %p105 = pneg %p99
      %p106 = scmp.eq.s32.totalorder %s52, 9
      %p107 = por %p105, %p106
      %p108 = scmp.ne.s32.totalorder %s100, %s103
      %p109 = scmp.eq.s32.totalorder %s52, 0
      %p110 = por %p108, %p109
      %p111 = scmp.ne.s32.totalorder %s100, %s103
      %p112 = scmp.eq.s32.totalorder %s57, 9
      %p113 = por %p111, %p112
      %p114 = scmp.ne.s32.totalorder %s103, %s104
      %p115 = scmp.eq.s32.totalorder %s57, 0
      %p116 = por %p114, %p115
      %p117 = scmp.ne.s32.totalorder %s103, %s104
      %p118 = scmp.eq.s32.totalorder %s58, 9
      %p119 = por %p117, %p118
      %p121 = scmp.ne.s32.totalorder %s104, %s120
      %p122 = scmp.eq.s32.totalorder %s58, 0
      %p123 = por %p121, %p122
      %s124 = ssub.s32 %s59, %s71
      %p125 = scmp.eq.s32.totalorder %s124, 0
      %s127 = sadd.s32 %s126, 1
      %s128 = scalar_select %p125, %s126, %s127
      %p131 = pneg %p125
      %p132 = scmp.eq.s32.totalorder %s52, 9
      %p133 = por %p131, %p132
      %p134 = scmp.ne.s32.totalorder %s126, %s129
      %p135 = scmp.eq.s32.totalorder %s52, 0
      %p136 = por %p134, %p135
      %p137 = scmp.ne.s32.totalorder %s126, %s129
      %p138 = scmp.eq.s32.totalorder %s57, 9
      %p139 = por %p137, %p138
      %p140 = scmp.ne.s32.totalorder %s129, %s130
      %p141 = scmp.eq.s32.totalorder %s57, 0
      %p142 = por %p140, %p141
      %p143 = scmp.ne.s32.totalorder %s129, %s130
      %p144 = scmp.eq.s32.totalorder %s58, 9
      %p145 = por %p143, %p144
      %p147 = scmp.ne.s32.totalorder %s130, %s146
      %p148 = scmp.eq.s32.totalorder %s58, 0
      %p149 = por %p147, %p148
      %s150 = ssub.s32 %s59, %s71
      %p151 = scmp.eq.s32.totalorder %s150, 0
      %s153 = sadd.s32 %s152, 1
      %s154 = scalar_select %p151, %s152, %s153
      %p157 = pneg %p151
      %p158 = scmp.eq.s32.totalorder %s52, 9
      %p159 = por %p157, %p158
      %p160 = scmp.ne.s32.totalorder %s152, %s155
      %p161 = scmp.eq.s32.totalorder %s52, 0
      %p162 = por %p160, %p161
      %p163 = scmp.ne.s32.totalorder %s152, %s155
      %p164 = scmp.eq.s32.totalorder %s57, 9
      %p165 = por %p163, %p164
      %p166 = scmp.ne.s32.totalorder %s155, %s156
      %p167 = scmp.eq.s32.totalorder %s57, 0
      %p168 = por %p166, %p167
      %p169 = scmp.ne.s32.totalorder %s155, %s156
      %p170 = scmp.eq.s32.totalorder %s58, 9
      %p171 = por %p169, %p170
      %p173 = scmp.ne.s32.totalorder %s156, %s172
      %p174 = scmp.eq.s32.totalorder %s58, 0
      %p175 = por %p173, %p174
      %s176 = ssub.s32 %s59, %s71
      %p177 = scmp.eq.s32.totalorder %s176, 0
      %s179 = sadd.s32 %s178, 1
      %s180 = scalar_select %p177, %s178, %s179
      %p183 = pneg %p177
      %p184 = scmp.eq.s32.totalorder %s52, 9
      %p185 = por %p183, %p184
      %p186 = scmp.ne.s32.totalorder %s178, %s181
      %p187 = scmp.eq.s32.totalorder %s52, 0
      %p188 = por %p186, %p187
      %p189 = scmp.ne.s32.totalorder %s178, %s181
      %p190 = scmp.eq.s32.totalorder %s57, 9
      %p191 = por %p189, %p190
      %p192 = scmp.ne.s32.totalorder %s181, %s182
      %p193 = scmp.eq.s32.totalorder %s57, 0
      %p194 = por %p192, %p193
      %p195 = scmp.ne.s32.totalorder %s181, %s182
      %p196 = scmp.eq.s32.totalorder %s58, 9
      %p197 = por %p195, %p196
      %p199 = scmp.ne.s32.totalorder %s182, %s198
      %p200 = scmp.eq.s32.totalorder %s58, 0
      %p201 = por %p199, %p200
      %s202 = ssub.s32 %s59, %s71
      %p203 = scmp.eq.s32.totalorder %s202, 0
      %s205 = sadd.s32 %s204, 1
      %s206 = scalar_select %p203, %s204, %s205
      %p209 = pneg %p203
      %p210 = scmp.eq.s32.totalorder %s52, 9
      %p211 = por %p209, %p210
      %p212 = scmp.ne.s32.totalorder %s204, %s207
      %p213 = scmp.eq.s32.totalorder %s52, 0
      %p214 = por %p212, %p213
      %p215 = scmp.ne.s32.totalorder %s204, %s207
      %p216 = scmp.eq.s32.totalorder %s57, 9
      %p217 = por %p215, %p216
      %p218 = scmp.ne.s32.totalorder %s207, %s208
      %p219 = scmp.eq.s32.totalorder %s57, 0
      %p220 = por %p218, %p219
      %p221 = scmp.ne.s32.totalorder %s207, %s208
      %p222 = scmp.eq.s32.totalorder %s58, 9
      %p223 = por %p221, %p222
      %p225 = scmp.ne.s32.totalorder %s208, %s224
      %p226 = scmp.eq.s32.totalorder %s58, 0
      %p227 = por %p225, %p226
      %s229 = sadd.s32 %s228, 1
      %p232 = scmp.eq.s32.totalorder %s52, 9
      %p233 = scmp.ne.s32.totalorder %s228, %s230
      %p234 = scmp.eq.s32.totalorder %s52, 0
      %p235 = por %p233, %p234
      %p236 = scmp.ne.s32.totalorder %s228, %s230
      %p237 = scmp.eq.s32.totalorder %s57, 9
      %p238 = por %p236, %p237
      %p239 = scmp.ne.s32.totalorder %s230, %s231
      %p240 = scmp.eq.s32.totalorder %s57, 0
      %p241 = por %p239, %p240
      %p242 = scmp.ne.s32.totalorder %s230, %s231
      %p243 = scmp.eq.s32.totalorder %s58, 9
      %p244 = por %p242, %p243
      %p246 = scmp.ne.s32.totalorder %s231, %s245
      %p247 = scmp.eq.s32.totalorder %s58, 0
      %p248 = por %p246, %p247
      %s250 = sadd.s32 %s249, 1
      %p253 = scmp.eq.s32.totalorder %s52, 9
      %p254 = scmp.ne.s32.totalorder %s249, %s251
      %p255 = scmp.eq.s32.totalorder %s52, 0
      %p256 = por %p254, %p255
      %p257 = scmp.ne.s32.totalorder %s249, %s251
      %p258 = scmp.eq.s32.totalorder %s57, 9
      %p259 = por %p257, %p258
      %p260 = scmp.ne.s32.totalorder %s251, %s252
      %p261 = scmp.eq.s32.totalorder %s57, 0
      %p262 = por %p260, %p261
      %p263 = scmp.ne.s32.totalorder %s251, %s252
      %p264 = scmp.eq.s32.totalorder %s58, 9
      %p265 = por %p263, %p264
      %p267 = scmp.ne.s32.totalorder %s252, %s266
      %p268 = scmp.eq.s32.totalorder %s58, 0
      %p269 = por %p267, %p268
      %s271 = sadd.s32 %s270, 1
      %p274 = scmp.eq.s32.totalorder %s52, 9
      %p275 = scmp.ne.s32.totalorder %s270, %s272
      %p276 = scmp.eq.s32.totalorder %s52, 0
      %p277 = por %p275, %p276
      %p278 = scmp.ne.s32.totalorder %s270, %s272
      %p279 = scmp.eq.s32.totalorder %s57, 9
      %p280 = por %p278, %p279
      %p281 = scmp.ne.s32.totalorder %s272, %s273
      %p282 = scmp.eq.s32.totalorder %s57, 0
      %p283 = por %p281, %p282
      %p284 = scmp.ne.s32.totalorder %s272, %s273
      %p285 = scmp.eq.s32.totalorder %s58, 9
      %p286 = por %p284, %p285
      %p288 = scmp.ne.s32.totalorder %s273, %s287
      %p289 = scmp.eq.s32.totalorder %s58, 0
      %p290 = por %p288, %p289
      %s292 = sadd.s32 %s291, 1
      %p295 = scmp.eq.s32.totalorder %s52, 9
      %p296 = scmp.ne.s32.totalorder %s291, %s293
      %p297 = scmp.eq.s32.totalorder %s52, 0
      %p298 = por %p296, %p297
      %p299 = scmp.ne.s32.totalorder %s291, %s293
      %p300 = scmp.eq.s32.totalorder %s57, 9
      %p301 = por %p299, %p300
      %p302 = scmp.ne.s32.totalorder %s293, %s294
      %p303 = scmp.eq.s32.totalorder %s57, 0
      %p304 = por %p302, %p303
      %p305 = scmp.ne.s32.totalorder %s293, %s294
      %p306 = scmp.eq.s32.totalorder %s58, 9
      %p307 = por %p305, %p306
      %p309 = scmp.ne.s32.totalorder %s294, %s308
      %p310 = scmp.eq.s32.totalorder %s58, 0
      %p311 = por %p309, %p310
      %s313 = sadd.s32 %s312, 1
      %p316 = scmp.eq.s32.totalorder %s52, 9
      %p317 = scmp.ne.s32.totalorder %s312, %s314
      %p318 = scmp.eq.s32.totalorder %s52, 0
      %p319 = por %p317, %p318
      %p320 = scmp.ne.s32.totalorder %s312, %s314
      %p321 = scmp.eq.s32.totalorder %s57, 9
      %p322 = por %p320, %p321
      %p323 = scmp.ne.s32.totalorder %s314, %s315
      %p324 = scmp.eq.s32.totalorder %s57, 0
      %p325 = por %p323, %p324
      %p326 = scmp.ne.s32.totalorder %s314, %s315
      %p327 = scmp.eq.s32.totalorder %s58, 9
      %p328 = por %p326, %p327
      %p330 = scmp.ne.s32.totalorder %s315, %s329
      %p331 = scmp.eq.s32.totalorder %s58, 0
      %p332 = por %p330, %p331
      %s334 = sadd.s32 %s333, 1
      %p337 = scmp.eq.s32.totalorder %s52, 9
      %p338 = scmp.ne.s32.totalorder %s333, %s335
      %p339 = scmp.eq.s32.totalorder %s52, 0
      %p340 = por %p338, %p339
      %p341 = scmp.ne.s32.totalorder %s333, %s335
      %p342 = scmp.eq.s32.totalorder %s57, 9
      %p343 = por %p341, %p342
      %p344 = scmp.ne.s32.totalorder %s335, %s336
      %p345 = scmp.eq.s32.totalorder %s57, 0
      %p346 = por %p344, %p345
      %p347 = scmp.ne.s32.totalorder %s335, %s336
      %p348 = scmp.eq.s32.totalorder %s58, 9
      %p349 = por %p347, %p348
      %p351 = scmp.ne.s32.totalorder %s336, %s350
      %p352 = scmp.eq.s32.totalorder %s58, 0
      %p353 = por %p351, %p352
      %s355 = sadd.s32 %s354, 1
      %p358 = scmp.eq.s32.totalorder %s52, 9
      %p359 = scmp.ne.s32.totalorder %s354, %s356
      %p360 = scmp.eq.s32.totalorder %s52, 0
      %p361 = por %p359, %p360
      %p362 = scmp.ne.s32.totalorder %s354, %s356
      %p363 = scmp.eq.s32.totalorder %s57, 9
      %p364 = por %p362, %p363
      %p365 = scmp.ne.s32.totalorder %s356, %s357
      %p366 = scmp.eq.s32.totalorder %s57, 0
      %p367 = por %p365, %p366
      %p368 = scmp.ne.s32.totalorder %s356, %s357
      %p369 = scmp.eq.s32.totalorder %s58, 9
      %p370 = por %p368, %p369
      %p372 = scmp.ne.s32.totalorder %s357, %s371
      %p373 = scmp.eq.s32.totalorder %s58, 0
      %p374 = por %p372, %p373
      %s376 = sadd.s32 %s375, 1
      %p379 = scmp.eq.s32.totalorder %s52, 9
      %p380 = scmp.ne.s32.totalorder %s375, %s377
      %p381 = scmp.eq.s32.totalorder %s52, 0
      %p382 = por %p380, %p381
      %p383 = scmp.ne.s32.totalorder %s375, %s377
      %p384 = scmp.eq.s32.totalorder %s57, 9
      %p385 = por %p383, %p384
      %p386 = scmp.ne.s32.totalorder %s377, %s378
      %p387 = scmp.eq.s32.totalorder %s57, 0
      %p388 = por %p386, %p387
      %p389 = scmp.ne.s32.totalorder %s377, %s378
      %p390 = scmp.eq.s32.totalorder %s58, 9
      %p391 = por %p389, %p390
      %p393 = scmp.ne.s32.totalorder %s378, %s392
      %p394 = scmp.eq.s32.totalorder %s58, 0
      %p395 = por %p393, %p394
      %s397 = sadd.s32 %s396, 1
      %p400 = scmp.eq.s32.totalorder %s52, 9
      %p401 = scmp.ne.s32.totalorder %s396, %s398
      %p402 = scmp.eq.s32.totalorder %s52, 0
      %p403 = por %p401, %p402
      %p404 = scmp.ne.s32.totalorder %s396, %s398
      %p405 = scmp.eq.s32.totalorder %s57, 9
      %p406 = por %p404, %p405
      %p407 = scmp.ne.s32.totalorder %s398, %s399
      %p408 = scmp.eq.s32.totalorder %s57, 0
      %p409 = por %p407, %p408
      %p410 = scmp.ne.s32.totalorder %s398, %s399
      %p411 = scmp.eq.s32.totalorder %s58, 9
      %p412 = por %p410, %p411
      %p414 = scmp.ne.s32.totalorder %s399, %s413
      %p415 = scmp.eq.s32.totalorder %s58, 0
      %p416 = por %p414, %p415
      %s418 = sadd.s32 %s417, 1
      %p421 = scmp.eq.s32.totalorder %s52, 9
      %p422 = scmp.ne.s32.totalorder %s417, %s419
      %p423 = scmp.eq.s32.totalorder %s52, 0
      %p424 = por %p422, %p423
      %p425 = scmp.ne.s32.totalorder %s417, %s419
      %p426 = scmp.eq.s32.totalorder %s57, 9
      %p427 = por %p425, %p426
      %p428 = scmp.ne.s32.totalorder %s419, %s420
      %p429 = scmp.eq.s32.totalorder %s57, 0
      %p430 = por %p428, %p429
      %p431 = scmp.ne.s32.totalorder %s419, %s420
      %p432 = scmp.eq.s32.totalorder %s58, 9
      %p433 = por %p431, %p432
      %p435 = scmp.ne.s32.totalorder %s420, %s434
      %p436 = scmp.eq.s32.totalorder %s58, 0
      %p437 = por %p435, %p436
      %s439 = sadd.s32 %s438, 1
      %p442 = scmp.eq.s32.totalorder %s52, 9
      %p443 = scmp.ne.s32.totalorder %s438, %s440
      %p444 = scmp.eq.s32.totalorder %s52, 0
      %p445 = por %p443, %p444
      %p446 = scmp.ne.s32.totalorder %s438, %s440
      %p447 = scmp.eq.s32.totalorder %s57, 9
      %p448 = por %p446, %p447
      %p449 = scmp.ne.s32.totalorder %s440, %s441
      %p450 = scmp.eq.s32.totalorder %s57, 0
      %p451 = por %p449, %p450
      %p452 = scmp.ne.s32.totalorder %s440, %s441
      %p453 = scmp.eq.s32.totalorder %s58, 9
      %p454 = por %p452, %p453
      %p456 = scmp.ne.s32.totalorder %s441, %s455
      %p457 = scmp.eq.s32.totalorder %s58, 0
      %p458 = por %p456, %p457
      %s460 = sadd.s32 %s459, 1
      %p463 = scmp.eq.s32.totalorder %s52, 9
      %p464 = scmp.ne.s32.totalorder %s459, %s461
      %p465 = scmp.eq.s32.totalorder %s52, 0
      %p466 = por %p464, %p465
      %p467 = scmp.ne.s32.totalorder %s459, %s461
      %p468 = scmp.eq.s32.totalorder %s57, 9
      %p469 = por %p467, %p468
      %p470 = scmp.ne.s32.totalorder %s461, %s462
      %p471 = scmp.eq.s32.totalorder %s57, 0
      %p472 = por %p470, %p471
      %p473 = scmp.ne.s32.totalorder %s461, %s462
      %p474 = scmp.eq.s32.totalorder %s58, 9
      %p475 = por %p473, %p474
      %p477 = scmp.ne.s32.totalorder %s462, %s476
      %p478 = scmp.eq.s32.totalorder %s58, 0
      %p479 = por %p477, %p478
      %s481 = sadd.s32 %s480, 1
      %p484 = scmp.eq.s32.totalorder %s52, 9
      %p485 = scmp.ne.s32.totalorder %s480, %s482
      %p486 = scmp.eq.s32.totalorder %s52, 0
      %p487 = por %p485, %p486
      %p488 = scmp.ne.s32.totalorder %s480, %s482
      %p489 = scmp.eq.s32.totalorder %s57, 9
      %p490 = por %p488, %p489
      %p491 = scmp.ne.s32.totalorder %s482, %s483
      %p492 = scmp.eq.s32.totalorder %s57, 0
      %p493 = por %p491, %p492
      %p494 = scmp.ne.s32.totalorder %s482, %s483
      %p495 = scmp.eq.s32.totalorder %s58, 9
      %p496 = por %p494, %p495
      %p498 = scmp.ne.s32.totalorder %s483, %s497
      %p499 = scmp.eq.s32.totalorder %s58, 0
      %p500 = por %p498, %p499
      %s502 = sadd.s32 %s501, 1
      %p505 = scmp.eq.s32.totalorder %s52, 9
      %p506 = scmp.ne.s32.totalorder %s501, %s503
      %p507 = scmp.eq.s32.totalorder %s52, 0
      %p508 = por %p506, %p507
      %p509 = scmp.ne.s32.totalorder %s501, %s503
      %p510 = scmp.eq.s32.totalorder %s57, 9
      %p511 = por %p509, %p510
      %p512 = scmp.ne.s32.totalorder %s503, %s504
      %p513 = scmp.eq.s32.totalorder %s57, 0
      %p514 = por %p512, %p513
      %p515 = scmp.ne.s32.totalorder %s503, %s504
      %p516 = scmp.eq.s32.totalorder %s58, 9
      %p517 = por %p515, %p516
      %p519 = scmp.ne.s32.totalorder %s504, %s518
      %p520 = scmp.eq.s32.totalorder %s58, 0
      %p521 = por %p519, %p520
      %s523 = sadd.s32 %s522, 1
      %p526 = scmp.eq.s32.totalorder %s52, 9
      %p527 = scmp.ne.s32.totalorder %s522, %s524
      %p528 = scmp.eq.s32.totalorder %s52, 0
      %p529 = por %p527, %p528
      %p530 = scmp.ne.s32.totalorder %s522, %s524
      %p531 = scmp.eq.s32.totalorder %s57, 9
      %p532 = por %p530, %p531
      %p533 = scmp.ne.s32.totalorder %s524, %s525
      %p534 = scmp.eq.s32.totalorder %s57, 0
      %p535 = por %p533, %p534
      %p536 = scmp.ne.s32.totalorder %s524, %s525
      %p537 = scmp.eq.s32.totalorder %s58, 9
      %p538 = por %p536, %p537
      %p540 = scmp.ne.s32.totalorder %s525, %s539
      %p541 = scmp.eq.s32.totalorder %s58, 0
      %p542 = por %p540, %p541
      %s544 = sadd.s32 %s543, 1
      %p547 = scmp.eq.s32.totalorder %s52, 9
      %p548 = scmp.ne.s32.totalorder %s543, %s545
      %p549 = scmp.eq.s32.totalorder %s52, 0
      %p550 = por %p548, %p549
      %p551 = scmp.ne.s32.totalorder %s543, %s545
      %p552 = scmp.eq.s32.totalorder %s57, 9
      %p553 = por %p551, %p552
      %p554 = scmp.ne.s32.totalorder %s545, %s546
      %p555 = scmp.eq.s32.totalorder %s57, 0
      %p556 = por %p554, %p555
      %p557 = scmp.ne.s32.totalorder %s545, %s546
      %p558 = scmp.eq.s32.totalorder %s58, 9
      %p559 = por %p557, %p558
      %p561 = scmp.ne.s32.totalorder %s546, %s560
      %p562 = scmp.eq.s32.totalorder %s58, 0
      %p563 = por %p561, %p562
      %s565 = sadd.s32 %s564, 1
      %p568 = scmp.eq.s32.totalorder %s52, 9
      %p569 = scmp.ne.s32.totalorder %s564, %s566
      %p570 = scmp.eq.s32.totalorder %s52, 0
      %p571 = por %p569, %p570
      %p572 = scmp.ne.s32.totalorder %s564, %s566
      %p573 = scmp.eq.s32.totalorder %s57, 9
      %p574 = por %p572, %p573
      %p575 = scmp.ne.s32.totalorder %s566, %s567
      %p576 = scmp.eq.s32.totalorder %s57, 0
      %p577 = por %p575, %p576
      %p578 = scmp.ne.s32.totalorder %s566, %s567
      %p579 = scmp.eq.s32.totalorder %s58, 9
      %p580 = por %p578, %p579
      %p582 = scmp.ne.s32.totalorder %s567, %s581
      %p583 = scmp.eq.s32.totalorder %s58, 0
      %p584 = por %p582, %p583
      %s586 = sadd.s32 %s585, 1
      %p589 = scmp.eq.s32.totalorder %s52, 9
      %p590 = scmp.ne.s32.totalorder %s585, %s587
      %p591 = scmp.eq.s32.totalorder %s52, 0
      %p592 = por %p590, %p591
      %p593 = scmp.ne.s32.totalorder %s585, %s587
      %p594 = scmp.eq.s32.totalorder %s57, 9
      %p595 = por %p593, %p594
      %p596 = scmp.ne.s32.totalorder %s587, %s588
      %p597 = scmp.eq.s32.totalorder %s57, 0
      %p598 = por %p596, %p597
      %p599 = scmp.ne.s32.totalorder %s587, %s588
      %p600 = scmp.eq.s32.totalorder %s58, 9
      %p601 = por %p599, %p600
      %p603 = scmp.ne.s32.totalorder %s588, %s602
      %p604 = scmp.eq.s32.totalorder %s58, 0
      %p605 = por %p603, %p604
      %s607 = sadd.s32 %s606, 1
      %p610 = scmp.eq.s32.totalorder %s52, 9
      %p611 = scmp.ne.s32.totalorder %s606, %s608
      %p612 = scmp.eq.s32.totalorder %s52, 0
      %p613 = por %p611, %p612
      %p614 = scmp.ne.s32.totalorder %s606, %s608
      %p615 = scmp.eq.s32.totalorder %s57, 9
      %p616 = por %p614, %p615
      %p617 = scmp.ne.s32.totalorder %s608, %s609
      %p618 = scmp.eq.s32.totalorder %s57, 0
      %p619 = por %p617, %p618
      %p620 = scmp.ne.s32.totalorder %s608, %s609
      %p621 = scmp.eq.s32.totalorder %s58, 9
      %p622 = por %p620, %p621
      %p624 = scmp.ne.s32.totalorder %s609, %s623
      %p625 = scmp.eq.s32.totalorder %s58, 0
      %p626 = por %p624, %p625
      %s628 = sadd.s32 %s627, 1
      %p631 = scmp.eq.s32.totalorder %s52, 9
      %p632 = scmp.ne.s32.totalorder %s627, %s629
      %p633 = scmp.eq.s32.totalorder %s52, 0
      %p634 = por %p632, %p633
      %p635 = scmp.ne.s32.totalorder %s627, %s629
      %p636 = scmp.eq.s32.totalorder %s57, 9
      %p637 = por %p635, %p636
      %p638 = scmp.ne.s32.totalorder %s629, %s630
      %p639 = scmp.eq.s32.totalorder %s57, 0
      %p640 = por %p638, %p639
      %p641 = scmp.ne.s32.totalorder %s629, %s630
      %p642 = scmp.eq.s32.totalorder %s58, 9
      %p643 = por %p641, %p642
      %p645 = scmp.ne.s32.totalorder %s630, %s644
      %p646 = scmp.eq.s32.totalorder %s58, 0
      %p647 = por %p645, %p646
      %s649 = sadd.s32 %s648, 1
      %p652 = scmp.eq.s32.totalorder %s52, 9
      %p653 = scmp.ne.s32.totalorder %s648, %s650
      %p654 = scmp.eq.s32.totalorder %s52, 0
      %p655 = por %p653, %p654
      %p656 = scmp.ne.s32.totalorder %s648, %s650
      %p657 = scmp.eq.s32.totalorder %s57, 9
      %p658 = por %p656, %p657
      %p659 = scmp.ne.s32.totalorder %s650, %s651
      %p660 = scmp.eq.s32.totalorder %s57, 0
      %p661 = por %p659, %p660
      %p662 = scmp.ne.s32.totalorder %s650, %s651
      %p663 = scmp.eq.s32.totalorder %s58, 9
      %p664 = por %p662, %p663
      %p666 = scmp.ne.s32.totalorder %s651, %s665
      %p667 = scmp.eq.s32.totalorder %s58, 0
      %p668 = por %p666, %p667
      %s670 = sadd.s32 %s669, 1
      %p673 = scmp.eq.s32.totalorder %s52, 9
      %p674 = scmp.ne.s32.totalorder %s669, %s671
      %p675 = scmp.eq.s32.totalorder %s52, 0
      %p676 = por %p674, %p675
      %p677 = scmp.ne.s32.totalorder %s669, %s671
      %p678 = scmp.eq.s32.totalorder %s57, 9
      %p679 = por %p677, %p678
      %p680 = scmp.ne.s32.totalorder %s671, %s672
      %p681 = scmp.eq.s32.totalorder %s57, 0
      %p682 = por %p680, %p681
      %p683 = scmp.ne.s32.totalorder %s671, %s672
      %p684 = scmp.eq.s32.totalorder %s58, 9
      %p685 = por %p683, %p684
      %p687 = scmp.ne.s32.totalorder %s672, %s686
      %p688 = scmp.eq.s32.totalorder %s58, 0
      %p689 = por %p687, %p688
      %p690 = scmp.le.s32.totalorder 1, %s52
      %p691 = scmp.lt.s32.totalorder %s52, 11
      %p692 = pnand %p690, %p691
      %p693 = pneg %p692
      // Predicated region
      $region9: #{tpu_custom_call.1} parent=5 // pred_check
        _
      $region10: #{tpu_custom_call.1} parent=5 // pred_check_branch
        %695 = sbr.rel (%p692) target = $region12
      $region11: #{tpu_custom_call.1} parent=5 // pred_region
        %s696 = ssub.s32 %s52, 1
        // Predicated region
        $region13: #{tpu_custom_call.1} parent=11 // pred_check
          %p697 = pneg %p90
        $region14: #{tpu_custom_call.1} parent=11 // pred_check_branch
          %699 = sbr.rel (%p697) target = $region16
        $region15: #{tpu_custom_call.1} parent=11 // pred_region
          %s700 = smul.u32 8, %s62
          %s702 = ssub.s32 4096, 4096
          %703 = vsyncadd [#allocation6], %s702
          %s704 = smul.addr %s700, 8
          %s705 = smul.addr %s704, 64
          %s706 = scalar_lea.hbm %s0, %s705
          %s707 = sshll.u32 [#allocation5], 4
          %s708 = int_to_ptr.vmem [resolvable:$true] %s707
          %713 = dma.hbm_to_vmem [thread:$0]  %s706, 4096, %s708, [#allocation6], 512, 512, 32
        $region16: #{tpu_custom_call.1} parent=11 // pred_fallthru
          _
        // Predicated region
        $region17: #{tpu_custom_call.1} parent=11 // pred_check
          %p714 = pneg %p116
        $region18: #{tpu_custom_call.1} parent=11 // pred_check_branch
          %716 = sbr.rel (%p714) target = $region20
        $region19: #{tpu_custom_call.1} parent=11 // pred_region
          %s717 = smul.u32 8, %s62
          %p718 = scmp.lt.s32.totalorder %s717, 7
          %s719 = scalar_select %p718, %s717, 7
          %s720 = smul.addr %s719, 8
          %s721 = scalar_lea.vmem %s1, %s720
          %s722 = smul.u32 8, %s62
        $region20: #{tpu_custom_call.1} parent=11 // pred_fallthru
          _
        // Predicated region
        $region21: #{tpu_custom_call.1} parent=11 // pred_check
          %p723 = pneg %p241
        $region22: #{tpu_custom_call.1} parent=11 // pred_check_branch
          %725 = sbr.rel (%p723) target = $region24
        $region23: #{tpu_custom_call.1} parent=11 // pred_region
          %s727 = ssub.s32 16, 16
          %728 = vsyncadd [#allocation15], %s727
          %s730 = sshll.u32 [#allocation14], 4
          %s731 = int_to_ptr.vmem [resolvable:$true] %s730
          %733 = dma.hbm_to_vmem [thread:$0]  %s6, 16, %s731, [#allocation15]
        $region24: #{tpu_custom_call.1} parent=11 // pred_fallthru
          _
        // Predicated region
        $region25: #{tpu_custom_call.1} parent=11 // pred_check
          %p734 = pneg %p262
        $region26: #{tpu_custom_call.1} parent=11 // pred_check_branch
          %736 = sbr.rel (%p734) target = $region28
        $region27: #{tpu_custom_call.1} parent=11 // pred_region
          %s738 = ssub.s32 16384, 16384
          %739 = vsyncadd [#allocation15], %s738
          %s740 = sshll.u32 [#allocation16], 4
          %s741 = int_to_ptr.vmem [resolvable:$true] %s740
          %746 = dma.hbm_to_vmem [thread:$0]  %s7, 16384, %s741, [#allocation15], 256, 256, 16
        $region28: #{tpu_custom_call.1} parent=11 // pred_fallthru
          _
        // Predicated region
        $region29: #{tpu_custom_call.1} parent=11 // pred_check
          %p747 = pneg %p283
        $region30: #{tpu_custom_call.1} parent=11 // pred_check_branch
          %749 = sbr.rel (%p747) target = $region32
        $region31: #{tpu_custom_call.1} parent=11 // pred_region
          %s751 = ssub.s32 64, 64
          %752 = vsyncadd [#allocation18], %s751
          %s754 = sshll.u32 [#allocation17], 4
          %s755 = int_to_ptr.vmem [resolvable:$true] %s754
          %757 = dma.hbm_to_vmem [thread:$0]  %s8, 64, %s755, [#allocation18]
        $region32: #{tpu_custom_call.1} parent=11 // pred_fallthru
          _
        // Predicated region
        $region33: #{tpu_custom_call.1} parent=11 // pred_check
          %p758 = pneg %p304
        $region34: #{tpu_custom_call.1} parent=11 // pred_check_branch
          %760 = sbr.rel (%p758) target = $region36
        $region35: #{tpu_custom_call.1} parent=11 // pred_region
          %s762 = ssub.s32 8192, 8192
          %763 = vsyncadd [#allocation18], %s762
          %s764 = sshll.u32 [#allocation19], 4
          %s765 = int_to_ptr.vmem [resolvable:$true] %s764
          %770 = dma.hbm_to_vmem [thread:$0]  %s9, 8192, %s765, [#allocation18], 128, 128, 8
        $region36: #{tpu_custom_call.1} parent=11 // pred_fallthru
          _
        // Predicated region
        $region37: #{tpu_custom_call.1} parent=11 // pred_check
          %p771 = pneg %p325
        $region38: #{tpu_custom_call.1} parent=11 // pred_check_branch
          %773 = sbr.rel (%p771) target = $region40
        $region39: #{tpu_custom_call.1} parent=11 // pred_region
          %s775 = ssub.s32 32, 32
          %776 = vsyncadd [#allocation21], %s775
          %s778 = sshll.u32 [#allocation20], 4
          %s779 = int_to_ptr.vmem [resolvable:$true] %s778
          %781 = dma.hbm_to_vmem [thread:$0]  %s10, 32, %s779, [#allocation21]
        $region40: #{tpu_custom_call.1} parent=11 // pred_fallthru
          _
        // Predicated region
        $region41: #{tpu_custom_call.1} parent=11 // pred_check
          %p782 = pneg %p346
        $region42: #{tpu_custom_call.1} parent=11 // pred_check_branch
          %784 = sbr.rel (%p782) target = $region44
        $region43: #{tpu_custom_call.1} parent=11 // pred_region
          %s786 = ssub.s32 8192, 8192
          %787 = vsyncadd [#allocation21], %s786
          %s788 = sshll.u32 [#allocation22], 4
          %s789 = int_to_ptr.vmem [resolvable:$true] %s788
          %794 = dma.hbm_to_vmem [thread:$0]  %s11, 8192, %s789, [#allocation21], 128, 128, 8
        $region44: #{tpu_custom_call.1} parent=11 // pred_fallthru
          _
        // Predicated region
        $region45: #{tpu_custom_call.1} parent=11 // pred_check
          %p795 = pneg %p367
        $region46: #{tpu_custom_call.1} parent=11 // pred_check_branch
          %797 = sbr.rel (%p795) target = $region48
        $region47: #{tpu_custom_call.1} parent=11 // pred_region
          %s799 = ssub.s32 32, 32
          %800 = vsyncadd [#allocation24], %s799
          %s802 = sshll.u32 [#allocation23], 4
          %s803 = int_to_ptr.vmem [resolvable:$true] %s802
          %805 = dma.hbm_to_vmem [thread:$0]  %s12, 32, %s803, [#allocation24]
        $region48: #{tpu_custom_call.1} parent=11 // pred_fallthru
          _
        // Predicated region
        $region49: #{tpu_custom_call.1} parent=11 // pred_check
          %p806 = pneg %p388
        $region50: #{tpu_custom_call.1} parent=11 // pred_check_branch
          %808 = sbr.rel (%p806) target = $region52
        $region51: #{tpu_custom_call.1} parent=11 // pred_region
          %s810 = ssub.s32 32, 32
          %811 = vsyncadd [#allocation24], %s810
          %s813 = sshll.u32 [#allocation25], 4
          %s814 = int_to_ptr.vmem [resolvable:$true] %s813
          %816 = dma.hbm_to_vmem [thread:$0]  %s13, 32, %s814, [#allocation24]
        $region52: #{tpu_custom_call.1} parent=11 // pred_fallthru
          _
        // Predicated region
        $region53: #{tpu_custom_call.1} parent=11 // pred_check
          %p817 = pneg %p409
        $region54: #{tpu_custom_call.1} parent=11 // pred_check_branch
          %819 = sbr.rel (%p817) target = $region56
        $region55: #{tpu_custom_call.1} parent=11 // pred_region
          %s821 = ssub.s32 8192, 8192
          %822 = vsyncadd [#allocation27], %s821
          %s823 = sshll.u32 [#allocation26], 4
          %s824 = int_to_ptr.vmem [resolvable:$true] %s823
          %829 = dma.hbm_to_vmem [thread:$0]  %s14, 8192, %s824, [#allocation27], 128, 128, 8
        $region56: #{tpu_custom_call.1} parent=11 // pred_fallthru
          _
        // Predicated region
        $region57: #{tpu_custom_call.1} parent=11 // pred_check
          %p830 = pneg %p430
        $region58: #{tpu_custom_call.1} parent=11 // pred_check_branch
          %832 = sbr.rel (%p830) target = $region60
        $region59: #{tpu_custom_call.1} parent=11 // pred_region
          %s834 = ssub.s32 32, 32
          %835 = vsyncadd [#allocation27], %s834
          %s837 = sshll.u32 [#allocation28], 4
          %s838 = int_to_ptr.vmem [resolvable:$true] %s837
          %840 = dma.hbm_to_vmem [thread:$0]  %s15, 32, %s838, [#allocation27]
        $region60: #{tpu_custom_call.1} parent=11 // pred_fallthru
          _
        // Predicated region
        $region61: #{tpu_custom_call.1} parent=11 // pred_check
          %p841 = pneg %p451
        $region62: #{tpu_custom_call.1} parent=11 // pred_check_branch
          %843 = sbr.rel (%p841) target = $region64
        $region63: #{tpu_custom_call.1} parent=11 // pred_region
          %s845 = ssub.s32 2048, 2048
          %846 = vsyncadd [#allocation30], %s845
          %s847 = sshll.u32 [#allocation29], 4
          %s848 = int_to_ptr.vmem [resolvable:$true] %s847
          %853 = dma.hbm_to_vmem [thread:$0]  %s16, 2048, %s848, [#allocation30], 128, 128, 8
        $region64: #{tpu_custom_call.1} parent=11 // pred_fallthru
          _
        // Predicated region
        $region65: #{tpu_custom_call.1} parent=11 // pred_check
          %p854 = pneg %p472
        $region66: #{tpu_custom_call.1} parent=11 // pred_check_branch
          %856 = sbr.rel (%p854) target = $region68
        $region67: #{tpu_custom_call.1} parent=11 // pred_region
          %s858 = ssub.s32 32, 32
          %859 = vsyncadd [#allocation30], %s858
          %s861 = sshll.u32 [#allocation31], 4
          %s862 = int_to_ptr.vmem [resolvable:$true] %s861
          %864 = dma.hbm_to_vmem [thread:$0]  %s17, 32, %s862, [#allocation30]
        $region68: #{tpu_custom_call.1} parent=11 // pred_fallthru
          _
        // Predicated region
        $region69: #{tpu_custom_call.1} parent=11 // pred_check
          %p865 = pneg %p493
        $region70: #{tpu_custom_call.1} parent=11 // pred_check_branch
          %867 = sbr.rel (%p865) target = $region72
        $region71: #{tpu_custom_call.1} parent=11 // pred_region
          %s869 = ssub.s32 4096, 4096
          %870 = vsyncadd [#allocation33], %s869
          %s871 = sshll.u32 [#allocation32], 4
          %s872 = int_to_ptr.vmem [resolvable:$true] %s871
          %877 = dma.hbm_to_vmem [thread:$0]  %s18, 4096, %s872, [#allocation33], 128, 128, 8
        $region72: #{tpu_custom_call.1} parent=11 // pred_fallthru
          _
        // Predicated region
        $region73: #{tpu_custom_call.1} parent=11 // pred_check
          %p878 = pneg %p514
        $region74: #{tpu_custom_call.1} parent=11 // pred_check_branch
          %880 = sbr.rel (%p878) target = $region76
        $region75: #{tpu_custom_call.1} parent=11 // pred_region
          %s882 = ssub.s32 32, 32
          %883 = vsyncadd [#allocation33], %s882
          %s885 = sshll.u32 [#allocation34], 4
          %s886 = int_to_ptr.vmem [resolvable:$true] %s885
          %888 = dma.hbm_to_vmem [thread:$0]  %s19, 32, %s886, [#allocation33]
        $region76: #{tpu_custom_call.1} parent=11 // pred_fallthru
          _
        // Predicated region
        $region77: #{tpu_custom_call.1} parent=11 // pred_check
          %p889 = pneg %p535
        $region78: #{tpu_custom_call.1} parent=11 // pred_check_branch
          %891 = sbr.rel (%p889) target = $region80
        $region79: #{tpu_custom_call.1} parent=11 // pred_region
          %s893 = ssub.s32 4096, 4096
          %894 = vsyncadd [#allocation36], %s893
          %s895 = sshll.u32 [#allocation35], 4
          %s896 = int_to_ptr.vmem [resolvable:$true] %s895
          %901 = dma.hbm_to_vmem [thread:$0]  %s20, 4096, %s896, [#allocation36], 128, 128, 8
        $region80: #{tpu_custom_call.1} parent=11 // pred_fallthru
          _
        // Predicated region
        $region81: #{tpu_custom_call.1} parent=11 // pred_check
          %p902 = pneg %p556
        $region82: #{tpu_custom_call.1} parent=11 // pred_check_branch
          %904 = sbr.rel (%p902) target = $region84
        $region83: #{tpu_custom_call.1} parent=11 // pred_region
          %s906 = ssub.s32 4096, 4096
          %907 = vsyncadd [#allocation36], %s906
          %s908 = sshll.u32 [#allocation37], 4
          %s909 = int_to_ptr.vmem [resolvable:$true] %s908
          %914 = dma.hbm_to_vmem [thread:$0]  %s21, 4096, %s909, [#allocation36], 128, 128, 8
        $region84: #{tpu_custom_call.1} parent=11 // pred_fallthru
          _
        // Predicated region
        $region85: #{tpu_custom_call.1} parent=11 // pred_check
          %p915 = pneg %p577
        $region86: #{tpu_custom_call.1} parent=11 // pred_check_branch
          %917 = sbr.rel (%p915) target = $region88
        $region87: #{tpu_custom_call.1} parent=11 // pred_region
          %s919 = ssub.s32 32, 32
          %920 = vsyncadd [#allocation39], %s919
          %s922 = sshll.u32 [#allocation38], 4
          %s923 = int_to_ptr.vmem [resolvable:$true] %s922
          %925 = dma.hbm_to_vmem [thread:$0]  %s22, 32, %s923, [#allocation39]
        $region88: #{tpu_custom_call.1} parent=11 // pred_fallthru
          _
        // Predicated region
        $region89: #{tpu_custom_call.1} parent=11 // pred_check
          %p926 = pneg %p598
        $region90: #{tpu_custom_call.1} parent=11 // pred_check_branch
          %928 = sbr.rel (%p926) target = $region92
        $region91: #{tpu_custom_call.1} parent=11 // pred_region
          %s930 = ssub.s32 4096, 4096
          %931 = vsyncadd [#allocation39], %s930
          %s932 = sshll.u32 [#allocation40], 4
          %s933 = int_to_ptr.vmem [resolvable:$true] %s932
          %938 = dma.hbm_to_vmem [thread:$0]  %s23, 4096, %s933, [#allocation39], 128, 128, 8
        $region92: #{tpu_custom_call.1} parent=11 // pred_fallthru
          _
        // Predicated region
        $region93: #{tpu_custom_call.1} parent=11 // pred_check
          %p939 = pneg %p619
        $region94: #{tpu_custom_call.1} parent=11 // pred_check_branch
          %941 = sbr.rel (%p939) target = $region96
        $region95: #{tpu_custom_call.1} parent=11 // pred_region
          %s943 = ssub.s32 32, 32
          %944 = vsyncadd [#allocation42], %s943
          %s946 = sshll.u32 [#allocation41], 4
          %s947 = int_to_ptr.vmem [resolvable:$true] %s946
          %949 = dma.hbm_to_vmem [thread:$0]  %s24, 32, %s947, [#allocation42]
        $region96: #{tpu_custom_call.1} parent=11 // pred_fallthru
          _
        // Predicated region
        $region97: #{tpu_custom_call.1} parent=11 // pred_check
          %p950 = pneg %p640
        $region98: #{tpu_custom_call.1} parent=11 // pred_check_branch
          %952 = sbr.rel (%p950) target = $region100
        $region99: #{tpu_custom_call.1} parent=11 // pred_region
          %s954 = ssub.s32 2048, 2048
          %955 = vsyncadd [#allocation42], %s954
          %s956 = sshll.u32 [#allocation43], 4
          %s957 = int_to_ptr.vmem [resolvable:$true] %s956
          %962 = dma.hbm_to_vmem [thread:$0]  %s25, 2048, %s957, [#allocation42], 64, 64, 4
        $region100: #{tpu_custom_call.1} parent=11 // pred_fallthru
          _
        // Predicated region
        $region101: #{tpu_custom_call.1} parent=11 // pred_check
          %p963 = pneg %p661
        $region102: #{tpu_custom_call.1} parent=11 // pred_check_branch
          %965 = sbr.rel (%p963) target = $region104
        $region103: #{tpu_custom_call.1} parent=11 // pred_region
          %s967 = ssub.s32 16, 16
          %968 = vsyncadd [#allocation45], %s967
          %s970 = sshll.u32 [#allocation44], 4
          %s971 = int_to_ptr.vmem [resolvable:$true] %s970
          %973 = dma.hbm_to_vmem [thread:$0]  %s26, 16, %s971, [#allocation45]
        $region104: #{tpu_custom_call.1} parent=11 // pred_fallthru
          _
      $region12: #{tpu_custom_call.1} parent=5 // pred_fallthru
        _
      %p974 = scmp.lt.s32.totalorder %s52, 10
      // Predicated region
      $region105: #{tpu_custom_call.1} parent=5 // pred_check
        %p975 = pneg %p974
      $region106: #{tpu_custom_call.1} parent=5 // pred_check_branch
        %977 = sbr.rel (%p975) target = $region108
      $region107: #{tpu_custom_call.1} parent=5 // pred_region
        // Predicated region
        $region109: #{tpu_custom_call.1} parent=107 // pred_check
          %p978 = pneg %p136
        $region110: #{tpu_custom_call.1} parent=107 // pred_check_branch
          %980 = sbr.rel (%p978) target = $region112
        $region111: #{tpu_custom_call.1} parent=107 // pred_region
          %s981 = sand.u32 %s52, 1
          %s982 = scalar_lea.sflag [#allocation9], %s981
          %s983 = sand.u32 %s126, 1
          %s984 = smul.addr %s983, 2048
          %s985 = scalar_lea.vmem [#allocation8], %s984
          %s987 = ssub.s32 32768, 32768
          %988 = vsyncadd %s982, %s987
          %s989 = smul.addr %s59, 512
          %s990 = smul.addr %s989, 64
          %s991 = scalar_lea.hbm %s2, %s990
          %s992 = sshll.u32 %s985, 4
          %s993 = int_to_ptr.vmem [resolvable:$true] %s992
          %998 = dma.hbm_to_vmem [thread:$0]  %s991, 32768, %s993, %s982, 256, 256, 16
        $region112: #{tpu_custom_call.1} parent=107 // pred_fallthru
          _
        // Predicated region
        $region113: #{tpu_custom_call.1} parent=107 // pred_check
          %p999 = pneg %p162
        $region114: #{tpu_custom_call.1} parent=107 // pred_check_branch
          %1001 = sbr.rel (%p999) target = $region116
        $region115: #{tpu_custom_call.1} parent=107 // pred_region
          %s1002 = sand.u32 %s52, 1
          %s1003 = scalar_lea.sflag [#allocation9], %s1002
          %s1004 = sand.u32 %s152, 1
          %s1005 = smul.addr %s1004, 4
          %s1006 = scalar_lea.vmem [#allocation10], %s1005
          %s1008 = ssub.s32 64, 64
          %1009 = vsyncadd %s1003, %s1008
          %s1010 = smul.addr %s59, 4
          %s1011 = smul.addr %s1010, 16
          %s1012 = scalar_lea.hbm %s3, %s1011
          %s1014 = sshll.u32 %s1006, 4
          %s1015 = int_to_ptr.vmem [resolvable:$true] %s1014
          %1017 = dma.hbm_to_vmem [thread:$0]  %s1012, 64, %s1015, %s1003
        $region116: #{tpu_custom_call.1} parent=107 // pred_fallthru
          _
        // Predicated region
        $region117: #{tpu_custom_call.1} parent=107 // pred_check
          %p1018 = pneg %p188
        $region118: #{tpu_custom_call.1} parent=107 // pred_check_branch
          %1020 = sbr.rel (%p1018) target = $region120
        $region119: #{tpu_custom_call.1} parent=107 // pred_region
          %s1021 = sand.u32 %s52, 1
          %s1022 = scalar_lea.sflag [#allocation12], %s1021
          %s1023 = sand.u32 %s178, 1
          %s1024 = smul.addr %s1023, 1024
          %s1025 = scalar_lea.vmem [#allocation11], %s1024
          %s1027 = ssub.s32 16384, 16384
          %1028 = vsyncadd %s1022, %s1027
          %s1029 = smul.addr %s59, 256
          %s1030 = smul.addr %s1029, 64
          %s1031 = scalar_lea.hbm %s4, %s1030
          %s1032 = sshll.u32 %s1025, 4
          %s1033 = int_to_ptr.vmem [resolvable:$true] %s1032
          %1038 = dma.hbm_to_vmem [thread:$0]  %s1031, 16384, %s1033, %s1022, 256, 256, 16
        $region120: #{tpu_custom_call.1} parent=107 // pred_fallthru
          _
        // Predicated region
        $region121: #{tpu_custom_call.1} parent=107 // pred_check
          %p1039 = pneg %p214
        $region122: #{tpu_custom_call.1} parent=107 // pred_check_branch
          %1041 = sbr.rel (%p1039) target = $region124
        $region123: #{tpu_custom_call.1} parent=107 // pred_region
          %s1042 = sand.u32 %s52, 1
          %s1043 = scalar_lea.sflag [#allocation12], %s1042
          %s1044 = sand.u32 %s204, 1
          %s1045 = smul.addr %s1044, 4
          %s1046 = scalar_lea.vmem [#allocation13], %s1045
          %s1048 = ssub.s32 64, 64
          %1049 = vsyncadd %s1043, %s1048
          %s1050 = smul.addr %s59, 4
          %s1051 = smul.addr %s1050, 16
          %s1052 = scalar_lea.hbm %s5, %s1051
          %s1054 = sshll.u32 %s1046, 4
          %s1055 = int_to_ptr.vmem [resolvable:$true] %s1054
          %1057 = dma.hbm_to_vmem [thread:$0]  %s1052, 64, %s1055, %s1043
        $region124: #{tpu_custom_call.1} parent=107 // pred_fallthru
          _
      $region108: #{tpu_custom_call.1} parent=5 // pred_fallthru
        _
      %p1058 = scmp.le.s32.totalorder 1, %s52
      %p1059 = scmp.lt.s32.totalorder %s52, 11
      %p1060 = pnand %p1058, %p1059
      %p1061 = pneg %p1060
      // Predicated region
      $region125: #{tpu_custom_call.1} parent=5 // pred_check
        _
      $region126: #{tpu_custom_call.1} parent=5 // pred_check_branch
        %1063 = sbr.rel (%p1060) target = $region128
      $region127: #{tpu_custom_call.1} parent=5 // pred_region
        %s1064 = ssub.s32 %s52, 1
        // Predicated region
        $region129: #{tpu_custom_call.1} parent=127 // pred_check
          %p1065 = pneg %p90
        $region130: #{tpu_custom_call.1} parent=127 // pred_check_branch
          %1067 = sbr.rel (%p1065) target = $region132
        $region131: #{tpu_custom_call.1} parent=127 // pred_region
          %1068 = dma.done [#allocation6], 4096
        $region132: #{tpu_custom_call.1} parent=127 // pred_fallthru
          _
        %s1069 = sand.u32 %s57, 1
        %s1070 = scalar_lea.sflag [#allocation9], %s1069
        %s1071 = sand.u32 %s129, 1
        %s1072 = smul.addr %s1071, 2048
        %s1073 = scalar_lea.vmem [#allocation8], %s1072
        // Predicated region
        $region133: #{tpu_custom_call.1} parent=127 // pred_check
          %p1074 = pneg %p142
        $region134: #{tpu_custom_call.1} parent=127 // pred_check_branch
          %1076 = sbr.rel (%p1074) target = $region136
        $region135: #{tpu_custom_call.1} parent=127 // pred_region
          %1077 = dma.done %s1070, 32768
        $region136: #{tpu_custom_call.1} parent=127 // pred_fallthru
          _
        %s1078 = sand.u32 %s57, 1
        %s1079 = scalar_lea.sflag [#allocation9], %s1078
        %s1080 = sand.u32 %s155, 1
        %s1081 = smul.addr %s1080, 4
        %s1082 = scalar_lea.vmem [#allocation10], %s1081
        // Predicated region
        $region137: #{tpu_custom_call.1} parent=127 // pred_check
          %p1083 = pneg %p168
        $region138: #{tpu_custom_call.1} parent=127 // pred_check_branch
          %1085 = sbr.rel (%p1083) target = $region140
        $region139: #{tpu_custom_call.1} parent=127 // pred_region
          %1086 = dma.done %s1079, 64
        $region140: #{tpu_custom_call.1} parent=127 // pred_fallthru
          _
        %s1087 = sand.u32 %s57, 1
        %s1088 = scalar_lea.sflag [#allocation12], %s1087
        %s1089 = sand.u32 %s181, 1
        %s1090 = smul.addr %s1089, 1024
        %s1091 = scalar_lea.vmem [#allocation11], %s1090
        // Predicated region
        $region141: #{tpu_custom_call.1} parent=127 // pred_check
          %p1092 = pneg %p194
        $region142: #{tpu_custom_call.1} parent=127 // pred_check_branch
          %1094 = sbr.rel (%p1092) target = $region144
        $region143: #{tpu_custom_call.1} parent=127 // pred_region
          %1095 = dma.done %s1088, 16384
        $region144: #{tpu_custom_call.1} parent=127 // pred_fallthru
          _
        %s1096 = sand.u32 %s57, 1
        %s1097 = scalar_lea.sflag [#allocation12], %s1096
        %s1098 = sand.u32 %s207, 1
        %s1099 = smul.addr %s1098, 4
        %s1100 = scalar_lea.vmem [#allocation13], %s1099
        // Predicated region
        $region145: #{tpu_custom_call.1} parent=127 // pred_check
          %p1101 = pneg %p220
        $region146: #{tpu_custom_call.1} parent=127 // pred_check_branch
          %1103 = sbr.rel (%p1101) target = $region148
        $region147: #{tpu_custom_call.1} parent=127 // pred_region
          %1104 = dma.done %s1097, 64
        $region148: #{tpu_custom_call.1} parent=127 // pred_fallthru
          _
        // Predicated region
        $region149: #{tpu_custom_call.1} parent=127 // pred_check
          %p1105 = pneg %p241
        $region150: #{tpu_custom_call.1} parent=127 // pred_check_branch
          %1107 = sbr.rel (%p1105) target = $region152
        $region151: #{tpu_custom_call.1} parent=127 // pred_region
          %1108 = dma.done [#allocation15], 16
        $region152: #{tpu_custom_call.1} parent=127 // pred_fallthru
          _
        // Predicated region
        $region153: #{tpu_custom_call.1} parent=127 // pred_check
          %p1109 = pneg %p262
        $region154: #{tpu_custom_call.1} parent=127 // pred_check_branch
          %1111 = sbr.rel (%p1109) target = $region156
        $region155: #{tpu_custom_call.1} parent=127 // pred_region
          %1112 = dma.done [#allocation15], 16384
        $region156: #{tpu_custom_call.1} parent=127 // pred_fallthru
          _
        // Predicated region
        $region157: #{tpu_custom_call.1} parent=127 // pred_check
          %p1113 = pneg %p283
        $region158: #{tpu_custom_call.1} parent=127 // pred_check_branch
          %1115 = sbr.rel (%p1113) target = $region160
        $region159: #{tpu_custom_call.1} parent=127 // pred_region
          %1116 = dma.done [#allocation18], 64
        $region160: #{tpu_custom_call.1} parent=127 // pred_fallthru
          _
        // Predicated region
        $region161: #{tpu_custom_call.1} parent=127 // pred_check
          %p1117 = pneg %p304
        $region162: #{tpu_custom_call.1} parent=127 // pred_check_branch
          %1119 = sbr.rel (%p1117) target = $region164
        $region163: #{tpu_custom_call.1} parent=127 // pred_region
          %1120 = dma.done [#allocation18], 8192
        $region164: #{tpu_custom_call.1} parent=127 // pred_fallthru
          _
        // Predicated region
        $region165: #{tpu_custom_call.1} parent=127 // pred_check
          %p1121 = pneg %p325
        $region166: #{tpu_custom_call.1} parent=127 // pred_check_branch
          %1123 = sbr.rel (%p1121) target = $region168
        $region167: #{tpu_custom_call.1} parent=127 // pred_region
          %1124 = dma.done [#allocation21], 32
        $region168: #{tpu_custom_call.1} parent=127 // pred_fallthru
          _
        // Predicated region
        $region169: #{tpu_custom_call.1} parent=127 // pred_check
          %p1125 = pneg %p346
        $region170: #{tpu_custom_call.1} parent=127 // pred_check_branch
          %1127 = sbr.rel (%p1125) target = $region172
        $region171: #{tpu_custom_call.1} parent=127 // pred_region
          %1128 = dma.done [#allocation21], 8192
        $region172: #{tpu_custom_call.1} parent=127 // pred_fallthru
          _
        // Predicated region
        $region173: #{tpu_custom_call.1} parent=127 // pred_check
          %p1129 = pneg %p367
        $region174: #{tpu_custom_call.1} parent=127 // pred_check_branch
          %1131 = sbr.rel (%p1129) target = $region176
        $region175: #{tpu_custom_call.1} parent=127 // pred_region
          %1132 = dma.done [#allocation24], 32
        $region176: #{tpu_custom_call.1} parent=127 // pred_fallthru
          _
        // Predicated region
        $region177: #{tpu_custom_call.1} parent=127 // pred_check
          %p1133 = pneg %p388
        $region178: #{tpu_custom_call.1} parent=127 // pred_check_branch
          %1135 = sbr.rel (%p1133) target = $region180
        $region179: #{tpu_custom_call.1} parent=127 // pred_region
          %1136 = dma.done [#allocation24], 32
        $region180: #{tpu_custom_call.1} parent=127 // pred_fallthru
          _
        // Predicated region
        $region181: #{tpu_custom_call.1} parent=127 // pred_check
          %p1137 = pneg %p409
        $region182: #{tpu_custom_call.1} parent=127 // pred_check_branch
          %1139 = sbr.rel (%p1137) target = $region184
        $region183: #{tpu_custom_call.1} parent=127 // pred_region
          %1140 = dma.done [#allocation27], 8192
        $region184: #{tpu_custom_call.1} parent=127 // pred_fallthru
          _
        // Predicated region
        $region185: #{tpu_custom_call.1} parent=127 // pred_check
          %p1141 = pneg %p430
        $region186: #{tpu_custom_call.1} parent=127 // pred_check_branch
          %1143 = sbr.rel (%p1141) target = $region188
        $region187: #{tpu_custom_call.1} parent=127 // pred_region
          %1144 = dma.done [#allocation27], 32
        $region188: #{tpu_custom_call.1} parent=127 // pred_fallthru
          _
        // Predicated region
        $region189: #{tpu_custom_call.1} parent=127 // pred_check
          %p1145 = pneg %p451
        $region190: #{tpu_custom_call.1} parent=127 // pred_check_branch
          %1147 = sbr.rel (%p1145) target = $region192
        $region191: #{tpu_custom_call.1} parent=127 // pred_region
          %1148 = dma.done [#allocation30], 2048
        $region192: #{tpu_custom_call.1} parent=127 // pred_fallthru
          _
        // Predicated region
        $region193: #{tpu_custom_call.1} parent=127 // pred_check
          %p1149 = pneg %p472
        $region194: #{tpu_custom_call.1} parent=127 // pred_check_branch
          %1151 = sbr.rel (%p1149) target = $region196
        $region195: #{tpu_custom_call.1} parent=127 // pred_region
          %1152 = dma.done [#allocation30], 32
        $region196: #{tpu_custom_call.1} parent=127 // pred_fallthru
          _
        // Predicated region
        $region197: #{tpu_custom_call.1} parent=127 // pred_check
          %p1153 = pneg %p493
        $region198: #{tpu_custom_call.1} parent=127 // pred_check_branch
          %1155 = sbr.rel (%p1153) target = $region200
        $region199: #{tpu_custom_call.1} parent=127 // pred_region
          %1156 = dma.done [#allocation33], 4096
        $region200: #{tpu_custom_call.1} parent=127 // pred_fallthru
          _
        // Predicated region
        $region201: #{tpu_custom_call.1} parent=127 // pred_check
          %p1157 = pneg %p514
        $region202: #{tpu_custom_call.1} parent=127 // pred_check_branch
          %1159 = sbr.rel (%p1157) target = $region204
        $region203: #{tpu_custom_call.1} parent=127 // pred_region
          %1160 = dma.done [#allocation33], 32
        $region204: #{tpu_custom_call.1} parent=127 // pred_fallthru
          _
        // Predicated region
        $region205: #{tpu_custom_call.1} parent=127 // pred_check
          %p1161 = pneg %p535
        $region206: #{tpu_custom_call.1} parent=127 // pred_check_branch
          %1163 = sbr.rel (%p1161) target = $region208
        $region207: #{tpu_custom_call.1} parent=127 // pred_region
          %1164 = dma.done [#allocation36], 4096
        $region208: #{tpu_custom_call.1} parent=127 // pred_fallthru
          _
        // Predicated region
        $region209: #{tpu_custom_call.1} parent=127 // pred_check
          %p1165 = pneg %p556
        $region210: #{tpu_custom_call.1} parent=127 // pred_check_branch
          %1167 = sbr.rel (%p1165) target = $region212
        $region211: #{tpu_custom_call.1} parent=127 // pred_region
          %1168 = dma.done [#allocation36], 4096
        $region212: #{tpu_custom_call.1} parent=127 // pred_fallthru
          _
        // Predicated region
        $region213: #{tpu_custom_call.1} parent=127 // pred_check
          %p1169 = pneg %p577
        $region214: #{tpu_custom_call.1} parent=127 // pred_check_branch
          %1171 = sbr.rel (%p1169) target = $region216
        $region215: #{tpu_custom_call.1} parent=127 // pred_region
          %1172 = dma.done [#allocation39], 32
        $region216: #{tpu_custom_call.1} parent=127 // pred_fallthru
          _
        // Predicated region
        $region217: #{tpu_custom_call.1} parent=127 // pred_check
          %p1173 = pneg %p598
        $region218: #{tpu_custom_call.1} parent=127 // pred_check_branch
          %1175 = sbr.rel (%p1173) target = $region220
        $region219: #{tpu_custom_call.1} parent=127 // pred_region
          %1176 = dma.done [#allocation39], 4096
        $region220: #{tpu_custom_call.1} parent=127 // pred_fallthru
          _
        // Predicated region
        $region221: #{tpu_custom_call.1} parent=127 // pred_check
          %p1177 = pneg %p619
        $region222: #{tpu_custom_call.1} parent=127 // pred_check_branch
          %1179 = sbr.rel (%p1177) target = $region224
        $region223: #{tpu_custom_call.1} parent=127 // pred_region
          %1180 = dma.done [#allocation42], 32
        $region224: #{tpu_custom_call.1} parent=127 // pred_fallthru
          _
        // Predicated region
        $region225: #{tpu_custom_call.1} parent=127 // pred_check
          %p1181 = pneg %p640
        $region226: #{tpu_custom_call.1} parent=127 // pred_check_branch
          %1183 = sbr.rel (%p1181) target = $region228
        $region227: #{tpu_custom_call.1} parent=127 // pred_region
          %1184 = dma.done [#allocation42], 2048
        $region228: #{tpu_custom_call.1} parent=127 // pred_fallthru
          _
        // Predicated region
        $region229: #{tpu_custom_call.1} parent=127 // pred_check
          %p1185 = pneg %p661
        $region230: #{tpu_custom_call.1} parent=127 // pred_check_branch
          %1187 = sbr.rel (%p1185) target = $region232
        $region231: #{tpu_custom_call.1} parent=127 // pred_region
          %1188 = dma.done [#allocation45], 16
        $region232: #{tpu_custom_call.1} parent=127 // pred_fallthru
          _
        %p1189 = pneg %p90
        %p1190 = pneg %p87
        %s1191 = smul.u32 8, %s62
        %p1192 = scmp.lt.s32.totalorder %s1191, 7
        %s1193 = scalar_select %p1192, %s1191, 7
        %s1194 = smul.addr %s1193, 8
        %s1195 = scalar_lea.vmem %s1, %s1194
        %p1196 = pneg %p116
        %p1197 = pneg %p113
        %s1198 = sand.u32 %s57, 1
        %s1199 = scalar_lea.sflag [#allocation9], %s1198
        %s1200 = sand.u32 %s129, 1
        %s1201 = smul.addr %s1200, 2048
        %s1202 = scalar_lea.vmem [#allocation8], %s1201
        %p1203 = pneg %p142
        %p1204 = pneg %p139
        %s1205 = sand.u32 %s57, 1
        %s1206 = scalar_lea.sflag [#allocation9], %s1205
        %s1207 = sand.u32 %s155, 1
        %s1208 = smul.addr %s1207, 4
        %s1209 = scalar_lea.vmem [#allocation10], %s1208
        %p1210 = pneg %p168
        %p1211 = pneg %p165
        %s1212 = sand.u32 %s57, 1
        %s1213 = scalar_lea.sflag [#allocation12], %s1212
        %s1214 = sand.u32 %s181, 1
        %s1215 = smul.addr %s1214, 1024
        %s1216 = scalar_lea.vmem [#allocation11], %s1215
        %p1217 = pneg %p194
        %p1218 = pneg %p191
        %s1219 = sand.u32 %s57, 1
        %s1220 = scalar_lea.sflag [#allocation12], %s1219
        %s1221 = sand.u32 %s207, 1
        %s1222 = smul.addr %s1221, 4
        %s1223 = scalar_lea.vmem [#allocation13], %s1222
        %p1224 = pneg %p220
        %p1225 = pneg %p217
        %p1226 = pneg %p241
        %p1227 = pneg %p238
        %p1228 = pneg %p262
        %p1229 = pneg %p259
        %p1230 = pneg %p283
        %p1231 = pneg %p280
        %p1232 = pneg %p304
        %p1233 = pneg %p301
        %p1234 = pneg %p325
        %p1235 = pneg %p322
        %p1236 = pneg %p346
        %p1237 = pneg %p343
        %p1238 = pneg %p367
        %p1239 = pneg %p364
        %p1240 = pneg %p388
        %p1241 = pneg %p385
        %p1242 = pneg %p409
        %p1243 = pneg %p406
        %p1244 = pneg %p430
        %p1245 = pneg %p427
        %p1246 = pneg %p451
        %p1247 = pneg %p448
        %p1248 = pneg %p472
        %p1249 = pneg %p469
        %p1250 = pneg %p493
        %p1251 = pneg %p490
        %p1252 = pneg %p514
        %p1253 = pneg %p511
        %p1254 = pneg %p535
        %p1255 = pneg %p532
        %p1256 = pneg %p556
        %p1257 = pneg %p553
        %p1258 = pneg %p577
        %p1259 = pneg %p574
        %p1260 = pneg %p598
        %p1261 = pneg %p595
        %p1262 = pneg %p619
        %p1263 = pneg %p616
        %p1264 = pneg %p640
        %p1265 = pneg %p637
        %p1266 = pneg %p661
        %p1267 = pneg %p658
        %p1268 = pneg %p682
        %p1269 = pneg %p679
        %s1270 = smul.u32 8, %s62
        %s1271 = smul.u32 8, %s62
        %p1272 = scmp.lt.s32.totalorder %s1271, 7
        %s1273 = scalar_select %p1272, %s1271, 7
        %s1274 = smul.addr %s1273, 8
        %s1275 = scalar_lea.vmem %s1, %s1274
        %s1276 = smul.u32 8, %s62
        %p1278 = scmp.eq.s32.totalorder %s61, 0
        %p1279 = scmp.eq.s32.totalorder %s62, 0
        %p1280 = pnand %p1278, %p1279
        %p1281 = pneg %p1280
        // Predicated region
        $region233: #{tpu_custom_call.1} parent=127 // pred_check
          _
        $region234: #{tpu_custom_call.1} parent=127 // pred_check_branch
          %1283 = sbr.rel (%p1280) target = $region236
        $region235: #{tpu_custom_call.1} parent=127 // pred_region
          %1284 = vst [vmem:[#allocation2] sm:$0xff] 0.0
          %1285 = vst [vmem:[#allocation2 + $0x8] sm:$0xff] 0.0
          %1286 = vst [vmem:[#allocation2 + $0x10] sm:$0xff] 0.0
          %1287 = vst [vmem:[#allocation2 + $0x18] sm:$0xff] 0.0
          %1288 = vst [vmem:[#allocation2 + $0x20] sm:$0xff] 0.0
          %1289 = vst [vmem:[#allocation2 + $0x28] sm:$0xff] 0.0
          %1290 = vst [vmem:[#allocation2 + $0x30] sm:$0xff] 0.0
          %1291 = vst [vmem:[#allocation2 + $0x38] sm:$0xff] 0.0
        $region236: #{tpu_custom_call.1} parent=127 // pred_fallthru
          _
        // Predicated region
        $region237: #{tpu_custom_call.1} parent=127 // pred_check
          %p1292 = pneg %p1279
        $region238: #{tpu_custom_call.1} parent=127 // pred_check_branch
          %1294 = sbr.rel (%p1292) target = $region240
        $region239: #{tpu_custom_call.1} parent=127 // pred_region
          %v1295 = vlaneseq
          %vm1296 = vcmp.ge.s32.totalorder %v1295, 0
          %vm1297 = vcmp.lt.s32.totalorder %v1295, 512
          %vm1298 = vmand %vm1296, %vm1297
          %1299 = vst.msk [vmem:[#allocation3] sm:$0xf] %vm1298, 0.0
          %1300 = vst.msk [vmem:[#allocation4] sm:$0xf] %vm1298, 0.0
        $region240: #{tpu_custom_call.1} parent=127 // pred_fallthru
          _
        %v1301 = vld [vmem:[#allocation5] sm:$0xff]
        %v1302 = vld [vmem:[#allocation5 + $0x8] sm:$0xff]
        %v1303 = vld [vmem:[#allocation5 + $0x10] sm:$0xff]
        %v1304 = vld [vmem:[#allocation5 + $0x18] sm:$0xff]
        %v1305 = vld [vmem:[#allocation5 + $0x20] sm:$0xff]
        %v1306 = vld [vmem:[#allocation5 + $0x28] sm:$0xff]
        %v1307 = vld [vmem:[#allocation5 + $0x30] sm:$0xff]
        %v1308 = vld [vmem:[#allocation5 + $0x38] sm:$0xff]
        %v1309 = vld [vmem:[#allocation5 + $0x40] sm:$0xff]
        %v1310 = vld [vmem:[#allocation5 + $0x48] sm:$0xff]
        %v1311 = vld [vmem:[#allocation5 + $0x50] sm:$0xff]
        %v1312 = vld [vmem:[#allocation5 + $0x58] sm:$0xff]
        %v1313 = vld [vmem:[#allocation5 + $0x60] sm:$0xff]
        %v1314 = vld [vmem:[#allocation5 + $0x68] sm:$0xff]
        %v1315 = vld [vmem:[#allocation5 + $0x70] sm:$0xff]
        %v1316 = vld [vmem:[#allocation5 + $0x78] sm:$0xff]
        %v1317 = vld [vmem:[#allocation5 + $0x80] sm:$0xff]
        %v1318 = vld [vmem:[#allocation5 + $0x88] sm:$0xff]
        %v1319 = vld [vmem:[#allocation5 + $0x90] sm:$0xff]
        %v1320 = vld [vmem:[#allocation5 + $0x98] sm:$0xff]
        %v1321 = vld [vmem:[#allocation5 + $0xa0] sm:$0xff]
        %v1322 = vld [vmem:[#allocation5 + $0xa8] sm:$0xff]
        %v1323 = vld [vmem:[#allocation5 + $0xb0] sm:$0xff]
        %v1324 = vld [vmem:[#allocation5 + $0xb8] sm:$0xff]
        %v1325 = vld [vmem:[#allocation5 + $0xc0] sm:$0xff]
        %v1326 = vld [vmem:[#allocation5 + $0xc8] sm:$0xff]
        %v1327 = vld [vmem:[#allocation5 + $0xd0] sm:$0xff]
        %v1328 = vld [vmem:[#allocation5 + $0xd8] sm:$0xff]
        %v1329 = vld [vmem:[#allocation5 + $0xe0] sm:$0xff]
        %v1330 = vld [vmem:[#allocation5 + $0xe8] sm:$0xff]
        %v1331 = vld [vmem:[#allocation5 + $0xf0] sm:$0xff]
        %v1332 = vld [vmem:[#allocation5 + $0xf8] sm:$0xff]
        %v1333 = vld [vmem:[%s1073] sm:$0xff]
        %v1334 = vld [vmem:[%s1073 + $0x8] sm:$0xff]
        %v1335 = vld [vmem:[%s1073 + $0x10] sm:$0xff]
        %v1336 = vld [vmem:[%s1073 + $0x18] sm:$0xff]
        %v1337 = vld [vmem:[%s1073 + $0x20] sm:$0xff]
        %v1338 = vld [vmem:[%s1073 + $0x28] sm:$0xff]
        %v1339 = vld [vmem:[%s1073 + $0x30] sm:$0xff]
        %v1340 = vld [vmem:[%s1073 + $0x38] sm:$0xff]
        %v1341 = vld [vmem:[%s1073 + $0x40] sm:$0xff]
        %v1342 = vld [vmem:[%s1073 + $0x48] sm:$0xff]
        %v1343 = vld [vmem:[%s1073 + $0x50] sm:$0xff]
        %v1344 = vld [vmem:[%s1073 + $0x58] sm:$0xff]
        %v1345 = vld [vmem:[%s1073 + $0x60] sm:$0xff]
        %v1346 = vld [vmem:[%s1073 + $0x68] sm:$0xff]
        %v1347 = vld [vmem:[%s1073 + $0x70] sm:$0xff]
        %v1348 = vld [vmem:[%s1073 + $0x78] sm:$0xff]
        %v1349 = vld [vmem:[%s1073 + $0x80] sm:$0xff]
        %v1350 = vld [vmem:[%s1073 + $0x88] sm:$0xff]
        %v1351 = vld [vmem:[%s1073 + $0x90] sm:$0xff]
        %v1352 = vld [vmem:[%s1073 + $0x98] sm:$0xff]
        %v1353 = vld [vmem:[%s1073 + $0xa0] sm:$0xff]
        %v1354 = vld [vmem:[%s1073 + $0xa8] sm:$0xff]
        %v1355 = vld [vmem:[%s1073 + $0xb0] sm:$0xff]
        %v1356 = vld [vmem:[%s1073 + $0xb8] sm:$0xff]
        %v1357 = vld [vmem:[%s1073 + $0xc0] sm:$0xff]
        %v1358 = vld [vmem:[%s1073 + $0xc8] sm:$0xff]
        %v1359 = vld [vmem:[%s1073 + $0xd0] sm:$0xff]
        %v1360 = vld [vmem:[%s1073 + $0xd8] sm:$0xff]
        %v1361 = vld [vmem:[%s1073 + $0xe0] sm:$0xff]
        %v1362 = vld [vmem:[%s1073 + $0xe8] sm:$0xff]
        %v1363 = vld [vmem:[%s1073 + $0xf0] sm:$0xff]
        %v1364 = vld [vmem:[%s1073 + $0xf8] sm:$0xff]
        %v1365 = vld [vmem:[%s1073 + $0x100] sm:$0xff]
        %v1366 = vld [vmem:[%s1073 + $0x108] sm:$0xff]
        %v1367 = vld [vmem:[%s1073 + $0x110] sm:$0xff]
        %v1368 = vld [vmem:[%s1073 + $0x118] sm:$0xff]
        %v1369 = vld [vmem:[%s1073 + $0x120] sm:$0xff]
        %v1370 = vld [vmem:[%s1073 + $0x128] sm:$0xff]
        %v1371 = vld [vmem:[%s1073 + $0x130] sm:$0xff]
        %v1372 = vld [vmem:[%s1073 + $0x138] sm:$0xff]
        %v1373 = vld [vmem:[%s1073 + $0x140] sm:$0xff]
        %v1374 = vld [vmem:[%s1073 + $0x148] sm:$0xff]
        %v1375 = vld [vmem:[%s1073 + $0x150] sm:$0xff]
        %v1376 = vld [vmem:[%s1073 + $0x158] sm:$0xff]
        %v1377 = vld [vmem:[%s1073 + $0x160] sm:$0xff]
        %v1378 = vld [vmem:[%s1073 + $0x168] sm:$0xff]
        %v1379 = vld [vmem:[%s1073 + $0x170] sm:$0xff]
        %v1380 = vld [vmem:[%s1073 + $0x178] sm:$0xff]
        %v1381 = vld [vmem:[%s1073 + $0x180] sm:$0xff]
        %v1382 = vld [vmem:[%s1073 + $0x188] sm:$0xff]
        %v1383 = vld [vmem:[%s1073 + $0x190] sm:$0xff]
        %v1384 = vld [vmem:[%s1073 + $0x198] sm:$0xff]
        %v1385 = vld [vmem:[%s1073 + $0x1a0] sm:$0xff]
        %v1386 = vld [vmem:[%s1073 + $0x1a8] sm:$0xff]
        %v1387 = vld [vmem:[%s1073 + $0x1b0] sm:$0xff]
        %v1388 = vld [vmem:[%s1073 + $0x1b8] sm:$0xff]
        %v1389 = vld [vmem:[%s1073 + $0x1c0] sm:$0xff]
        %v1390 = vld [vmem:[%s1073 + $0x1c8] sm:$0xff]
        %v1391 = vld [vmem:[%s1073 + $0x1d0] sm:$0xff]
        %v1392 = vld [vmem:[%s1073 + $0x1d8] sm:$0xff]
        %v1393 = vld [vmem:[%s1073 + $0x1e0] sm:$0xff]
        %v1394 = vld [vmem:[%s1073 + $0x1e8] sm:$0xff]
        %v1395 = vld [vmem:[%s1073 + $0x1f0] sm:$0xff]
        %v1396 = vld [vmem:[%s1073 + $0x1f8] sm:$0xff]
        %v1397 = vld [vmem:[%s1073 + $0x200] sm:$0xff]
        %v1398 = vld [vmem:[%s1073 + $0x208] sm:$0xff]
        %v1399 = vld [vmem:[%s1073 + $0x210] sm:$0xff]
        %v1400 = vld [vmem:[%s1073 + $0x218] sm:$0xff]
        %v1401 = vld [vmem:[%s1073 + $0x220] sm:$0xff]
        %v1402 = vld [vmem:[%s1073 + $0x228] sm:$0xff]
        %v1403 = vld [vmem:[%s1073 + $0x230] sm:$0xff]
        %v1404 = vld [vmem:[%s1073 + $0x238] sm:$0xff]
        %v1405 = vld [vmem:[%s1073 + $0x240] sm:$0xff]
        %v1406 = vld [vmem:[%s1073 + $0x248] sm:$0xff]
        %v1407 = vld [vmem:[%s1073 + $0x250] sm:$0xff]
        %v1408 = vld [vmem:[%s1073 + $0x258] sm:$0xff]
        %v1409 = vld [vmem:[%s1073 + $0x260] sm:$0xff]
        %v1410 = vld [vmem:[%s1073 + $0x268] sm:$0xff]
        %v1411 = vld [vmem:[%s1073 + $0x270] sm:$0xff]
        %v1412 = vld [vmem:[%s1073 + $0x278] sm:$0xff]
        %v1413 = vld [vmem:[%s1073 + $0x280] sm:$0xff]
        %v1414 = vld [vmem:[%s1073 + $0x288] sm:$0xff]
        %v1415 = vld [vmem:[%s1073 + $0x290] sm:$0xff]
        %v1416 = vld [vmem:[%s1073 + $0x298] sm:$0xff]
        %v1417 = vld [vmem:[%s1073 + $0x2a0] sm:$0xff]
        %v1418 = vld [vmem:[%s1073 + $0x2a8] sm:$0xff]
        %v1419 = vld [vmem:[%s1073 + $0x2b0] sm:$0xff]
        %v1420 = vld [vmem:[%s1073 + $0x2b8] sm:$0xff]
        %v1421 = vld [vmem:[%s1073 + $0x2c0] sm:$0xff]
        %v1422 = vld [vmem:[%s1073 + $0x2c8] sm:$0xff]
        %v1423 = vld [vmem:[%s1073 + $0x2d0] sm:$0xff]
        %v1424 = vld [vmem:[%s1073 + $0x2d8] sm:$0xff]
        %v1425 = vld [vmem:[%s1073 + $0x2e0] sm:$0xff]
        %v1426 = vld [vmem:[%s1073 + $0x2e8] sm:$0xff]
        %v1427 = vld [vmem:[%s1073 + $0x2f0] sm:$0xff]
        %v1428 = vld [vmem:[%s1073 + $0x2f8] sm:$0xff]
        %v1429 = vld [vmem:[%s1073 + $0x300] sm:$0xff]
        %v1430 = vld [vmem:[%s1073 + $0x308] sm:$0xff]
        %v1431 = vld [vmem:[%s1073 + $0x310] sm:$0xff]
        %v1432 = vld [vmem:[%s1073 + $0x318] sm:$0xff]
        %v1433 = vld [vmem:[%s1073 + $0x320] sm:$0xff]
        %v1434 = vld [vmem:[%s1073 + $0x328] sm:$0xff]
        %v1435 = vld [vmem:[%s1073 + $0x330] sm:$0xff]
        %v1436 = vld [vmem:[%s1073 + $0x338] sm:$0xff]
        %v1437 = vld [vmem:[%s1073 + $0x340] sm:$0xff]
        %v1438 = vld [vmem:[%s1073 + $0x348] sm:$0xff]
        %v1439 = vld [vmem:[%s1073 + $0x350] sm:$0xff]
        %v1440 = vld [vmem:[%s1073 + $0x358] sm:$0xff]
        %v1441 = vld [vmem:[%s1073 + $0x360] sm:$0xff]
        %v1442 = vld [vmem:[%s1073 + $0x368] sm:$0xff]
        %v1443 = vld [vmem:[%s1073 + $0x370] sm:$0xff]
        %v1444 = vld [vmem:[%s1073 + $0x378] sm:$0xff]
        %v1445 = vld [vmem:[%s1073 + $0x380] sm:$0xff]
        %v1446 = vld [vmem:[%s1073 + $0x388] sm:$0xff]
        %v1447 = vld [vmem:[%s1073 + $0x390] sm:$0xff]
        %v1448 = vld [vmem:[%s1073 + $0x398] sm:$0xff]
        %v1449 = vld [vmem:[%s1073 + $0x3a0] sm:$0xff]
        %v1450 = vld [vmem:[%s1073 + $0x3a8] sm:$0xff]
        %v1451 = vld [vmem:[%s1073 + $0x3b0] sm:$0xff]
        %v1452 = vld [vmem:[%s1073 + $0x3b8] sm:$0xff]
        %v1453 = vld [vmem:[%s1073 + $0x3c0] sm:$0xff]
        %v1454 = vld [vmem:[%s1073 + $0x3c8] sm:$0xff]
        %v1455 = vld [vmem:[%s1073 + $0x3d0] sm:$0xff]
        %v1456 = vld [vmem:[%s1073 + $0x3d8] sm:$0xff]
        %v1457 = vld [vmem:[%s1073 + $0x3e0] sm:$0xff]
        %v1458 = vld [vmem:[%s1073 + $0x3e8] sm:$0xff]
        %v1459 = vld [vmem:[%s1073 + $0x3f0] sm:$0xff]
        %v1460 = vld [vmem:[%s1073 + $0x3f8] sm:$0xff]
        %v1461 = vld [vmem:[%s1073 + $0x400] sm:$0xff]
        %v1462 = vld [vmem:[%s1073 + $0x408] sm:$0xff]
        %v1463 = vld [vmem:[%s1073 + $0x410] sm:$0xff]
        %v1464 = vld [vmem:[%s1073 + $0x418] sm:$0xff]
        %v1465 = vld [vmem:[%s1073 + $0x420] sm:$0xff]
        %v1466 = vld [vmem:[%s1073 + $0x428] sm:$0xff]
        %v1467 = vld [vmem:[%s1073 + $0x430] sm:$0xff]
        %v1468 = vld [vmem:[%s1073 + $0x438] sm:$0xff]
        %v1469 = vld [vmem:[%s1073 + $0x440] sm:$0xff]
        %v1470 = vld [vmem:[%s1073 + $0x448] sm:$0xff]
        %v1471 = vld [vmem:[%s1073 + $0x450] sm:$0xff]
        %v1472 = vld [vmem:[%s1073 + $0x458] sm:$0xff]
        %v1473 = vld [vmem:[%s1073 + $0x460] sm:$0xff]
        %v1474 = vld [vmem:[%s1073 + $0x468] sm:$0xff]
        %v1475 = vld [vmem:[%s1073 + $0x470] sm:$0xff]
        %v1476 = vld [vmem:[%s1073 + $0x478] sm:$0xff]
        %v1477 = vld [vmem:[%s1073 + $0x480] sm:$0xff]
        %v1478 = vld [vmem:[%s1073 + $0x488] sm:$0xff]
        %v1479 = vld [vmem:[%s1073 + $0x490] sm:$0xff]
        %v1480 = vld [vmem:[%s1073 + $0x498] sm:$0xff]
        %v1481 = vld [vmem:[%s1073 + $0x4a0] sm:$0xff]
        %v1482 = vld [vmem:[%s1073 + $0x4a8] sm:$0xff]
        %v1483 = vld [vmem:[%s1073 + $0x4b0] sm:$0xff]
        %v1484 = vld [vmem:[%s1073 + $0x4b8] sm:$0xff]
        %v1485 = vld [vmem:[%s1073 + $0x4c0] sm:$0xff]
        %v1486 = vld [vmem:[%s1073 + $0x4c8] sm:$0xff]
        %v1487 = vld [vmem:[%s1073 + $0x4d0] sm:$0xff]
        %v1488 = vld [vmem:[%s1073 + $0x4d8] sm:$0xff]
        %v1489 = vld [vmem:[%s1073 + $0x4e0] sm:$0xff]
        %v1490 = vld [vmem:[%s1073 + $0x4e8] sm:$0xff]
        %v1491 = vld [vmem:[%s1073 + $0x4f0] sm:$0xff]
        %v1492 = vld [vmem:[%s1073 + $0x4f8] sm:$0xff]
        %v1493 = vld [vmem:[%s1073 + $0x500] sm:$0xff]
        %v1494 = vld [vmem:[%s1073 + $0x508] sm:$0xff]
        %v1495 = vld [vmem:[%s1073 + $0x510] sm:$0xff]
        %v1496 = vld [vmem:[%s1073 + $0x518] sm:$0xff]
        %v1497 = vld [vmem:[%s1073 + $0x520] sm:$0xff]
        %v1498 = vld [vmem:[%s1073 + $0x528] sm:$0xff]
        %v1499 = vld [vmem:[%s1073 + $0x530] sm:$0xff]
        %v1500 = vld [vmem:[%s1073 + $0x538] sm:$0xff]
        %v1501 = vld [vmem:[%s1073 + $0x540] sm:$0xff]
        %v1502 = vld [vmem:[%s1073 + $0x548] sm:$0xff]
        %v1503 = vld [vmem:[%s1073 + $0x550] sm:$0xff]
        %v1504 = vld [vmem:[%s1073 + $0x558] sm:$0xff]
        %v1505 = vld [vmem:[%s1073 + $0x560] sm:$0xff]
        %v1506 = vld [vmem:[%s1073 + $0x568] sm:$0xff]
        %v1507 = vld [vmem:[%s1073 + $0x570] sm:$0xff]
        %v1508 = vld [vmem:[%s1073 + $0x578] sm:$0xff]
        %v1509 = vld [vmem:[%s1073 + $0x580] sm:$0xff]
        %v1510 = vld [vmem:[%s1073 + $0x588] sm:$0xff]
        %v1511 = vld [vmem:[%s1073 + $0x590] sm:$0xff]
        %v1512 = vld [vmem:[%s1073 + $0x598] sm:$0xff]
        %v1513 = vld [vmem:[%s1073 + $0x5a0] sm:$0xff]
        %v1514 = vld [vmem:[%s1073 + $0x5a8] sm:$0xff]
        %v1515 = vld [vmem:[%s1073 + $0x5b0] sm:$0xff]
        %v1516 = vld [vmem:[%s1073 + $0x5b8] sm:$0xff]
        %v1517 = vld [vmem:[%s1073 + $0x5c0] sm:$0xff]
        %v1518 = vld [vmem:[%s1073 + $0x5c8] sm:$0xff]
        %v1519 = vld [vmem:[%s1073 + $0x5d0] sm:$0xff]
        %v1520 = vld [vmem:[%s1073 + $0x5d8] sm:$0xff]
        %v1521 = vld [vmem:[%s1073 + $0x5e0] sm:$0xff]
        %v1522 = vld [vmem:[%s1073 + $0x5e8] sm:$0xff]
        %v1523 = vld [vmem:[%s1073 + $0x5f0] sm:$0xff]
        %v1524 = vld [vmem:[%s1073 + $0x5f8] sm:$0xff]
        %v1525 = vld [vmem:[%s1073 + $0x600] sm:$0xff]
        %v1526 = vld [vmem:[%s1073 + $0x608] sm:$0xff]
        %v1527 = vld [vmem:[%s1073 + $0x610] sm:$0xff]
        %v1528 = vld [vmem:[%s1073 + $0x618] sm:$0xff]
        %v1529 = vld [vmem:[%s1073 + $0x620] sm:$0xff]
        %v1530 = vld [vmem:[%s1073 + $0x628] sm:$0xff]
        %v1531 = vld [vmem:[%s1073 + $0x630] sm:$0xff]
        %v1532 = vld [vmem:[%s1073 + $0x638] sm:$0xff]
        %v1533 = vld [vmem:[%s1073 + $0x640] sm:$0xff]
        %v1534 = vld [vmem:[%s1073 + $0x648] sm:$0xff]
        %v1535 = vld [vmem:[%s1073 + $0x650] sm:$0xff]
        %v1536 = vld [vmem:[%s1073 + $0x658] sm:$0xff]
        %v1537 = vld [vmem:[%s1073 + $0x660] sm:$0xff]
        %v1538 = vld [vmem:[%s1073 + $0x668] sm:$0xff]
        %v1539 = vld [vmem:[%s1073 + $0x670] sm:$0xff]
        %v1540 = vld [vmem:[%s1073 + $0x678] sm:$0xff]
        %v1541 = vld [vmem:[%s1073 + $0x680] sm:$0xff]
        %v1542 = vld [vmem:[%s1073 + $0x688] sm:$0xff]
        %v1543 = vld [vmem:[%s1073 + $0x690] sm:$0xff]
        %v1544 = vld [vmem:[%s1073 + $0x698] sm:$0xff]
        %v1545 = vld [vmem:[%s1073 + $0x6a0] sm:$0xff]
        %v1546 = vld [vmem:[%s1073 + $0x6a8] sm:$0xff]
        %v1547 = vld [vmem:[%s1073 + $0x6b0] sm:$0xff]
        %v1548 = vld [vmem:[%s1073 + $0x6b8] sm:$0xff]
        %v1549 = vld [vmem:[%s1073 + $0x6c0] sm:$0xff]
        %v1550 = vld [vmem:[%s1073 + $0x6c8] sm:$0xff]
        %v1551 = vld [vmem:[%s1073 + $0x6d0] sm:$0xff]
        %v1552 = vld [vmem:[%s1073 + $0x6d8] sm:$0xff]
        %v1553 = vld [vmem:[%s1073 + $0x6e0] sm:$0xff]
        %v1554 = vld [vmem:[%s1073 + $0x6e8] sm:$0xff]
        %v1555 = vld [vmem:[%s1073 + $0x6f0] sm:$0xff]
        %v1556 = vld [vmem:[%s1073 + $0x6f8] sm:$0xff]
        %v1557 = vld [vmem:[%s1073 + $0x700] sm:$0xff]
        %v1558 = vld [vmem:[%s1073 + $0x708] sm:$0xff]
        %v1559 = vld [vmem:[%s1073 + $0x710] sm:$0xff]
        %v1560 = vld [vmem:[%s1073 + $0x718] sm:$0xff]
        %v1561 = vld [vmem:[%s1073 + $0x720] sm:$0xff]
        %v1562 = vld [vmem:[%s1073 + $0x728] sm:$0xff]
        %v1563 = vld [vmem:[%s1073 + $0x730] sm:$0xff]
        %v1564 = vld [vmem:[%s1073 + $0x738] sm:$0xff]
        %v1565 = vld [vmem:[%s1073 + $0x740] sm:$0xff]
        %v1566 = vld [vmem:[%s1073 + $0x748] sm:$0xff]
        %v1567 = vld [vmem:[%s1073 + $0x750] sm:$0xff]
        %v1568 = vld [vmem:[%s1073 + $0x758] sm:$0xff]
        %v1569 = vld [vmem:[%s1073 + $0x760] sm:$0xff]
        %v1570 = vld [vmem:[%s1073 + $0x768] sm:$0xff]
        %v1571 = vld [vmem:[%s1073 + $0x770] sm:$0xff]
        %v1572 = vld [vmem:[%s1073 + $0x778] sm:$0xff]
        %v1573 = vld [vmem:[%s1073 + $0x780] sm:$0xff]
        %v1574 = vld [vmem:[%s1073 + $0x788] sm:$0xff]
        %v1575 = vld [vmem:[%s1073 + $0x790] sm:$0xff]
        %v1576 = vld [vmem:[%s1073 + $0x798] sm:$0xff]
        %v1577 = vld [vmem:[%s1073 + $0x7a0] sm:$0xff]
        %v1578 = vld [vmem:[%s1073 + $0x7a8] sm:$0xff]
        %v1579 = vld [vmem:[%s1073 + $0x7b0] sm:$0xff]
        %v1580 = vld [vmem:[%s1073 + $0x7b8] sm:$0xff]
        %v1581 = vld [vmem:[%s1073 + $0x7c0] sm:$0xff]
        %v1582 = vld [vmem:[%s1073 + $0x7c8] sm:$0xff]
        %v1583 = vld [vmem:[%s1073 + $0x7d0] sm:$0xff]
        %v1584 = vld [vmem:[%s1073 + $0x7d8] sm:$0xff]
        %v1585 = vld [vmem:[%s1073 + $0x7e0] sm:$0xff]
        %v1586 = vld [vmem:[%s1073 + $0x7e8] sm:$0xff]
        %v1587 = vld [vmem:[%s1073 + $0x7f0] sm:$0xff]
        %v1588 = vld [vmem:[%s1073 + $0x7f8] sm:$0xff]
        %v1589 = vld [vmem:[%s1082] sm:$0xf]
        %v1591 = vlaneseq
        %v1592 = vshrl.u32 %v1591, 7
        %v1593 = vsub.s32 0, %v1592
        %v1594 = vrot.slane %v1589, %v1593
        %v1595 = vlaneseq
        %v1596 = vshrl.u32 %v1595, 7
        %v1597 = vsub.s32 1, %v1596
        %v1598 = vrot.slane %v1589, %v1597
        %v1599 = vlaneseq
        %v1600 = vshrl.u32 %v1599, 7
        %v1601 = vsub.s32 2, %v1600
        %v1602 = vrot.slane %v1589, %v1601
        %v1603 = vlaneseq
        %v1604 = vshrl.u32 %v1603, 7
        %v1605 = vsub.s32 3, %v1604
        %v1606 = vrot.slane %v1589, %v1605
        %v1643 = vunpack.c.l.b16 %v1301
        %v1644 = vunpack.c.h.b16 %v1301
        %v1645 = vunpack.c.l.b16 %v1302
        %v1646 = vunpack.c.h.b16 %v1302
        %v1647 = vunpack.c.l.b16 %v1303
        %v1648 = vunpack.c.h.b16 %v1303
        %v1649 = vunpack.c.l.b16 %v1304
        %v1650 = vunpack.c.h.b16 %v1304
        %v1651 = vunpack.c.l.b16 %v1305
        %v1652 = vunpack.c.h.b16 %v1305
        %v1653 = vunpack.c.l.b16 %v1306
        %v1654 = vunpack.c.h.b16 %v1306
        %v1655 = vunpack.c.l.b16 %v1307
        %v1656 = vunpack.c.h.b16 %v1307
        %v1657 = vunpack.c.l.b16 %v1308
        %v1658 = vunpack.c.h.b16 %v1308
        %v1659 = vunpack.c.l.b16 %v1309
        %v1660 = vunpack.c.h.b16 %v1309
        %v1661 = vunpack.c.l.b16 %v1310
        %v1662 = vunpack.c.h.b16 %v1310
        %v1663 = vunpack.c.l.b16 %v1311
        %v1664 = vunpack.c.h.b16 %v1311
        %v1665 = vunpack.c.l.b16 %v1312
        %v1666 = vunpack.c.h.b16 %v1312
        %v1667 = vunpack.c.l.b16 %v1313
        %v1668 = vunpack.c.h.b16 %v1313
        %v1669 = vunpack.c.l.b16 %v1314
        %v1670 = vunpack.c.h.b16 %v1314
        %v1671 = vunpack.c.l.b16 %v1315
        %v1672 = vunpack.c.h.b16 %v1315
        %v1673 = vunpack.c.l.b16 %v1316
        %v1674 = vunpack.c.h.b16 %v1316
        %v1675 = vunpack.c.l.b16 %v1317
        %v1676 = vunpack.c.h.b16 %v1317
        %v1677 = vunpack.c.l.b16 %v1318
        %v1678 = vunpack.c.h.b16 %v1318
        %v1679 = vunpack.c.l.b16 %v1319
        %v1680 = vunpack.c.h.b16 %v1319
        %v1681 = vunpack.c.l.b16 %v1320
        %v1682 = vunpack.c.h.b16 %v1320
        %v1683 = vunpack.c.l.b16 %v1321
        %v1684 = vunpack.c.h.b16 %v1321
        %v1685 = vunpack.c.l.b16 %v1322
        %v1686 = vunpack.c.h.b16 %v1322
        %v1687 = vunpack.c.l.b16 %v1323
        %v1688 = vunpack.c.h.b16 %v1323
        %v1689 = vunpack.c.l.b16 %v1324
        %v1690 = vunpack.c.h.b16 %v1324
        %v1691 = vunpack.c.l.b16 %v1325
        %v1692 = vunpack.c.h.b16 %v1325
        %v1693 = vunpack.c.l.b16 %v1326
        %v1694 = vunpack.c.h.b16 %v1326
        %v1695 = vunpack.c.l.b16 %v1327
        %v1696 = vunpack.c.h.b16 %v1327
        %v1697 = vunpack.c.l.b16 %v1328
        %v1698 = vunpack.c.h.b16 %v1328
        %v1699 = vunpack.c.l.b16 %v1329
        %v1700 = vunpack.c.h.b16 %v1329
        %v1701 = vunpack.c.l.b16 %v1330
        %v1702 = vunpack.c.h.b16 %v1330
        %v1703 = vunpack.c.l.b16 %v1331
        %v1704 = vunpack.c.h.b16 %v1331
        %v1705 = vunpack.c.l.b16 %v1332
        %v1706 = vunpack.c.h.b16 %v1332
        %v1707 = vpack.c.b16 %v1651, %v1643
        %v1708 = vpack.c.b16 %v1652, %v1644
        %v1709 = vpack.c.b16 %v1653, %v1645
        %v1710 = vpack.c.b16 %v1654, %v1646
        %v1711 = vpack.c.b16 %v1655, %v1647
        %v1712 = vpack.c.b16 %v1656, %v1648
        %v1713 = vpack.c.b16 %v1657, %v1649
        %v1714 = vpack.c.b16 %v1658, %v1650
        %v1715 = vpack.c.b16 %v1667, %v1659
        %v1716 = vpack.c.b16 %v1668, %v1660
        %v1717 = vpack.c.b16 %v1669, %v1661
        %v1718 = vpack.c.b16 %v1670, %v1662
        %v1719 = vpack.c.b16 %v1671, %v1663
        %v1720 = vpack.c.b16 %v1672, %v1664
        %v1721 = vpack.c.b16 %v1673, %v1665
        %v1722 = vpack.c.b16 %v1674, %v1666
        %v1723 = vpack.c.b16 %v1683, %v1675
        %v1724 = vpack.c.b16 %v1684, %v1676
        %v1725 = vpack.c.b16 %v1685, %v1677
        %v1726 = vpack.c.b16 %v1686, %v1678
        %v1727 = vpack.c.b16 %v1687, %v1679
        %v1728 = vpack.c.b16 %v1688, %v1680
        %v1729 = vpack.c.b16 %v1689, %v1681
        %v1730 = vpack.c.b16 %v1690, %v1682
        %v1731 = vpack.c.b16 %v1699, %v1691
        %v1732 = vpack.c.b16 %v1700, %v1692
        %v1733 = vpack.c.b16 %v1701, %v1693
        %v1734 = vpack.c.b16 %v1702, %v1694
        %v1735 = vpack.c.b16 %v1703, %v1695
        %v1736 = vpack.c.b16 %v1704, %v1696
        %v1737 = vpack.c.b16 %v1705, %v1697
        %v1738 = vpack.c.b16 %v1706, %v1698
        %v2027 = vunpack.c.l.b16 %v1333
        %v2028 = vunpack.c.h.b16 %v1333
        %v2029 = vunpack.c.l.b16 %v1334
        %v2030 = vunpack.c.h.b16 %v1334
        %v2031 = vunpack.c.l.b16 %v1335
        %v2032 = vunpack.c.h.b16 %v1335
        %v2033 = vunpack.c.l.b16 %v1336
        %v2034 = vunpack.c.h.b16 %v1336
        %v2035 = vunpack.c.l.b16 %v1337
        %v2036 = vunpack.c.h.b16 %v1337
        %v2037 = vunpack.c.l.b16 %v1338
        %v2038 = vunpack.c.h.b16 %v1338
        %v2039 = vunpack.c.l.b16 %v1339
        %v2040 = vunpack.c.h.b16 %v1339
        %v2041 = vunpack.c.l.b16 %v1340
        %v2042 = vunpack.c.h.b16 %v1340
        %v2043 = vunpack.c.l.b16 %v1341
        %v2044 = vunpack.c.h.b16 %v1341
        %v2045 = vunpack.c.l.b16 %v1342
        %v2046 = vunpack.c.h.b16 %v1342
        %v2047 = vunpack.c.l.b16 %v1343
        %v2048 = vunpack.c.h.b16 %v1343
        %v2049 = vunpack.c.l.b16 %v1344
        %v2050 = vunpack.c.h.b16 %v1344
        %v2051 = vunpack.c.l.b16 %v1345
        %v2052 = vunpack.c.h.b16 %v1345
        %v2053 = vunpack.c.l.b16 %v1346
        %v2054 = vunpack.c.h.b16 %v1346
        %v2055 = vunpack.c.l.b16 %v1347
        %v2056 = vunpack.c.h.b16 %v1347
        %v2057 = vunpack.c.l.b16 %v1348
        %v2058 = vunpack.c.h.b16 %v1348
        %v2059 = vunpack.c.l.b16 %v1349
        %v2060 = vunpack.c.h.b16 %v1349
        %v2061 = vunpack.c.l.b16 %v1350
        %v2062 = vunpack.c.h.b16 %v1350
        %v2063 = vunpack.c.l.b16 %v1351
        %v2064 = vunpack.c.h.b16 %v1351
        %v2065 = vunpack.c.l.b16 %v1352
        %v2066 = vunpack.c.h.b16 %v1352
        %v2067 = vunpack.c.l.b16 %v1353
        %v2068 = vunpack.c.h.b16 %v1353
        %v2069 = vunpack.c.l.b16 %v1354
        %v2070 = vunpack.c.h.b16 %v1354
        %v2071 = vunpack.c.l.b16 %v1355
        %v2072 = vunpack.c.h.b16 %v1355
        %v2073 = vunpack.c.l.b16 %v1356
        %v2074 = vunpack.c.h.b16 %v1356
        %v2075 = vunpack.c.l.b16 %v1357
        %v2076 = vunpack.c.h.b16 %v1357
        %v2077 = vunpack.c.l.b16 %v1358
        %v2078 = vunpack.c.h.b16 %v1358
        %v2079 = vunpack.c.l.b16 %v1359
        %v2080 = vunpack.c.h.b16 %v1359
        %v2081 = vunpack.c.l.b16 %v1360
        %v2082 = vunpack.c.h.b16 %v1360
        %v2083 = vunpack.c.l.b16 %v1361
        %v2084 = vunpack.c.h.b16 %v1361
        %v2085 = vunpack.c.l.b16 %v1362
        %v2086 = vunpack.c.h.b16 %v1362
        %v2087 = vunpack.c.l.b16 %v1363
        %v2088 = vunpack.c.h.b16 %v1363
        %v2089 = vunpack.c.l.b16 %v1364
        %v2090 = vunpack.c.h.b16 %v1364
        %v2091 = vunpack.c.l.b16 %v1365
        %v2092 = vunpack.c.h.b16 %v1365
        %v2093 = vunpack.c.l.b16 %v1366
        %v2094 = vunpack.c.h.b16 %v1366
        %v2095 = vunpack.c.l.b16 %v1367
        %v2096 = vunpack.c.h.b16 %v1367
        %v2097 = vunpack.c.l.b16 %v1368
        %v2098 = vunpack.c.h.b16 %v1368
        %v2099 = vunpack.c.l.b16 %v1369
        %v2100 = vunpack.c.h.b16 %v1369
        %v2101 = vunpack.c.l.b16 %v1370
        %v2102 = vunpack.c.h.b16 %v1370
        %v2103 = vunpack.c.l.b16 %v1371
        %v2104 = vunpack.c.h.b16 %v1371
        %v2105 = vunpack.c.l.b16 %v1372
        %v2106 = vunpack.c.h.b16 %v1372
        %v2107 = vunpack.c.l.b16 %v1373
        %v2108 = vunpack.c.h.b16 %v1373
        %v2109 = vunpack.c.l.b16 %v1374
        %v2110 = vunpack.c.h.b16 %v1374
        %v2111 = vunpack.c.l.b16 %v1375
        %v2112 = vunpack.c.h.b16 %v1375
        %v2113 = vunpack.c.l.b16 %v1376
        %v2114 = vunpack.c.h.b16 %v1376
        %v2115 = vunpack.c.l.b16 %v1377
        %v2116 = vunpack.c.h.b16 %v1377
        %v2117 = vunpack.c.l.b16 %v1378
        %v2118 = vunpack.c.h.b16 %v1378
        %v2119 = vunpack.c.l.b16 %v1379
        %v2120 = vunpack.c.h.b16 %v1379
        %v2121 = vunpack.c.l.b16 %v1380
        %v2122 = vunpack.c.h.b16 %v1380
        %v2123 = vunpack.c.l.b16 %v1381
        %v2124 = vunpack.c.h.b16 %v1381
        %v2125 = vunpack.c.l.b16 %v1382
        %v2126 = vunpack.c.h.b16 %v1382
        %v2127 = vunpack.c.l.b16 %v1383
        %v2128 = vunpack.c.h.b16 %v1383
        %v2129 = vunpack.c.l.b16 %v1384
        %v2130 = vunpack.c.h.b16 %v1384
        %v2131 = vunpack.c.l.b16 %v1385
        %v2132 = vunpack.c.h.b16 %v1385
        %v2133 = vunpack.c.l.b16 %v1386
        %v2134 = vunpack.c.h.b16 %v1386
        %v2135 = vunpack.c.l.b16 %v1387
        %v2136 = vunpack.c.h.b16 %v1387
        %v2137 = vunpack.c.l.b16 %v1388
        %v2138 = vunpack.c.h.b16 %v1388
        %v2139 = vunpack.c.l.b16 %v1389
        %v2140 = vunpack.c.h.b16 %v1389
        %v2141 = vunpack.c.l.b16 %v1390
        %v2142 = vunpack.c.h.b16 %v1390
        %v2143 = vunpack.c.l.b16 %v1391
        %v2144 = vunpack.c.h.b16 %v1391
        %v2145 = vunpack.c.l.b16 %v1392
        %v2146 = vunpack.c.h.b16 %v1392
        %v2147 = vunpack.c.l.b16 %v1393
        %v2148 = vunpack.c.h.b16 %v1393
        %v2149 = vunpack.c.l.b16 %v1394
        %v2150 = vunpack.c.h.b16 %v1394
        %v2151 = vunpack.c.l.b16 %v1395
        %v2152 = vunpack.c.h.b16 %v1395
        %v2153 = vunpack.c.l.b16 %v1396
        %v2154 = vunpack.c.h.b16 %v1396
        %v2155 = vunpack.c.l.b16 %v1397
        %v2156 = vunpack.c.h.b16 %v1397
        %v2157 = vunpack.c.l.b16 %v1398
        %v2158 = vunpack.c.h.b16 %v1398
        %v2159 = vunpack.c.l.b16 %v1399
        %v2160 = vunpack.c.h.b16 %v1399
        %v2161 = vunpack.c.l.b16 %v1400
        %v2162 = vunpack.c.h.b16 %v1400
        %v2163 = vunpack.c.l.b16 %v1401
        %v2164 = vunpack.c.h.b16 %v1401
        %v2165 = vunpack.c.l.b16 %v1402
        %v2166 = vunpack.c.h.b16 %v1402
        %v2167 = vunpack.c.l.b16 %v1403
        %v2168 = vunpack.c.h.b16 %v1403
        %v2169 = vunpack.c.l.b16 %v1404
        %v2170 = vunpack.c.h.b16 %v1404
        %v2171 = vunpack.c.l.b16 %v1405
        %v2172 = vunpack.c.h.b16 %v1405
        %v2173 = vunpack.c.l.b16 %v1406
        %v2174 = vunpack.c.h.b16 %v1406
        %v2175 = vunpack.c.l.b16 %v1407
        %v2176 = vunpack.c.h.b16 %v1407
        %v2177 = vunpack.c.l.b16 %v1408
        %v2178 = vunpack.c.h.b16 %v1408
        %v2179 = vunpack.c.l.b16 %v1409
        %v2180 = vunpack.c.h.b16 %v1409
        %v2181 = vunpack.c.l.b16 %v1410
        %v2182 = vunpack.c.h.b16 %v1410
        %v2183 = vunpack.c.l.b16 %v1411
        %v2184 = vunpack.c.h.b16 %v1411
        %v2185 = vunpack.c.l.b16 %v1412
        %v2186 = vunpack.c.h.b16 %v1412
        %v2187 = vunpack.c.l.b16 %v1413
        %v2188 = vunpack.c.h.b16 %v1413
        %v2189 = vunpack.c.l.b16 %v1414
        %v2190 = vunpack.c.h.b16 %v1414
        %v2191 = vunpack.c.l.b16 %v1415
        %v2192 = vunpack.c.h.b16 %v1415
        %v2193 = vunpack.c.l.b16 %v1416
        %v2194 = vunpack.c.h.b16 %v1416
        %v2195 = vunpack.c.l.b16 %v1417
        %v2196 = vunpack.c.h.b16 %v1417
        %v2197 = vunpack.c.l.b16 %v1418
        %v2198 = vunpack.c.h.b16 %v1418
        %v2199 = vunpack.c.l.b16 %v1419
        %v2200 = vunpack.c.h.b16 %v1419
        %v2201 = vunpack.c.l.b16 %v1420
        %v2202 = vunpack.c.h.b16 %v1420
        %v2203 = vunpack.c.l.b16 %v1421
        %v2204 = vunpack.c.h.b16 %v1421
        %v2205 = vunpack.c.l.b16 %v1422
        %v2206 = vunpack.c.h.b16 %v1422
        %v2207 = vunpack.c.l.b16 %v1423
        %v2208 = vunpack.c.h.b16 %v1423
        %v2209 = vunpack.c.l.b16 %v1424
        %v2210 = vunpack.c.h.b16 %v1424
        %v2211 = vunpack.c.l.b16 %v1425
        %v2212 = vunpack.c.h.b16 %v1425
        %v2213 = vunpack.c.l.b16 %v1426
        %v2214 = vunpack.c.h.b16 %v1426
        %v2215 = vunpack.c.l.b16 %v1427
        %v2216 = vunpack.c.h.b16 %v1427
        %v2217 = vunpack.c.l.b16 %v1428
        %v2218 = vunpack.c.h.b16 %v1428
        %v2219 = vunpack.c.l.b16 %v1429
        %v2220 = vunpack.c.h.b16 %v1429
        %v2221 = vunpack.c.l.b16 %v1430
        %v2222 = vunpack.c.h.b16 %v1430
        %v2223 = vunpack.c.l.b16 %v1431
        %v2224 = vunpack.c.h.b16 %v1431
        %v2225 = vunpack.c.l.b16 %v1432
        %v2226 = vunpack.c.h.b16 %v1432
        %v2227 = vunpack.c.l.b16 %v1433
        %v2228 = vunpack.c.h.b16 %v1433
        %v2229 = vunpack.c.l.b16 %v1434
        %v2230 = vunpack.c.h.b16 %v1434
        %v2231 = vunpack.c.l.b16 %v1435
        %v2232 = vunpack.c.h.b16 %v1435
        %v2233 = vunpack.c.l.b16 %v1436
        %v2234 = vunpack.c.h.b16 %v1436
        %v2235 = vunpack.c.l.b16 %v1437
        %v2236 = vunpack.c.h.b16 %v1437
        %v2237 = vunpack.c.l.b16 %v1438
        %v2238 = vunpack.c.h.b16 %v1438
        %v2239 = vunpack.c.l.b16 %v1439
        %v2240 = vunpack.c.h.b16 %v1439
        %v2241 = vunpack.c.l.b16 %v1440
        %v2242 = vunpack.c.h.b16 %v1440
        %v2243 = vunpack.c.l.b16 %v1441
        %v2244 = vunpack.c.h.b16 %v1441
        %v2245 = vunpack.c.l.b16 %v1442
        %v2246 = vunpack.c.h.b16 %v1442
        %v2247 = vunpack.c.l.b16 %v1443
        %v2248 = vunpack.c.h.b16 %v1443
        %v2249 = vunpack.c.l.b16 %v1444
        %v2250 = vunpack.c.h.b16 %v1444
        %v2251 = vunpack.c.l.b16 %v1445
        %v2252 = vunpack.c.h.b16 %v1445
        %v2253 = vunpack.c.l.b16 %v1446
        %v2254 = vunpack.c.h.b16 %v1446
        %v2255 = vunpack.c.l.b16 %v1447
        %v2256 = vunpack.c.h.b16 %v1447
        %v2257 = vunpack.c.l.b16 %v1448
        %v2258 = vunpack.c.h.b16 %v1448
        %v2259 = vunpack.c.l.b16 %v1449
        %v2260 = vunpack.c.h.b16 %v1449
        %v2261 = vunpack.c.l.b16 %v1450
        %v2262 = vunpack.c.h.b16 %v1450
        %v2263 = vunpack.c.l.b16 %v1451
        %v2264 = vunpack.c.h.b16 %v1451
        %v2265 = vunpack.c.l.b16 %v1452
        %v2266 = vunpack.c.h.b16 %v1452
        %v2267 = vunpack.c.l.b16 %v1453
        %v2268 = vunpack.c.h.b16 %v1453
        %v2269 = vunpack.c.l.b16 %v1454
        %v2270 = vunpack.c.h.b16 %v1454
        %v2271 = vunpack.c.l.b16 %v1455
        %v2272 = vunpack.c.h.b16 %v1455
        %v2273 = vunpack.c.l.b16 %v1456
        %v2274 = vunpack.c.h.b16 %v1456
        %v2275 = vunpack.c.l.b16 %v1457
        %v2276 = vunpack.c.h.b16 %v1457
        %v2277 = vunpack.c.l.b16 %v1458
        %v2278 = vunpack.c.h.b16 %v1458
        %v2279 = vunpack.c.l.b16 %v1459
        %v2280 = vunpack.c.h.b16 %v1459
        %v2281 = vunpack.c.l.b16 %v1460
        %v2282 = vunpack.c.h.b16 %v1460
        %v2283 = vunpack.c.l.b16 %v1461
        %v2284 = vunpack.c.h.b16 %v1461
        %v2285 = vunpack.c.l.b16 %v1462
        %v2286 = vunpack.c.h.b16 %v1462
        %v2287 = vunpack.c.l.b16 %v1463
        %v2288 = vunpack.c.h.b16 %v1463
        %v2289 = vunpack.c.l.b16 %v1464
        %v2290 = vunpack.c.h.b16 %v1464
        %v2291 = vunpack.c.l.b16 %v1465
        %v2292 = vunpack.c.h.b16 %v1465
        %v2293 = vunpack.c.l.b16 %v1466
        %v2294 = vunpack.c.h.b16 %v1466
        %v2295 = vunpack.c.l.b16 %v1467
        %v2296 = vunpack.c.h.b16 %v1467
        %v2297 = vunpack.c.l.b16 %v1468
        %v2298 = vunpack.c.h.b16 %v1468
        %v2299 = vunpack.c.l.b16 %v1469
        %v2300 = vunpack.c.h.b16 %v1469
        %v2301 = vunpack.c.l.b16 %v1470
        %v2302 = vunpack.c.h.b16 %v1470
        %v2303 = vunpack.c.l.b16 %v1471
        %v2304 = vunpack.c.h.b16 %v1471
        %v2305 = vunpack.c.l.b16 %v1472
        %v2306 = vunpack.c.h.b16 %v1472
        %v2307 = vunpack.c.l.b16 %v1473
        %v2308 = vunpack.c.h.b16 %v1473
        %v2309 = vunpack.c.l.b16 %v1474
        %v2310 = vunpack.c.h.b16 %v1474
        %v2311 = vunpack.c.l.b16 %v1475
        %v2312 = vunpack.c.h.b16 %v1475
        %v2313 = vunpack.c.l.b16 %v1476
        %v2314 = vunpack.c.h.b16 %v1476
        %v2315 = vunpack.c.l.b16 %v1477
        %v2316 = vunpack.c.h.b16 %v1477
        %v2317 = vunpack.c.l.b16 %v1478
        %v2318 = vunpack.c.h.b16 %v1478
        %v2319 = vunpack.c.l.b16 %v1479
        %v2320 = vunpack.c.h.b16 %v1479
        %v2321 = vunpack.c.l.b16 %v1480
        %v2322 = vunpack.c.h.b16 %v1480
        %v2323 = vunpack.c.l.b16 %v1481
        %v2324 = vunpack.c.h.b16 %v1481
        %v2325 = vunpack.c.l.b16 %v1482
        %v2326 = vunpack.c.h.b16 %v1482
        %v2327 = vunpack.c.l.b16 %v1483
        %v2328 = vunpack.c.h.b16 %v1483
        %v2329 = vunpack.c.l.b16 %v1484
        %v2330 = vunpack.c.h.b16 %v1484
        %v2331 = vunpack.c.l.b16 %v1485
        %v2332 = vunpack.c.h.b16 %v1485
        %v2333 = vunpack.c.l.b16 %v1486
        %v2334 = vunpack.c.h.b16 %v1486
        %v2335 = vunpack.c.l.b16 %v1487
        %v2336 = vunpack.c.h.b16 %v1487
        %v2337 = vunpack.c.l.b16 %v1488
        %v2338 = vunpack.c.h.b16 %v1488
        %v2339 = vunpack.c.l.b16 %v1489
        %v2340 = vunpack.c.h.b16 %v1489
        %v2341 = vunpack.c.l.b16 %v1490
        %v2342 = vunpack.c.h.b16 %v1490
        %v2343 = vunpack.c.l.b16 %v1491
        %v2344 = vunpack.c.h.b16 %v1491
        %v2345 = vunpack.c.l.b16 %v1492
        %v2346 = vunpack.c.h.b16 %v1492
        %v2347 = vunpack.c.l.b16 %v1493
        %v2348 = vunpack.c.h.b16 %v1493
        %v2349 = vunpack.c.l.b16 %v1494
        %v2350 = vunpack.c.h.b16 %v1494
        %v2351 = vunpack.c.l.b16 %v1495
        %v2352 = vunpack.c.h.b16 %v1495
        %v2353 = vunpack.c.l.b16 %v1496
        %v2354 = vunpack.c.h.b16 %v1496
        %v2355 = vunpack.c.l.b16 %v1497
        %v2356 = vunpack.c.h.b16 %v1497
        %v2357 = vunpack.c.l.b16 %v1498
        %v2358 = vunpack.c.h.b16 %v1498
        %v2359 = vunpack.c.l.b16 %v1499
        %v2360 = vunpack.c.h.b16 %v1499
        %v2361 = vunpack.c.l.b16 %v1500
        %v2362 = vunpack.c.h.b16 %v1500
        %v2363 = vunpack.c.l.b16 %v1501
        %v2364 = vunpack.c.h.b16 %v1501
        %v2365 = vunpack.c.l.b16 %v1502
        %v2366 = vunpack.c.h.b16 %v1502
        %v2367 = vunpack.c.l.b16 %v1503
        %v2368 = vunpack.c.h.b16 %v1503
        %v2369 = vunpack.c.l.b16 %v1504
        %v2370 = vunpack.c.h.b16 %v1504
        %v2371 = vunpack.c.l.b16 %v1505
        %v2372 = vunpack.c.h.b16 %v1505
        %v2373 = vunpack.c.l.b16 %v1506
        %v2374 = vunpack.c.h.b16 %v1506
        %v2375 = vunpack.c.l.b16 %v1507
        %v2376 = vunpack.c.h.b16 %v1507
        %v2377 = vunpack.c.l.b16 %v1508
        %v2378 = vunpack.c.h.b16 %v1508
        %v2379 = vunpack.c.l.b16 %v1509
        %v2380 = vunpack.c.h.b16 %v1509
        %v2381 = vunpack.c.l.b16 %v1510
        %v2382 = vunpack.c.h.b16 %v1510
        %v2383 = vunpack.c.l.b16 %v1511
        %v2384 = vunpack.c.h.b16 %v1511
        %v2385 = vunpack.c.l.b16 %v1512
        %v2386 = vunpack.c.h.b16 %v1512
        %v2387 = vunpack.c.l.b16 %v1513
        %v2388 = vunpack.c.h.b16 %v1513
        %v2389 = vunpack.c.l.b16 %v1514
        %v2390 = vunpack.c.h.b16 %v1514
        %v2391 = vunpack.c.l.b16 %v1515
        %v2392 = vunpack.c.h.b16 %v1515
        %v2393 = vunpack.c.l.b16 %v1516
        %v2394 = vunpack.c.h.b16 %v1516
        %v2395 = vunpack.c.l.b16 %v1517
        %v2396 = vunpack.c.h.b16 %v1517
        %v2397 = vunpack.c.l.b16 %v1518
        %v2398 = vunpack.c.h.b16 %v1518
        %v2399 = vunpack.c.l.b16 %v1519
        %v2400 = vunpack.c.h.b16 %v1519
        %v2401 = vunpack.c.l.b16 %v1520
        %v2402 = vunpack.c.h.b16 %v1520
        %v2403 = vunpack.c.l.b16 %v1521
        %v2404 = vunpack.c.h.b16 %v1521
        %v2405 = vunpack.c.l.b16 %v1522
        %v2406 = vunpack.c.h.b16 %v1522
        %v2407 = vunpack.c.l.b16 %v1523
        %v2408 = vunpack.c.h.b16 %v1523
        %v2409 = vunpack.c.l.b16 %v1524
        %v2410 = vunpack.c.h.b16 %v1524
        %v2411 = vunpack.c.l.b16 %v1525
        %v2412 = vunpack.c.h.b16 %v1525
        %v2413 = vunpack.c.l.b16 %v1526
        %v2414 = vunpack.c.h.b16 %v1526
        %v2415 = vunpack.c.l.b16 %v1527
        %v2416 = vunpack.c.h.b16 %v1527
        %v2417 = vunpack.c.l.b16 %v1528
        %v2418 = vunpack.c.h.b16 %v1528
        %v2419 = vunpack.c.l.b16 %v1529
        %v2420 = vunpack.c.h.b16 %v1529
        %v2421 = vunpack.c.l.b16 %v1530
        %v2422 = vunpack.c.h.b16 %v1530
        %v2423 = vunpack.c.l.b16 %v1531
        %v2424 = vunpack.c.h.b16 %v1531
        %v2425 = vunpack.c.l.b16 %v1532
        %v2426 = vunpack.c.h.b16 %v1532
        %v2427 = vunpack.c.l.b16 %v1533
        %v2428 = vunpack.c.h.b16 %v1533
        %v2429 = vunpack.c.l.b16 %v1534
        %v2430 = vunpack.c.h.b16 %v1534
        %v2431 = vunpack.c.l.b16 %v1535
        %v2432 = vunpack.c.h.b16 %v1535
        %v2433 = vunpack.c.l.b16 %v1536
        %v2434 = vunpack.c.h.b16 %v1536
        %v2435 = vunpack.c.l.b16 %v1537
        %v2436 = vunpack.c.h.b16 %v1537
        %v2437 = vunpack.c.l.b16 %v1538
        %v2438 = vunpack.c.h.b16 %v1538
        %v2439 = vunpack.c.l.b16 %v1539
        %v2440 = vunpack.c.h.b16 %v1539
        %v2441 = vunpack.c.l.b16 %v1540
        %v2442 = vunpack.c.h.b16 %v1540
        %v2443 = vunpack.c.l.b16 %v1541
        %v2444 = vunpack.c.h.b16 %v1541
        %v2445 = vunpack.c.l.b16 %v1542
        %v2446 = vunpack.c.h.b16 %v1542
        %v2447 = vunpack.c.l.b16 %v1543
        %v2448 = vunpack.c.h.b16 %v1543
        %v2449 = vunpack.c.l.b16 %v1544
        %v2450 = vunpack.c.h.b16 %v1544
        %v2451 = vunpack.c.l.b16 %v1545
        %v2452 = vunpack.c.h.b16 %v1545
        %v2453 = vunpack.c.l.b16 %v1546
        %v2454 = vunpack.c.h.b16 %v1546
        %v2455 = vunpack.c.l.b16 %v1547
        %v2456 = vunpack.c.h.b16 %v1547
        %v2457 = vunpack.c.l.b16 %v1548
        %v2458 = vunpack.c.h.b16 %v1548
        %v2459 = vunpack.c.l.b16 %v1549
        %v2460 = vunpack.c.h.b16 %v1549
        %v2461 = vunpack.c.l.b16 %v1550
        %v2462 = vunpack.c.h.b16 %v1550
        %v2463 = vunpack.c.l.b16 %v1551
        %v2464 = vunpack.c.h.b16 %v1551
        %v2465 = vunpack.c.l.b16 %v1552
        %v2466 = vunpack.c.h.b16 %v1552
        %v2467 = vunpack.c.l.b16 %v1553
        %v2468 = vunpack.c.h.b16 %v1553
        %v2469 = vunpack.c.l.b16 %v1554
        %v2470 = vunpack.c.h.b16 %v1554
        %v2471 = vunpack.c.l.b16 %v1555
        %v2472 = vunpack.c.h.b16 %v1555
        %v2473 = vunpack.c.l.b16 %v1556
        %v2474 = vunpack.c.h.b16 %v1556
        %v2475 = vunpack.c.l.b16 %v1557
        %v2476 = vunpack.c.h.b16 %v1557
        %v2477 = vunpack.c.l.b16 %v1558
        %v2478 = vunpack.c.h.b16 %v1558
        %v2479 = vunpack.c.l.b16 %v1559
        %v2480 = vunpack.c.h.b16 %v1559
        %v2481 = vunpack.c.l.b16 %v1560
        %v2482 = vunpack.c.h.b16 %v1560
        %v2483 = vunpack.c.l.b16 %v1561
        %v2484 = vunpack.c.h.b16 %v1561
        %v2485 = vunpack.c.l.b16 %v1562
        %v2486 = vunpack.c.h.b16 %v1562
        %v2487 = vunpack.c.l.b16 %v1563
        %v2488 = vunpack.c.h.b16 %v1563
        %v2489 = vunpack.c.l.b16 %v1564
        %v2490 = vunpack.c.h.b16 %v1564
        %v2491 = vunpack.c.l.b16 %v1565
        %v2492 = vunpack.c.h.b16 %v1565
        %v2493 = vunpack.c.l.b16 %v1566
        %v2494 = vunpack.c.h.b16 %v1566
        %v2495 = vunpack.c.l.b16 %v1567
        %v2496 = vunpack.c.h.b16 %v1567
        %v2497 = vunpack.c.l.b16 %v1568
        %v2498 = vunpack.c.h.b16 %v1568
        %v2499 = vunpack.c.l.b16 %v1569
        %v2500 = vunpack.c.h.b16 %v1569
        %v2501 = vunpack.c.l.b16 %v1570
        %v2502 = vunpack.c.h.b16 %v1570
        %v2503 = vunpack.c.l.b16 %v1571
        %v2504 = vunpack.c.h.b16 %v1571
        %v2505 = vunpack.c.l.b16 %v1572
        %v2506 = vunpack.c.h.b16 %v1572
        %v2507 = vunpack.c.l.b16 %v1573
        %v2508 = vunpack.c.h.b16 %v1573
        %v2509 = vunpack.c.l.b16 %v1574
        %v2510 = vunpack.c.h.b16 %v1574
        %v2511 = vunpack.c.l.b16 %v1575
        %v2512 = vunpack.c.h.b16 %v1575
        %v2513 = vunpack.c.l.b16 %v1576
        %v2514 = vunpack.c.h.b16 %v1576
        %v2515 = vunpack.c.l.b16 %v1577
        %v2516 = vunpack.c.h.b16 %v1577
        %v2517 = vunpack.c.l.b16 %v1578
        %v2518 = vunpack.c.h.b16 %v1578
        %v2519 = vunpack.c.l.b16 %v1579
        %v2520 = vunpack.c.h.b16 %v1579
        %v2521 = vunpack.c.l.b16 %v1580
        %v2522 = vunpack.c.h.b16 %v1580
        %v2523 = vunpack.c.l.b16 %v1581
        %v2524 = vunpack.c.h.b16 %v1581
        %v2525 = vunpack.c.l.b16 %v1582
        %v2526 = vunpack.c.h.b16 %v1582
        %v2527 = vunpack.c.l.b16 %v1583
        %v2528 = vunpack.c.h.b16 %v1583
        %v2529 = vunpack.c.l.b16 %v1584
        %v2530 = vunpack.c.h.b16 %v1584
        %v2531 = vunpack.c.l.b16 %v1585
        %v2532 = vunpack.c.h.b16 %v1585
        %v2533 = vunpack.c.l.b16 %v1586
        %v2534 = vunpack.c.h.b16 %v1586
        %v2535 = vunpack.c.l.b16 %v1587
        %v2536 = vunpack.c.h.b16 %v1587
        %v2537 = vunpack.c.l.b16 %v1588
        %v2538 = vunpack.c.h.b16 %v1588
        %v2539 = vpack.c.b16 %v2031, %v2027
        %v2540 = vpack.c.b16 %v2032, %v2028
        %v2541 = vpack.c.b16 %v2033, %v2029
        %v2542 = vpack.c.b16 %v2034, %v2030
        %v2543 = vpack.c.b16 %v2039, %v2035
        %v2544 = vpack.c.b16 %v2040, %v2036
        %v2545 = vpack.c.b16 %v2041, %v2037
        %v2546 = vpack.c.b16 %v2042, %v2038
        %v2547 = vpack.c.b16 %v2047, %v2043
        %v2548 = vpack.c.b16 %v2048, %v2044
        %v2549 = vpack.c.b16 %v2049, %v2045
        %v2550 = vpack.c.b16 %v2050, %v2046
        %v2551 = vpack.c.b16 %v2055, %v2051
        %v2552 = vpack.c.b16 %v2056, %v2052
        %v2553 = vpack.c.b16 %v2057, %v2053
        %v2554 = vpack.c.b16 %v2058, %v2054
        %v2555 = vpack.c.b16 %v2063, %v2059
        %v2556 = vpack.c.b16 %v2064, %v2060
        %v2557 = vpack.c.b16 %v2065, %v2061
        %v2558 = vpack.c.b16 %v2066, %v2062
        %v2559 = vpack.c.b16 %v2071, %v2067
        %v2560 = vpack.c.b16 %v2072, %v2068
        %v2561 = vpack.c.b16 %v2073, %v2069
        %v2562 = vpack.c.b16 %v2074, %v2070
        %v2563 = vpack.c.b16 %v2079, %v2075
        %v2564 = vpack.c.b16 %v2080, %v2076
        %v2565 = vpack.c.b16 %v2081, %v2077
        %v2566 = vpack.c.b16 %v2082, %v2078
        %v2567 = vpack.c.b16 %v2087, %v2083
        %v2568 = vpack.c.b16 %v2088, %v2084
        %v2569 = vpack.c.b16 %v2089, %v2085
        %v2570 = vpack.c.b16 %v2090, %v2086
        %v2571 = vpack.c.b16 %v2095, %v2091
        %v2572 = vpack.c.b16 %v2096, %v2092
        %v2573 = vpack.c.b16 %v2097, %v2093
        %v2574 = vpack.c.b16 %v2098, %v2094
        %v2575 = vpack.c.b16 %v2103, %v2099
        %v2576 = vpack.c.b16 %v2104, %v2100
        %v2577 = vpack.c.b16 %v2105, %v2101
        %v2578 = vpack.c.b16 %v2106, %v2102
        %v2579 = vpack.c.b16 %v2111, %v2107
        %v2580 = vpack.c.b16 %v2112, %v2108
        %v2581 = vpack.c.b16 %v2113, %v2109
        %v2582 = vpack.c.b16 %v2114, %v2110
        %v2583 = vpack.c.b16 %v2119, %v2115
        %v2584 = vpack.c.b16 %v2120, %v2116
        %v2585 = vpack.c.b16 %v2121, %v2117
        %v2586 = vpack.c.b16 %v2122, %v2118
        %v2587 = vpack.c.b16 %v2127, %v2123
        %v2588 = vpack.c.b16 %v2128, %v2124
        %v2589 = vpack.c.b16 %v2129, %v2125
        %v2590 = vpack.c.b16 %v2130, %v2126
        %v2591 = vpack.c.b16 %v2135, %v2131
        %v2592 = vpack.c.b16 %v2136, %v2132
        %v2593 = vpack.c.b16 %v2137, %v2133
        %v2594 = vpack.c.b16 %v2138, %v2134
        %v2595 = vpack.c.b16 %v2143, %v2139
        %v2596 = vpack.c.b16 %v2144, %v2140
        %v2597 = vpack.c.b16 %v2145, %v2141
        %v2598 = vpack.c.b16 %v2146, %v2142
        %v2599 = vpack.c.b16 %v2151, %v2147
        %v2600 = vpack.c.b16 %v2152, %v2148
        %v2601 = vpack.c.b16 %v2153, %v2149
        %v2602 = vpack.c.b16 %v2154, %v2150
        %v2603 = vpack.c.b16 %v2159, %v2155
        %v2604 = vpack.c.b16 %v2160, %v2156
        %v2605 = vpack.c.b16 %v2161, %v2157
        %v2606 = vpack.c.b16 %v2162, %v2158
        %v2607 = vpack.c.b16 %v2167, %v2163
        %v2608 = vpack.c.b16 %v2168, %v2164
        %v2609 = vpack.c.b16 %v2169, %v2165
        %v2610 = vpack.c.b16 %v2170, %v2166
        %v2611 = vpack.c.b16 %v2175, %v2171
        %v2612 = vpack.c.b16 %v2176, %v2172
        %v2613 = vpack.c.b16 %v2177, %v2173
        %v2614 = vpack.c.b16 %v2178, %v2174
        %v2615 = vpack.c.b16 %v2183, %v2179
        %v2616 = vpack.c.b16 %v2184, %v2180
        %v2617 = vpack.c.b16 %v2185, %v2181
        %v2618 = vpack.c.b16 %v2186, %v2182
        %v2619 = vpack.c.b16 %v2191, %v2187
        %v2620 = vpack.c.b16 %v2192, %v2188
        %v2621 = vpack.c.b16 %v2193, %v2189
        %v2622 = vpack.c.b16 %v2194, %v2190
        %v2623 = vpack.c.b16 %v2199, %v2195
        %v2624 = vpack.c.b16 %v2200, %v2196
        %v2625 = vpack.c.b16 %v2201, %v2197
        %v2626 = vpack.c.b16 %v2202, %v2198
        %v2627 = vpack.c.b16 %v2207, %v2203
        %v2628 = vpack.c.b16 %v2208, %v2204
        %v2629 = vpack.c.b16 %v2209, %v2205
        %v2630 = vpack.c.b16 %v2210, %v2206
        %v2631 = vpack.c.b16 %v2215, %v2211
        %v2632 = vpack.c.b16 %v2216, %v2212
        %v2633 = vpack.c.b16 %v2217, %v2213
        %v2634 = vpack.c.b16 %v2218, %v2214
        %v2635 = vpack.c.b16 %v2223, %v2219
        %v2636 = vpack.c.b16 %v2224, %v2220
        %v2637 = vpack.c.b16 %v2225, %v2221
        %v2638 = vpack.c.b16 %v2226, %v2222
        %v2639 = vpack.c.b16 %v2231, %v2227
        %v2640 = vpack.c.b16 %v2232, %v2228
        %v2641 = vpack.c.b16 %v2233, %v2229
        %v2642 = vpack.c.b16 %v2234, %v2230
        %v2643 = vpack.c.b16 %v2239, %v2235
        %v2644 = vpack.c.b16 %v2240, %v2236
        %v2645 = vpack.c.b16 %v2241, %v2237
        %v2646 = vpack.c.b16 %v2242, %v2238
        %v2647 = vpack.c.b16 %v2247, %v2243
        %v2648 = vpack.c.b16 %v2248, %v2244
        %v2649 = vpack.c.b16 %v2249, %v2245
        %v2650 = vpack.c.b16 %v2250, %v2246
        %v2651 = vpack.c.b16 %v2255, %v2251
        %v2652 = vpack.c.b16 %v2256, %v2252
        %v2653 = vpack.c.b16 %v2257, %v2253
        %v2654 = vpack.c.b16 %v2258, %v2254
        %v2655 = vpack.c.b16 %v2263, %v2259
        %v2656 = vpack.c.b16 %v2264, %v2260
        %v2657 = vpack.c.b16 %v2265, %v2261
        %v2658 = vpack.c.b16 %v2266, %v2262
        %v2659 = vpack.c.b16 %v2271, %v2267
        %v2660 = vpack.c.b16 %v2272, %v2268
        %v2661 = vpack.c.b16 %v2273, %v2269
        %v2662 = vpack.c.b16 %v2274, %v2270
        %v2663 = vpack.c.b16 %v2279, %v2275
        %v2664 = vpack.c.b16 %v2280, %v2276
        %v2665 = vpack.c.b16 %v2281, %v2277
        %v2666 = vpack.c.b16 %v2282, %v2278
        %v2667 = vpack.c.b16 %v2287, %v2283
        %v2668 = vpack.c.b16 %v2288, %v2284
        %v2669 = vpack.c.b16 %v2289, %v2285
        %v2670 = vpack.c.b16 %v2290, %v2286
        %v2671 = vpack.c.b16 %v2295, %v2291
        %v2672 = vpack.c.b16 %v2296, %v2292
        %v2673 = vpack.c.b16 %v2297, %v2293
        %v2674 = vpack.c.b16 %v2298, %v2294
        %v2675 = vpack.c.b16 %v2303, %v2299
        %v2676 = vpack.c.b16 %v2304, %v2300
        %v2677 = vpack.c.b16 %v2305, %v2301
        %v2678 = vpack.c.b16 %v2306, %v2302
        %v2679 = vpack.c.b16 %v2311, %v2307
        %v2680 = vpack.c.b16 %v2312, %v2308
        %v2681 = vpack.c.b16 %v2313, %v2309
        %v2682 = vpack.c.b16 %v2314, %v2310
        %v2683 = vpack.c.b16 %v2319, %v2315
        %v2684 = vpack.c.b16 %v2320, %v2316
        %v2685 = vpack.c.b16 %v2321, %v2317
        %v2686 = vpack.c.b16 %v2322, %v2318
        %v2687 = vpack.c.b16 %v2327, %v2323
        %v2688 = vpack.c.b16 %v2328, %v2324
        %v2689 = vpack.c.b16 %v2329, %v2325
        %v2690 = vpack.c.b16 %v2330, %v2326
        %v2691 = vpack.c.b16 %v2335, %v2331
        %v2692 = vpack.c.b16 %v2336, %v2332
        %v2693 = vpack.c.b16 %v2337, %v2333
        %v2694 = vpack.c.b16 %v2338, %v2334
        %v2695 = vpack.c.b16 %v2343, %v2339
        %v2696 = vpack.c.b16 %v2344, %v2340
        %v2697 = vpack.c.b16 %v2345, %v2341
        %v2698 = vpack.c.b16 %v2346, %v2342
        %v2699 = vpack.c.b16 %v2351, %v2347
        %v2700 = vpack.c.b16 %v2352, %v2348
        %v2701 = vpack.c.b16 %v2353, %v2349
        %v2702 = vpack.c.b16 %v2354, %v2350
        %v2703 = vpack.c.b16 %v2359, %v2355
        %v2704 = vpack.c.b16 %v2360, %v2356
        %v2705 = vpack.c.b16 %v2361, %v2357
        %v2706 = vpack.c.b16 %v2362, %v2358
        %v2707 = vpack.c.b16 %v2367, %v2363
        %v2708 = vpack.c.b16 %v2368, %v2364
        %v2709 = vpack.c.b16 %v2369, %v2365
        %v2710 = vpack.c.b16 %v2370, %v2366
        %v2711 = vpack.c.b16 %v2375, %v2371
        %v2712 = vpack.c.b16 %v2376, %v2372
        %v2713 = vpack.c.b16 %v2377, %v2373
        %v2714 = vpack.c.b16 %v2378, %v2374
        %v2715 = vpack.c.b16 %v2383, %v2379
        %v2716 = vpack.c.b16 %v2384, %v2380
        %v2717 = vpack.c.b16 %v2385, %v2381
        %v2718 = vpack.c.b16 %v2386, %v2382
        %v2719 = vpack.c.b16 %v2391, %v2387
        %v2720 = vpack.c.b16 %v2392, %v2388
        %v2721 = vpack.c.b16 %v2393, %v2389
        %v2722 = vpack.c.b16 %v2394, %v2390
        %v2723 = vpack.c.b16 %v2399, %v2395
        %v2724 = vpack.c.b16 %v2400, %v2396
        %v2725 = vpack.c.b16 %v2401, %v2397
        %v2726 = vpack.c.b16 %v2402, %v2398
        %v2727 = vpack.c.b16 %v2407, %v2403
        %v2728 = vpack.c.b16 %v2408, %v2404
        %v2729 = vpack.c.b16 %v2409, %v2405
        %v2730 = vpack.c.b16 %v2410, %v2406
        %v2731 = vpack.c.b16 %v2415, %v2411
        %v2732 = vpack.c.b16 %v2416, %v2412
        %v2733 = vpack.c.b16 %v2417, %v2413
        %v2734 = vpack.c.b16 %v2418, %v2414
        %v2735 = vpack.c.b16 %v2423, %v2419
        %v2736 = vpack.c.b16 %v2424, %v2420
        %v2737 = vpack.c.b16 %v2425, %v2421
        %v2738 = vpack.c.b16 %v2426, %v2422
        %v2739 = vpack.c.b16 %v2431, %v2427
        %v2740 = vpack.c.b16 %v2432, %v2428
        %v2741 = vpack.c.b16 %v2433, %v2429
        %v2742 = vpack.c.b16 %v2434, %v2430
        %v2743 = vpack.c.b16 %v2439, %v2435
        %v2744 = vpack.c.b16 %v2440, %v2436
        %v2745 = vpack.c.b16 %v2441, %v2437
        %v2746 = vpack.c.b16 %v2442, %v2438
        %v2747 = vpack.c.b16 %v2447, %v2443
        %v2748 = vpack.c.b16 %v2448, %v2444
        %v2749 = vpack.c.b16 %v2449, %v2445
        %v2750 = vpack.c.b16 %v2450, %v2446
        %v2751 = vpack.c.b16 %v2455, %v2451
        %v2752 = vpack.c.b16 %v2456, %v2452
        %v2753 = vpack.c.b16 %v2457, %v2453
        %v2754 = vpack.c.b16 %v2458, %v2454
        %v2755 = vpack.c.b16 %v2463, %v2459
        %v2756 = vpack.c.b16 %v2464, %v2460
        %v2757 = vpack.c.b16 %v2465, %v2461
        %v2758 = vpack.c.b16 %v2466, %v2462
        %v2759 = vpack.c.b16 %v2471, %v2467
        %v2760 = vpack.c.b16 %v2472, %v2468
        %v2761 = vpack.c.b16 %v2473, %v2469
        %v2762 = vpack.c.b16 %v2474, %v2470
        %v2763 = vpack.c.b16 %v2479, %v2475
        %v2764 = vpack.c.b16 %v2480, %v2476
        %v2765 = vpack.c.b16 %v2481, %v2477
        %v2766 = vpack.c.b16 %v2482, %v2478
        %v2767 = vpack.c.b16 %v2487, %v2483
        %v2768 = vpack.c.b16 %v2488, %v2484
        %v2769 = vpack.c.b16 %v2489, %v2485
        %v2770 = vpack.c.b16 %v2490, %v2486
        %v2771 = vpack.c.b16 %v2495, %v2491
        %v2772 = vpack.c.b16 %v2496, %v2492
        %v2773 = vpack.c.b16 %v2497, %v2493
        %v2774 = vpack.c.b16 %v2498, %v2494
        %v2775 = vpack.c.b16 %v2503, %v2499
        %v2776 = vpack.c.b16 %v2504, %v2500
        %v2777 = vpack.c.b16 %v2505, %v2501
        %v2778 = vpack.c.b16 %v2506, %v2502
        %v2779 = vpack.c.b16 %v2511, %v2507
        %v2780 = vpack.c.b16 %v2512, %v2508
        %v2781 = vpack.c.b16 %v2513, %v2509
        %v2782 = vpack.c.b16 %v2514, %v2510
        %v2783 = vpack.c.b16 %v2519, %v2515
        %v2784 = vpack.c.b16 %v2520, %v2516
        %v2785 = vpack.c.b16 %v2521, %v2517
        %v2786 = vpack.c.b16 %v2522, %v2518
        %v2787 = vpack.c.b16 %v2527, %v2523
        %v2788 = vpack.c.b16 %v2528, %v2524
        %v2789 = vpack.c.b16 %v2529, %v2525
        %v2790 = vpack.c.b16 %v2530, %v2526
        %v2791 = vpack.c.b16 %v2535, %v2531
        %v2792 = vpack.c.b16 %v2536, %v2532
        %v2793 = vpack.c.b16 %v2537, %v2533
        %v2794 = vpack.c.b16 %v2538, %v2534
        %3051 = vmatprep.subr.bf16.mxu0 %v2540
        %3052 = vmatpush1.bf16.msra.mxu0 %v2539
        %3053 = vmatprep.subr.bf16.mxu0 %v2544
        %3054 = vmatpush1.bf16.msra.mxu0 %v2543
        %3055 = vmatprep.subr.bf16.mxu0 %v2548
        %3056 = vmatpush1.bf16.msra.mxu0 %v2547
        %3057 = vmatprep.subr.bf16.mxu0 %v2552
        %3058 = vmatpush1.bf16.msra.mxu0 %v2551
        %3059 = vmatprep.subr.bf16.mxu0 %v2556
        %3060 = vmatpush1.bf16.msra.mxu0 %v2555
        %3061 = vmatprep.subr.bf16.mxu0 %v2560
        %3062 = vmatpush1.bf16.msra.mxu0 %v2559
        %3063 = vmatprep.subr.bf16.mxu0 %v2564
        %3064 = vmatpush1.bf16.msra.mxu0 %v2563
        %3065 = vmatprep.subr.bf16.mxu0 %v2568
        %3066 = vmatpush1.bf16.msra.mxu0 %v2567
        %3067 = vmatprep.subr.bf16.mxu0 %v2572
        %3068 = vmatpush1.bf16.msra.mxu0 %v2571
        %3069 = vmatprep.subr.bf16.mxu0 %v2576
        %3070 = vmatpush1.bf16.msra.mxu0 %v2575
        %3071 = vmatprep.subr.bf16.mxu0 %v2580
        %3072 = vmatpush1.bf16.msra.mxu0 %v2579
        %3073 = vmatprep.subr.bf16.mxu0 %v2584
        %3074 = vmatpush1.bf16.msra.mxu0 %v2583
        %3075 = vmatprep.subr.bf16.mxu0 %v2588
        %3076 = vmatpush1.bf16.msra.mxu0 %v2587
        %3077 = vmatprep.subr.bf16.mxu0 %v2592
        %3078 = vmatpush1.bf16.msra.mxu0 %v2591
        %3079 = vmatprep.subr.bf16.mxu0 %v2596
        %3080 = vmatpush1.bf16.msra.mxu0 %v2595
        %3081 = vmatprep.subr.bf16.mxu0 %v2600
        %3082 = vmatpush1.bf16.msra.mxu0 %v2599
        %3083 = vmatprep.mubr.bf16.mxu0 %v1708
        %3084 = vmatmul.mubr.bf16.gmra.mrb[0].mxu0 %v1707
        %v3085 = vpop.f32.mrb[0].mxu0
        %v3086 = vadd.f32 %v1594, %v3085
        %v3087 = vpop.f32.mrb[0].mxu0
        %v3088 = vadd.f32 %v1598, %v3087
        %v3089 = vpop.f32.mrb[0].mxu0
        %v3090 = vadd.f32 %v1594, %v3089
        %v3091 = vpop.f32.mrb[0].mxu0
        %v3092 = vadd.f32 %v1598, %v3091
        %3093 = vmatprep.mubr.bf16.mxu0 %v1716
        %3094 = vmatmul.mubr.bf16.gmra.mrb[0].mxu0 %v1715
        %v3095 = vpop.f32.mrb[0].mxu0
        %v3096 = vadd.f32 %v1594, %v3095
        %v3097 = vpop.f32.mrb[0].mxu0
        %v3098 = vadd.f32 %v1598, %v3097
        %v3099 = vpop.f32.mrb[0].mxu0
        %v3100 = vadd.f32 %v1594, %v3099
        %v3101 = vpop.f32.mrb[0].mxu0
        %v3102 = vadd.f32 %v1598, %v3101
        %3103 = vmatprep.mubr.bf16.mxu0 %v1724
        %3104 = vmatmul.mubr.bf16.gmra.mrb[0].mxu0 %v1723
        %v3105 = vpop.f32.mrb[0].mxu0
        %v3106 = vadd.f32 %v1594, %v3105
        %v3107 = vpop.f32.mrb[0].mxu0
        %v3108 = vadd.f32 %v1598, %v3107
        %v3109 = vpop.f32.mrb[0].mxu0
        %v3110 = vadd.f32 %v1594, %v3109
        %v3111 = vpop.f32.mrb[0].mxu0
        %v3112 = vadd.f32 %v1598, %v3111
        %3113 = vmatprep.mubr.bf16.mxu0 %v1732
        %3114 = vmatmul.mubr.bf16.gmra.mrb[0].mxu0 %v1731
        %v3115 = vpop.f32.mrb[0].mxu0
        %v3116 = vadd.f32 %v1594, %v3115
        %v3117 = vpop.f32.mrb[0].mxu0
        %v3118 = vadd.f32 %v1598, %v3117
        %v3119 = vpop.f32.mrb[0].mxu0
        %v3120 = vadd.f32 %v1594, %v3119
        %v3121 = vpop.f32.mrb[0].mxu0
        %v3122 = vadd.f32 %v1598, %v3121
        %3123 = vdwg.mxu0
        %3124 = vmatprep.subr.bf16.mxu0 %v2604
        %3125 = vmatpush1.bf16.msra.mxu0 %v2603
        %3126 = vmatprep.subr.bf16.mxu0 %v2608
        %3127 = vmatpush1.bf16.msra.mxu0 %v2607
        %3128 = vmatprep.subr.bf16.mxu0 %v2612
        %3129 = vmatpush1.bf16.msra.mxu0 %v2611
        %3130 = vmatprep.subr.bf16.mxu0 %v2616
        %3131 = vmatpush1.bf16.msra.mxu0 %v2615
        %3132 = vmatprep.subr.bf16.mxu0 %v2620
        %3133 = vmatpush1.bf16.msra.mxu0 %v2619
        %3134 = vmatprep.subr.bf16.mxu0 %v2624
        %3135 = vmatpush1.bf16.msra.mxu0 %v2623
        %3136 = vmatprep.subr.bf16.mxu0 %v2628
        %3137 = vmatpush1.bf16.msra.mxu0 %v2627
        %3138 = vmatprep.subr.bf16.mxu0 %v2632
        %3139 = vmatpush1.bf16.msra.mxu0 %v2631
        %3140 = vmatprep.subr.bf16.mxu0 %v2636
        %3141 = vmatpush1.bf16.msra.mxu0 %v2635
        %3142 = vmatprep.subr.bf16.mxu0 %v2640
        %3143 = vmatpush1.bf16.msra.mxu0 %v2639
        %3144 = vmatprep.subr.bf16.mxu0 %v2644
        %3145 = vmatpush1.bf16.msra.mxu0 %v2643
        %3146 = vmatprep.subr.bf16.mxu0 %v2648
        %3147 = vmatpush1.bf16.msra.mxu0 %v2647
        %3148 = vmatprep.subr.bf16.mxu0 %v2652
        %3149 = vmatpush1.bf16.msra.mxu0 %v2651
        %3150 = vmatprep.subr.bf16.mxu0 %v2656
        %3151 = vmatpush1.bf16.msra.mxu0 %v2655
        %3152 = vmatprep.subr.bf16.mxu0 %v2660
        %3153 = vmatpush1.bf16.msra.mxu0 %v2659
        %3154 = vmatprep.subr.bf16.mxu0 %v2664
        %3155 = vmatpush1.bf16.msra.mxu0 %v2663
        %3156 = vmatprep.mubr.bf16.mxu0 %v1710
        %3157 = vmatmul.mubr.bf16.gmra.mrb[0].mxu0 %v1709
        %v3158 = vpop.f32.mrb[0].mxu0
        %v3159 = vadd.f32 %v3086, %v3158
        %v3160 = vpop.f32.mrb[0].mxu0
        %v3161 = vadd.f32 %v3088, %v3160
        %v3162 = vpop.f32.mrb[0].mxu0
        %v3163 = vadd.f32 %v3090, %v3162
        %v3164 = vpop.f32.mrb[0].mxu0
        %v3165 = vadd.f32 %v3092, %v3164
        %3166 = vmatprep.mubr.bf16.mxu0 %v1718
        %3167 = vmatmul.mubr.bf16.gmra.mrb[0].mxu0 %v1717
        %v3168 = vpop.f32.mrb[0].mxu0
        %v3169 = vadd.f32 %v3096, %v3168
        %v3170 = vpop.f32.mrb[0].mxu0
        %v3171 = vadd.f32 %v3098, %v3170
        %v3172 = vpop.f32.mrb[0].mxu0
        %v3173 = vadd.f32 %v3100, %v3172
        %v3174 = vpop.f32.mrb[0].mxu0
        %v3175 = vadd.f32 %v3102, %v3174
        %3176 = vmatprep.mubr.bf16.mxu0 %v1726
        %3177 = vmatmul.mubr.bf16.gmra.mrb[0].mxu0 %v1725
        %v3178 = vpop.f32.mrb[0].mxu0
        %v3179 = vadd.f32 %v3106, %v3178
        %v3180 = vpop.f32.mrb[0].mxu0
        %v3181 = vadd.f32 %v3108, %v3180
        %v3182 = vpop.f32.mrb[0].mxu0
        %v3183 = vadd.f32 %v3110, %v3182
        %v3184 = vpop.f32.mrb[0].mxu0
        %v3185 = vadd.f32 %v3112, %v3184
        %3186 = vmatprep.mubr.bf16.mxu0 %v1734
        %3187 = vmatmul.mubr.bf16.gmra.mrb[0].mxu0 %v1733
        %v3188 = vpop.f32.mrb[0].mxu0
        %v3189 = vadd.f32 %v3116, %v3188
        %v3190 = vpop.f32.mrb[0].mxu0
        %v3191 = vadd.f32 %v3118, %v3190
        %v3192 = vpop.f32.mrb[0].mxu0
        %v3193 = vadd.f32 %v3120, %v3192
        %v3194 = vpop.f32.mrb[0].mxu0
        %v3195 = vadd.f32 %v3122, %v3194
        %3196 = vdwg.mxu0
        %3197 = vmatprep.subr.bf16.mxu0 %v2668
        %3198 = vmatpush1.bf16.msra.mxu0 %v2667
        %3199 = vmatprep.subr.bf16.mxu0 %v2672
        %3200 = vmatpush1.bf16.msra.mxu0 %v2671
        %3201 = vmatprep.subr.bf16.mxu0 %v2676
        %3202 = vmatpush1.bf16.msra.mxu0 %v2675
        %3203 = vmatprep.subr.bf16.mxu0 %v2680
        %3204 = vmatpush1.bf16.msra.mxu0 %v2679
        %3205 = vmatprep.subr.bf16.mxu0 %v2684
        %3206 = vmatpush1.bf16.msra.mxu0 %v2683
        %3207 = vmatprep.subr.bf16.mxu0 %v2688
        %3208 = vmatpush1.bf16.msra.mxu0 %v2687
        %3209 = vmatprep.subr.bf16.mxu0 %v2692
        %3210 = vmatpush1.bf16.msra.mxu0 %v2691
        %3211 = vmatprep.subr.bf16.mxu0 %v2696
        %3212 = vmatpush1.bf16.msra.mxu0 %v2695
        %3213 = vmatprep.subr.bf16.mxu0 %v2700
        %3214 = vmatpush1.bf16.msra.mxu0 %v2699
        %3215 = vmatprep.subr.bf16.mxu0 %v2704
        %3216 = vmatpush1.bf16.msra.mxu0 %v2703
        %3217 = vmatprep.subr.bf16.mxu0 %v2708
        %3218 = vmatpush1.bf16.msra.mxu0 %v2707
        %3219 = vmatprep.subr.bf16.mxu0 %v2712
        %3220 = vmatpush1.bf16.msra.mxu0 %v2711
        %3221 = vmatprep.subr.bf16.mxu0 %v2716
        %3222 = vmatpush1.bf16.msra.mxu0 %v2715
        %3223 = vmatprep.subr.bf16.mxu0 %v2720
        %3224 = vmatpush1.bf16.msra.mxu0 %v2719
        %3225 = vmatprep.subr.bf16.mxu0 %v2724
        %3226 = vmatpush1.bf16.msra.mxu0 %v2723
        %3227 = vmatprep.subr.bf16.mxu0 %v2728
        %3228 = vmatpush1.bf16.msra.mxu0 %v2727
        %3229 = vmatprep.mubr.bf16.mxu0 %v1712
        %3230 = vmatmul.mubr.bf16.gmra.mrb[0].mxu0 %v1711
        %v3231 = vpop.f32.mrb[0].mxu0
        %v3232 = vadd.f32 %v3159, %v3231
        %v3233 = vpop.f32.mrb[0].mxu0
        %v3234 = vadd.f32 %v3161, %v3233
        %v3235 = vpop.f32.mrb[0].mxu0
        %v3236 = vadd.f32 %v3163, %v3235
        %v3237 = vpop.f32.mrb[0].mxu0
        %v3238 = vadd.f32 %v3165, %v3237
        %3239 = vmatprep.mubr.bf16.mxu0 %v1720
        %3240 = vmatmul.mubr.bf16.gmra.mrb[0].mxu0 %v1719
        %v3241 = vpop.f32.mrb[0].mxu0
        %v3242 = vadd.f32 %v3169, %v3241
        %v3243 = vpop.f32.mrb[0].mxu0
        %v3244 = vadd.f32 %v3171, %v3243
        %v3245 = vpop.f32.mrb[0].mxu0
        %v3246 = vadd.f32 %v3173, %v3245
        %v3247 = vpop.f32.mrb[0].mxu0
        %v3248 = vadd.f32 %v3175, %v3247
        %3249 = vmatprep.mubr.bf16.mxu0 %v1728
        %3250 = vmatmul.mubr.bf16.gmra.mrb[0].mxu0 %v1727
        %v3251 = vpop.f32.mrb[0].mxu0
        %v3252 = vadd.f32 %v3179, %v3251
        %v3253 = vpop.f32.mrb[0].mxu0
        %v3254 = vadd.f32 %v3181, %v3253
        %v3255 = vpop.f32.mrb[0].mxu0
        %v3256 = vadd.f32 %v3183, %v3255
        %v3257 = vpop.f32.mrb[0].mxu0
        %v3258 = vadd.f32 %v3185, %v3257
        %3259 = vmatprep.mubr.bf16.mxu0 %v1736
        %3260 = vmatmul.mubr.bf16.gmra.mrb[0].mxu0 %v1735
        %v3261 = vpop.f32.mrb[0].mxu0
        %v3262 = vadd.f32 %v3189, %v3261
        %v3263 = vpop.f32.mrb[0].mxu0
        %v3264 = vadd.f32 %v3191, %v3263
        %v3265 = vpop.f32.mrb[0].mxu0
        %v3266 = vadd.f32 %v3193, %v3265
        %v3267 = vpop.f32.mrb[0].mxu0
        %v3268 = vadd.f32 %v3195, %v3267
        %3269 = vdwg.mxu0
        %3270 = vmatprep.subr.bf16.mxu0 %v2732
        %3271 = vmatpush1.bf16.msra.mxu0 %v2731
        %3272 = vmatprep.subr.bf16.mxu0 %v2736
        %3273 = vmatpush1.bf16.msra.mxu0 %v2735
        %3274 = vmatprep.subr.bf16.mxu0 %v2740
        %3275 = vmatpush1.bf16.msra.mxu0 %v2739
        %3276 = vmatprep.subr.bf16.mxu0 %v2744
        %3277 = vmatpush1.bf16.msra.mxu0 %v2743
        %3278 = vmatprep.subr.bf16.mxu0 %v2748
        %3279 = vmatpush1.bf16.msra.mxu0 %v2747
        %3280 = vmatprep.subr.bf16.mxu0 %v2752
        %3281 = vmatpush1.bf16.msra.mxu0 %v2751
        %3282 = vmatprep.subr.bf16.mxu0 %v2756
        %3283 = vmatpush1.bf16.msra.mxu0 %v2755
        %3284 = vmatprep.subr.bf16.mxu0 %v2760
        %3285 = vmatpush1.bf16.msra.mxu0 %v2759
        %3286 = vmatprep.subr.bf16.mxu0 %v2764
        %3287 = vmatpush1.bf16.msra.mxu0 %v2763
        %3288 = vmatprep.subr.bf16.mxu0 %v2768
        %3289 = vmatpush1.bf16.msra.mxu0 %v2767
        %3290 = vmatprep.subr.bf16.mxu0 %v2772
        %3291 = vmatpush1.bf16.msra.mxu0 %v2771
        %3292 = vmatprep.subr.bf16.mxu0 %v2776
        %3293 = vmatpush1.bf16.msra.mxu0 %v2775
        %3294 = vmatprep.subr.bf16.mxu0 %v2780
        %3295 = vmatpush1.bf16.msra.mxu0 %v2779
        %3296 = vmatprep.subr.bf16.mxu0 %v2784
        %3297 = vmatpush1.bf16.msra.mxu0 %v2783
        %3298 = vmatprep.subr.bf16.mxu0 %v2788
        %3299 = vmatpush1.bf16.msra.mxu0 %v2787
        %3300 = vmatprep.subr.bf16.mxu0 %v2792
        %3301 = vmatpush1.bf16.msra.mxu0 %v2791
        %3302 = vmatprep.mubr.bf16.mxu0 %v1714
        %3303 = vmatmul.mubr.bf16.gmra.mrb[0].mxu0 %v1713
        %v3304 = vpop.f32.mrb[0].mxu0
        %v3305 = vadd.f32 %v3232, %v3304
        %v3306 = vpop.f32.mrb[0].mxu0
        %v3307 = vadd.f32 %v3234, %v3306
        %v3308 = vpop.f32.mrb[0].mxu0
        %v3309 = vadd.f32 %v3236, %v3308
        %v3310 = vpop.f32.mrb[0].mxu0
        %v3311 = vadd.f32 %v3238, %v3310
        %3312 = vmatprep.mubr.bf16.mxu0 %v1722
        %3313 = vmatmul.mubr.bf16.gmra.mrb[0].mxu0 %v1721
        %v3314 = vpop.f32.mrb[0].mxu0
        %v3315 = vadd.f32 %v3242, %v3314
        %v3316 = vpop.f32.mrb[0].mxu0
        %v3317 = vadd.f32 %v3244, %v3316
        %v3318 = vpop.f32.mrb[0].mxu0
        %v3319 = vadd.f32 %v3246, %v3318
        %v3320 = vpop.f32.mrb[0].mxu0
        %v3321 = vadd.f32 %v3248, %v3320
        %3322 = vmatprep.mubr.bf16.mxu0 %v1730
        %3323 = vmatmul.mubr.bf16.gmra.mrb[0].mxu0 %v1729
        %v3324 = vpop.f32.mrb[0].mxu0
        %v3325 = vadd.f32 %v3252, %v3324
        %v3326 = vpop.f32.mrb[0].mxu0
        %v3327 = vadd.f32 %v3254, %v3326
        %v3328 = vpop.f32.mrb[0].mxu0
        %v3329 = vadd.f32 %v3256, %v3328
        %v3330 = vpop.f32.mrb[0].mxu0
        %v3331 = vadd.f32 %v3258, %v3330
        %3332 = vmatprep.mubr.bf16.mxu0 %v1738
        %3333 = vmatmul.mubr.bf16.gmra.mrb[0].mxu0 %v1737
        %v3334 = vpop.f32.mrb[0].mxu0
        %v3335 = vadd.f32 %v3262, %v3334
        %v3336 = vpop.f32.mrb[0].mxu0
        %v3337 = vadd.f32 %v3264, %v3336
        %v3338 = vpop.f32.mrb[0].mxu0
        %v3339 = vadd.f32 %v3266, %v3338
        %v3340 = vpop.f32.mrb[0].mxu0
        %v3341 = vadd.f32 %v3268, %v3340
        %3342 = vdwg.mxu0
        %3343 = vmatprep.subr.bf16.mxu0 %v2542
        %3344 = vmatpush1.bf16.msra.mxu0 %v2541
        %3345 = vmatprep.subr.bf16.mxu0 %v2546
        %3346 = vmatpush1.bf16.msra.mxu0 %v2545
        %3347 = vmatprep.subr.bf16.mxu0 %v2550
        %3348 = vmatpush1.bf16.msra.mxu0 %v2549
        %3349 = vmatprep.subr.bf16.mxu0 %v2554
        %3350 = vmatpush1.bf16.msra.mxu0 %v2553
        %3351 = vmatprep.subr.bf16.mxu0 %v2558
        %3352 = vmatpush1.bf16.msra.mxu0 %v2557
        %3353 = vmatprep.subr.bf16.mxu0 %v2562
        %3354 = vmatpush1.bf16.msra.mxu0 %v2561
        %3355 = vmatprep.subr.bf16.mxu0 %v2566
        %3356 = vmatpush1.bf16.msra.mxu0 %v2565
        %3357 = vmatprep.subr.bf16.mxu0 %v2570
        %3358 = vmatpush1.bf16.msra.mxu0 %v2569
        %3359 = vmatprep.subr.bf16.mxu0 %v2574
        %3360 = vmatpush1.bf16.msra.mxu0 %v2573
        %3361 = vmatprep.subr.bf16.mxu0 %v2578
        %3362 = vmatpush1.bf16.msra.mxu0 %v2577
        %3363 = vmatprep.subr.bf16.mxu0 %v2582
        %3364 = vmatpush1.bf16.msra.mxu0 %v2581
        %3365 = vmatprep.subr.bf16.mxu0 %v2586
        %3366 = vmatpush1.bf16.msra.mxu0 %v2585
        %3367 = vmatprep.subr.bf16.mxu0 %v2590
        %3368 = vmatpush1.bf16.msra.mxu0 %v2589
        %3369 = vmatprep.subr.bf16.mxu0 %v2594
        %3370 = vmatpush1.bf16.msra.mxu0 %v2593
        %3371 = vmatprep.subr.bf16.mxu0 %v2598
        %3372 = vmatpush1.bf16.msra.mxu0 %v2597
        %3373 = vmatprep.subr.bf16.mxu0 %v2602
        %3374 = vmatpush1.bf16.msra.mxu0 %v2601
        %3375 = vmatprep.mubr.bf16.mxu0 %v1708
        %3376 = vmatmul.mubr.bf16.gmra.mrb[0].mxu0 %v1707
        %v3377 = vpop.f32.mrb[0].mxu0
        %v3378 = vadd.f32 %v1602, %v3377
        %v3379 = vpop.f32.mrb[0].mxu0
        %v3380 = vadd.f32 %v1606, %v3379
        %v3381 = vpop.f32.mrb[0].mxu0
        %v3382 = vadd.f32 %v1602, %v3381
        %v3383 = vpop.f32.mrb[0].mxu0
        %v3384 = vadd.f32 %v1606, %v3383
        %3385 = vmatprep.mubr.bf16.mxu0 %v1716
        %3386 = vmatmul.mubr.bf16.gmra.mrb[0].mxu0 %v1715
        %v3387 = vpop.f32.mrb[0].mxu0
        %v3388 = vadd.f32 %v1602, %v3387
        %v3389 = vpop.f32.mrb[0].mxu0
        %v3390 = vadd.f32 %v1606, %v3389
        %v3391 = vpop.f32.mrb[0].mxu0
        %v3392 = vadd.f32 %v1602, %v3391
        %v3393 = vpop.f32.mrb[0].mxu0
        %v3394 = vadd.f32 %v1606, %v3393
        %3395 = vmatprep.mubr.bf16.mxu0 %v1724
        %3396 = vmatmul.mubr.bf16.gmra.mrb[0].mxu0 %v1723
        %v3397 = vpop.f32.mrb[0].mxu0
        %v3398 = vadd.f32 %v1602, %v3397
        %v3399 = vpop.f32.mrb[0].mxu0
        %v3400 = vadd.f32 %v1606, %v3399
        %v3401 = vpop.f32.mrb[0].mxu0
        %v3402 = vadd.f32 %v1602, %v3401
        %v3403 = vpop.f32.mrb[0].mxu0
        %v3404 = vadd.f32 %v1606, %v3403
        %3405 = vmatprep.mubr.bf16.mxu0 %v1732
        %3406 = vmatmul.mubr.bf16.gmra.mrb[0].mxu0 %v1731
        %v3407 = vpop.f32.mrb[0].mxu0
        %v3408 = vadd.f32 %v1602, %v3407
        %v3409 = vpop.f32.mrb[0].mxu0
        %v3410 = vadd.f32 %v1606, %v3409
        %v3411 = vpop.f32.mrb[0].mxu0
        %v3412 = vadd.f32 %v1602, %v3411
        %v3413 = vpop.f32.mrb[0].mxu0
        %v3414 = vadd.f32 %v1606, %v3413
        %3415 = vdwg.mxu0
        %3416 = vmatprep.subr.bf16.mxu0 %v2606
        %3417 = vmatpush1.bf16.msra.mxu0 %v2605
        %3418 = vmatprep.subr.bf16.mxu0 %v2610
        %3419 = vmatpush1.bf16.msra.mxu0 %v2609
        %3420 = vmatprep.subr.bf16.mxu0 %v2614
        %3421 = vmatpush1.bf16.msra.mxu0 %v2613
        %3422 = vmatprep.subr.bf16.mxu0 %v2618
        %3423 = vmatpush1.bf16.msra.mxu0 %v2617
        %3424 = vmatprep.subr.bf16.mxu0 %v2622
        %3425 = vmatpush1.bf16.msra.mxu0 %v2621
        %3426 = vmatprep.subr.bf16.mxu0 %v2626
        %3427 = vmatpush1.bf16.msra.mxu0 %v2625
        %3428 = vmatprep.subr.bf16.mxu0 %v2630
        %3429 = vmatpush1.bf16.msra.mxu0 %v2629
        %3430 = vmatprep.subr.bf16.mxu0 %v2634
        %3431 = vmatpush1.bf16.msra.mxu0 %v2633
        %3432 = vmatprep.subr.bf16.mxu0 %v2638
        %3433 = vmatpush1.bf16.msra.mxu0 %v2637
        %3434 = vmatprep.subr.bf16.mxu0 %v2642
        %3435 = vmatpush1.bf16.msra.mxu0 %v2641
        %3436 = vmatprep.subr.bf16.mxu0 %v2646
        %3437 = vmatpush1.bf16.msra.mxu0 %v2645
        %3438 = vmatprep.subr.bf16.mxu0 %v2650
        %3439 = vmatpush1.bf16.msra.mxu0 %v2649
        %3440 = vmatprep.subr.bf16.mxu0 %v2654
        %3441 = vmatpush1.bf16.msra.mxu0 %v2653
        %3442 = vmatprep.subr.bf16.mxu0 %v2658
        %3443 = vmatpush1.bf16.msra.mxu0 %v2657
        %3444 = vmatprep.subr.bf16.mxu0 %v2662
        %3445 = vmatpush1.bf16.msra.mxu0 %v2661
        %3446 = vmatprep.subr.bf16.mxu0 %v2666
        %3447 = vmatpush1.bf16.msra.mxu0 %v2665
        %3448 = vmatprep.mubr.bf16.mxu0 %v1710
        %3449 = vmatmul.mubr.bf16.gmra.mrb[0].mxu0 %v1709
        %v3450 = vpop.f32.mrb[0].mxu0
        %v3451 = vadd.f32 %v3378, %v3450
        %v3452 = vpop.f32.mrb[0].mxu0
        %v3453 = vadd.f32 %v3380, %v3452
        %v3454 = vpop.f32.mrb[0].mxu0
        %v3455 = vadd.f32 %v3382, %v3454
        %v3456 = vpop.f32.mrb[0].mxu0
        %v3457 = vadd.f32 %v3384, %v3456
        %3458 = vmatprep.mubr.bf16.mxu0 %v1718
        %3459 = vmatmul.mubr.bf16.gmra.mrb[0].mxu0 %v1717
        %v3460 = vpop.f32.mrb[0].mxu0
        %v3461 = vadd.f32 %v3388, %v3460
        %v3462 = vpop.f32.mrb[0].mxu0
        %v3463 = vadd.f32 %v3390, %v3462
        %v3464 = vpop.f32.mrb[0].mxu0
        %v3465 = vadd.f32 %v3392, %v3464
        %v3466 = vpop.f32.mrb[0].mxu0
        %v3467 = vadd.f32 %v3394, %v3466
        %3468 = vmatprep.mubr.bf16.mxu0 %v1726
        %3469 = vmatmul.mubr.bf16.gmra.mrb[0].mxu0 %v1725
        %v3470 = vpop.f32.mrb[0].mxu0
        %v3471 = vadd.f32 %v3398, %v3470
        %v3472 = vpop.f32.mrb[0].mxu0
        %v3473 = vadd.f32 %v3400, %v3472
        %v3474 = vpop.f32.mrb[0].mxu0
        %v3475 = vadd.f32 %v3402, %v3474
        %v3476 = vpop.f32.mrb[0].mxu0
        %v3477 = vadd.f32 %v3404, %v3476
        %3478 = vmatprep.mubr.bf16.mxu0 %v1734
        %3479 = vmatmul.mubr.bf16.gmra.mrb[0].mxu0 %v1733
        %v3480 = vpop.f32.mrb[0].mxu0
        %v3481 = vadd.f32 %v3408, %v3480
        %v3482 = vpop.f32.mrb[0].mxu0
        %v3483 = vadd.f32 %v3410, %v3482
        %v3484 = vpop.f32.mrb[0].mxu0
        %v3485 = vadd.f32 %v3412, %v3484
        %v3486 = vpop.f32.mrb[0].mxu0
        %v3487 = vadd.f32 %v3414, %v3486
        %3488 = vdwg.mxu0
        %3489 = vmatprep.subr.bf16.mxu0 %v2670
        %3490 = vmatpush1.bf16.msra.mxu0 %v2669
        %3491 = vmatprep.subr.bf16.mxu0 %v2674
        %3492 = vmatpush1.bf16.msra.mxu0 %v2673
        %3493 = vmatprep.subr.bf16.mxu0 %v2678
        %3494 = vmatpush1.bf16.msra.mxu0 %v2677
        %3495 = vmatprep.subr.bf16.mxu0 %v2682
        %3496 = vmatpush1.bf16.msra.mxu0 %v2681
        %3497 = vmatprep.subr.bf16.mxu0 %v2686
        %3498 = vmatpush1.bf16.msra.mxu0 %v2685
        %3499 = vmatprep.subr.bf16.mxu0 %v2690
        %3500 = vmatpush1.bf16.msra.mxu0 %v2689
        %3501 = vmatprep.subr.bf16.mxu0 %v2694
        %3502 = vmatpush1.bf16.msra.mxu0 %v2693
        %3503 = vmatprep.subr.bf16.mxu0 %v2698
        %3504 = vmatpush1.bf16.msra.mxu0 %v2697
        %3505 = vmatprep.subr.bf16.mxu0 %v2702
        %3506 = vmatpush1.bf16.msra.mxu0 %v2701
        %3507 = vmatprep.subr.bf16.mxu0 %v2706
        %3508 = vmatpush1.bf16.msra.mxu0 %v2705
        %3509 = vmatprep.subr.bf16.mxu0 %v2710
        %3510 = vmatpush1.bf16.msra.mxu0 %v2709
        %3511 = vmatprep.subr.bf16.mxu0 %v2714
        %3512 = vmatpush1.bf16.msra.mxu0 %v2713
        %3513 = vmatprep.subr.bf16.mxu0 %v2718
        %3514 = vmatpush1.bf16.msra.mxu0 %v2717
        %3515 = vmatprep.subr.bf16.mxu0 %v2722
        %3516 = vmatpush1.bf16.msra.mxu0 %v2721
        %3517 = vmatprep.subr.bf16.mxu0 %v2726
        %3518 = vmatpush1.bf16.msra.mxu0 %v2725
        %3519 = vmatprep.subr.bf16.mxu0 %v2730
        %3520 = vmatpush1.bf16.msra.mxu0 %v2729
        %3521 = vmatprep.mubr.bf16.mxu0 %v1712
        %3522 = vmatmul.mubr.bf16.gmra.mrb[0].mxu0 %v1711
        %v3523 = vpop.f32.mrb[0].mxu0
        %v3524 = vadd.f32 %v3451, %v3523
        %v3525 = vpop.f32.mrb[0].mxu0
        %v3526 = vadd.f32 %v3453, %v3525
        %v3527 = vpop.f32.mrb[0].mxu0
        %v3528 = vadd.f32 %v3455, %v3527
        %v3529 = vpop.f32.mrb[0].mxu0
        %v3530 = vadd.f32 %v3457, %v3529
        %3531 = vmatprep.mubr.bf16.mxu0 %v1720
        %3532 = vmatmul.mubr.bf16.gmra.mrb[0].mxu0 %v1719
        %v3533 = vpop.f32.mrb[0].mxu0
        %v3534 = vadd.f32 %v3461, %v3533
        %v3535 = vpop.f32.mrb[0].mxu0
        %v3536 = vadd.f32 %v3463, %v3535
        %v3537 = vpop.f32.mrb[0].mxu0
        %v3538 = vadd.f32 %v3465, %v3537
        %v3539 = vpop.f32.mrb[0].mxu0
        %v3540 = vadd.f32 %v3467, %v3539
        %3541 = vmatprep.mubr.bf16.mxu0 %v1728
        %3542 = vmatmul.mubr.bf16.gmra.mrb[0].mxu0 %v1727
        %v3543 = vpop.f32.mrb[0].mxu0
        %v3544 = vadd.f32 %v3471, %v3543
        %v3545 = vpop.f32.mrb[0].mxu0
        %v3546 = vadd.f32 %v3473, %v3545
        %v3547 = vpop.f32.mrb[0].mxu0
        %v3548 = vadd.f32 %v3475, %v3547
        %v3549 = vpop.f32.mrb[0].mxu0
        %v3550 = vadd.f32 %v3477, %v3549
        %3551 = vmatprep.mubr.bf16.mxu0 %v1736
        %3552 = vmatmul.mubr.bf16.gmra.mrb[0].mxu0 %v1735
        %v3553 = vpop.f32.mrb[0].mxu0
        %v3554 = vadd.f32 %v3481, %v3553
        %v3555 = vpop.f32.mrb[0].mxu0
        %v3556 = vadd.f32 %v3483, %v3555
        %v3557 = vpop.f32.mrb[0].mxu0
        %v3558 = vadd.f32 %v3485, %v3557
        %v3559 = vpop.f32.mrb[0].mxu0
        %v3560 = vadd.f32 %v3487, %v3559
        %3561 = vdwg.mxu0
        %3562 = vmatprep.subr.bf16.mxu0 %v2734
        %3563 = vmatpush1.bf16.msra.mxu0 %v2733
        %3564 = vmatprep.subr.bf16.mxu0 %v2738
        %3565 = vmatpush1.bf16.msra.mxu0 %v2737
        %3566 = vmatprep.subr.bf16.mxu0 %v2742
        %3567 = vmatpush1.bf16.msra.mxu0 %v2741
        %3568 = vmatprep.subr.bf16.mxu0 %v2746
        %3569 = vmatpush1.bf16.msra.mxu0 %v2745
        %3570 = vmatprep.subr.bf16.mxu0 %v2750
        %3571 = vmatpush1.bf16.msra.mxu0 %v2749
        %3572 = vmatprep.subr.bf16.mxu0 %v2754
        %3573 = vmatpush1.bf16.msra.mxu0 %v2753
        %3574 = vmatprep.subr.bf16.mxu0 %v2758
        %3575 = vmatpush1.bf16.msra.mxu0 %v2757
        %3576 = vmatprep.subr.bf16.mxu0 %v2762
        %3577 = vmatpush1.bf16.msra.mxu0 %v2761
        %3578 = vmatprep.subr.bf16.mxu0 %v2766
        %3579 = vmatpush1.bf16.msra.mxu0 %v2765
        %3580 = vmatprep.subr.bf16.mxu0 %v2770
        %3581 = vmatpush1.bf16.msra.mxu0 %v2769
        %3582 = vmatprep.subr.bf16.mxu0 %v2774
        %3583 = vmatpush1.bf16.msra.mxu0 %v2773
        %3584 = vmatprep.subr.bf16.mxu0 %v2778
        %3585 = vmatpush1.bf16.msra.mxu0 %v2777
        %3586 = vmatprep.subr.bf16.mxu0 %v2782
        %3587 = vmatpush1.bf16.msra.mxu0 %v2781
        %3588 = vmatprep.subr.bf16.mxu0 %v2786
        %3589 = vmatpush1.bf16.msra.mxu0 %v2785
        %3590 = vmatprep.subr.bf16.mxu0 %v2790
        %3591 = vmatpush1.bf16.msra.mxu0 %v2789
        %3592 = vmatprep.subr.bf16.mxu0 %v2794
        %3593 = vmatpush1.bf16.msra.mxu0 %v2793
        %3594 = vmatprep.mubr.bf16.mxu0 %v1714
        %3595 = vmatmul.mubr.bf16.gmra.mrb[0].mxu0 %v1713
        %v3596 = vpop.f32.mrb[0].mxu0
        %v3597 = vadd.f32 %v3524, %v3596
        %v3598 = vpop.f32.mrb[0].mxu0
        %v3599 = vadd.f32 %v3526, %v3598
        %v3600 = vpop.f32.mrb[0].mxu0
        %v3601 = vadd.f32 %v3528, %v3600
        %v3602 = vpop.f32.mrb[0].mxu0
        %v3603 = vadd.f32 %v3530, %v3602
        %3604 = vmatprep.mubr.bf16.mxu0 %v1722
        %3605 = vmatmul.mubr.bf16.gmra.mrb[0].mxu0 %v1721
        %v3606 = vpop.f32.mrb[0].mxu0
        %v3607 = vadd.f32 %v3534, %v3606
        %v3608 = vpop.f32.mrb[0].mxu0
        %v3609 = vadd.f32 %v3536, %v3608
        %v3610 = vpop.f32.mrb[0].mxu0
        %v3611 = vadd.f32 %v3538, %v3610
        %v3612 = vpop.f32.mrb[0].mxu0
        %v3613 = vadd.f32 %v3540, %v3612
        %3614 = vmatprep.mubr.bf16.mxu0 %v1730
        %3615 = vmatmul.mubr.bf16.gmra.mrb[0].mxu0 %v1729
        %v3616 = vpop.f32.mrb[0].mxu0
        %v3617 = vadd.f32 %v3544, %v3616
        %v3618 = vpop.f32.mrb[0].mxu0
        %v3619 = vadd.f32 %v3546, %v3618
        %v3620 = vpop.f32.mrb[0].mxu0
        %v3621 = vadd.f32 %v3548, %v3620
        %v3622 = vpop.f32.mrb[0].mxu0
        %v3623 = vadd.f32 %v3550, %v3622
        %3624 = vmatprep.mubr.bf16.mxu0 %v1738
        %3625 = vmatmul.mubr.bf16.gmra.mrb[0].mxu0 %v1737
        %v3626 = vpop.f32.mrb[0].mxu0
        %v3627 = vadd.f32 %v3554, %v3626
        %v3628 = vpop.f32.mrb[0].mxu0
        %v3629 = vadd.f32 %v3556, %v3628
        %v3630 = vpop.f32.mrb[0].mxu0
        %v3631 = vadd.f32 %v3558, %v3630
        %v3632 = vpop.f32.mrb[0].mxu0
        %v3633 = vadd.f32 %v3560, %v3632
        %3634 = vdwg.mxu0
        %v3635 = vmax.f32 %v3305, 0.0
        %v3636 = vmax.f32 %v3307, 0.0
        %v3637 = vmax.f32 %v3597, 0.0
        %v3638 = vmax.f32 %v3599, 0.0
        %v3639 = vmax.f32 %v3309, 0.0
        %v3640 = vmax.f32 %v3311, 0.0
        %v3641 = vmax.f32 %v3601, 0.0
        %v3642 = vmax.f32 %v3603, 0.0
        %v3643 = vmax.f32 %v3315, 0.0
        %v3644 = vmax.f32 %v3317, 0.0
        %v3645 = vmax.f32 %v3607, 0.0
        %v3646 = vmax.f32 %v3609, 0.0
        %v3647 = vmax.f32 %v3319, 0.0
        %v3648 = vmax.f32 %v3321, 0.0
        %v3649 = vmax.f32 %v3611, 0.0
        %v3650 = vmax.f32 %v3613, 0.0
        %v3651 = vmax.f32 %v3325, 0.0
        %v3652 = vmax.f32 %v3327, 0.0
        %v3653 = vmax.f32 %v3617, 0.0
        %v3654 = vmax.f32 %v3619, 0.0
        %v3655 = vmax.f32 %v3329, 0.0
        %v3656 = vmax.f32 %v3331, 0.0
        %v3657 = vmax.f32 %v3621, 0.0
        %v3658 = vmax.f32 %v3623, 0.0
        %v3659 = vmax.f32 %v3335, 0.0
        %v3660 = vmax.f32 %v3337, 0.0
        %v3661 = vmax.f32 %v3627, 0.0
        %v3662 = vmax.f32 %v3629, 0.0
        %v3663 = vmax.f32 %v3339, 0.0
        %v3664 = vmax.f32 %v3341, 0.0
        %v3665 = vmax.f32 %v3631, 0.0
        %v3666 = vmax.f32 %v3633, 0.0
        %v3667 = vpack.c.bf16 %v3639, %v3635
        %v3668 = vpack.c.bf16 %v3640, %v3636
        %v3669 = vpack.c.bf16 %v3641, %v3637
        %v3670 = vpack.c.bf16 %v3642, %v3638
        %v3671 = vpack.c.bf16 %v3647, %v3643
        %v3672 = vpack.c.bf16 %v3648, %v3644
        %v3673 = vpack.c.bf16 %v3649, %v3645
        %v3674 = vpack.c.bf16 %v3650, %v3646
        %v3675 = vpack.c.bf16 %v3655, %v3651
        %v3676 = vpack.c.bf16 %v3656, %v3652
        %v3677 = vpack.c.bf16 %v3657, %v3653
        %v3678 = vpack.c.bf16 %v3658, %v3654
        %v3679 = vpack.c.bf16 %v3663, %v3659
        %v3680 = vpack.c.bf16 %v3664, %v3660
        %v3681 = vpack.c.bf16 %v3665, %v3661
        %v3682 = vpack.c.bf16 %v3666, %v3662
        %v3683 = vld [vmem:[%s1091] sm:$0xff]
        %v3684 = vld [vmem:[%s1091 + $0x8] sm:$0xff]
        %v3685 = vld [vmem:[%s1091 + $0x10] sm:$0xff]
        %v3686 = vld [vmem:[%s1091 + $0x18] sm:$0xff]
        %v3687 = vld [vmem:[%s1091 + $0x20] sm:$0xff]
        %v3688 = vld [vmem:[%s1091 + $0x28] sm:$0xff]
        %v3689 = vld [vmem:[%s1091 + $0x30] sm:$0xff]
        %v3690 = vld [vmem:[%s1091 + $0x38] sm:$0xff]
        %v3691 = vld [vmem:[%s1091 + $0x40] sm:$0xff]
        %v3692 = vld [vmem:[%s1091 + $0x48] sm:$0xff]
        %v3693 = vld [vmem:[%s1091 + $0x50] sm:$0xff]
        %v3694 = vld [vmem:[%s1091 + $0x58] sm:$0xff]
        %v3695 = vld [vmem:[%s1091 + $0x60] sm:$0xff]
        %v3696 = vld [vmem:[%s1091 + $0x68] sm:$0xff]
        %v3697 = vld [vmem:[%s1091 + $0x70] sm:$0xff]
        %v3698 = vld [vmem:[%s1091 + $0x78] sm:$0xff]
        %v3699 = vld [vmem:[%s1091 + $0x80] sm:$0xff]
        %v3700 = vld [vmem:[%s1091 + $0x88] sm:$0xff]
        %v3701 = vld [vmem:[%s1091 + $0x90] sm:$0xff]
        %v3702 = vld [vmem:[%s1091 + $0x98] sm:$0xff]
        %v3703 = vld [vmem:[%s1091 + $0xa0] sm:$0xff]
        %v3704 = vld [vmem:[%s1091 + $0xa8] sm:$0xff]
        %v3705 = vld [vmem:[%s1091 + $0xb0] sm:$0xff]
        %v3706 = vld [vmem:[%s1091 + $0xb8] sm:$0xff]
        %v3707 = vld [vmem:[%s1091 + $0xc0] sm:$0xff]
        %v3708 = vld [vmem:[%s1091 + $0xc8] sm:$0xff]
        %v3709 = vld [vmem:[%s1091 + $0xd0] sm:$0xff]
        %v3710 = vld [vmem:[%s1091 + $0xd8] sm:$0xff]
        %v3711 = vld [vmem:[%s1091 + $0xe0] sm:$0xff]
        %v3712 = vld [vmem:[%s1091 + $0xe8] sm:$0xff]
        %v3713 = vld [vmem:[%s1091 + $0xf0] sm:$0xff]
        %v3714 = vld [vmem:[%s1091 + $0xf8] sm:$0xff]
        %v3715 = vld [vmem:[%s1091 + $0x100] sm:$0xff]
        %v3716 = vld [vmem:[%s1091 + $0x108] sm:$0xff]
        %v3717 = vld [vmem:[%s1091 + $0x110] sm:$0xff]
        %v3718 = vld [vmem:[%s1091 + $0x118] sm:$0xff]
        %v3719 = vld [vmem:[%s1091 + $0x120] sm:$0xff]
        %v3720 = vld [vmem:[%s1091 + $0x128] sm:$0xff]
        %v3721 = vld [vmem:[%s1091 + $0x130] sm:$0xff]
        %v3722 = vld [vmem:[%s1091 + $0x138] sm:$0xff]
        %v3723 = vld [vmem:[%s1091 + $0x140] sm:$0xff]
        %v3724 = vld [vmem:[%s1091 + $0x148] sm:$0xff]
        %v3725 = vld [vmem:[%s1091 + $0x150] sm:$0xff]
        %v3726 = vld [vmem:[%s1091 + $0x158] sm:$0xff]
        %v3727 = vld [vmem:[%s1091 + $0x160] sm:$0xff]
        %v3728 = vld [vmem:[%s1091 + $0x168] sm:$0xff]
        %v3729 = vld [vmem:[%s1091 + $0x170] sm:$0xff]
        %v3730 = vld [vmem:[%s1091 + $0x178] sm:$0xff]
        %v3731 = vld [vmem:[%s1091 + $0x180] sm:$0xff]
        %v3732 = vld [vmem:[%s1091 + $0x188] sm:$0xff]
        %v3733 = vld [vmem:[%s1091 + $0x190] sm:$0xff]
        %v3734 = vld [vmem:[%s1091 + $0x198] sm:$0xff]
        %v3735 = vld [vmem:[%s1091 + $0x1a0] sm:$0xff]
        %v3736 = vld [vmem:[%s1091 + $0x1a8] sm:$0xff]
        %v3737 = vld [vmem:[%s1091 + $0x1b0] sm:$0xff]
        %v3738 = vld [vmem:[%s1091 + $0x1b8] sm:$0xff]
        %v3739 = vld [vmem:[%s1091 + $0x1c0] sm:$0xff]
        %v3740 = vld [vmem:[%s1091 + $0x1c8] sm:$0xff]
        %v3741 = vld [vmem:[%s1091 + $0x1d0] sm:$0xff]
        %v3742 = vld [vmem:[%s1091 + $0x1d8] sm:$0xff]
        %v3743 = vld [vmem:[%s1091 + $0x1e0] sm:$0xff]
        %v3744 = vld [vmem:[%s1091 + $0x1e8] sm:$0xff]
        %v3745 = vld [vmem:[%s1091 + $0x1f0] sm:$0xff]
        %v3746 = vld [vmem:[%s1091 + $0x1f8] sm:$0xff]
        %v3747 = vld [vmem:[%s1091 + $0x200] sm:$0xff]
        %v3748 = vld [vmem:[%s1091 + $0x208] sm:$0xff]
        %v3749 = vld [vmem:[%s1091 + $0x210] sm:$0xff]
        %v3750 = vld [vmem:[%s1091 + $0x218] sm:$0xff]
        %v3751 = vld [vmem:[%s1091 + $0x220] sm:$0xff]
        %v3752 = vld [vmem:[%s1091 + $0x228] sm:$0xff]
        %v3753 = vld [vmem:[%s1091 + $0x230] sm:$0xff]
        %v3754 = vld [vmem:[%s1091 + $0x238] sm:$0xff]
        %v3755 = vld [vmem:[%s1091 + $0x240] sm:$0xff]
        %v3756 = vld [vmem:[%s1091 + $0x248] sm:$0xff]
        %v3757 = vld [vmem:[%s1091 + $0x250] sm:$0xff]
        %v3758 = vld [vmem:[%s1091 + $0x258] sm:$0xff]
        %v3759 = vld [vmem:[%s1091 + $0x260] sm:$0xff]
        %v3760 = vld [vmem:[%s1091 + $0x268] sm:$0xff]
        %v3761 = vld [vmem:[%s1091 + $0x270] sm:$0xff]
        %v3762 = vld [vmem:[%s1091 + $0x278] sm:$0xff]
        %v3763 = vld [vmem:[%s1091 + $0x280] sm:$0xff]
        %v3764 = vld [vmem:[%s1091 + $0x288] sm:$0xff]
        %v3765 = vld [vmem:[%s1091 + $0x290] sm:$0xff]
        %v3766 = vld [vmem:[%s1091 + $0x298] sm:$0xff]
        %v3767 = vld [vmem:[%s1091 + $0x2a0] sm:$0xff]
        %v3768 = vld [vmem:[%s1091 + $0x2a8] sm:$0xff]
        %v3769 = vld [vmem:[%s1091 + $0x2b0] sm:$0xff]
        %v3770 = vld [vmem:[%s1091 + $0x2b8] sm:$0xff]
        %v3771 = vld [vmem:[%s1091 + $0x2c0] sm:$0xff]
        %v3772 = vld [vmem:[%s1091 + $0x2c8] sm:$0xff]
        %v3773 = vld [vmem:[%s1091 + $0x2d0] sm:$0xff]
        %v3774 = vld [vmem:[%s1091 + $0x2d8] sm:$0xff]
        %v3775 = vld [vmem:[%s1091 + $0x2e0] sm:$0xff]
        %v3776 = vld [vmem:[%s1091 + $0x2e8] sm:$0xff]
        %v3777 = vld [vmem:[%s1091 + $0x2f0] sm:$0xff]
        %v3778 = vld [vmem:[%s1091 + $0x2f8] sm:$0xff]
        %v3779 = vld [vmem:[%s1091 + $0x300] sm:$0xff]
        %v3780 = vld [vmem:[%s1091 + $0x308] sm:$0xff]
        %v3781 = vld [vmem:[%s1091 + $0x310] sm:$0xff]
        %v3782 = vld [vmem:[%s1091 + $0x318] sm:$0xff]
        %v3783 = vld [vmem:[%s1091 + $0x320] sm:$0xff]
        %v3784 = vld [vmem:[%s1091 + $0x328] sm:$0xff]
        %v3785 = vld [vmem:[%s1091 + $0x330] sm:$0xff]
        %v3786 = vld [vmem:[%s1091 + $0x338] sm:$0xff]
        %v3787 = vld [vmem:[%s1091 + $0x340] sm:$0xff]
        %v3788 = vld [vmem:[%s1091 + $0x348] sm:$0xff]
        %v3789 = vld [vmem:[%s1091 + $0x350] sm:$0xff]
        %v3790 = vld [vmem:[%s1091 + $0x358] sm:$0xff]
        %v3791 = vld [vmem:[%s1091 + $0x360] sm:$0xff]
        %v3792 = vld [vmem:[%s1091 + $0x368] sm:$0xff]
        %v3793 = vld [vmem:[%s1091 + $0x370] sm:$0xff]
        %v3794 = vld [vmem:[%s1091 + $0x378] sm:$0xff]
        %v3795 = vld [vmem:[%s1091 + $0x380] sm:$0xff]
        %v3796 = vld [vmem:[%s1091 + $0x388] sm:$0xff]
        %v3797 = vld [vmem:[%s1091 + $0x390] sm:$0xff]
        %v3798 = vld [vmem:[%s1091 + $0x398] sm:$0xff]
        %v3799 = vld [vmem:[%s1091 + $0x3a0] sm:$0xff]
        %v3800 = vld [vmem:[%s1091 + $0x3a8] sm:$0xff]
        %v3801 = vld [vmem:[%s1091 + $0x3b0] sm:$0xff]
        %v3802 = vld [vmem:[%s1091 + $0x3b8] sm:$0xff]
        %v3803 = vld [vmem:[%s1091 + $0x3c0] sm:$0xff]
        %v3804 = vld [vmem:[%s1091 + $0x3c8] sm:$0xff]
        %v3805 = vld [vmem:[%s1091 + $0x3d0] sm:$0xff]
        %v3806 = vld [vmem:[%s1091 + $0x3d8] sm:$0xff]
        %v3807 = vld [vmem:[%s1091 + $0x3e0] sm:$0xff]
        %v3808 = vld [vmem:[%s1091 + $0x3e8] sm:$0xff]
        %v3809 = vld [vmem:[%s1091 + $0x3f0] sm:$0xff]
        %v3810 = vld [vmem:[%s1091 + $0x3f8] sm:$0xff]
        %v3811 = vld [vmem:[%s1100] sm:$0xf]
        %v3813 = vlaneseq
        %v3814 = vshrl.u32 %v3813, 7
        %v3815 = vsub.s32 0, %v3814
        %v3816 = vrot.slane %v3811, %v3815
        %v3817 = vlaneseq
        %v3818 = vshrl.u32 %v3817, 7
        %v3819 = vsub.s32 1, %v3818
        %v3820 = vrot.slane %v3811, %v3819
        %v3821 = vlaneseq
        %v3822 = vshrl.u32 %v3821, 7
        %v3823 = vsub.s32 2, %v3822
        %v3824 = vrot.slane %v3811, %v3823
        %v3825 = vlaneseq
        %v3826 = vshrl.u32 %v3825, 7
        %v3827 = vsub.s32 3, %v3826
        %v3828 = vrot.slane %v3811, %v3827
        %v3961 = vunpack.c.l.b16 %v3683
        %v3962 = vunpack.c.h.b16 %v3683
        %v3963 = vunpack.c.l.b16 %v3684
        %v3964 = vunpack.c.h.b16 %v3684
        %v3965 = vunpack.c.l.b16 %v3685
        %v3966 = vunpack.c.h.b16 %v3685
        %v3967 = vunpack.c.l.b16 %v3686
        %v3968 = vunpack.c.h.b16 %v3686
        %v3969 = vunpack.c.l.b16 %v3687
        %v3970 = vunpack.c.h.b16 %v3687
        %v3971 = vunpack.c.l.b16 %v3688
        %v3972 = vunpack.c.h.b16 %v3688
        %v3973 = vunpack.c.l.b16 %v3689
        %v3974 = vunpack.c.h.b16 %v3689
        %v3975 = vunpack.c.l.b16 %v3690
        %v3976 = vunpack.c.h.b16 %v3690
        %v3977 = vunpack.c.l.b16 %v3691
        %v3978 = vunpack.c.h.b16 %v3691
        %v3979 = vunpack.c.l.b16 %v3692
        %v3980 = vunpack.c.h.b16 %v3692
        %v3981 = vunpack.c.l.b16 %v3693
        %v3982 = vunpack.c.h.b16 %v3693
        %v3983 = vunpack.c.l.b16 %v3694
        %v3984 = vunpack.c.h.b16 %v3694
        %v3985 = vunpack.c.l.b16 %v3695
        %v3986 = vunpack.c.h.b16 %v3695
        %v3987 = vunpack.c.l.b16 %v3696
        %v3988 = vunpack.c.h.b16 %v3696
        %v3989 = vunpack.c.l.b16 %v3697
        %v3990 = vunpack.c.h.b16 %v3697
        %v3991 = vunpack.c.l.b16 %v3698
        %v3992 = vunpack.c.h.b16 %v3698
        %v3993 = vunpack.c.l.b16 %v3699
        %v3994 = vunpack.c.h.b16 %v3699
        %v3995 = vunpack.c.l.b16 %v3700
        %v3996 = vunpack.c.h.b16 %v3700
        %v3997 = vunpack.c.l.b16 %v3701
        %v3998 = vunpack.c.h.b16 %v3701
        %v3999 = vunpack.c.l.b16 %v3702
        %v4000 = vunpack.c.h.b16 %v3702
        %v4001 = vunpack.c.l.b16 %v3703
        %v4002 = vunpack.c.h.b16 %v3703
        %v4003 = vunpack.c.l.b16 %v3704
        %v4004 = vunpack.c.h.b16 %v3704
        %v4005 = vunpack.c.l.b16 %v3705
        %v4006 = vunpack.c.h.b16 %v3705
        %v4007 = vunpack.c.l.b16 %v3706
        %v4008 = vunpack.c.h.b16 %v3706
        %v4009 = vunpack.c.l.b16 %v3707
        %v4010 = vunpack.c.h.b16 %v3707
        %v4011 = vunpack.c.l.b16 %v3708
        %v4012 = vunpack.c.h.b16 %v3708
        %v4013 = vunpack.c.l.b16 %v3709
        %v4014 = vunpack.c.h.b16 %v3709
        %v4015 = vunpack.c.l.b16 %v3710
        %v4016 = vunpack.c.h.b16 %v3710
        %v4017 = vunpack.c.l.b16 %v3711
        %v4018 = vunpack.c.h.b16 %v3711
        %v4019 = vunpack.c.l.b16 %v3712
        %v4020 = vunpack.c.h.b16 %v3712
        %v4021 = vunpack.c.l.b16 %v3713
        %v4022 = vunpack.c.h.b16 %v3713
        %v4023 = vunpack.c.l.b16 %v3714
        %v4024 = vunpack.c.h.b16 %v3714
        %v4025 = vunpack.c.l.b16 %v3715
        %v4026 = vunpack.c.h.b16 %v3715
        %v4027 = vunpack.c.l.b16 %v3716
        %v4028 = vunpack.c.h.b16 %v3716
        %v4029 = vunpack.c.l.b16 %v3717
        %v4030 = vunpack.c.h.b16 %v3717
        %v4031 = vunpack.c.l.b16 %v3718
        %v4032 = vunpack.c.h.b16 %v3718
        %v4033 = vunpack.c.l.b16 %v3719
        %v4034 = vunpack.c.h.b16 %v3719
        %v4035 = vunpack.c.l.b16 %v3720
        %v4036 = vunpack.c.h.b16 %v3720
        %v4037 = vunpack.c.l.b16 %v3721
        %v4038 = vunpack.c.h.b16 %v3721
        %v4039 = vunpack.c.l.b16 %v3722
        %v4040 = vunpack.c.h.b16 %v3722
        %v4041 = vunpack.c.l.b16 %v3723
        %v4042 = vunpack.c.h.b16 %v3723
        %v4043 = vunpack.c.l.b16 %v3724
        %v4044 = vunpack.c.h.b16 %v3724
        %v4045 = vunpack.c.l.b16 %v3725
        %v4046 = vunpack.c.h.b16 %v3725
        %v4047 = vunpack.c.l.b16 %v3726
        %v4048 = vunpack.c.h.b16 %v3726
        %v4049 = vunpack.c.l.b16 %v3727
        %v4050 = vunpack.c.h.b16 %v3727
        %v4051 = vunpack.c.l.b16 %v3728
        %v4052 = vunpack.c.h.b16 %v3728
        %v4053 = vunpack.c.l.b16 %v3729
        %v4054 = vunpack.c.h.b16 %v3729
        %v4055 = vunpack.c.l.b16 %v3730
        %v4056 = vunpack.c.h.b16 %v3730
        %v4057 = vunpack.c.l.b16 %v3731
        %v4058 = vunpack.c.h.b16 %v3731
        %v4059 = vunpack.c.l.b16 %v3732
        %v4060 = vunpack.c.h.b16 %v3732
        %v4061 = vunpack.c.l.b16 %v3733
        %v4062 = vunpack.c.h.b16 %v3733
        %v4063 = vunpack.c.l.b16 %v3734
        %v4064 = vunpack.c.h.b16 %v3734
        %v4065 = vunpack.c.l.b16 %v3735
        %v4066 = vunpack.c.h.b16 %v3735
        %v4067 = vunpack.c.l.b16 %v3736
        %v4068 = vunpack.c.h.b16 %v3736
        %v4069 = vunpack.c.l.b16 %v3737
        %v4070 = vunpack.c.h.b16 %v3737
        %v4071 = vunpack.c.l.b16 %v3738
        %v4072 = vunpack.c.h.b16 %v3738
        %v4073 = vunpack.c.l.b16 %v3739
        %v4074 = vunpack.c.h.b16 %v3739
        %v4075 = vunpack.c.l.b16 %v3740
        %v4076 = vunpack.c.h.b16 %v3740
        %v4077 = vunpack.c.l.b16 %v3741
        %v4078 = vunpack.c.h.b16 %v3741
        %v4079 = vunpack.c.l.b16 %v3742
        %v4080 = vunpack.c.h.b16 %v3742
        %v4081 = vunpack.c.l.b16 %v3743
        %v4082 = vunpack.c.h.b16 %v3743
        %v4083 = vunpack.c.l.b16 %v3744
        %v4084 = vunpack.c.h.b16 %v3744
        %v4085 = vunpack.c.l.b16 %v3745
        %v4086 = vunpack.c.h.b16 %v3745
        %v4087 = vunpack.c.l.b16 %v3746
        %v4088 = vunpack.c.h.b16 %v3746
        %v4089 = vunpack.c.l.b16 %v3747
        %v4090 = vunpack.c.h.b16 %v3747
        %v4091 = vunpack.c.l.b16 %v3748
        %v4092 = vunpack.c.h.b16 %v3748
        %v4093 = vunpack.c.l.b16 %v3749
        %v4094 = vunpack.c.h.b16 %v3749
        %v4095 = vunpack.c.l.b16 %v3750
        %v4096 = vunpack.c.h.b16 %v3750
        %v4097 = vunpack.c.l.b16 %v3751
        %v4098 = vunpack.c.h.b16 %v3751
        %v4099 = vunpack.c.l.b16 %v3752
        %v4100 = vunpack.c.h.b16 %v3752
        %v4101 = vunpack.c.l.b16 %v3753
        %v4102 = vunpack.c.h.b16 %v3753
        %v4103 = vunpack.c.l.b16 %v3754
        %v4104 = vunpack.c.h.b16 %v3754
        %v4105 = vunpack.c.l.b16 %v3755
        %v4106 = vunpack.c.h.b16 %v3755
        %v4107 = vunpack.c.l.b16 %v3756
        %v4108 = vunpack.c.h.b16 %v3756
        %v4109 = vunpack.c.l.b16 %v3757
        %v4110 = vunpack.c.h.b16 %v3757
        %v4111 = vunpack.c.l.b16 %v3758
        %v4112 = vunpack.c.h.b16 %v3758
        %v4113 = vunpack.c.l.b16 %v3759
        %v4114 = vunpack.c.h.b16 %v3759
        %v4115 = vunpack.c.l.b16 %v3760
        %v4116 = vunpack.c.h.b16 %v3760
        %v4117 = vunpack.c.l.b16 %v3761
        %v4118 = vunpack.c.h.b16 %v3761
        %v4119 = vunpack.c.l.b16 %v3762
        %v4120 = vunpack.c.h.b16 %v3762
        %v4121 = vunpack.c.l.b16 %v3763
        %v4122 = vunpack.c.h.b16 %v3763
        %v4123 = vunpack.c.l.b16 %v3764
        %v4124 = vunpack.c.h.b16 %v3764
        %v4125 = vunpack.c.l.b16 %v3765
        %v4126 = vunpack.c.h.b16 %v3765
        %v4127 = vunpack.c.l.b16 %v3766
        %v4128 = vunpack.c.h.b16 %v3766
        %v4129 = vunpack.c.l.b16 %v3767
        %v4130 = vunpack.c.h.b16 %v3767
        %v4131 = vunpack.c.l.b16 %v3768
        %v4132 = vunpack.c.h.b16 %v3768
        %v4133 = vunpack.c.l.b16 %v3769
        %v4134 = vunpack.c.h.b16 %v3769
        %v4135 = vunpack.c.l.b16 %v3770
        %v4136 = vunpack.c.h.b16 %v3770
        %v4137 = vunpack.c.l.b16 %v3771
        %v4138 = vunpack.c.h.b16 %v3771
        %v4139 = vunpack.c.l.b16 %v3772
        %v4140 = vunpack.c.h.b16 %v3772
        %v4141 = vunpack.c.l.b16 %v3773
        %v4142 = vunpack.c.h.b16 %v3773
        %v4143 = vunpack.c.l.b16 %v3774
        %v4144 = vunpack.c.h.b16 %v3774
        %v4145 = vunpack.c.l.b16 %v3775
        %v4146 = vunpack.c.h.b16 %v3775
        %v4147 = vunpack.c.l.b16 %v3776
        %v4148 = vunpack.c.h.b16 %v3776
        %v4149 = vunpack.c.l.b16 %v3777
        %v4150 = vunpack.c.h.b16 %v3777
        %v4151 = vunpack.c.l.b16 %v3778
        %v4152 = vunpack.c.h.b16 %v3778
        %v4153 = vunpack.c.l.b16 %v3779
        %v4154 = vunpack.c.h.b16 %v3779
        %v4155 = vunpack.c.l.b16 %v3780
        %v4156 = vunpack.c.h.b16 %v3780
        %v4157 = vunpack.c.l.b16 %v3781
        %v4158 = vunpack.c.h.b16 %v3781
        %v4159 = vunpack.c.l.b16 %v3782
        %v4160 = vunpack.c.h.b16 %v3782
        %v4161 = vunpack.c.l.b16 %v3783
        %v4162 = vunpack.c.h.b16 %v3783
        %v4163 = vunpack.c.l.b16 %v3784
        %v4164 = vunpack.c.h.b16 %v3784
        %v4165 = vunpack.c.l.b16 %v3785
        %v4166 = vunpack.c.h.b16 %v3785
        %v4167 = vunpack.c.l.b16 %v3786
        %v4168 = vunpack.c.h.b16 %v3786
        %v4169 = vunpack.c.l.b16 %v3787
        %v4170 = vunpack.c.h.b16 %v3787
        %v4171 = vunpack.c.l.b16 %v3788
        %v4172 = vunpack.c.h.b16 %v3788
        %v4173 = vunpack.c.l.b16 %v3789
        %v4174 = vunpack.c.h.b16 %v3789
        %v4175 = vunpack.c.l.b16 %v3790
        %v4176 = vunpack.c.h.b16 %v3790
        %v4177 = vunpack.c.l.b16 %v3791
        %v4178 = vunpack.c.h.b16 %v3791
        %v4179 = vunpack.c.l.b16 %v3792
        %v4180 = vunpack.c.h.b16 %v3792
        %v4181 = vunpack.c.l.b16 %v3793
        %v4182 = vunpack.c.h.b16 %v3793
        %v4183 = vunpack.c.l.b16 %v3794
        %v4184 = vunpack.c.h.b16 %v3794
        %v4185 = vunpack.c.l.b16 %v3795
        %v4186 = vunpack.c.h.b16 %v3795
        %v4187 = vunpack.c.l.b16 %v3796
        %v4188 = vunpack.c.h.b16 %v3796
        %v4189 = vunpack.c.l.b16 %v3797
        %v4190 = vunpack.c.h.b16 %v3797
        %v4191 = vunpack.c.l.b16 %v3798
        %v4192 = vunpack.c.h.b16 %v3798
        %v4193 = vunpack.c.l.b16 %v3799
        %v4194 = vunpack.c.h.b16 %v3799
        %v4195 = vunpack.c.l.b16 %v3800
        %v4196 = vunpack.c.h.b16 %v3800
        %v4197 = vunpack.c.l.b16 %v3801
        %v4198 = vunpack.c.h.b16 %v3801
        %v4199 = vunpack.c.l.b16 %v3802
        %v4200 = vunpack.c.h.b16 %v3802
        %v4201 = vunpack.c.l.b16 %v3803
        %v4202 = vunpack.c.h.b16 %v3803
        %v4203 = vunpack.c.l.b16 %v3804
        %v4204 = vunpack.c.h.b16 %v3804
        %v4205 = vunpack.c.l.b16 %v3805
        %v4206 = vunpack.c.h.b16 %v3805
        %v4207 = vunpack.c.l.b16 %v3806
        %v4208 = vunpack.c.h.b16 %v3806
        %v4209 = vunpack.c.l.b16 %v3807
        %v4210 = vunpack.c.h.b16 %v3807
        %v4211 = vunpack.c.l.b16 %v3808
        %v4212 = vunpack.c.h.b16 %v3808
        %v4213 = vunpack.c.l.b16 %v3809
        %v4214 = vunpack.c.h.b16 %v3809
        %v4215 = vunpack.c.l.b16 %v3810
        %v4216 = vunpack.c.h.b16 %v3810
        %v4217 = vpack.c.b16 %v3965, %v3961
        %v4218 = vpack.c.b16 %v3966, %v3962
        %v4219 = vpack.c.b16 %v3967, %v3963
        %v4220 = vpack.c.b16 %v3968, %v3964
        %v4221 = vpack.c.b16 %v3973, %v3969
        %v4222 = vpack.c.b16 %v3974, %v3970
        %v4223 = vpack.c.b16 %v3975, %v3971
        %v4224 = vpack.c.b16 %v3976, %v3972
        %v4225 = vpack.c.b16 %v3981, %v3977
        %v4226 = vpack.c.b16 %v3982, %v3978
        %v4227 = vpack.c.b16 %v3983, %v3979
        %v4228 = vpack.c.b16 %v3984, %v3980
        %v4229 = vpack.c.b16 %v3989, %v3985
        %v4230 = vpack.c.b16 %v3990, %v3986
        %v4231 = vpack.c.b16 %v3991, %v3987
        %v4232 = vpack.c.b16 %v3992, %v3988
        %v4233 = vpack.c.b16 %v3997, %v3993
        %v4234 = vpack.c.b16 %v3998, %v3994
        %v4235 = vpack.c.b16 %v3999, %v3995
        %v4236 = vpack.c.b16 %v4000, %v3996
        %v4237 = vpack.c.b16 %v4005, %v4001
        %v4238 = vpack.c.b16 %v4006, %v4002
        %v4239 = vpack.c.b16 %v4007, %v4003
        %v4240 = vpack.c.b16 %v4008, %v4004
        %v4241 = vpack.c.b16 %v4013, %v4009
        %v4242 = vpack.c.b16 %v4014, %v4010
        %v4243 = vpack.c.b16 %v4015, %v4011
        %v4244 = vpack.c.b16 %v4016, %v4012
        %v4245 = vpack.c.b16 %v4021, %v4017
        %v4246 = vpack.c.b16 %v4022, %v4018
        %v4247 = vpack.c.b16 %v4023, %v4019
        %v4248 = vpack.c.b16 %v4024, %v4020
        %v4249 = vpack.c.b16 %v4029, %v4025
        %v4250 = vpack.c.b16 %v4030, %v4026
        %v4251 = vpack.c.b16 %v4031, %v4027
        %v4252 = vpack.c.b16 %v4032, %v4028
        %v4253 = vpack.c.b16 %v4037, %v4033
        %v4254 = vpack.c.b16 %v4038, %v4034
        %v4255 = vpack.c.b16 %v4039, %v4035
        %v4256 = vpack.c.b16 %v4040, %v4036
        %v4257 = vpack.c.b16 %v4045, %v4041
        %v4258 = vpack.c.b16 %v4046, %v4042
        %v4259 = vpack.c.b16 %v4047, %v4043
        %v4260 = vpack.c.b16 %v4048, %v4044
        %v4261 = vpack.c.b16 %v4053, %v4049
        %v4262 = vpack.c.b16 %v4054, %v4050
        %v4263 = vpack.c.b16 %v4055, %v4051
        %v4264 = vpack.c.b16 %v4056, %v4052
        %v4265 = vpack.c.b16 %v4061, %v4057
        %v4266 = vpack.c.b16 %v4062, %v4058
        %v4267 = vpack.c.b16 %v4063, %v4059
        %v4268 = vpack.c.b16 %v4064, %v4060
        %v4269 = vpack.c.b16 %v4069, %v4065
        %v4270 = vpack.c.b16 %v4070, %v4066
        %v4271 = vpack.c.b16 %v4071, %v4067
        %v4272 = vpack.c.b16 %v4072, %v4068
        %v4273 = vpack.c.b16 %v4077, %v4073
        %v4274 = vpack.c.b16 %v4078, %v4074
        %v4275 = vpack.c.b16 %v4079, %v4075
        %v4276 = vpack.c.b16 %v4080, %v4076
        %v4277 = vpack.c.b16 %v4085, %v4081
        %v4278 = vpack.c.b16 %v4086, %v4082
        %v4279 = vpack.c.b16 %v4087, %v4083
        %v4280 = vpack.c.b16 %v4088, %v4084
        %v4281 = vpack.c.b16 %v4093, %v4089
        %v4282 = vpack.c.b16 %v4094, %v4090
        %v4283 = vpack.c.b16 %v4095, %v4091
        %v4284 = vpack.c.b16 %v4096, %v4092
        %v4285 = vpack.c.b16 %v4101, %v4097
        %v4286 = vpack.c.b16 %v4102, %v4098
        %v4287 = vpack.c.b16 %v4103, %v4099
        %v4288 = vpack.c.b16 %v4104, %v4100
        %v4289 = vpack.c.b16 %v4109, %v4105
        %v4290 = vpack.c.b16 %v4110, %v4106
        %v4291 = vpack.c.b16 %v4111, %v4107
        %v4292 = vpack.c.b16 %v4112, %v4108
        %v4293 = vpack.c.b16 %v4117, %v4113
        %v4294 = vpack.c.b16 %v4118, %v4114
        %v4295 = vpack.c.b16 %v4119, %v4115
        %v4296 = vpack.c.b16 %v4120, %v4116
        %v4297 = vpack.c.b16 %v4125, %v4121
        %v4298 = vpack.c.b16 %v4126, %v4122
        %v4299 = vpack.c.b16 %v4127, %v4123
        %v4300 = vpack.c.b16 %v4128, %v4124
        %v4301 = vpack.c.b16 %v4133, %v4129
        %v4302 = vpack.c.b16 %v4134, %v4130
        %v4303 = vpack.c.b16 %v4135, %v4131
        %v4304 = vpack.c.b16 %v4136, %v4132
        %v4305 = vpack.c.b16 %v4141, %v4137
        %v4306 = vpack.c.b16 %v4142, %v4138
        %v4307 = vpack.c.b16 %v4143, %v4139
        %v4308 = vpack.c.b16 %v4144, %v4140
        %v4309 = vpack.c.b16 %v4149, %v4145
        %v4310 = vpack.c.b16 %v4150, %v4146
        %v4311 = vpack.c.b16 %v4151, %v4147
        %v4312 = vpack.c.b16 %v4152, %v4148
        %v4313 = vpack.c.b16 %v4157, %v4153
        %v4314 = vpack.c.b16 %v4158, %v4154
        %v4315 = vpack.c.b16 %v4159, %v4155
        %v4316 = vpack.c.b16 %v4160, %v4156
        %v4317 = vpack.c.b16 %v4165, %v4161
        %v4318 = vpack.c.b16 %v4166, %v4162
        %v4319 = vpack.c.b16 %v4167, %v4163
        %v4320 = vpack.c.b16 %v4168, %v4164
        %v4321 = vpack.c.b16 %v4173, %v4169
        %v4322 = vpack.c.b16 %v4174, %v4170
        %v4323 = vpack.c.b16 %v4175, %v4171
        %v4324 = vpack.c.b16 %v4176, %v4172
        %v4325 = vpack.c.b16 %v4181, %v4177
        %v4326 = vpack.c.b16 %v4182, %v4178
        %v4327 = vpack.c.b16 %v4183, %v4179
        %v4328 = vpack.c.b16 %v4184, %v4180
        %v4329 = vpack.c.b16 %v4189, %v4185
        %v4330 = vpack.c.b16 %v4190, %v4186
        %v4331 = vpack.c.b16 %v4191, %v4187
        %v4332 = vpack.c.b16 %v4192, %v4188
        %v4333 = vpack.c.b16 %v4197, %v4193
        %v4334 = vpack.c.b16 %v4198, %v4194
        %v4335 = vpack.c.b16 %v4199, %v4195
        %v4336 = vpack.c.b16 %v4200, %v4196
        %v4337 = vpack.c.b16 %v4205, %v4201
        %v4338 = vpack.c.b16 %v4206, %v4202
        %v4339 = vpack.c.b16 %v4207, %v4203
        %v4340 = vpack.c.b16 %v4208, %v4204
        %v4341 = vpack.c.b16 %v4213, %v4209
        %v4342 = vpack.c.b16 %v4214, %v4210
        %v4343 = vpack.c.b16 %v4215, %v4211
        %v4344 = vpack.c.b16 %v4216, %v4212
        %4473 = vmatprep.subr.bf16.mxu0 %v4218
        %4474 = vmatpush1.bf16.msra.mxu0 %v4217
        %4475 = vmatprep.subr.bf16.mxu0 %v4222
        %4476 = vmatpush1.bf16.msra.mxu0 %v4221
        %4477 = vmatprep.subr.bf16.mxu0 %v4226
        %4478 = vmatpush1.bf16.msra.mxu0 %v4225
        %4479 = vmatprep.subr.bf16.mxu0 %v4230
        %4480 = vmatpush1.bf16.msra.mxu0 %v4229
        %4481 = vmatprep.subr.bf16.mxu0 %v4234
        %4482 = vmatpush1.bf16.msra.mxu0 %v4233
        %4483 = vmatprep.subr.bf16.mxu0 %v4238
        %4484 = vmatpush1.bf16.msra.mxu0 %v4237
        %4485 = vmatprep.subr.bf16.mxu0 %v4242
        %4486 = vmatpush1.bf16.msra.mxu0 %v4241
        %4487 = vmatprep.subr.bf16.mxu0 %v4246
        %4488 = vmatpush1.bf16.msra.mxu0 %v4245
        %4489 = vmatprep.subr.bf16.mxu0 %v4250
        %4490 = vmatpush1.bf16.msra.mxu0 %v4249
        %4491 = vmatprep.subr.bf16.mxu0 %v4254
        %4492 = vmatpush1.bf16.msra.mxu0 %v4253
        %4493 = vmatprep.subr.bf16.mxu0 %v4258
        %4494 = vmatpush1.bf16.msra.mxu0 %v4257
        %4495 = vmatprep.subr.bf16.mxu0 %v4262
        %4496 = vmatpush1.bf16.msra.mxu0 %v4261
        %4497 = vmatprep.subr.bf16.mxu0 %v4266
        %4498 = vmatpush1.bf16.msra.mxu0 %v4265
        %4499 = vmatprep.subr.bf16.mxu0 %v4270
        %4500 = vmatpush1.bf16.msra.mxu0 %v4269
        %4501 = vmatprep.subr.bf16.mxu0 %v4274
        %4502 = vmatpush1.bf16.msra.mxu0 %v4273
        %4503 = vmatprep.subr.bf16.mxu0 %v4278
        %4504 = vmatpush1.bf16.msra.mxu0 %v4277
        %4505 = vmatprep.mubr.bf16.mxu0 %v3668
        %4506 = vmatmul.mubr.bf16.gmra.mrb[0].mxu0 %v3667
        %v4507 = vpop.f32.mrb[0].mxu0
        %v4508 = vadd.f32 %v3816, %v4507
        %v4509 = vpop.f32.mrb[0].mxu0
        %v4510 = vadd.f32 %v3820, %v4509
        %v4511 = vpop.f32.mrb[0].mxu0
        %v4512 = vadd.f32 %v3816, %v4511
        %v4513 = vpop.f32.mrb[0].mxu0
        %v4514 = vadd.f32 %v3820, %v4513
        %4515 = vmatprep.mubr.bf16.mxu0 %v3672
        %4516 = vmatmul.mubr.bf16.gmra.mrb[0].mxu0 %v3671
        %v4517 = vpop.f32.mrb[0].mxu0
        %v4518 = vadd.f32 %v3816, %v4517
        %v4519 = vpop.f32.mrb[0].mxu0
        %v4520 = vadd.f32 %v3820, %v4519
        %v4521 = vpop.f32.mrb[0].mxu0
        %v4522 = vadd.f32 %v3816, %v4521
        %v4523 = vpop.f32.mrb[0].mxu0
        %v4524 = vadd.f32 %v3820, %v4523
        %4525 = vmatprep.mubr.bf16.mxu0 %v3676
        %4526 = vmatmul.mubr.bf16.gmra.mrb[0].mxu0 %v3675
        %v4527 = vpop.f32.mrb[0].mxu0
        %v4528 = vadd.f32 %v3816, %v4527
        %v4529 = vpop.f32.mrb[0].mxu0
        %v4530 = vadd.f32 %v3820, %v4529
        %v4531 = vpop.f32.mrb[0].mxu0
        %v4532 = vadd.f32 %v3816, %v4531
        %v4533 = vpop.f32.mrb[0].mxu0
        %v4534 = vadd.f32 %v3820, %v4533
        %4535 = vmatprep.mubr.bf16.mxu0 %v3680
        %4536 = vmatmul.mubr.bf16.gmra.mrb[0].mxu0 %v3679
        %v4537 = vpop.f32.mrb[0].mxu0
        %v4538 = vadd.f32 %v3816, %v4537
        %v4539 = vpop.f32.mrb[0].mxu0
        %v4540 = vadd.f32 %v3820, %v4539
        %v4541 = vpop.f32.mrb[0].mxu0
        %v4542 = vadd.f32 %v3816, %v4541
        %v4543 = vpop.f32.mrb[0].mxu0
        %v4544 = vadd.f32 %v3820, %v4543
        %4545 = vdwg.mxu0
        %4546 = vmatprep.subr.bf16.mxu0 %v4282
        %4547 = vmatpush1.bf16.msra.mxu0 %v4281
        %4548 = vmatprep.subr.bf16.mxu0 %v4286
        %4549 = vmatpush1.bf16.msra.mxu0 %v4285
        %4550 = vmatprep.subr.bf16.mxu0 %v4290
        %4551 = vmatpush1.bf16.msra.mxu0 %v4289
        %4552 = vmatprep.subr.bf16.mxu0 %v4294
        %4553 = vmatpush1.bf16.msra.mxu0 %v4293
        %4554 = vmatprep.subr.bf16.mxu0 %v4298
        %4555 = vmatpush1.bf16.msra.mxu0 %v4297
        %4556 = vmatprep.subr.bf16.mxu0 %v4302
        %4557 = vmatpush1.bf16.msra.mxu0 %v4301
        %4558 = vmatprep.subr.bf16.mxu0 %v4306
        %4559 = vmatpush1.bf16.msra.mxu0 %v4305
        %4560 = vmatprep.subr.bf16.mxu0 %v4310
        %4561 = vmatpush1.bf16.msra.mxu0 %v4309
        %4562 = vmatprep.subr.bf16.mxu0 %v4314
        %4563 = vmatpush1.bf16.msra.mxu0 %v4313
        %4564 = vmatprep.subr.bf16.mxu0 %v4318
        %4565 = vmatpush1.bf16.msra.mxu0 %v4317
        %4566 = vmatprep.subr.bf16.mxu0 %v4322
        %4567 = vmatpush1.bf16.msra.mxu0 %v4321
        %4568 = vmatprep.subr.bf16.mxu0 %v4326
        %4569 = vmatpush1.bf16.msra.mxu0 %v4325
        %4570 = vmatprep.subr.bf16.mxu0 %v4330
        %4571 = vmatpush1.bf16.msra.mxu0 %v4329
        %4572 = vmatprep.subr.bf16.mxu0 %v4334
        %4573 = vmatpush1.bf16.msra.mxu0 %v4333
        %4574 = vmatprep.subr.bf16.mxu0 %v4338
        %4575 = vmatpush1.bf16.msra.mxu0 %v4337
        %4576 = vmatprep.subr.bf16.mxu0 %v4342
        %4577 = vmatpush1.bf16.msra.mxu0 %v4341
        %4578 = vmatprep.mubr.bf16.mxu0 %v3670
        %4579 = vmatmul.mubr.bf16.gmra.mrb[0].mxu0 %v3669
        %v4580 = vpop.f32.mrb[0].mxu0
        %v4581 = vadd.f32 %v4508, %v4580
        %v4582 = vpop.f32.mrb[0].mxu0
        %v4583 = vadd.f32 %v4510, %v4582
        %v4584 = vpop.f32.mrb[0].mxu0
        %v4585 = vadd.f32 %v4512, %v4584
        %v4586 = vpop.f32.mrb[0].mxu0
        %v4587 = vadd.f32 %v4514, %v4586
        %4588 = vmatprep.mubr.bf16.mxu0 %v3674
        %4589 = vmatmul.mubr.bf16.gmra.mrb[0].mxu0 %v3673
        %v4590 = vpop.f32.mrb[0].mxu0
        %v4591 = vadd.f32 %v4518, %v4590
        %v4592 = vpop.f32.mrb[0].mxu0
        %v4593 = vadd.f32 %v4520, %v4592
        %v4594 = vpop.f32.mrb[0].mxu0
        %v4595 = vadd.f32 %v4522, %v4594
        %v4596 = vpop.f32.mrb[0].mxu0
        %v4597 = vadd.f32 %v4524, %v4596
        %4598 = vmatprep.mubr.bf16.mxu0 %v3678
        %4599 = vmatmul.mubr.bf16.gmra.mrb[0].mxu0 %v3677
        %v4600 = vpop.f32.mrb[0].mxu0
        %v4601 = vadd.f32 %v4528, %v4600
        %v4602 = vpop.f32.mrb[0].mxu0
        %v4603 = vadd.f32 %v4530, %v4602
        %v4604 = vpop.f32.mrb[0].mxu0
        %v4605 = vadd.f32 %v4532, %v4604
        %v4606 = vpop.f32.mrb[0].mxu0
        %v4607 = vadd.f32 %v4534, %v4606
        %4608 = vmatprep.mubr.bf16.mxu0 %v3682
        %4609 = vmatmul.mubr.bf16.gmra.mrb[0].mxu0 %v3681
        %v4610 = vpop.f32.mrb[0].mxu0
        %v4611 = vadd.f32 %v4538, %v4610
        %v4612 = vpop.f32.mrb[0].mxu0
        %v4613 = vadd.f32 %v4540, %v4612
        %v4614 = vpop.f32.mrb[0].mxu0
        %v4615 = vadd.f32 %v4542, %v4614
        %v4616 = vpop.f32.mrb[0].mxu0
        %v4617 = vadd.f32 %v4544, %v4616
        %4618 = vdwg.mxu0
        %4619 = vmatprep.subr.bf16.mxu0 %v4220
        %4620 = vmatpush1.bf16.msra.mxu0 %v4219
        %4621 = vmatprep.subr.bf16.mxu0 %v4224
        %4622 = vmatpush1.bf16.msra.mxu0 %v4223
        %4623 = vmatprep.subr.bf16.mxu0 %v4228
        %4624 = vmatpush1.bf16.msra.mxu0 %v4227
        %4625 = vmatprep.subr.bf16.mxu0 %v4232
        %4626 = vmatpush1.bf16.msra.mxu0 %v4231
        %4627 = vmatprep.subr.bf16.mxu0 %v4236
        %4628 = vmatpush1.bf16.msra.mxu0 %v4235
        %4629 = vmatprep.subr.bf16.mxu0 %v4240
        %4630 = vmatpush1.bf16.msra.mxu0 %v4239
        %4631 = vmatprep.subr.bf16.mxu0 %v4244
        %4632 = vmatpush1.bf16.msra.mxu0 %v4243
        %4633 = vmatprep.subr.bf16.mxu0 %v4248
        %4634 = vmatpush1.bf16.msra.mxu0 %v4247
        %4635 = vmatprep.subr.bf16.mxu0 %v4252
        %4636 = vmatpush1.bf16.msra.mxu0 %v4251
        %4637 = vmatprep.subr.bf16.mxu0 %v4256
        %4638 = vmatpush1.bf16.msra.mxu0 %v4255
        %4639 = vmatprep.subr.bf16.mxu0 %v4260
        %4640 = vmatpush1.bf16.msra.mxu0 %v4259
        %4641 = vmatprep.subr.bf16.mxu0 %v4264
        %4642 = vmatpush1.bf16.msra.mxu0 %v4263
        %4643 = vmatprep.subr.bf16.mxu0 %v4268
        %4644 = vmatpush1.bf16.msra.mxu0 %v4267
        %4645 = vmatprep.subr.bf16.mxu0 %v4272
        %4646 = vmatpush1.bf16.msra.mxu0 %v4271
        %4647 = vmatprep.subr.bf16.mxu0 %v4276
        %4648 = vmatpush1.bf16.msra.mxu0 %v4275
        %4649 = vmatprep.subr.bf16.mxu0 %v4280
        %4650 = vmatpush1.bf16.msra.mxu0 %v4279
        %4651 = vmatprep.mubr.bf16.mxu0 %v3668
        %4652 = vmatmul.mubr.bf16.gmra.mrb[0].mxu0 %v3667
        %v4653 = vpop.f32.mrb[0].mxu0
        %v4654 = vadd.f32 %v3824, %v4653
        %v4655 = vpop.f32.mrb[0].mxu0
        %v4656 = vadd.f32 %v3828, %v4655
        %v4657 = vpop.f32.mrb[0].mxu0
        %v4658 = vadd.f32 %v3824, %v4657
        %v4659 = vpop.f32.mrb[0].mxu0
        %v4660 = vadd.f32 %v3828, %v4659
        %4661 = vmatprep.mubr.bf16.mxu0 %v3672
        %4662 = vmatmul.mubr.bf16.gmra.mrb[0].mxu0 %v3671
        %v4663 = vpop.f32.mrb[0].mxu0
        %v4664 = vadd.f32 %v3824, %v4663
        %v4665 = vpop.f32.mrb[0].mxu0
        %v4666 = vadd.f32 %v3828, %v4665
        %v4667 = vpop.f32.mrb[0].mxu0
        %v4668 = vadd.f32 %v3824, %v4667
        %v4669 = vpop.f32.mrb[0].mxu0
        %v4670 = vadd.f32 %v3828, %v4669
        %4671 = vmatprep.mubr.bf16.mxu0 %v3676
        %4672 = vmatmul.mubr.bf16.gmra.mrb[0].mxu0 %v3675
        %v4673 = vpop.f32.mrb[0].mxu0
        %v4674 = vadd.f32 %v3824, %v4673
        %v4675 = vpop.f32.mrb[0].mxu0
        %v4676 = vadd.f32 %v3828, %v4675
        %v4677 = vpop.f32.mrb[0].mxu0
        %v4678 = vadd.f32 %v3824, %v4677
        %v4679 = vpop.f32.mrb[0].mxu0
        %v4680 = vadd.f32 %v3828, %v4679
        %4681 = vmatprep.mubr.bf16.mxu0 %v3680
        %4682 = vmatmul.mubr.bf16.gmra.mrb[0].mxu0 %v3679
        %v4683 = vpop.f32.mrb[0].mxu0
        %v4684 = vadd.f32 %v3824, %v4683
        %v4685 = vpop.f32.mrb[0].mxu0
        %v4686 = vadd.f32 %v3828, %v4685
        %v4687 = vpop.f32.mrb[0].mxu0
        %v4688 = vadd.f32 %v3824, %v4687
        %v4689 = vpop.f32.mrb[0].mxu0
        %v4690 = vadd.f32 %v3828, %v4689
        %4691 = vdwg.mxu0
        %4692 = vmatprep.subr.bf16.mxu0 %v4284
        %4693 = vmatpush1.bf16.msra.mxu0 %v4283
        %4694 = vmatprep.subr.bf16.mxu0 %v4288
        %4695 = vmatpush1.bf16.msra.mxu0 %v4287
        %4696 = vmatprep.subr.bf16.mxu0 %v4292
        %4697 = vmatpush1.bf16.msra.mxu0 %v4291
        %4698 = vmatprep.subr.bf16.mxu0 %v4296
        %4699 = vmatpush1.bf16.msra.mxu0 %v4295
        %4700 = vmatprep.subr.bf16.mxu0 %v4300
        %4701 = vmatpush1.bf16.msra.mxu0 %v4299
        %4702 = vmatprep.subr.bf16.mxu0 %v4304
        %4703 = vmatpush1.bf16.msra.mxu0 %v4303
        %4704 = vmatprep.subr.bf16.mxu0 %v4308
        %4705 = vmatpush1.bf16.msra.mxu0 %v4307
        %4706 = vmatprep.subr.bf16.mxu0 %v4312
        %4707 = vmatpush1.bf16.msra.mxu0 %v4311
        %4708 = vmatprep.subr.bf16.mxu0 %v4316
        %4709 = vmatpush1.bf16.msra.mxu0 %v4315
        %4710 = vmatprep.subr.bf16.mxu0 %v4320
        %4711 = vmatpush1.bf16.msra.mxu0 %v4319
        %4712 = vmatprep.subr.bf16.mxu0 %v4324
        %4713 = vmatpush1.bf16.msra.mxu0 %v4323
        %4714 = vmatprep.subr.bf16.mxu0 %v4328
        %4715 = vmatpush1.bf16.msra.mxu0 %v4327
        %4716 = vmatprep.subr.bf16.mxu0 %v4332
        %4717 = vmatpush1.bf16.msra.mxu0 %v4331
        %4718 = vmatprep.subr.bf16.mxu0 %v4336
        %4719 = vmatpush1.bf16.msra.mxu0 %v4335
        %4720 = vmatprep.subr.bf16.mxu0 %v4340
        %4721 = vmatpush1.bf16.msra.mxu0 %v4339
        %4722 = vmatprep.subr.bf16.mxu0 %v4344
        %4723 = vmatpush1.bf16.msra.mxu0 %v4343
        %4724 = vmatprep.mubr.bf16.mxu0 %v3670
        %4725 = vmatmul.mubr.bf16.gmra.mrb[0].mxu0 %v3669
        %v4726 = vpop.f32.mrb[0].mxu0
        %v4727 = vadd.f32 %v4654, %v4726
        %v4728 = vpop.f32.mrb[0].mxu0
        %v4729 = vadd.f32 %v4656, %v4728
        %v4730 = vpop.f32.mrb[0].mxu0
        %v4731 = vadd.f32 %v4658, %v4730
        %v4732 = vpop.f32.mrb[0].mxu0
        %v4733 = vadd.f32 %v4660, %v4732
        %4734 = vmatprep.mubr.bf16.mxu0 %v3674
        %4735 = vmatmul.mubr.bf16.gmra.mrb[0].mxu0 %v3673
        %v4736 = vpop.f32.mrb[0].mxu0
        %v4737 = vadd.f32 %v4664, %v4736
        %v4738 = vpop.f32.mrb[0].mxu0
        %v4739 = vadd.f32 %v4666, %v4738
        %v4740 = vpop.f32.mrb[0].mxu0
        %v4741 = vadd.f32 %v4668, %v4740
        %v4742 = vpop.f32.mrb[0].mxu0
        %v4743 = vadd.f32 %v4670, %v4742
        %4744 = vmatprep.mubr.bf16.mxu0 %v3678
        %4745 = vmatmul.mubr.bf16.gmra.mrb[0].mxu0 %v3677
        %v4746 = vpop.f32.mrb[0].mxu0
        %v4747 = vadd.f32 %v4674, %v4746
        %v4748 = vpop.f32.mrb[0].mxu0
        %v4749 = vadd.f32 %v4676, %v4748
        %v4750 = vpop.f32.mrb[0].mxu0
        %v4751 = vadd.f32 %v4678, %v4750
        %v4752 = vpop.f32.mrb[0].mxu0
        %v4753 = vadd.f32 %v4680, %v4752
        %4754 = vmatprep.mubr.bf16.mxu0 %v3682
        %4755 = vmatmul.mubr.bf16.gmra.mrb[0].mxu0 %v3681
        %v4756 = vpop.f32.mrb[0].mxu0
        %v4757 = vadd.f32 %v4684, %v4756
        %v4758 = vpop.f32.mrb[0].mxu0
        %v4759 = vadd.f32 %v4686, %v4758
        %v4760 = vpop.f32.mrb[0].mxu0
        %v4761 = vadd.f32 %v4688, %v4760
        %v4762 = vpop.f32.mrb[0].mxu0
        %v4763 = vadd.f32 %v4690, %v4762
        %4764 = vdwg.mxu0
        %v4765 = vmax.f32 %v4581, 0.0
        %v4766 = vmax.f32 %v4583, 0.0
        %v4767 = vmax.f32 %v4727, 0.0
        %v4768 = vmax.f32 %v4729, 0.0
        %v4769 = vmax.f32 %v4585, 0.0
        %v4770 = vmax.f32 %v4587, 0.0
        %v4771 = vmax.f32 %v4731, 0.0
        %v4772 = vmax.f32 %v4733, 0.0
        %v4773 = vmax.f32 %v4591, 0.0
        %v4774 = vmax.f32 %v4593, 0.0
        %v4775 = vmax.f32 %v4737, 0.0
        %v4776 = vmax.f32 %v4739, 0.0
        %v4777 = vmax.f32 %v4595, 0.0
        %v4778 = vmax.f32 %v4597, 0.0
        %v4779 = vmax.f32 %v4741, 0.0
        %v4780 = vmax.f32 %v4743, 0.0
        %v4781 = vmax.f32 %v4601, 0.0
        %v4782 = vmax.f32 %v4603, 0.0
        %v4783 = vmax.f32 %v4747, 0.0
        %v4784 = vmax.f32 %v4749, 0.0
        %v4785 = vmax.f32 %v4605, 0.0
        %v4786 = vmax.f32 %v4607, 0.0
        %v4787 = vmax.f32 %v4751, 0.0
        %v4788 = vmax.f32 %v4753, 0.0
        %v4789 = vmax.f32 %v4611, 0.0
        %v4790 = vmax.f32 %v4613, 0.0
        %v4791 = vmax.f32 %v4757, 0.0
        %v4792 = vmax.f32 %v4759, 0.0
        %v4793 = vmax.f32 %v4615, 0.0
        %v4794 = vmax.f32 %v4617, 0.0
        %v4795 = vmax.f32 %v4761, 0.0
        %v4796 = vmax.f32 %v4763, 0.0
        %v4797 = vld [vmem:[%s1275] sm:$0xff]
        %v4798 = vld [vmem:[%s1275 + $0x8] sm:$0xff]
        %v4799 = vld [vmem:[%s1275 + $0x10] sm:$0xff]
        %v4800 = vld [vmem:[%s1275 + $0x18] sm:$0xff]
        %v4801 = vld [vmem:[%s1275 + $0x20] sm:$0xff]
        %v4802 = vld [vmem:[%s1275 + $0x28] sm:$0xff]
        %v4803 = vld [vmem:[%s1275 + $0x30] sm:$0xff]
        %v4804 = vld [vmem:[%s1275 + $0x38] sm:$0xff]
        %v4805 = vstv %s61
        %vm4806 = vcmp.eq.s32.totalorder %v4797, %v4805
        %vm4807 = vcmp.eq.s32.totalorder %v4798, %v4805
        %vm4808 = vcmp.eq.s32.totalorder %v4799, %v4805
        %vm4809 = vcmp.eq.s32.totalorder %v4800, %v4805
        %vm4810 = vcmp.eq.s32.totalorder %v4801, %v4805
        %vm4811 = vcmp.eq.s32.totalorder %v4802, %v4805
        %vm4812 = vcmp.eq.s32.totalorder %v4803, %v4805
        %vm4813 = vcmp.eq.s32.totalorder %v4804, %v4805
        %v4814 = vsel %vm4806, 1, 0
        %v4815 = vsel %vm4807, 1, 0
        %v4816 = vsel %vm4808, 1, 0
        %v4817 = vsel %vm4809, 1, 0
        %v4818 = vsel %vm4810, 1, 0
        %v4819 = vsel %vm4811, 1, 0
        %v4820 = vsel %vm4812, 1, 0
        %v4821 = vsel %vm4813, 1, 0
        %v4822 = vcvt.s32.f32 %v4814
        %v4823 = vcvt.s32.f32 %v4815
        %v4824 = vcvt.s32.f32 %v4816
        %v4825 = vcvt.s32.f32 %v4817
        %v4826 = vcvt.s32.f32 %v4818
        %v4827 = vcvt.s32.f32 %v4819
        %v4828 = vcvt.s32.f32 %v4820
        %v4829 = vcvt.s32.f32 %v4821
        %v4830 = vld [vmem:[#allocation3] sm:$0xf]
        %4831 = vxpose.xlu0.b32.start [1/16] %v4822, 128
        %4832 = vxpose.xlu0.b32.cont [2/16] %v4823, 128
        %4833 = vxpose.xlu0.b32.cont [3/16] %v4824, 128
        %4834 = vxpose.xlu0.b32.cont [4/16] %v4825, 128
        %4835 = vxpose.xlu0.b32.cont [5/16] %v4826, 128
        %4836 = vxpose.xlu0.b32.cont [6/16] %v4827, 128
        %4837 = vxpose.xlu0.b32.cont [7/16] %v4828, 128
        %4838 = vxpose.xlu0.b32.cont [8/16] %v4829, 128
        %4839 = vxpose.xlu0.b32.cont [9/16] 0.0, 128
        %4840 = vxpose.xlu0.b32.cont [10/16] 0.0, 128
        %4841 = vxpose.xlu0.b32.cont [11/16] 0.0, 128
        %4842 = vxpose.xlu0.b32.cont [12/16] 0.0, 128
        %4843 = vxpose.xlu0.b32.cont [13/16] 0.0, 128
        %4844 = vxpose.xlu0.b32.cont [14/16] 0.0, 128
        %4845 = vxpose.xlu0.b32.cont [15/16] 0.0, 128
        %4846 = vxpose.xlu0.b32.end [16/16] 0.0, 128
        %v4847 = vpop.trf.xlu0
        %v4848 = vpop.trf.xlu0
        %v4849 = vpop.trf.xlu0
        %v4850 = vpop.trf.xlu0
        %v4851 = vpop.trf.xlu0
        %v4852 = vpop.trf.xlu0
        %v4853 = vpop.trf.xlu0
        %v4854 = vpop.trf.xlu0
        %v4855 = vpop.trf.xlu0
        %v4856 = vpop.trf.xlu0
        %v4857 = vpop.trf.xlu0
        %v4858 = vpop.trf.xlu0
        %v4859 = vpop.trf.xlu0
        %v4860 = vpop.trf.xlu0
        %v4861 = vpop.trf.xlu0
        %v4862 = vpop.trf.xlu0
        %vm4863 = vcmask 523264
        %v4865 = vsel %vm4863, %v4847, 0
        %4867 = vmatprep.subr.mxu0 %v4766
        %4868 = vmatpush1.msra.mxu0 %v4765
        %4869 = vmatprep.subr.mxu0 %v4770
        %4870 = vmatpush1.msra.mxu0 %v4769
        %4871 = vmatprep.subr.mxu0 %v4774
        %4872 = vmatpush1.msra.mxu0 %v4773
        %4873 = vmatprep.subr.mxu0 %v4778
        %4874 = vmatpush1.msra.mxu0 %v4777
        %4875 = vmatprep.subr.mxu0 %v4782
        %4876 = vmatpush1.msra.mxu0 %v4781
        %4877 = vmatprep.subr.mxu0 %v4786
        %4878 = vmatpush1.msra.mxu0 %v4785
        %4879 = vmatprep.subr.mxu0 %v4790
        %4880 = vmatpush1.msra.mxu0 %v4789
        %4881 = vmatprep.subr.mxu0 %v4794
        %4882 = vmatpush1.msra.mxu0 %v4793
        %4883 = vmatprep.subr.mxu0 0.0
        %4884 = vmatpush1.msra.mxu0 0.0
        %4885 = vmatprep.subr.mxu0 0.0
        %4886 = vmatpush1.msra.mxu0 0.0
        %4887 = vmatprep.subr.mxu0 0.0
        %4888 = vmatpush1.msra.mxu0 0.0
        %4889 = vmatprep.subr.mxu0 0.0
        %4890 = vmatpush1.msra.mxu0 0.0
        %4891 = vmatprep.subr.mxu0 0.0
        %4892 = vmatpush1.msra.mxu0 0.0
        %4893 = vmatprep.subr.mxu0 0.0
        %4894 = vmatpush1.msra.mxu0 0.0
        %4895 = vmatprep.subr.mxu0 0.0
        %4896 = vmatpush1.msra.mxu0 0.0
        %4897 = vmatprep.subr.mxu0 0.0
        %4898 = vmatpush1.msra.mxu0 0.0
        %4899 = vmatprep.subr.mxu0 0.0
        %4900 = vmatpush1.msra.mxu0 0.0
        %4901 = vmatprep.subr.mxu0 0.0
        %4902 = vmatpush1.msra.mxu0 0.0
        %4903 = vmatprep.subr.mxu0 0.0
        %4904 = vmatpush1.msra.mxu0 0.0
        %4905 = vmatprep.subr.mxu0 0.0
        %4906 = vmatpush1.msra.mxu0 0.0
        %4907 = vmatprep.subr.mxu0 0.0
        %4908 = vmatpush1.msra.mxu0 0.0
        %4909 = vmatprep.subr.mxu0 0.0
        %4910 = vmatpush1.msra.mxu0 0.0
        %4911 = vmatprep.subr.mxu0 0.0
        %4912 = vmatpush1.msra.mxu0 0.0
        %4913 = vmatprep.subr.mxu0 0.0
        %4914 = vmatpush1.msra.mxu0 0.0
        %4915 = vmatprep.subr.mxu0 0.0
        %4916 = vmatpush1.msra.mxu0 0.0
        %4917 = vmatprep.subr.mxu0 0.0
        %4918 = vmatpush1.msra.mxu0 0.0
        %4919 = vmatprep.subr.mxu0 0.0
        %4920 = vmatpush1.msra.mxu0 0.0
        %4921 = vmatprep.subr.mxu0 0.0
        %4922 = vmatpush1.msra.mxu0 0.0
        %4923 = vmatprep.subr.mxu0 0.0
        %4924 = vmatpush1.msra.mxu0 0.0
        %4925 = vmatprep.subr.mxu0 0.0
        %4926 = vmatpush1.msra.mxu0 0.0
        %4927 = vmatprep.subr.mxu0 0.0
        %4928 = vmatpush1.msra.mxu0 0.0
        %4929 = vmatprep.subr.mxu0 0.0
        %4930 = vmatpush1.msra.mxu0 0.0
        %4931 = vmatprep.mubr.f32.mxu0 0.0
        %4932 = vmatmul.mubr.f32.gmra.mrb[0].mxu0 %v4865
        %v4933 = vpop.f32.mrb[0].mxu0
        %v4934 = vadd.f32 0.0, %v4933
        %v4935 = vpop.f32.mrb[0].mxu0
        %v4936 = vadd.f32 0.0, %v4935
        %4937 = vdwg.mxu0
        %4938 = vmatprep.subr.mxu0 %v4768
        %4939 = vmatpush1.msra.mxu0 %v4767
        %4940 = vmatprep.subr.mxu0 %v4772
        %4941 = vmatpush1.msra.mxu0 %v4771
        %4942 = vmatprep.subr.mxu0 %v4776
        %4943 = vmatpush1.msra.mxu0 %v4775
        %4944 = vmatprep.subr.mxu0 %v4780
        %4945 = vmatpush1.msra.mxu0 %v4779
        %4946 = vmatprep.subr.mxu0 %v4784
        %4947 = vmatpush1.msra.mxu0 %v4783
        %4948 = vmatprep.subr.mxu0 %v4788
        %4949 = vmatpush1.msra.mxu0 %v4787
        %4950 = vmatprep.subr.mxu0 %v4792
        %4951 = vmatpush1.msra.mxu0 %v4791
        %4952 = vmatprep.subr.mxu0 %v4796
        %4953 = vmatpush1.msra.mxu0 %v4795
        %4954 = vmatprep.subr.mxu0 0.0
        %4955 = vmatpush1.msra.mxu0 0.0
        %4956 = vmatprep.subr.mxu0 0.0
        %4957 = vmatpush1.msra.mxu0 0.0
        %4958 = vmatprep.subr.mxu0 0.0
        %4959 = vmatpush1.msra.mxu0 0.0
        %4960 = vmatprep.subr.mxu0 0.0
        %4961 = vmatpush1.msra.mxu0 0.0
        %4962 = vmatprep.subr.mxu0 0.0
        %4963 = vmatpush1.msra.mxu0 0.0
        %4964 = vmatprep.subr.mxu0 0.0
        %4965 = vmatpush1.msra.mxu0 0.0
        %4966 = vmatprep.subr.mxu0 0.0
        %4967 = vmatpush1.msra.mxu0 0.0
        %4968 = vmatprep.subr.mxu0 0.0
        %4969 = vmatpush1.msra.mxu0 0.0
        %4970 = vmatprep.subr.mxu0 0.0
        %4971 = vmatpush1.msra.mxu0 0.0
        %4972 = vmatprep.subr.mxu0 0.0
        %4973 = vmatpush1.msra.mxu0 0.0
        %4974 = vmatprep.subr.mxu0 0.0
        %4975 = vmatpush1.msra.mxu0 0.0
        %4976 = vmatprep.subr.mxu0 0.0
        %4977 = vmatpush1.msra.mxu0 0.0
        %4978 = vmatprep.subr.mxu0 0.0
        %4979 = vmatpush1.msra.mxu0 0.0
        %4980 = vmatprep.subr.mxu0 0.0
        %4981 = vmatpush1.msra.mxu0 0.0
        %4982 = vmatprep.subr.mxu0 0.0
        %4983 = vmatpush1.msra.mxu0 0.0
        %4984 = vmatprep.subr.mxu0 0.0
        %4985 = vmatpush1.msra.mxu0 0.0
        %4986 = vmatprep.subr.mxu0 0.0
        %4987 = vmatpush1.msra.mxu0 0.0
        %4988 = vmatprep.subr.mxu0 0.0
        %4989 = vmatpush1.msra.mxu0 0.0
        %4990 = vmatprep.subr.mxu0 0.0
        %4991 = vmatpush1.msra.mxu0 0.0
        %4992 = vmatprep.subr.mxu0 0.0
        %4993 = vmatpush1.msra.mxu0 0.0
        %4994 = vmatprep.subr.mxu0 0.0
        %4995 = vmatpush1.msra.mxu0 0.0
        %4996 = vmatprep.subr.mxu0 0.0
        %4997 = vmatpush1.msra.mxu0 0.0
        %4998 = vmatprep.subr.mxu0 0.0
        %4999 = vmatpush1.msra.mxu0 0.0
        %5000 = vmatprep.subr.mxu0 0.0
        %5001 = vmatpush1.msra.mxu0 0.0
        %5002 = vmatprep.mubr.f32.mxu0 0.0
        %5003 = vmatmul.mubr.f32.gmra.mrb[0].mxu0 %v4865
        %v5004 = vpop.f32.mrb[0].mxu0
        %v5005 = vadd.f32 0.0, %v5004
        %v5006 = vpop.f32.mrb[0].mxu0
        %v5007 = vadd.f32 0.0, %v5006
        %5008 = vdwg.mxu0
        %v5013 = vcombine.low %v4934, %v4936
        %v5014 = vcombine.low %v5005, %v5007
        %v5016 = vunpack.c.l.s4 1966171168
        %v5017 = vunpack.c.0.s8 %v5016
        %v5018 = vlaneseq
        %v5019 = vshrl.u32 %v5018, 7
        %v5020 = vsub.s32 %v5017, %v5019
        %v5021 = vrot.slane %v5013, %v5020
        %v5023 = vunpack.c.l.s4 1966171168
        %v5024 = vunpack.c.0.s8 %v5023
        %v5025 = vlaneseq
        %v5026 = vshrl.u32 %v5025, 7
        %v5027 = vsub.s32 %v5024, %v5026
        %v5028 = vrot.slane %v5014, %v5027
        %v5029 = vcombine.low %v5021, %v5028
        %v5031 = vunpack.c.l.s4 1966171168
        %v5032 = vunpack.c.0.s8 %v5031
        %v5033 = vlaneseq
        %v5034 = vshrl.u32 %v5033, 7
        %v5035 = vsub.s32 %v5032, %v5034
        %v5036 = vrot.slane %v5029, %v5035
        %v5038 = vadd.f32 %v4830, %v5036
        %v5039 = vlaneseq
        %vm5040 = vcmp.ge.s32.totalorder %v5039, 0
        %vm5041 = vcmp.lt.s32.totalorder %v5039, 512
        %vm5042 = vmand %vm5040, %vm5041
        %5043 = vst.msk [vmem:[#allocation3] sm:$0xf] %vm5042, %v5038
        %v5044 = vld [vmem:[#allocation4] sm:$0xf]
        %vm5045 = vcmask 7168
        %v5046 = vsel %vm5045, %v4822, 0.0
        %v5047 = vsel %vm5045, %v4823, 0.0
        %v5048 = vadd.f32 %v5046, %v5047
        %v5049 = vsel %vm5045, %v4824, 0.0
        %v5050 = vadd.f32 %v5048, %v5049
        %v5051 = vsel %vm5045, %v4825, 0.0
        %v5052 = vadd.f32 %v5050, %v5051
        %v5053 = vsel %vm5045, %v4826, 0.0
        %v5054 = vadd.f32 %v5052, %v5053
        %v5055 = vsel %vm5045, %v4827, 0.0
        %v5056 = vadd.f32 %v5054, %v5055
        %v5057 = vsel %vm5045, %v4828, 0.0
        %v5058 = vadd.f32 %v5056, %v5057
        %v5059 = vsel %vm5045, %v4829, 0.0
        %v5060 = vadd.f32 %v5058, %v5059
        %5061 = vadd.xlane.f32.xlu0 %v5060
        %v5062 = vpop.xlane.xlu0 %5061
        %v5063 = vrot.slane %v5062, 4
        %v5064 = vadd.f32 %v5062, %v5063
        %v5065 = vrot.slane %v5064, 2
        %v5066 = vadd.f32 %v5064, %v5065
        %v5067 = vrot.slane %v5066, 1
        %v5068 = vadd.f32 %v5066, %v5067
        %s5069 = vtos %v5068
        %v5070 = vstv %s5069
        %v5071 = vadd.f32 %v5044, %v5070
        %5072 = vst.msk [vmem:[#allocation4] sm:$0xf] %vm5042, %v5071
        // Predicated region
        $region241: #{tpu_custom_call.1} parent=127 // pred_check
          %p5073 = pneg %p1279
        $region242: #{tpu_custom_call.1} parent=127 // pred_check_branch
          %5075 = sbr.rel (%p5073) target = $region244
        $region243: #{tpu_custom_call.1} parent=127 // pred_region
          %v5076 = vld [vmem:[#allocation3] sm:$0xf]
          %v5077 = vld [vmem:[#allocation4] sm:$0xf]
          %v5078 = vmax.f32 %v5077, 1.0
          %v5079 = vrcp.pop %v5078
          %v5080 = vmul.f32 %v5076, %v5079
          %v5081 = vlaneseq
          %v5082 = vshrl.u32 %v5081, 7
          %v5083 = vadd.s32 %v5082, 8
          %vm5084 = vcmp.eq.s32.totalorder %v5082, %v4805
          %vm5085 = vcmp.eq.s32.totalorder %v5083, %v4805
          %v5086 = vld [vmem:[#allocation2] sm:$0xff]
          %v5087 = vld [vmem:[#allocation2 + $0x8] sm:$0xff]
          %v5088 = vld [vmem:[#allocation2 + $0x10] sm:$0xff]
          %v5089 = vld [vmem:[#allocation2 + $0x18] sm:$0xff]
          %v5090 = vld [vmem:[#allocation2 + $0x20] sm:$0xff]
          %v5091 = vld [vmem:[#allocation2 + $0x28] sm:$0xff]
          %v5092 = vld [vmem:[#allocation2 + $0x30] sm:$0xff]
          %v5093 = vld [vmem:[#allocation2 + $0x38] sm:$0xff]
          %v5094 = vsel %vm5084, 1, 0
          %v5095 = vsel %vm5085, 1, 0
          %vm5096 = vcmp.eq.s32.totalorder %v5094, 1
          %vm5097 = vcmp.eq.s32.totalorder %v5095, 1
          %v5099 = vlaneseq
          %v5100 = vshrl.u32 %v5099, 7
          %v5101 = vsub.s32 0, %v5100
          %v5102 = vrot.slane %v5080, %v5101
          %v5103 = vlaneseq
          %v5104 = vshrl.u32 %v5103, 7
          %v5105 = vsub.s32 1, %v5104
          %v5106 = vrot.slane %v5080, %v5105
          %v5107 = vlaneseq
          %v5108 = vshrl.u32 %v5107, 7
          %v5109 = vsub.s32 2, %v5108
          %v5110 = vrot.slane %v5080, %v5109
          %v5111 = vlaneseq
          %v5112 = vshrl.u32 %v5111, 7
          %v5113 = vsub.s32 3, %v5112
          %v5114 = vrot.slane %v5080, %v5113
          %v5119 = vsel %vm5096, %v5102, %v5086
          %v5120 = vsel %vm5096, %v5106, %v5087
          %v5121 = vsel %vm5096, %v5110, %v5088
          %v5122 = vsel %vm5096, %v5114, %v5089
          %v5123 = vsel %vm5097, %v5102, %v5090
          %v5124 = vsel %vm5097, %v5106, %v5091
          %v5125 = vsel %vm5097, %v5110, %v5092
          %v5126 = vsel %vm5097, %v5114, %v5093
          %5127 = vst [vmem:[#allocation2] sm:$0xff] %v5119
          %5128 = vst [vmem:[#allocation2 + $0x8] sm:$0xff] %v5120
          %5129 = vst [vmem:[#allocation2 + $0x10] sm:$0xff] %v5121
          %5130 = vst [vmem:[#allocation2 + $0x18] sm:$0xff] %v5122
          %5131 = vst [vmem:[#allocation2 + $0x20] sm:$0xff] %v5123
          %5132 = vst [vmem:[#allocation2 + $0x28] sm:$0xff] %v5124
          %5133 = vst [vmem:[#allocation2 + $0x30] sm:$0xff] %v5125
          %5134 = vst [vmem:[#allocation2 + $0x38] sm:$0xff] %v5126
        $region244: #{tpu_custom_call.1} parent=127 // pred_fallthru
          _
        %p5135 = scmp.eq.s32.totalorder %s61, 9
        %p5136 = pnand %p5135, %p1279
        %p5137 = pneg %p5136
        // Predicated region
        $region245: #{tpu_custom_call.1} parent=127 // pred_check
          _
        $region246: #{tpu_custom_call.1} parent=127 // pred_check_branch
          %5139 = sbr.rel (%p5136) target = $region248
        $region247: #{tpu_custom_call.1} parent=127 // pred_region
          %v5140 = vld [vmem:[#allocation2] sm:$0xff]
          %v5141 = vld [vmem:[#allocation2 + $0x8] sm:$0xff]
          %v5142 = vld [vmem:[#allocation2 + $0x10] sm:$0xff]
          %v5143 = vld [vmem:[#allocation2 + $0x18] sm:$0xff]
          %v5144 = vld [vmem:[#allocation2 + $0x20] sm:$0xff]
          %v5145 = vld [vmem:[#allocation2 + $0x28] sm:$0xff]
          %v5146 = vld [vmem:[#allocation2 + $0x30] sm:$0xff]
          %v5147 = vld [vmem:[#allocation2 + $0x38] sm:$0xff]
          %v5148 = vpack.c.bf16 %v5144, %v5140
          %v5149 = vpack.c.bf16 %v5145, %v5141
          %v5150 = vpack.c.bf16 %v5146, %v5142
          %v5151 = vpack.c.bf16 %v5147, %v5143
          %v5152 = vld [vmem:[#allocation16] sm:$0xff]
          %v5153 = vld [vmem:[#allocation16 + $0x8] sm:$0xff]
          %v5154 = vld [vmem:[#allocation16 + $0x10] sm:$0xff]
          %v5155 = vld [vmem:[#allocation16 + $0x18] sm:$0xff]
          %v5156 = vld [vmem:[#allocation16 + $0x20] sm:$0xff]
          %v5157 = vld [vmem:[#allocation16 + $0x28] sm:$0xff]
          %v5158 = vld [vmem:[#allocation16 + $0x30] sm:$0xff]
          %v5159 = vld [vmem:[#allocation16 + $0x38] sm:$0xff]
          %v5160 = vld [vmem:[#allocation16 + $0x40] sm:$0xff]
          %v5161 = vld [vmem:[#allocation16 + $0x48] sm:$0xff]
          %v5162 = vld [vmem:[#allocation16 + $0x50] sm:$0xff]
          %v5163 = vld [vmem:[#allocation16 + $0x58] sm:$0xff]
          %v5164 = vld [vmem:[#allocation16 + $0x60] sm:$0xff]
          %v5165 = vld [vmem:[#allocation16 + $0x68] sm:$0xff]
          %v5166 = vld [vmem:[#allocation16 + $0x70] sm:$0xff]
          %v5167 = vld [vmem:[#allocation16 + $0x78] sm:$0xff]
          %v5168 = vld [vmem:[#allocation16 + $0x80] sm:$0xff]
          %v5169 = vld [vmem:[#allocation16 + $0x88] sm:$0xff]
          %v5170 = vld [vmem:[#allocation16 + $0x90] sm:$0xff]
          %v5171 = vld [vmem:[#allocation16 + $0x98] sm:$0xff]
          %v5172 = vld [vmem:[#allocation16 + $0xa0] sm:$0xff]
          %v5173 = vld [vmem:[#allocation16 + $0xa8] sm:$0xff]
          %v5174 = vld [vmem:[#allocation16 + $0xb0] sm:$0xff]
          %v5175 = vld [vmem:[#allocation16 + $0xb8] sm:$0xff]
          %v5176 = vld [vmem:[#allocation16 + $0xc0] sm:$0xff]
          %v5177 = vld [vmem:[#allocation16 + $0xc8] sm:$0xff]
          %v5178 = vld [vmem:[#allocation16 + $0xd0] sm:$0xff]
          %v5179 = vld [vmem:[#allocation16 + $0xd8] sm:$0xff]
          %v5180 = vld [vmem:[#allocation16 + $0xe0] sm:$0xff]
          %v5181 = vld [vmem:[#allocation16 + $0xe8] sm:$0xff]
          %v5182 = vld [vmem:[#allocation16 + $0xf0] sm:$0xff]
          %v5183 = vld [vmem:[#allocation16 + $0xf8] sm:$0xff]
          %v5184 = vld [vmem:[#allocation16 + $0x100] sm:$0xff]
          %v5185 = vld [vmem:[#allocation16 + $0x108] sm:$0xff]
          %v5186 = vld [vmem:[#allocation16 + $0x110] sm:$0xff]
          %v5187 = vld [vmem:[#allocation16 + $0x118] sm:$0xff]
          %v5188 = vld [vmem:[#allocation16 + $0x120] sm:$0xff]
          %v5189 = vld [vmem:[#allocation16 + $0x128] sm:$0xff]
          %v5190 = vld [vmem:[#allocation16 + $0x130] sm:$0xff]
          %v5191 = vld [vmem:[#allocation16 + $0x138] sm:$0xff]
          %v5192 = vld [vmem:[#allocation16 + $0x140] sm:$0xff]
          %v5193 = vld [vmem:[#allocation16 + $0x148] sm:$0xff]
          %v5194 = vld [vmem:[#allocation16 + $0x150] sm:$0xff]
          %v5195 = vld [vmem:[#allocation16 + $0x158] sm:$0xff]
          %v5196 = vld [vmem:[#allocation16 + $0x160] sm:$0xff]
          %v5197 = vld [vmem:[#allocation16 + $0x168] sm:$0xff]
          %v5198 = vld [vmem:[#allocation16 + $0x170] sm:$0xff]
          %v5199 = vld [vmem:[#allocation16 + $0x178] sm:$0xff]
          %v5200 = vld [vmem:[#allocation16 + $0x180] sm:$0xff]
          %v5201 = vld [vmem:[#allocation16 + $0x188] sm:$0xff]
          %v5202 = vld [vmem:[#allocation16 + $0x190] sm:$0xff]
          %v5203 = vld [vmem:[#allocation16 + $0x198] sm:$0xff]
          %v5204 = vld [vmem:[#allocation16 + $0x1a0] sm:$0xff]
          %v5205 = vld [vmem:[#allocation16 + $0x1a8] sm:$0xff]
          %v5206 = vld [vmem:[#allocation16 + $0x1b0] sm:$0xff]
          %v5207 = vld [vmem:[#allocation16 + $0x1b8] sm:$0xff]
          %v5208 = vld [vmem:[#allocation16 + $0x1c0] sm:$0xff]
          %v5209 = vld [vmem:[#allocation16 + $0x1c8] sm:$0xff]
          %v5210 = vld [vmem:[#allocation16 + $0x1d0] sm:$0xff]
          %v5211 = vld [vmem:[#allocation16 + $0x1d8] sm:$0xff]
          %v5212 = vld [vmem:[#allocation16 + $0x1e0] sm:$0xff]
          %v5213 = vld [vmem:[#allocation16 + $0x1e8] sm:$0xff]
          %v5214 = vld [vmem:[#allocation16 + $0x1f0] sm:$0xff]
          %v5215 = vld [vmem:[#allocation16 + $0x1f8] sm:$0xff]
          %v5216 = vld [vmem:[#allocation16 + $0x200] sm:$0xff]
          %v5217 = vld [vmem:[#allocation16 + $0x208] sm:$0xff]
          %v5218 = vld [vmem:[#allocation16 + $0x210] sm:$0xff]
          %v5219 = vld [vmem:[#allocation16 + $0x218] sm:$0xff]
          %v5220 = vld [vmem:[#allocation16 + $0x220] sm:$0xff]
          %v5221 = vld [vmem:[#allocation16 + $0x228] sm:$0xff]
          %v5222 = vld [vmem:[#allocation16 + $0x230] sm:$0xff]
          %v5223 = vld [vmem:[#allocation16 + $0x238] sm:$0xff]
          %v5224 = vld [vmem:[#allocation16 + $0x240] sm:$0xff]
          %v5225 = vld [vmem:[#allocation16 + $0x248] sm:$0xff]
          %v5226 = vld [vmem:[#allocation16 + $0x250] sm:$0xff]
          %v5227 = vld [vmem:[#allocation16 + $0x258] sm:$0xff]
          %v5228 = vld [vmem:[#allocation16 + $0x260] sm:$0xff]
          %v5229 = vld [vmem:[#allocation16 + $0x268] sm:$0xff]
          %v5230 = vld [vmem:[#allocation16 + $0x270] sm:$0xff]
          %v5231 = vld [vmem:[#allocation16 + $0x278] sm:$0xff]
          %v5232 = vld [vmem:[#allocation16 + $0x280] sm:$0xff]
          %v5233 = vld [vmem:[#allocation16 + $0x288] sm:$0xff]
          %v5234 = vld [vmem:[#allocation16 + $0x290] sm:$0xff]
          %v5235 = vld [vmem:[#allocation16 + $0x298] sm:$0xff]
          %v5236 = vld [vmem:[#allocation16 + $0x2a0] sm:$0xff]
          %v5237 = vld [vmem:[#allocation16 + $0x2a8] sm:$0xff]
          %v5238 = vld [vmem:[#allocation16 + $0x2b0] sm:$0xff]
          %v5239 = vld [vmem:[#allocation16 + $0x2b8] sm:$0xff]
          %v5240 = vld [vmem:[#allocation16 + $0x2c0] sm:$0xff]
          %v5241 = vld [vmem:[#allocation16 + $0x2c8] sm:$0xff]
          %v5242 = vld [vmem:[#allocation16 + $0x2d0] sm:$0xff]
          %v5243 = vld [vmem:[#allocation16 + $0x2d8] sm:$0xff]
          %v5244 = vld [vmem:[#allocation16 + $0x2e0] sm:$0xff]
          %v5245 = vld [vmem:[#allocation16 + $0x2e8] sm:$0xff]
          %v5246 = vld [vmem:[#allocation16 + $0x2f0] sm:$0xff]
          %v5247 = vld [vmem:[#allocation16 + $0x2f8] sm:$0xff]
          %v5248 = vld [vmem:[#allocation16 + $0x300] sm:$0xff]
          %v5249 = vld [vmem:[#allocation16 + $0x308] sm:$0xff]
          %v5250 = vld [vmem:[#allocation16 + $0x310] sm:$0xff]
          %v5251 = vld [vmem:[#allocation16 + $0x318] sm:$0xff]
          %v5252 = vld [vmem:[#allocation16 + $0x320] sm:$0xff]
          %v5253 = vld [vmem:[#allocation16 + $0x328] sm:$0xff]
          %v5254 = vld [vmem:[#allocation16 + $0x330] sm:$0xff]
          %v5255 = vld [vmem:[#allocation16 + $0x338] sm:$0xff]
          %v5256 = vld [vmem:[#allocation16 + $0x340] sm:$0xff]
          %v5257 = vld [vmem:[#allocation16 + $0x348] sm:$0xff]
          %v5258 = vld [vmem:[#allocation16 + $0x350] sm:$0xff]
          %v5259 = vld [vmem:[#allocation16 + $0x358] sm:$0xff]
          %v5260 = vld [vmem:[#allocation16 + $0x360] sm:$0xff]
          %v5261 = vld [vmem:[#allocation16 + $0x368] sm:$0xff]
          %v5262 = vld [vmem:[#allocation16 + $0x370] sm:$0xff]
          %v5263 = vld [vmem:[#allocation16 + $0x378] sm:$0xff]
          %v5264 = vld [vmem:[#allocation16 + $0x380] sm:$0xff]
          %v5265 = vld [vmem:[#allocation16 + $0x388] sm:$0xff]
          %v5266 = vld [vmem:[#allocation16 + $0x390] sm:$0xff]
          %v5267 = vld [vmem:[#allocation16 + $0x398] sm:$0xff]
          %v5268 = vld [vmem:[#allocation16 + $0x3a0] sm:$0xff]
          %v5269 = vld [vmem:[#allocation16 + $0x3a8] sm:$0xff]
          %v5270 = vld [vmem:[#allocation16 + $0x3b0] sm:$0xff]
          %v5271 = vld [vmem:[#allocation16 + $0x3b8] sm:$0xff]
          %v5272 = vld [vmem:[#allocation16 + $0x3c0] sm:$0xff]
          %v5273 = vld [vmem:[#allocation16 + $0x3c8] sm:$0xff]
          %v5274 = vld [vmem:[#allocation16 + $0x3d0] sm:$0xff]
          %v5275 = vld [vmem:[#allocation16 + $0x3d8] sm:$0xff]
          %v5276 = vld [vmem:[#allocation16 + $0x3e0] sm:$0xff]
          %v5277 = vld [vmem:[#allocation16 + $0x3e8] sm:$0xff]
          %v5278 = vld [vmem:[#allocation16 + $0x3f0] sm:$0xff]
          %v5279 = vld [vmem:[#allocation16 + $0x3f8] sm:$0xff]
          %v5280 = vld [vmem:[#allocation17] sm:$0xf]
          %v5282 = vlaneseq
          %v5283 = vshrl.u32 %v5282, 7
          %v5284 = vsub.s32 0, %v5283
          %v5285 = vrot.slane %v5280, %v5284
          %v5286 = vlaneseq
          %v5287 = vshrl.u32 %v5286, 7
          %v5288 = vsub.s32 1, %v5287
          %v5289 = vrot.slane %v5280, %v5288
          %v5290 = vlaneseq
          %v5291 = vshrl.u32 %v5290, 7
          %v5292 = vsub.s32 2, %v5291
          %v5293 = vrot.slane %v5280, %v5292
          %v5294 = vlaneseq
          %v5295 = vshrl.u32 %v5294, 7
          %v5296 = vsub.s32 3, %v5295
          %v5297 = vrot.slane %v5280, %v5296
          %v5430 = vunpack.c.l.b16 %v5152
          %v5431 = vunpack.c.h.b16 %v5152
          %v5432 = vunpack.c.l.b16 %v5153
          %v5433 = vunpack.c.h.b16 %v5153
          %v5434 = vunpack.c.l.b16 %v5154
          %v5435 = vunpack.c.h.b16 %v5154
          %v5436 = vunpack.c.l.b16 %v5155
          %v5437 = vunpack.c.h.b16 %v5155
          %v5438 = vunpack.c.l.b16 %v5156
          %v5439 = vunpack.c.h.b16 %v5156
          %v5440 = vunpack.c.l.b16 %v5157
          %v5441 = vunpack.c.h.b16 %v5157
          %v5442 = vunpack.c.l.b16 %v5158
          %v5443 = vunpack.c.h.b16 %v5158
          %v5444 = vunpack.c.l.b16 %v5159
          %v5445 = vunpack.c.h.b16 %v5159
          %v5446 = vunpack.c.l.b16 %v5160
          %v5447 = vunpack.c.h.b16 %v5160
          %v5448 = vunpack.c.l.b16 %v5161
          %v5449 = vunpack.c.h.b16 %v5161
          %v5450 = vunpack.c.l.b16 %v5162
          %v5451 = vunpack.c.h.b16 %v5162
          %v5452 = vunpack.c.l.b16 %v5163
          %v5453 = vunpack.c.h.b16 %v5163
          %v5454 = vunpack.c.l.b16 %v5164
          %v5455 = vunpack.c.h.b16 %v5164
          %v5456 = vunpack.c.l.b16 %v5165
          %v5457 = vunpack.c.h.b16 %v5165
          %v5458 = vunpack.c.l.b16 %v5166
          %v5459 = vunpack.c.h.b16 %v5166
          %v5460 = vunpack.c.l.b16 %v5167
          %v5461 = vunpack.c.h.b16 %v5167
          %v5462 = vunpack.c.l.b16 %v5168
          %v5463 = vunpack.c.h.b16 %v5168
          %v5464 = vunpack.c.l.b16 %v5169
          %v5465 = vunpack.c.h.b16 %v5169
          %v5466 = vunpack.c.l.b16 %v5170
          %v5467 = vunpack.c.h.b16 %v5170
          %v5468 = vunpack.c.l.b16 %v5171
          %v5469 = vunpack.c.h.b16 %v5171
          %v5470 = vunpack.c.l.b16 %v5172
          %v5471 = vunpack.c.h.b16 %v5172
          %v5472 = vunpack.c.l.b16 %v5173
          %v5473 = vunpack.c.h.b16 %v5173
          %v5474 = vunpack.c.l.b16 %v5174
          %v5475 = vunpack.c.h.b16 %v5174
          %v5476 = vunpack.c.l.b16 %v5175
          %v5477 = vunpack.c.h.b16 %v5175
          %v5478 = vunpack.c.l.b16 %v5176
          %v5479 = vunpack.c.h.b16 %v5176
          %v5480 = vunpack.c.l.b16 %v5177
          %v5481 = vunpack.c.h.b16 %v5177
          %v5482 = vunpack.c.l.b16 %v5178
          %v5483 = vunpack.c.h.b16 %v5178
          %v5484 = vunpack.c.l.b16 %v5179
          %v5485 = vunpack.c.h.b16 %v5179
          %v5486 = vunpack.c.l.b16 %v5180
          %v5487 = vunpack.c.h.b16 %v5180
          %v5488 = vunpack.c.l.b16 %v5181
          %v5489 = vunpack.c.h.b16 %v5181
          %v5490 = vunpack.c.l.b16 %v5182
          %v5491 = vunpack.c.h.b16 %v5182
          %v5492 = vunpack.c.l.b16 %v5183
          %v5493 = vunpack.c.h.b16 %v5183
          %v5494 = vunpack.c.l.b16 %v5184
          %v5495 = vunpack.c.h.b16 %v5184
          %v5496 = vunpack.c.l.b16 %v5185
          %v5497 = vunpack.c.h.b16 %v5185
          %v5498 = vunpack.c.l.b16 %v5186
          %v5499 = vunpack.c.h.b16 %v5186
          %v5500 = vunpack.c.l.b16 %v5187
          %v5501 = vunpack.c.h.b16 %v5187
          %v5502 = vunpack.c.l.b16 %v5188
          %v5503 = vunpack.c.h.b16 %v5188
          %v5504 = vunpack.c.l.b16 %v5189
          %v5505 = vunpack.c.h.b16 %v5189
          %v5506 = vunpack.c.l.b16 %v5190
          %v5507 = vunpack.c.h.b16 %v5190
          %v5508 = vunpack.c.l.b16 %v5191
          %v5509 = vunpack.c.h.b16 %v5191
          %v5510 = vunpack.c.l.b16 %v5192
          %v5511 = vunpack.c.h.b16 %v5192
          %v5512 = vunpack.c.l.b16 %v5193
          %v5513 = vunpack.c.h.b16 %v5193
          %v5514 = vunpack.c.l.b16 %v5194
          %v5515 = vunpack.c.h.b16 %v5194
          %v5516 = vunpack.c.l.b16 %v5195
          %v5517 = vunpack.c.h.b16 %v5195
          %v5518 = vunpack.c.l.b16 %v5196
          %v5519 = vunpack.c.h.b16 %v5196
          %v5520 = vunpack.c.l.b16 %v5197
          %v5521 = vunpack.c.h.b16 %v5197
          %v5522 = vunpack.c.l.b16 %v5198
          %v5523 = vunpack.c.h.b16 %v5198
          %v5524 = vunpack.c.l.b16 %v5199
          %v5525 = vunpack.c.h.b16 %v5199
          %v5526 = vunpack.c.l.b16 %v5200
          %v5527 = vunpack.c.h.b16 %v5200
          %v5528 = vunpack.c.l.b16 %v5201
          %v5529 = vunpack.c.h.b16 %v5201
          %v5530 = vunpack.c.l.b16 %v5202
          %v5531 = vunpack.c.h.b16 %v5202
          %v5532 = vunpack.c.l.b16 %v5203
          %v5533 = vunpack.c.h.b16 %v5203
          %v5534 = vunpack.c.l.b16 %v5204
          %v5535 = vunpack.c.h.b16 %v5204
          %v5536 = vunpack.c.l.b16 %v5205
          %v5537 = vunpack.c.h.b16 %v5205
          %v5538 = vunpack.c.l.b16 %v5206
          %v5539 = vunpack.c.h.b16 %v5206
          %v5540 = vunpack.c.l.b16 %v5207
          %v5541 = vunpack.c.h.b16 %v5207
          %v5542 = vunpack.c.l.b16 %v5208
          %v5543 = vunpack.c.h.b16 %v5208
          %v5544 = vunpack.c.l.b16 %v5209
          %v5545 = vunpack.c.h.b16 %v5209
          %v5546 = vunpack.c.l.b16 %v5210
          %v5547 = vunpack.c.h.b16 %v5210
          %v5548 = vunpack.c.l.b16 %v5211
          %v5549 = vunpack.c.h.b16 %v5211
          %v5550 = vunpack.c.l.b16 %v5212
          %v5551 = vunpack.c.h.b16 %v5212
          %v5552 = vunpack.c.l.b16 %v5213
          %v5553 = vunpack.c.h.b16 %v5213
          %v5554 = vunpack.c.l.b16 %v5214
          %v5555 = vunpack.c.h.b16 %v5214
          %v5556 = vunpack.c.l.b16 %v5215
          %v5557 = vunpack.c.h.b16 %v5215
          %v5558 = vunpack.c.l.b16 %v5216
          %v5559 = vunpack.c.h.b16 %v5216
          %v5560 = vunpack.c.l.b16 %v5217
          %v5561 = vunpack.c.h.b16 %v5217
          %v5562 = vunpack.c.l.b16 %v5218
          %v5563 = vunpack.c.h.b16 %v5218
          %v5564 = vunpack.c.l.b16 %v5219
          %v5565 = vunpack.c.h.b16 %v5219
          %v5566 = vunpack.c.l.b16 %v5220
          %v5567 = vunpack.c.h.b16 %v5220
          %v5568 = vunpack.c.l.b16 %v5221
          %v5569 = vunpack.c.h.b16 %v5221
          %v5570 = vunpack.c.l.b16 %v5222
          %v5571 = vunpack.c.h.b16 %v5222
          %v5572 = vunpack.c.l.b16 %v5223
          %v5573 = vunpack.c.h.b16 %v5223
          %v5574 = vunpack.c.l.b16 %v5224
          %v5575 = vunpack.c.h.b16 %v5224
          %v5576 = vunpack.c.l.b16 %v5225
          %v5577 = vunpack.c.h.b16 %v5225
          %v5578 = vunpack.c.l.b16 %v5226
          %v5579 = vunpack.c.h.b16 %v5226
          %v5580 = vunpack.c.l.b16 %v5227
          %v5581 = vunpack.c.h.b16 %v5227
          %v5582 = vunpack.c.l.b16 %v5228
          %v5583 = vunpack.c.h.b16 %v5228
          %v5584 = vunpack.c.l.b16 %v5229
          %v5585 = vunpack.c.h.b16 %v5229
          %v5586 = vunpack.c.l.b16 %v5230
          %v5587 = vunpack.c.h.b16 %v5230
          %v5588 = vunpack.c.l.b16 %v5231
          %v5589 = vunpack.c.h.b16 %v5231
          %v5590 = vunpack.c.l.b16 %v5232
          %v5591 = vunpack.c.h.b16 %v5232
          %v5592 = vunpack.c.l.b16 %v5233
          %v5593 = vunpack.c.h.b16 %v5233
          %v5594 = vunpack.c.l.b16 %v5234
          %v5595 = vunpack.c.h.b16 %v5234
          %v5596 = vunpack.c.l.b16 %v5235
          %v5597 = vunpack.c.h.b16 %v5235
          %v5598 = vunpack.c.l.b16 %v5236
          %v5599 = vunpack.c.h.b16 %v5236
          %v5600 = vunpack.c.l.b16 %v5237
          %v5601 = vunpack.c.h.b16 %v5237
          %v5602 = vunpack.c.l.b16 %v5238
          %v5603 = vunpack.c.h.b16 %v5238
          %v5604 = vunpack.c.l.b16 %v5239
          %v5605 = vunpack.c.h.b16 %v5239
          %v5606 = vunpack.c.l.b16 %v5240
          %v5607 = vunpack.c.h.b16 %v5240
          %v5608 = vunpack.c.l.b16 %v5241
          %v5609 = vunpack.c.h.b16 %v5241
          %v5610 = vunpack.c.l.b16 %v5242
          %v5611 = vunpack.c.h.b16 %v5242
          %v5612 = vunpack.c.l.b16 %v5243
          %v5613 = vunpack.c.h.b16 %v5243
          %v5614 = vunpack.c.l.b16 %v5244
          %v5615 = vunpack.c.h.b16 %v5244
          %v5616 = vunpack.c.l.b16 %v5245
          %v5617 = vunpack.c.h.b16 %v5245
          %v5618 = vunpack.c.l.b16 %v5246
          %v5619 = vunpack.c.h.b16 %v5246
          %v5620 = vunpack.c.l.b16 %v5247
          %v5621 = vunpack.c.h.b16 %v5247
          %v5622 = vunpack.c.l.b16 %v5248
          %v5623 = vunpack.c.h.b16 %v5248
          %v5624 = vunpack.c.l.b16 %v5249
          %v5625 = vunpack.c.h.b16 %v5249
          %v5626 = vunpack.c.l.b16 %v5250
          %v5627 = vunpack.c.h.b16 %v5250
          %v5628 = vunpack.c.l.b16 %v5251
          %v5629 = vunpack.c.h.b16 %v5251
          %v5630 = vunpack.c.l.b16 %v5252
          %v5631 = vunpack.c.h.b16 %v5252
          %v5632 = vunpack.c.l.b16 %v5253
          %v5633 = vunpack.c.h.b16 %v5253
          %v5634 = vunpack.c.l.b16 %v5254
          %v5635 = vunpack.c.h.b16 %v5254
          %v5636 = vunpack.c.l.b16 %v5255
          %v5637 = vunpack.c.h.b16 %v5255
          %v5638 = vunpack.c.l.b16 %v5256
          %v5639 = vunpack.c.h.b16 %v5256
          %v5640 = vunpack.c.l.b16 %v5257
          %v5641 = vunpack.c.h.b16 %v5257
          %v5642 = vunpack.c.l.b16 %v5258
          %v5643 = vunpack.c.h.b16 %v5258
          %v5644 = vunpack.c.l.b16 %v5259
          %v5645 = vunpack.c.h.b16 %v5259
          %v5646 = vunpack.c.l.b16 %v5260
          %v5647 = vunpack.c.h.b16 %v5260
          %v5648 = vunpack.c.l.b16 %v5261
          %v5649 = vunpack.c.h.b16 %v5261
          %v5650 = vunpack.c.l.b16 %v5262
          %v5651 = vunpack.c.h.b16 %v5262
          %v5652 = vunpack.c.l.b16 %v5263
          %v5653 = vunpack.c.h.b16 %v5263
          %v5654 = vunpack.c.l.b16 %v5264
          %v5655 = vunpack.c.h.b16 %v5264
          %v5656 = vunpack.c.l.b16 %v5265
          %v5657 = vunpack.c.h.b16 %v5265
          %v5658 = vunpack.c.l.b16 %v5266
          %v5659 = vunpack.c.h.b16 %v5266
          %v5660 = vunpack.c.l.b16 %v5267
          %v5661 = vunpack.c.h.b16 %v5267
          %v5662 = vunpack.c.l.b16 %v5268
          %v5663 = vunpack.c.h.b16 %v5268
          %v5664 = vunpack.c.l.b16 %v5269
          %v5665 = vunpack.c.h.b16 %v5269
          %v5666 = vunpack.c.l.b16 %v5270
          %v5667 = vunpack.c.h.b16 %v5270
          %v5668 = vunpack.c.l.b16 %v5271
          %v5669 = vunpack.c.h.b16 %v5271
          %v5670 = vunpack.c.l.b16 %v5272
          %v5671 = vunpack.c.h.b16 %v5272
          %v5672 = vunpack.c.l.b16 %v5273
          %v5673 = vunpack.c.h.b16 %v5273
          %v5674 = vunpack.c.l.b16 %v5274
          %v5675 = vunpack.c.h.b16 %v5274
          %v5676 = vunpack.c.l.b16 %v5275
          %v5677 = vunpack.c.h.b16 %v5275
          %v5678 = vunpack.c.l.b16 %v5276
          %v5679 = vunpack.c.h.b16 %v5276
          %v5680 = vunpack.c.l.b16 %v5277
          %v5681 = vunpack.c.h.b16 %v5277
          %v5682 = vunpack.c.l.b16 %v5278
          %v5683 = vunpack.c.h.b16 %v5278
          %v5684 = vunpack.c.l.b16 %v5279
          %v5685 = vunpack.c.h.b16 %v5279
          %v5686 = vpack.c.b16 %v5434, %v5430
          %v5687 = vpack.c.b16 %v5435, %v5431
          %v5688 = vpack.c.b16 %v5436, %v5432
          %v5689 = vpack.c.b16 %v5437, %v5433
          %v5690 = vpack.c.b16 %v5442, %v5438
          %v5691 = vpack.c.b16 %v5443, %v5439
          %v5692 = vpack.c.b16 %v5444, %v5440
          %v5693 = vpack.c.b16 %v5445, %v5441
          %v5694 = vpack.c.b16 %v5450, %v5446
          %v5695 = vpack.c.b16 %v5451, %v5447
          %v5696 = vpack.c.b16 %v5452, %v5448
          %v5697 = vpack.c.b16 %v5453, %v5449
          %v5698 = vpack.c.b16 %v5458, %v5454
          %v5699 = vpack.c.b16 %v5459, %v5455
          %v5700 = vpack.c.b16 %v5460, %v5456
          %v5701 = vpack.c.b16 %v5461, %v5457
          %v5702 = vpack.c.b16 %v5466, %v5462
          %v5703 = vpack.c.b16 %v5467, %v5463
          %v5704 = vpack.c.b16 %v5468, %v5464
          %v5705 = vpack.c.b16 %v5469, %v5465
          %v5706 = vpack.c.b16 %v5474, %v5470
          %v5707 = vpack.c.b16 %v5475, %v5471
          %v5708 = vpack.c.b16 %v5476, %v5472
          %v5709 = vpack.c.b16 %v5477, %v5473
          %v5710 = vpack.c.b16 %v5482, %v5478
          %v5711 = vpack.c.b16 %v5483, %v5479
          %v5712 = vpack.c.b16 %v5484, %v5480
          %v5713 = vpack.c.b16 %v5485, %v5481
          %v5714 = vpack.c.b16 %v5490, %v5486
          %v5715 = vpack.c.b16 %v5491, %v5487
          %v5716 = vpack.c.b16 %v5492, %v5488
          %v5717 = vpack.c.b16 %v5493, %v5489
          %v5718 = vpack.c.b16 %v5498, %v5494
          %v5719 = vpack.c.b16 %v5499, %v5495
          %v5720 = vpack.c.b16 %v5500, %v5496
          %v5721 = vpack.c.b16 %v5501, %v5497
          %v5722 = vpack.c.b16 %v5506, %v5502
          %v5723 = vpack.c.b16 %v5507, %v5503
          %v5724 = vpack.c.b16 %v5508, %v5504
          %v5725 = vpack.c.b16 %v5509, %v5505
          %v5726 = vpack.c.b16 %v5514, %v5510
          %v5727 = vpack.c.b16 %v5515, %v5511
          %v5728 = vpack.c.b16 %v5516, %v5512
          %v5729 = vpack.c.b16 %v5517, %v5513
          %v5730 = vpack.c.b16 %v5522, %v5518
          %v5731 = vpack.c.b16 %v5523, %v5519
          %v5732 = vpack.c.b16 %v5524, %v5520
          %v5733 = vpack.c.b16 %v5525, %v5521
          %v5734 = vpack.c.b16 %v5530, %v5526
          %v5735 = vpack.c.b16 %v5531, %v5527
          %v5736 = vpack.c.b16 %v5532, %v5528
          %v5737 = vpack.c.b16 %v5533, %v5529
          %v5738 = vpack.c.b16 %v5538, %v5534
          %v5739 = vpack.c.b16 %v5539, %v5535
          %v5740 = vpack.c.b16 %v5540, %v5536
          %v5741 = vpack.c.b16 %v5541, %v5537
          %v5742 = vpack.c.b16 %v5546, %v5542
          %v5743 = vpack.c.b16 %v5547, %v5543
          %v5744 = vpack.c.b16 %v5548, %v5544
          %v5745 = vpack.c.b16 %v5549, %v5545
          %v5746 = vpack.c.b16 %v5554, %v5550
          %v5747 = vpack.c.b16 %v5555, %v5551
          %v5748 = vpack.c.b16 %v5556, %v5552
          %v5749 = vpack.c.b16 %v5557, %v5553
          %v5750 = vpack.c.b16 %v5562, %v5558
          %v5751 = vpack.c.b16 %v5563, %v5559
          %v5752 = vpack.c.b16 %v5564, %v5560
          %v5753 = vpack.c.b16 %v5565, %v5561
          %v5754 = vpack.c.b16 %v5570, %v5566
          %v5755 = vpack.c.b16 %v5571, %v5567
          %v5756 = vpack.c.b16 %v5572, %v5568
          %v5757 = vpack.c.b16 %v5573, %v5569
          %v5758 = vpack.c.b16 %v5578, %v5574
          %v5759 = vpack.c.b16 %v5579, %v5575
          %v5760 = vpack.c.b16 %v5580, %v5576
          %v5761 = vpack.c.b16 %v5581, %v5577
          %v5762 = vpack.c.b16 %v5586, %v5582
          %v5763 = vpack.c.b16 %v5587, %v5583
          %v5764 = vpack.c.b16 %v5588, %v5584
          %v5765 = vpack.c.b16 %v5589, %v5585
          %v5766 = vpack.c.b16 %v5594, %v5590
          %v5767 = vpack.c.b16 %v5595, %v5591
          %v5768 = vpack.c.b16 %v5596, %v5592
          %v5769 = vpack.c.b16 %v5597, %v5593
          %v5770 = vpack.c.b16 %v5602, %v5598
          %v5771 = vpack.c.b16 %v5603, %v5599
          %v5772 = vpack.c.b16 %v5604, %v5600
          %v5773 = vpack.c.b16 %v5605, %v5601
          %v5774 = vpack.c.b16 %v5610, %v5606
          %v5775 = vpack.c.b16 %v5611, %v5607
          %v5776 = vpack.c.b16 %v5612, %v5608
          %v5777 = vpack.c.b16 %v5613, %v5609
          %v5778 = vpack.c.b16 %v5618, %v5614
          %v5779 = vpack.c.b16 %v5619, %v5615
          %v5780 = vpack.c.b16 %v5620, %v5616
          %v5781 = vpack.c.b16 %v5621, %v5617
          %v5782 = vpack.c.b16 %v5626, %v5622
          %v5783 = vpack.c.b16 %v5627, %v5623
          %v5784 = vpack.c.b16 %v5628, %v5624
          %v5785 = vpack.c.b16 %v5629, %v5625
          %v5786 = vpack.c.b16 %v5634, %v5630
          %v5787 = vpack.c.b16 %v5635, %v5631
          %v5788 = vpack.c.b16 %v5636, %v5632
          %v5789 = vpack.c.b16 %v5637, %v5633
          %v5790 = vpack.c.b16 %v5642, %v5638
          %v5791 = vpack.c.b16 %v5643, %v5639
          %v5792 = vpack.c.b16 %v5644, %v5640
          %v5793 = vpack.c.b16 %v5645, %v5641
          %v5794 = vpack.c.b16 %v5650, %v5646
          %v5795 = vpack.c.b16 %v5651, %v5647
          %v5796 = vpack.c.b16 %v5652, %v5648
          %v5797 = vpack.c.b16 %v5653, %v5649
          %v5798 = vpack.c.b16 %v5658, %v5654
          %v5799 = vpack.c.b16 %v5659, %v5655
          %v5800 = vpack.c.b16 %v5660, %v5656
          %v5801 = vpack.c.b16 %v5661, %v5657
          %v5802 = vpack.c.b16 %v5666, %v5662
          %v5803 = vpack.c.b16 %v5667, %v5663
          %v5804 = vpack.c.b16 %v5668, %v5664
          %v5805 = vpack.c.b16 %v5669, %v5665
          %v5806 = vpack.c.b16 %v5674, %v5670
          %v5807 = vpack.c.b16 %v5675, %v5671
          %v5808 = vpack.c.b16 %v5676, %v5672
          %v5809 = vpack.c.b16 %v5677, %v5673
          %v5810 = vpack.c.b16 %v5682, %v5678
          %v5811 = vpack.c.b16 %v5683, %v5679
          %v5812 = vpack.c.b16 %v5684, %v5680
          %v5813 = vpack.c.b16 %v5685, %v5681
          %5942 = vmatprep.subr.bf16.mxu0 %v5687
          %5943 = vmatpush1.bf16.msra.mxu0 %v5686
          %5944 = vmatprep.subr.bf16.mxu0 %v5691
          %5945 = vmatpush1.bf16.msra.mxu0 %v5690
          %5946 = vmatprep.subr.bf16.mxu0 %v5695
          %5947 = vmatpush1.bf16.msra.mxu0 %v5694
          %5948 = vmatprep.subr.bf16.mxu0 %v5699
          %5949 = vmatpush1.bf16.msra.mxu0 %v5698
          %5950 = vmatprep.subr.bf16.mxu0 %v5703
          %5951 = vmatpush1.bf16.msra.mxu0 %v5702
          %5952 = vmatprep.subr.bf16.mxu0 %v5707
          %5953 = vmatpush1.bf16.msra.mxu0 %v5706
          %5954 = vmatprep.subr.bf16.mxu0 %v5711
          %5955 = vmatpush1.bf16.msra.mxu0 %v5710
          %5956 = vmatprep.subr.bf16.mxu0 %v5715
          %5957 = vmatpush1.bf16.msra.mxu0 %v5714
          %5958 = vmatprep.subr.bf16.mxu0 %v5719
          %5959 = vmatpush1.bf16.msra.mxu0 %v5718
          %5960 = vmatprep.subr.bf16.mxu0 %v5723
          %5961 = vmatpush1.bf16.msra.mxu0 %v5722
          %5962 = vmatprep.subr.bf16.mxu0 %v5727
          %5963 = vmatpush1.bf16.msra.mxu0 %v5726
          %5964 = vmatprep.subr.bf16.mxu0 %v5731
          %5965 = vmatpush1.bf16.msra.mxu0 %v5730
          %5966 = vmatprep.subr.bf16.mxu0 %v5735
          %5967 = vmatpush1.bf16.msra.mxu0 %v5734
          %5968 = vmatprep.subr.bf16.mxu0 %v5739
          %5969 = vmatpush1.bf16.msra.mxu0 %v5738
          %5970 = vmatprep.subr.bf16.mxu0 %v5743
          %5971 = vmatpush1.bf16.msra.mxu0 %v5742
          %5972 = vmatprep.subr.bf16.mxu0 %v5747
          %5973 = vmatpush1.bf16.msra.mxu0 %v5746
          %5974 = vmatprep.mubr.bf16.mxu0 %v5149
          %5975 = vmatmul.mubr.bf16.gmra.mrb[0].mxu0 %v5148
          %v5976 = vpop.f32.mrb[0].mxu0
          %v5977 = vadd.f32 %v5285, %v5976
          %v5978 = vpop.f32.mrb[0].mxu0
          %v5979 = vadd.f32 %v5289, %v5978
          %v5980 = vpop.f32.mrb[0].mxu0
          %v5981 = vadd.f32 %v5285, %v5980
          %v5982 = vpop.f32.mrb[0].mxu0
          %v5983 = vadd.f32 %v5289, %v5982
          %5984 = vdwg.mxu0
          %5985 = vmatprep.subr.bf16.mxu0 %v5751
          %5986 = vmatpush1.bf16.msra.mxu0 %v5750
          %5987 = vmatprep.subr.bf16.mxu0 %v5755
          %5988 = vmatpush1.bf16.msra.mxu0 %v5754
          %5989 = vmatprep.subr.bf16.mxu0 %v5759
          %5990 = vmatpush1.bf16.msra.mxu0 %v5758
          %5991 = vmatprep.subr.bf16.mxu0 %v5763
          %5992 = vmatpush1.bf16.msra.mxu0 %v5762
          %5993 = vmatprep.subr.bf16.mxu0 %v5767
          %5994 = vmatpush1.bf16.msra.mxu0 %v5766
          %5995 = vmatprep.subr.bf16.mxu0 %v5771
          %5996 = vmatpush1.bf16.msra.mxu0 %v5770
          %5997 = vmatprep.subr.bf16.mxu0 %v5775
          %5998 = vmatpush1.bf16.msra.mxu0 %v5774
          %5999 = vmatprep.subr.bf16.mxu0 %v5779
          %6000 = vmatpush1.bf16.msra.mxu0 %v5778
          %6001 = vmatprep.subr.bf16.mxu0 %v5783
          %6002 = vmatpush1.bf16.msra.mxu0 %v5782
          %6003 = vmatprep.subr.bf16.mxu0 %v5787
          %6004 = vmatpush1.bf16.msra.mxu0 %v5786
          %6005 = vmatprep.subr.bf16.mxu0 %v5791
          %6006 = vmatpush1.bf16.msra.mxu0 %v5790
          %6007 = vmatprep.subr.bf16.mxu0 %v5795
          %6008 = vmatpush1.bf16.msra.mxu0 %v5794
          %6009 = vmatprep.subr.bf16.mxu0 %v5799
          %6010 = vmatpush1.bf16.msra.mxu0 %v5798
          %6011 = vmatprep.subr.bf16.mxu0 %v5803
          %6012 = vmatpush1.bf16.msra.mxu0 %v5802
          %6013 = vmatprep.subr.bf16.mxu0 %v5807
          %6014 = vmatpush1.bf16.msra.mxu0 %v5806
          %6015 = vmatprep.subr.bf16.mxu0 %v5811
          %6016 = vmatpush1.bf16.msra.mxu0 %v5810
          %6017 = vmatprep.mubr.bf16.mxu0 %v5151
          %6018 = vmatmul.mubr.bf16.gmra.mrb[0].mxu0 %v5150
          %v6019 = vpop.f32.mrb[0].mxu0
          %v6020 = vadd.f32 %v5977, %v6019
          %v6021 = vpop.f32.mrb[0].mxu0
          %v6022 = vadd.f32 %v5979, %v6021
          %v6023 = vpop.f32.mrb[0].mxu0
          %v6024 = vadd.f32 %v5981, %v6023
          %v6025 = vpop.f32.mrb[0].mxu0
          %v6026 = vadd.f32 %v5983, %v6025
          %6027 = vdwg.mxu0
          %6028 = vmatprep.subr.bf16.mxu0 %v5689
          %6029 = vmatpush1.bf16.msra.mxu0 %v5688
          %6030 = vmatprep.subr.bf16.mxu0 %v5693
          %6031 = vmatpush1.bf16.msra.mxu0 %v5692
          %6032 = vmatprep.subr.bf16.mxu0 %v5697
          %6033 = vmatpush1.bf16.msra.mxu0 %v5696
          %6034 = vmatprep.subr.bf16.mxu0 %v5701
          %6035 = vmatpush1.bf16.msra.mxu0 %v5700
          %6036 = vmatprep.subr.bf16.mxu0 %v5705
          %6037 = vmatpush1.bf16.msra.mxu0 %v5704
          %6038 = vmatprep.subr.bf16.mxu0 %v5709
          %6039 = vmatpush1.bf16.msra.mxu0 %v5708
          %6040 = vmatprep.subr.bf16.mxu0 %v5713
          %6041 = vmatpush1.bf16.msra.mxu0 %v5712
          %6042 = vmatprep.subr.bf16.mxu0 %v5717
          %6043 = vmatpush1.bf16.msra.mxu0 %v5716
          %6044 = vmatprep.subr.bf16.mxu0 %v5721
          %6045 = vmatpush1.bf16.msra.mxu0 %v5720
          %6046 = vmatprep.subr.bf16.mxu0 %v5725
          %6047 = vmatpush1.bf16.msra.mxu0 %v5724
          %6048 = vmatprep.subr.bf16.mxu0 %v5729
          %6049 = vmatpush1.bf16.msra.mxu0 %v5728
          %6050 = vmatprep.subr.bf16.mxu0 %v5733
          %6051 = vmatpush1.bf16.msra.mxu0 %v5732
          %6052 = vmatprep.subr.bf16.mxu0 %v5737
          %6053 = vmatpush1.bf16.msra.mxu0 %v5736
          %6054 = vmatprep.subr.bf16.mxu0 %v5741
          %6055 = vmatpush1.bf16.msra.mxu0 %v5740
          %6056 = vmatprep.subr.bf16.mxu0 %v5745
          %6057 = vmatpush1.bf16.msra.mxu0 %v5744
          %6058 = vmatprep.subr.bf16.mxu0 %v5749
          %6059 = vmatpush1.bf16.msra.mxu0 %v5748
          %6060 = vmatprep.mubr.bf16.mxu0 %v5149
          %6061 = vmatmul.mubr.bf16.gmra.mrb[0].mxu0 %v5148
          %v6062 = vpop.f32.mrb[0].mxu0
          %v6063 = vadd.f32 %v5293, %v6062
          %v6064 = vpop.f32.mrb[0].mxu0
          %v6065 = vadd.f32 %v5297, %v6064
          %v6066 = vpop.f32.mrb[0].mxu0
          %v6067 = vadd.f32 %v5293, %v6066
          %v6068 = vpop.f32.mrb[0].mxu0
          %v6069 = vadd.f32 %v5297, %v6068
          %6070 = vdwg.mxu0
          %6071 = vmatprep.subr.bf16.mxu0 %v5753
          %6072 = vmatpush1.bf16.msra.mxu0 %v5752
          %6073 = vmatprep.subr.bf16.mxu0 %v5757
          %6074 = vmatpush1.bf16.msra.mxu0 %v5756
          %6075 = vmatprep.subr.bf16.mxu0 %v5761
          %6076 = vmatpush1.bf16.msra.mxu0 %v5760
          %6077 = vmatprep.subr.bf16.mxu0 %v5765
          %6078 = vmatpush1.bf16.msra.mxu0 %v5764
          %6079 = vmatprep.subr.bf16.mxu0 %v5769
          %6080 = vmatpush1.bf16.msra.mxu0 %v5768
          %6081 = vmatprep.subr.bf16.mxu0 %v5773
          %6082 = vmatpush1.bf16.msra.mxu0 %v5772
          %6083 = vmatprep.subr.bf16.mxu0 %v5777
          %6084 = vmatpush1.bf16.msra.mxu0 %v5776
          %6085 = vmatprep.subr.bf16.mxu0 %v5781
          %6086 = vmatpush1.bf16.msra.mxu0 %v5780
          %6087 = vmatprep.subr.bf16.mxu0 %v5785
          %6088 = vmatpush1.bf16.msra.mxu0 %v5784
          %6089 = vmatprep.subr.bf16.mxu0 %v5789
          %6090 = vmatpush1.bf16.msra.mxu0 %v5788
          %6091 = vmatprep.subr.bf16.mxu0 %v5793
          %6092 = vmatpush1.bf16.msra.mxu0 %v5792
          %6093 = vmatprep.subr.bf16.mxu0 %v5797
          %6094 = vmatpush1.bf16.msra.mxu0 %v5796
          %6095 = vmatprep.subr.bf16.mxu0 %v5801
          %6096 = vmatpush1.bf16.msra.mxu0 %v5800
          %6097 = vmatprep.subr.bf16.mxu0 %v5805
          %6098 = vmatpush1.bf16.msra.mxu0 %v5804
          %6099 = vmatprep.subr.bf16.mxu0 %v5809
          %6100 = vmatpush1.bf16.msra.mxu0 %v5808
          %6101 = vmatprep.subr.bf16.mxu0 %v5813
          %6102 = vmatpush1.bf16.msra.mxu0 %v5812
          %6103 = vmatprep.mubr.bf16.mxu0 %v5151
          %6104 = vmatmul.mubr.bf16.gmra.mrb[0].mxu0 %v5150
          %v6105 = vpop.f32.mrb[0].mxu0
          %v6106 = vadd.f32 %v6063, %v6105
          %v6107 = vpop.f32.mrb[0].mxu0
          %v6108 = vadd.f32 %v6065, %v6107
          %v6109 = vpop.f32.mrb[0].mxu0
          %v6110 = vadd.f32 %v6067, %v6109
          %v6111 = vpop.f32.mrb[0].mxu0
          %v6112 = vadd.f32 %v6069, %v6111
          %6113 = vdwg.mxu0
          %v6114 = vmax.f32 %v6020, 0.0
          %v6115 = vmax.f32 %v6022, 0.0
          %v6116 = vmax.f32 %v6106, 0.0
          %v6117 = vmax.f32 %v6108, 0.0
          %v6118 = vmax.f32 %v6024, 0.0
          %v6119 = vmax.f32 %v6026, 0.0
          %v6120 = vmax.f32 %v6110, 0.0
          %v6121 = vmax.f32 %v6112, 0.0
          %v6122 = vpack.c.bf16 %v6118, %v6114
          %v6123 = vpack.c.bf16 %v6119, %v6115
          %v6124 = vpack.c.bf16 %v6120, %v6116
          %v6125 = vpack.c.bf16 %v6121, %v6117
          %v6126 = vld [vmem:[#allocation19] sm:$0xff]
          %v6127 = vld [vmem:[#allocation19 + $0x8] sm:$0xff]
          %v6128 = vld [vmem:[#allocation19 + $0x10] sm:$0xff]
          %v6129 = vld [vmem:[#allocation19 + $0x18] sm:$0xff]
          %v6130 = vld [vmem:[#allocation19 + $0x20] sm:$0xff]
          %v6131 = vld [vmem:[#allocation19 + $0x28] sm:$0xff]
          %v6132 = vld [vmem:[#allocation19 + $0x30] sm:$0xff]
          %v6133 = vld [vmem:[#allocation19 + $0x38] sm:$0xff]
          %v6134 = vld [vmem:[#allocation19 + $0x40] sm:$0xff]
          %v6135 = vld [vmem:[#allocation19 + $0x48] sm:$0xff]
          %v6136 = vld [vmem:[#allocation19 + $0x50] sm:$0xff]
          %v6137 = vld [vmem:[#allocation19 + $0x58] sm:$0xff]
          %v6138 = vld [vmem:[#allocation19 + $0x60] sm:$0xff]
          %v6139 = vld [vmem:[#allocation19 + $0x68] sm:$0xff]
          %v6140 = vld [vmem:[#allocation19 + $0x70] sm:$0xff]
          %v6141 = vld [vmem:[#allocation19 + $0x78] sm:$0xff]
          %v6142 = vld [vmem:[#allocation19 + $0x80] sm:$0xff]
          %v6143 = vld [vmem:[#allocation19 + $0x88] sm:$0xff]
          %v6144 = vld [vmem:[#allocation19 + $0x90] sm:$0xff]
          %v6145 = vld [vmem:[#allocation19 + $0x98] sm:$0xff]
          %v6146 = vld [vmem:[#allocation19 + $0xa0] sm:$0xff]
          %v6147 = vld [vmem:[#allocation19 + $0xa8] sm:$0xff]
          %v6148 = vld [vmem:[#allocation19 + $0xb0] sm:$0xff]
          %v6149 = vld [vmem:[#allocation19 + $0xb8] sm:$0xff]
          %v6150 = vld [vmem:[#allocation19 + $0xc0] sm:$0xff]
          %v6151 = vld [vmem:[#allocation19 + $0xc8] sm:$0xff]
          %v6152 = vld [vmem:[#allocation19 + $0xd0] sm:$0xff]
          %v6153 = vld [vmem:[#allocation19 + $0xd8] sm:$0xff]
          %v6154 = vld [vmem:[#allocation19 + $0xe0] sm:$0xff]
          %v6155 = vld [vmem:[#allocation19 + $0xe8] sm:$0xff]
          %v6156 = vld [vmem:[#allocation19 + $0xf0] sm:$0xff]
          %v6157 = vld [vmem:[#allocation19 + $0xf8] sm:$0xff]
          %v6158 = vld [vmem:[#allocation19 + $0x100] sm:$0xff]
          %v6159 = vld [vmem:[#allocation19 + $0x108] sm:$0xff]
          %v6160 = vld [vmem:[#allocation19 + $0x110] sm:$0xff]
          %v6161 = vld [vmem:[#allocation19 + $0x118] sm:$0xff]
          %v6162 = vld [vmem:[#allocation19 + $0x120] sm:$0xff]
          %v6163 = vld [vmem:[#allocation19 + $0x128] sm:$0xff]
          %v6164 = vld [vmem:[#allocation19 + $0x130] sm:$0xff]
          %v6165 = vld [vmem:[#allocation19 + $0x138] sm:$0xff]
          %v6166 = vld [vmem:[#allocation19 + $0x140] sm:$0xff]
          %v6167 = vld [vmem:[#allocation19 + $0x148] sm:$0xff]
          %v6168 = vld [vmem:[#allocation19 + $0x150] sm:$0xff]
          %v6169 = vld [vmem:[#allocation19 + $0x158] sm:$0xff]
          %v6170 = vld [vmem:[#allocation19 + $0x160] sm:$0xff]
          %v6171 = vld [vmem:[#allocation19 + $0x168] sm:$0xff]
          %v6172 = vld [vmem:[#allocation19 + $0x170] sm:$0xff]
          %v6173 = vld [vmem:[#allocation19 + $0x178] sm:$0xff]
          %v6174 = vld [vmem:[#allocation19 + $0x180] sm:$0xff]
          %v6175 = vld [vmem:[#allocation19 + $0x188] sm:$0xff]
          %v6176 = vld [vmem:[#allocation19 + $0x190] sm:$0xff]
          %v6177 = vld [vmem:[#allocation19 + $0x198] sm:$0xff]
          %v6178 = vld [vmem:[#allocation19 + $0x1a0] sm:$0xff]
          %v6179 = vld [vmem:[#allocation19 + $0x1a8] sm:$0xff]
          %v6180 = vld [vmem:[#allocation19 + $0x1b0] sm:$0xff]
          %v6181 = vld [vmem:[#allocation19 + $0x1b8] sm:$0xff]
          %v6182 = vld [vmem:[#allocation19 + $0x1c0] sm:$0xff]
          %v6183 = vld [vmem:[#allocation19 + $0x1c8] sm:$0xff]
          %v6184 = vld [vmem:[#allocation19 + $0x1d0] sm:$0xff]
          %v6185 = vld [vmem:[#allocation19 + $0x1d8] sm:$0xff]
          %v6186 = vld [vmem:[#allocation19 + $0x1e0] sm:$0xff]
          %v6187 = vld [vmem:[#allocation19 + $0x1e8] sm:$0xff]
          %v6188 = vld [vmem:[#allocation19 + $0x1f0] sm:$0xff]
          %v6189 = vld [vmem:[#allocation19 + $0x1f8] sm:$0xff]
          %v6190 = vld [vmem:[#allocation20] sm:$0x3]
          %v6192 = vlaneseq
          %v6193 = vshrl.u32 %v6192, 7
          %v6194 = vsub.s32 0, %v6193
          %v6195 = vrot.slane %v6190, %v6194
          %v6196 = vlaneseq
          %v6197 = vshrl.u32 %v6196, 7
          %v6198 = vsub.s32 1, %v6197
          %v6199 = vrot.slane %v6190, %v6198
          %v6266 = vunpack.c.l.b16 %v6126
          %v6267 = vunpack.c.h.b16 %v6126
          %v6268 = vunpack.c.l.b16 %v6127
          %v6269 = vunpack.c.h.b16 %v6127
          %v6270 = vunpack.c.l.b16 %v6128
          %v6271 = vunpack.c.h.b16 %v6128
          %v6272 = vunpack.c.l.b16 %v6129
          %v6273 = vunpack.c.h.b16 %v6129
          %v6274 = vunpack.c.l.b16 %v6130
          %v6275 = vunpack.c.h.b16 %v6130
          %v6276 = vunpack.c.l.b16 %v6131
          %v6277 = vunpack.c.h.b16 %v6131
          %v6278 = vunpack.c.l.b16 %v6132
          %v6279 = vunpack.c.h.b16 %v6132
          %v6280 = vunpack.c.l.b16 %v6133
          %v6281 = vunpack.c.h.b16 %v6133
          %v6282 = vunpack.c.l.b16 %v6134
          %v6283 = vunpack.c.h.b16 %v6134
          %v6284 = vunpack.c.l.b16 %v6135
          %v6285 = vunpack.c.h.b16 %v6135
          %v6286 = vunpack.c.l.b16 %v6136
          %v6287 = vunpack.c.h.b16 %v6136
          %v6288 = vunpack.c.l.b16 %v6137
          %v6289 = vunpack.c.h.b16 %v6137
          %v6290 = vunpack.c.l.b16 %v6138
          %v6291 = vunpack.c.h.b16 %v6138
          %v6292 = vunpack.c.l.b16 %v6139
          %v6293 = vunpack.c.h.b16 %v6139
          %v6294 = vunpack.c.l.b16 %v6140
          %v6295 = vunpack.c.h.b16 %v6140
          %v6296 = vunpack.c.l.b16 %v6141
          %v6297 = vunpack.c.h.b16 %v6141
          %v6298 = vunpack.c.l.b16 %v6142
          %v6299 = vunpack.c.h.b16 %v6142
          %v6300 = vunpack.c.l.b16 %v6143
          %v6301 = vunpack.c.h.b16 %v6143
          %v6302 = vunpack.c.l.b16 %v6144
          %v6303 = vunpack.c.h.b16 %v6144
          %v6304 = vunpack.c.l.b16 %v6145
          %v6305 = vunpack.c.h.b16 %v6145
          %v6306 = vunpack.c.l.b16 %v6146
          %v6307 = vunpack.c.h.b16 %v6146
          %v6308 = vunpack.c.l.b16 %v6147
          %v6309 = vunpack.c.h.b16 %v6147
          %v6310 = vunpack.c.l.b16 %v6148
          %v6311 = vunpack.c.h.b16 %v6148
          %v6312 = vunpack.c.l.b16 %v6149
          %v6313 = vunpack.c.h.b16 %v6149
          %v6314 = vunpack.c.l.b16 %v6150
          %v6315 = vunpack.c.h.b16 %v6150
          %v6316 = vunpack.c.l.b16 %v6151
          %v6317 = vunpack.c.h.b16 %v6151
          %v6318 = vunpack.c.l.b16 %v6152
          %v6319 = vunpack.c.h.b16 %v6152
          %v6320 = vunpack.c.l.b16 %v6153
          %v6321 = vunpack.c.h.b16 %v6153
          %v6322 = vunpack.c.l.b16 %v6154
          %v6323 = vunpack.c.h.b16 %v6154
          %v6324 = vunpack.c.l.b16 %v6155
          %v6325 = vunpack.c.h.b16 %v6155
          %v6326 = vunpack.c.l.b16 %v6156
          %v6327 = vunpack.c.h.b16 %v6156
          %v6328 = vunpack.c.l.b16 %v6157
          %v6329 = vunpack.c.h.b16 %v6157
          %v6330 = vunpack.c.l.b16 %v6158
          %v6331 = vunpack.c.h.b16 %v6158
          %v6332 = vunpack.c.l.b16 %v6159
          %v6333 = vunpack.c.h.b16 %v6159
          %v6334 = vunpack.c.l.b16 %v6160
          %v6335 = vunpack.c.h.b16 %v6160
          %v6336 = vunpack.c.l.b16 %v6161
          %v6337 = vunpack.c.h.b16 %v6161
          %v6338 = vunpack.c.l.b16 %v6162
          %v6339 = vunpack.c.h.b16 %v6162
          %v6340 = vunpack.c.l.b16 %v6163
          %v6341 = vunpack.c.h.b16 %v6163
          %v6342 = vunpack.c.l.b16 %v6164
          %v6343 = vunpack.c.h.b16 %v6164
          %v6344 = vunpack.c.l.b16 %v6165
          %v6345 = vunpack.c.h.b16 %v6165
          %v6346 = vunpack.c.l.b16 %v6166
          %v6347 = vunpack.c.h.b16 %v6166
          %v6348 = vunpack.c.l.b16 %v6167
          %v6349 = vunpack.c.h.b16 %v6167
          %v6350 = vunpack.c.l.b16 %v6168
          %v6351 = vunpack.c.h.b16 %v6168
          %v6352 = vunpack.c.l.b16 %v6169
          %v6353 = vunpack.c.h.b16 %v6169
          %v6354 = vunpack.c.l.b16 %v6170
          %v6355 = vunpack.c.h.b16 %v6170
          %v6356 = vunpack.c.l.b16 %v6171
          %v6357 = vunpack.c.h.b16 %v6171
          %v6358 = vunpack.c.l.b16 %v6172
          %v6359 = vunpack.c.h.b16 %v6172
          %v6360 = vunpack.c.l.b16 %v6173
          %v6361 = vunpack.c.h.b16 %v6173
          %v6362 = vunpack.c.l.b16 %v6174
          %v6363 = vunpack.c.h.b16 %v6174
          %v6364 = vunpack.c.l.b16 %v6175
          %v6365 = vunpack.c.h.b16 %v6175
          %v6366 = vunpack.c.l.b16 %v6176
          %v6367 = vunpack.c.h.b16 %v6176
          %v6368 = vunpack.c.l.b16 %v6177
          %v6369 = vunpack.c.h.b16 %v6177
          %v6370 = vunpack.c.l.b16 %v6178
          %v6371 = vunpack.c.h.b16 %v6178
          %v6372 = vunpack.c.l.b16 %v6179
          %v6373 = vunpack.c.h.b16 %v6179
          %v6374 = vunpack.c.l.b16 %v6180
          %v6375 = vunpack.c.h.b16 %v6180
          %v6376 = vunpack.c.l.b16 %v6181
          %v6377 = vunpack.c.h.b16 %v6181
          %v6378 = vunpack.c.l.b16 %v6182
          %v6379 = vunpack.c.h.b16 %v6182
          %v6380 = vunpack.c.l.b16 %v6183
          %v6381 = vunpack.c.h.b16 %v6183
          %v6382 = vunpack.c.l.b16 %v6184
          %v6383 = vunpack.c.h.b16 %v6184
          %v6384 = vunpack.c.l.b16 %v6185
          %v6385 = vunpack.c.h.b16 %v6185
          %v6386 = vunpack.c.l.b16 %v6186
          %v6387 = vunpack.c.h.b16 %v6186
          %v6388 = vunpack.c.l.b16 %v6187
          %v6389 = vunpack.c.h.b16 %v6187
          %v6390 = vunpack.c.l.b16 %v6188
          %v6391 = vunpack.c.h.b16 %v6188
          %v6392 = vunpack.c.l.b16 %v6189
          %v6393 = vunpack.c.h.b16 %v6189
          %v6394 = vpack.c.b16 %v6268, %v6266
          %v6395 = vpack.c.b16 %v6269, %v6267
          %v6396 = vpack.c.b16 %v6272, %v6270
          %v6397 = vpack.c.b16 %v6273, %v6271
          %v6398 = vpack.c.b16 %v6276, %v6274
          %v6399 = vpack.c.b16 %v6277, %v6275
          %v6400 = vpack.c.b16 %v6280, %v6278
          %v6401 = vpack.c.b16 %v6281, %v6279
          %v6402 = vpack.c.b16 %v6284, %v6282
          %v6403 = vpack.c.b16 %v6285, %v6283
          %v6404 = vpack.c.b16 %v6288, %v6286
          %v6405 = vpack.c.b16 %v6289, %v6287
          %v6406 = vpack.c.b16 %v6292, %v6290
          %v6407 = vpack.c.b16 %v6293, %v6291
          %v6408 = vpack.c.b16 %v6296, %v6294
          %v6409 = vpack.c.b16 %v6297, %v6295
          %v6410 = vpack.c.b16 %v6300, %v6298
          %v6411 = vpack.c.b16 %v6301, %v6299
          %v6412 = vpack.c.b16 %v6304, %v6302
          %v6413 = vpack.c.b16 %v6305, %v6303
          %v6414 = vpack.c.b16 %v6308, %v6306
          %v6415 = vpack.c.b16 %v6309, %v6307
          %v6416 = vpack.c.b16 %v6312, %v6310
          %v6417 = vpack.c.b16 %v6313, %v6311
          %v6418 = vpack.c.b16 %v6316, %v6314
          %v6419 = vpack.c.b16 %v6317, %v6315
          %v6420 = vpack.c.b16 %v6320, %v6318
          %v6421 = vpack.c.b16 %v6321, %v6319
          %v6422 = vpack.c.b16 %v6324, %v6322
          %v6423 = vpack.c.b16 %v6325, %v6323
          %v6424 = vpack.c.b16 %v6328, %v6326
          %v6425 = vpack.c.b16 %v6329, %v6327
          %v6426 = vpack.c.b16 %v6332, %v6330
          %v6427 = vpack.c.b16 %v6333, %v6331
          %v6428 = vpack.c.b16 %v6336, %v6334
          %v6429 = vpack.c.b16 %v6337, %v6335
          %v6430 = vpack.c.b16 %v6340, %v6338
          %v6431 = vpack.c.b16 %v6341, %v6339
          %v6432 = vpack.c.b16 %v6344, %v6342
          %v6433 = vpack.c.b16 %v6345, %v6343
          %v6434 = vpack.c.b16 %v6348, %v6346
          %v6435 = vpack.c.b16 %v6349, %v6347
          %v6436 = vpack.c.b16 %v6352, %v6350
          %v6437 = vpack.c.b16 %v6353, %v6351
          %v6438 = vpack.c.b16 %v6356, %v6354
          %v6439 = vpack.c.b16 %v6357, %v6355
          %v6440 = vpack.c.b16 %v6360, %v6358
          %v6441 = vpack.c.b16 %v6361, %v6359
          %v6442 = vpack.c.b16 %v6364, %v6362
          %v6443 = vpack.c.b16 %v6365, %v6363
          %v6444 = vpack.c.b16 %v6368, %v6366
          %v6445 = vpack.c.b16 %v6369, %v6367
          %v6446 = vpack.c.b16 %v6372, %v6370
          %v6447 = vpack.c.b16 %v6373, %v6371
          %v6448 = vpack.c.b16 %v6376, %v6374
          %v6449 = vpack.c.b16 %v6377, %v6375
          %v6450 = vpack.c.b16 %v6380, %v6378
          %v6451 = vpack.c.b16 %v6381, %v6379
          %v6452 = vpack.c.b16 %v6384, %v6382
          %v6453 = vpack.c.b16 %v6385, %v6383
          %v6454 = vpack.c.b16 %v6388, %v6386
          %v6455 = vpack.c.b16 %v6389, %v6387
          %v6456 = vpack.c.b16 %v6392, %v6390
          %v6457 = vpack.c.b16 %v6393, %v6391
          %6522 = vmatprep.subr.bf16.mxu0 %v6395
          %6523 = vmatpush1.bf16.msra.mxu0 %v6394
          %6524 = vmatprep.subr.bf16.mxu0 %v6397
          %6525 = vmatpush1.bf16.msra.mxu0 %v6396
          %6526 = vmatprep.subr.bf16.mxu0 %v6399
          %6527 = vmatpush1.bf16.msra.mxu0 %v6398
          %6528 = vmatprep.subr.bf16.mxu0 %v6401
          %6529 = vmatpush1.bf16.msra.mxu0 %v6400
          %6530 = vmatprep.subr.bf16.mxu0 %v6403
          %6531 = vmatpush1.bf16.msra.mxu0 %v6402
          %6532 = vmatprep.subr.bf16.mxu0 %v6405
          %6533 = vmatpush1.bf16.msra.mxu0 %v6404
          %6534 = vmatprep.subr.bf16.mxu0 %v6407
          %6535 = vmatpush1.bf16.msra.mxu0 %v6406
          %6536 = vmatprep.subr.bf16.mxu0 %v6409
          %6537 = vmatpush1.bf16.msra.mxu0 %v6408
          %6538 = vmatprep.subr.bf16.mxu0 %v6411
          %6539 = vmatpush1.bf16.msra.mxu0 %v6410
          %6540 = vmatprep.subr.bf16.mxu0 %v6413
          %6541 = vmatpush1.bf16.msra.mxu0 %v6412
          %6542 = vmatprep.subr.bf16.mxu0 %v6415
          %6543 = vmatpush1.bf16.msra.mxu0 %v6414
          %6544 = vmatprep.subr.bf16.mxu0 %v6417
          %6545 = vmatpush1.bf16.msra.mxu0 %v6416
          %6546 = vmatprep.subr.bf16.mxu0 %v6419
          %6547 = vmatpush1.bf16.msra.mxu0 %v6418
          %6548 = vmatprep.subr.bf16.mxu0 %v6421
          %6549 = vmatpush1.bf16.msra.mxu0 %v6420
          %6550 = vmatprep.subr.bf16.mxu0 %v6423
          %6551 = vmatpush1.bf16.msra.mxu0 %v6422
          %6552 = vmatprep.subr.bf16.mxu0 %v6425
          %6553 = vmatpush1.bf16.msra.mxu0 %v6424
          %6554 = vmatprep.mubr.bf16.mxu0 %v6123
          %6555 = vmatmul.mubr.bf16.gmra.mrb[0].mxu0 %v6122
          %v6556 = vpop.f32.mrb[0].mxu0
          %v6557 = vadd.f32 %v6195, %v6556
          %v6558 = vpop.f32.mrb[0].mxu0
          %v6559 = vadd.f32 %v6199, %v6558
          %v6560 = vpop.f32.mrb[0].mxu0
          %v6561 = vadd.f32 %v6195, %v6560
          %v6562 = vpop.f32.mrb[0].mxu0
          %v6563 = vadd.f32 %v6199, %v6562
          %6564 = vdwg.mxu0
          %6565 = vmatprep.subr.bf16.mxu0 %v6427
          %6566 = vmatpush1.bf16.msra.mxu0 %v6426
          %6567 = vmatprep.subr.bf16.mxu0 %v6429
          %6568 = vmatpush1.bf16.msra.mxu0 %v6428
          %6569 = vmatprep.subr.bf16.mxu0 %v6431
          %6570 = vmatpush1.bf16.msra.mxu0 %v6430
          %6571 = vmatprep.subr.bf16.mxu0 %v6433
          %6572 = vmatpush1.bf16.msra.mxu0 %v6432
          %6573 = vmatprep.subr.bf16.mxu0 %v6435
          %6574 = vmatpush1.bf16.msra.mxu0 %v6434
          %6575 = vmatprep.subr.bf16.mxu0 %v6437
          %6576 = vmatpush1.bf16.msra.mxu0 %v6436
          %6577 = vmatprep.subr.bf16.mxu0 %v6439
          %6578 = vmatpush1.bf16.msra.mxu0 %v6438
          %6579 = vmatprep.subr.bf16.mxu0 %v6441
          %6580 = vmatpush1.bf16.msra.mxu0 %v6440
          %6581 = vmatprep.subr.bf16.mxu0 %v6443
          %6582 = vmatpush1.bf16.msra.mxu0 %v6442
          %6583 = vmatprep.subr.bf16.mxu0 %v6445
          %6584 = vmatpush1.bf16.msra.mxu0 %v6444
          %6585 = vmatprep.subr.bf16.mxu0 %v6447
          %6586 = vmatpush1.bf16.msra.mxu0 %v6446
          %6587 = vmatprep.subr.bf16.mxu0 %v6449
          %6588 = vmatpush1.bf16.msra.mxu0 %v6448
          %6589 = vmatprep.subr.bf16.mxu0 %v6451
          %6590 = vmatpush1.bf16.msra.mxu0 %v6450
          %6591 = vmatprep.subr.bf16.mxu0 %v6453
          %6592 = vmatpush1.bf16.msra.mxu0 %v6452
          %6593 = vmatprep.subr.bf16.mxu0 %v6455
          %6594 = vmatpush1.bf16.msra.mxu0 %v6454
          %6595 = vmatprep.subr.bf16.mxu0 %v6457
          %6596 = vmatpush1.bf16.msra.mxu0 %v6456
          %6597 = vmatprep.mubr.bf16.mxu0 %v6125
          %6598 = vmatmul.mubr.bf16.gmra.mrb[0].mxu0 %v6124
          %v6599 = vpop.f32.mrb[0].mxu0
          %v6600 = vadd.f32 %v6557, %v6599
          %v6601 = vpop.f32.mrb[0].mxu0
          %v6602 = vadd.f32 %v6559, %v6601
          %v6603 = vpop.f32.mrb[0].mxu0
          %v6604 = vadd.f32 %v6561, %v6603
          %v6605 = vpop.f32.mrb[0].mxu0
          %v6606 = vadd.f32 %v6563, %v6605
          %6607 = vdwg.mxu0
          %v6608 = vtanh.pop %v6600
          %v6609 = vtanh.pop %v6602
          %v6610 = vtanh.pop %v6604
          %v6611 = vtanh.pop %v6606
          %v6612 = vld [vmem:[#allocation22] sm:$0xff]
          %v6613 = vld [vmem:[#allocation22 + $0x8] sm:$0xff]
          %v6614 = vld [vmem:[#allocation22 + $0x10] sm:$0xff]
          %v6615 = vld [vmem:[#allocation22 + $0x18] sm:$0xff]
          %v6616 = vld [vmem:[#allocation22 + $0x20] sm:$0xff]
          %v6617 = vld [vmem:[#allocation22 + $0x28] sm:$0xff]
          %v6618 = vld [vmem:[#allocation22 + $0x30] sm:$0xff]
          %v6619 = vld [vmem:[#allocation22 + $0x38] sm:$0xff]
          %v6620 = vld [vmem:[#allocation22 + $0x40] sm:$0xff]
          %v6621 = vld [vmem:[#allocation22 + $0x48] sm:$0xff]
          %v6622 = vld [vmem:[#allocation22 + $0x50] sm:$0xff]
          %v6623 = vld [vmem:[#allocation22 + $0x58] sm:$0xff]
          %v6624 = vld [vmem:[#allocation22 + $0x60] sm:$0xff]
          %v6625 = vld [vmem:[#allocation22 + $0x68] sm:$0xff]
          %v6626 = vld [vmem:[#allocation22 + $0x70] sm:$0xff]
          %v6627 = vld [vmem:[#allocation22 + $0x78] sm:$0xff]
          %v6628 = vld [vmem:[#allocation22 + $0x80] sm:$0xff]
          %v6629 = vld [vmem:[#allocation22 + $0x88] sm:$0xff]
          %v6630 = vld [vmem:[#allocation22 + $0x90] sm:$0xff]
          %v6631 = vld [vmem:[#allocation22 + $0x98] sm:$0xff]
          %v6632 = vld [vmem:[#allocation22 + $0xa0] sm:$0xff]
          %v6633 = vld [vmem:[#allocation22 + $0xa8] sm:$0xff]
          %v6634 = vld [vmem:[#allocation22 + $0xb0] sm:$0xff]
          %v6635 = vld [vmem:[#allocation22 + $0xb8] sm:$0xff]
          %v6636 = vld [vmem:[#allocation22 + $0xc0] sm:$0xff]
          %v6637 = vld [vmem:[#allocation22 + $0xc8] sm:$0xff]
          %v6638 = vld [vmem:[#allocation22 + $0xd0] sm:$0xff]
          %v6639 = vld [vmem:[#allocation22 + $0xd8] sm:$0xff]
          %v6640 = vld [vmem:[#allocation22 + $0xe0] sm:$0xff]
          %v6641 = vld [vmem:[#allocation22 + $0xe8] sm:$0xff]
          %v6642 = vld [vmem:[#allocation22 + $0xf0] sm:$0xff]
          %v6643 = vld [vmem:[#allocation22 + $0xf8] sm:$0xff]
          %v6644 = vld [vmem:[#allocation22 + $0x100] sm:$0xff]
          %v6645 = vld [vmem:[#allocation22 + $0x108] sm:$0xff]
          %v6646 = vld [vmem:[#allocation22 + $0x110] sm:$0xff]
          %v6647 = vld [vmem:[#allocation22 + $0x118] sm:$0xff]
          %v6648 = vld [vmem:[#allocation22 + $0x120] sm:$0xff]
          %v6649 = vld [vmem:[#allocation22 + $0x128] sm:$0xff]
          %v6650 = vld [vmem:[#allocation22 + $0x130] sm:$0xff]
          %v6651 = vld [vmem:[#allocation22 + $0x138] sm:$0xff]
          %v6652 = vld [vmem:[#allocation22 + $0x140] sm:$0xff]
          %v6653 = vld [vmem:[#allocation22 + $0x148] sm:$0xff]
          %v6654 = vld [vmem:[#allocation22 + $0x150] sm:$0xff]
          %v6655 = vld [vmem:[#allocation22 + $0x158] sm:$0xff]
          %v6656 = vld [vmem:[#allocation22 + $0x160] sm:$0xff]
          %v6657 = vld [vmem:[#allocation22 + $0x168] sm:$0xff]
          %v6658 = vld [vmem:[#allocation22 + $0x170] sm:$0xff]
          %v6659 = vld [vmem:[#allocation22 + $0x178] sm:$0xff]
          %v6660 = vld [vmem:[#allocation22 + $0x180] sm:$0xff]
          %v6661 = vld [vmem:[#allocation22 + $0x188] sm:$0xff]
          %v6662 = vld [vmem:[#allocation22 + $0x190] sm:$0xff]
          %v6663 = vld [vmem:[#allocation22 + $0x198] sm:$0xff]
          %v6664 = vld [vmem:[#allocation22 + $0x1a0] sm:$0xff]
          %v6665 = vld [vmem:[#allocation22 + $0x1a8] sm:$0xff]
          %v6666 = vld [vmem:[#allocation22 + $0x1b0] sm:$0xff]
          %v6667 = vld [vmem:[#allocation22 + $0x1b8] sm:$0xff]
          %v6668 = vld [vmem:[#allocation22 + $0x1c0] sm:$0xff]
          %v6669 = vld [vmem:[#allocation22 + $0x1c8] sm:$0xff]
          %v6670 = vld [vmem:[#allocation22 + $0x1d0] sm:$0xff]
          %v6671 = vld [vmem:[#allocation22 + $0x1d8] sm:$0xff]
          %v6672 = vld [vmem:[#allocation22 + $0x1e0] sm:$0xff]
          %v6673 = vld [vmem:[#allocation22 + $0x1e8] sm:$0xff]
          %v6674 = vld [vmem:[#allocation22 + $0x1f0] sm:$0xff]
          %v6675 = vld [vmem:[#allocation22 + $0x1f8] sm:$0xff]
          %v6676 = vld [vmem:[#allocation23] sm:$0x3]
          %v6678 = vlaneseq
          %v6679 = vshrl.u32 %v6678, 7
          %v6680 = vsub.s32 0, %v6679
          %v6681 = vrot.slane %v6676, %v6680
          %v6682 = vlaneseq
          %v6683 = vshrl.u32 %v6682, 7
          %v6684 = vsub.s32 1, %v6683
          %v6685 = vrot.slane %v6676, %v6684
          %v6752 = vunpack.c.l.b16 %v6612
          %v6753 = vunpack.c.h.b16 %v6612
          %v6754 = vunpack.c.l.b16 %v6613
          %v6755 = vunpack.c.h.b16 %v6613
          %v6756 = vunpack.c.l.b16 %v6614
          %v6757 = vunpack.c.h.b16 %v6614
          %v6758 = vunpack.c.l.b16 %v6615
          %v6759 = vunpack.c.h.b16 %v6615
          %v6760 = vunpack.c.l.b16 %v6616
          %v6761 = vunpack.c.h.b16 %v6616
          %v6762 = vunpack.c.l.b16 %v6617
          %v6763 = vunpack.c.h.b16 %v6617
          %v6764 = vunpack.c.l.b16 %v6618
          %v6765 = vunpack.c.h.b16 %v6618
          %v6766 = vunpack.c.l.b16 %v6619
          %v6767 = vunpack.c.h.b16 %v6619
          %v6768 = vunpack.c.l.b16 %v6620
          %v6769 = vunpack.c.h.b16 %v6620
          %v6770 = vunpack.c.l.b16 %v6621
          %v6771 = vunpack.c.h.b16 %v6621
          %v6772 = vunpack.c.l.b16 %v6622
          %v6773 = vunpack.c.h.b16 %v6622
          %v6774 = vunpack.c.l.b16 %v6623
          %v6775 = vunpack.c.h.b16 %v6623
          %v6776 = vunpack.c.l.b16 %v6624
          %v6777 = vunpack.c.h.b16 %v6624
          %v6778 = vunpack.c.l.b16 %v6625
          %v6779 = vunpack.c.h.b16 %v6625
          %v6780 = vunpack.c.l.b16 %v6626
          %v6781 = vunpack.c.h.b16 %v6626
          %v6782 = vunpack.c.l.b16 %v6627
          %v6783 = vunpack.c.h.b16 %v6627
          %v6784 = vunpack.c.l.b16 %v6628
          %v6785 = vunpack.c.h.b16 %v6628
          %v6786 = vunpack.c.l.b16 %v6629
          %v6787 = vunpack.c.h.b16 %v6629
          %v6788 = vunpack.c.l.b16 %v6630
          %v6789 = vunpack.c.h.b16 %v6630
          %v6790 = vunpack.c.l.b16 %v6631
          %v6791 = vunpack.c.h.b16 %v6631
          %v6792 = vunpack.c.l.b16 %v6632
          %v6793 = vunpack.c.h.b16 %v6632
          %v6794 = vunpack.c.l.b16 %v6633
          %v6795 = vunpack.c.h.b16 %v6633
          %v6796 = vunpack.c.l.b16 %v6634
          %v6797 = vunpack.c.h.b16 %v6634
          %v6798 = vunpack.c.l.b16 %v6635
          %v6799 = vunpack.c.h.b16 %v6635
          %v6800 = vunpack.c.l.b16 %v6636
          %v6801 = vunpack.c.h.b16 %v6636
          %v6802 = vunpack.c.l.b16 %v6637
          %v6803 = vunpack.c.h.b16 %v6637
          %v6804 = vunpack.c.l.b16 %v6638
          %v6805 = vunpack.c.h.b16 %v6638
          %v6806 = vunpack.c.l.b16 %v6639
          %v6807 = vunpack.c.h.b16 %v6639
          %v6808 = vunpack.c.l.b16 %v6640
          %v6809 = vunpack.c.h.b16 %v6640
          %v6810 = vunpack.c.l.b16 %v6641
          %v6811 = vunpack.c.h.b16 %v6641
          %v6812 = vunpack.c.l.b16 %v6642
          %v6813 = vunpack.c.h.b16 %v6642
          %v6814 = vunpack.c.l.b16 %v6643
          %v6815 = vunpack.c.h.b16 %v6643
          %v6816 = vunpack.c.l.b16 %v6644
          %v6817 = vunpack.c.h.b16 %v6644
          %v6818 = vunpack.c.l.b16 %v6645
          %v6819 = vunpack.c.h.b16 %v6645
          %v6820 = vunpack.c.l.b16 %v6646
          %v6821 = vunpack.c.h.b16 %v6646
          %v6822 = vunpack.c.l.b16 %v6647
          %v6823 = vunpack.c.h.b16 %v6647
          %v6824 = vunpack.c.l.b16 %v6648
          %v6825 = vunpack.c.h.b16 %v6648
          %v6826 = vunpack.c.l.b16 %v6649
          %v6827 = vunpack.c.h.b16 %v6649
          %v6828 = vunpack.c.l.b16 %v6650
          %v6829 = vunpack.c.h.b16 %v6650
          %v6830 = vunpack.c.l.b16 %v6651
          %v6831 = vunpack.c.h.b16 %v6651
          %v6832 = vunpack.c.l.b16 %v6652
          %v6833 = vunpack.c.h.b16 %v6652
          %v6834 = vunpack.c.l.b16 %v6653
          %v6835 = vunpack.c.h.b16 %v6653
          %v6836 = vunpack.c.l.b16 %v6654
          %v6837 = vunpack.c.h.b16 %v6654
          %v6838 = vunpack.c.l.b16 %v6655
          %v6839 = vunpack.c.h.b16 %v6655
          %v6840 = vunpack.c.l.b16 %v6656
          %v6841 = vunpack.c.h.b16 %v6656
          %v6842 = vunpack.c.l.b16 %v6657
          %v6843 = vunpack.c.h.b16 %v6657
          %v6844 = vunpack.c.l.b16 %v6658
          %v6845 = vunpack.c.h.b16 %v6658
          %v6846 = vunpack.c.l.b16 %v6659
          %v6847 = vunpack.c.h.b16 %v6659
          %v6848 = vunpack.c.l.b16 %v6660
          %v6849 = vunpack.c.h.b16 %v6660
          %v6850 = vunpack.c.l.b16 %v6661
          %v6851 = vunpack.c.h.b16 %v6661
          %v6852 = vunpack.c.l.b16 %v6662
          %v6853 = vunpack.c.h.b16 %v6662
          %v6854 = vunpack.c.l.b16 %v6663
          %v6855 = vunpack.c.h.b16 %v6663
          %v6856 = vunpack.c.l.b16 %v6664
          %v6857 = vunpack.c.h.b16 %v6664
          %v6858 = vunpack.c.l.b16 %v6665
          %v6859 = vunpack.c.h.b16 %v6665
          %v6860 = vunpack.c.l.b16 %v6666
          %v6861 = vunpack.c.h.b16 %v6666
          %v6862 = vunpack.c.l.b16 %v6667
          %v6863 = vunpack.c.h.b16 %v6667
          %v6864 = vunpack.c.l.b16 %v6668
          %v6865 = vunpack.c.h.b16 %v6668
          %v6866 = vunpack.c.l.b16 %v6669
          %v6867 = vunpack.c.h.b16 %v6669
          %v6868 = vunpack.c.l.b16 %v6670
          %v6869 = vunpack.c.h.b16 %v6670
          %v6870 = vunpack.c.l.b16 %v6671
          %v6871 = vunpack.c.h.b16 %v6671
          %v6872 = vunpack.c.l.b16 %v6672
          %v6873 = vunpack.c.h.b16 %v6672
          %v6874 = vunpack.c.l.b16 %v6673
          %v6875 = vunpack.c.h.b16 %v6673
          %v6876 = vunpack.c.l.b16 %v6674
          %v6877 = vunpack.c.h.b16 %v6674
          %v6878 = vunpack.c.l.b16 %v6675
          %v6879 = vunpack.c.h.b16 %v6675
          %v6880 = vpack.c.b16 %v6754, %v6752
          %v6881 = vpack.c.b16 %v6755, %v6753
          %v6882 = vpack.c.b16 %v6758, %v6756
          %v6883 = vpack.c.b16 %v6759, %v6757
          %v6884 = vpack.c.b16 %v6762, %v6760
          %v6885 = vpack.c.b16 %v6763, %v6761
          %v6886 = vpack.c.b16 %v6766, %v6764
          %v6887 = vpack.c.b16 %v6767, %v6765
          %v6888 = vpack.c.b16 %v6770, %v6768
          %v6889 = vpack.c.b16 %v6771, %v6769
          %v6890 = vpack.c.b16 %v6774, %v6772
          %v6891 = vpack.c.b16 %v6775, %v6773
          %v6892 = vpack.c.b16 %v6778, %v6776
          %v6893 = vpack.c.b16 %v6779, %v6777
          %v6894 = vpack.c.b16 %v6782, %v6780
          %v6895 = vpack.c.b16 %v6783, %v6781
          %v6896 = vpack.c.b16 %v6786, %v6784
          %v6897 = vpack.c.b16 %v6787, %v6785
          %v6898 = vpack.c.b16 %v6790, %v6788
          %v6899 = vpack.c.b16 %v6791, %v6789
          %v6900 = vpack.c.b16 %v6794, %v6792
          %v6901 = vpack.c.b16 %v6795, %v6793
          %v6902 = vpack.c.b16 %v6798, %v6796
          %v6903 = vpack.c.b16 %v6799, %v6797
          %v6904 = vpack.c.b16 %v6802, %v6800
          %v6905 = vpack.c.b16 %v6803, %v6801
          %v6906 = vpack.c.b16 %v6806, %v6804
          %v6907 = vpack.c.b16 %v6807, %v6805
          %v6908 = vpack.c.b16 %v6810, %v6808
          %v6909 = vpack.c.b16 %v6811, %v6809
          %v6910 = vpack.c.b16 %v6814, %v6812
          %v6911 = vpack.c.b16 %v6815, %v6813
          %v6912 = vpack.c.b16 %v6818, %v6816
          %v6913 = vpack.c.b16 %v6819, %v6817
          %v6914 = vpack.c.b16 %v6822, %v6820
          %v6915 = vpack.c.b16 %v6823, %v6821
          %v6916 = vpack.c.b16 %v6826, %v6824
          %v6917 = vpack.c.b16 %v6827, %v6825
          %v6918 = vpack.c.b16 %v6830, %v6828
          %v6919 = vpack.c.b16 %v6831, %v6829
          %v6920 = vpack.c.b16 %v6834, %v6832
          %v6921 = vpack.c.b16 %v6835, %v6833
          %v6922 = vpack.c.b16 %v6838, %v6836
          %v6923 = vpack.c.b16 %v6839, %v6837
          %v6924 = vpack.c.b16 %v6842, %v6840
          %v6925 = vpack.c.b16 %v6843, %v6841
          %v6926 = vpack.c.b16 %v6846, %v6844
          %v6927 = vpack.c.b16 %v6847, %v6845
          %v6928 = vpack.c.b16 %v6850, %v6848
          %v6929 = vpack.c.b16 %v6851, %v6849
          %v6930 = vpack.c.b16 %v6854, %v6852
          %v6931 = vpack.c.b16 %v6855, %v6853
          %v6932 = vpack.c.b16 %v6858, %v6856
          %v6933 = vpack.c.b16 %v6859, %v6857
          %v6934 = vpack.c.b16 %v6862, %v6860
          %v6935 = vpack.c.b16 %v6863, %v6861
          %v6936 = vpack.c.b16 %v6866, %v6864
          %v6937 = vpack.c.b16 %v6867, %v6865
          %v6938 = vpack.c.b16 %v6870, %v6868
          %v6939 = vpack.c.b16 %v6871, %v6869
          %v6940 = vpack.c.b16 %v6874, %v6872
          %v6941 = vpack.c.b16 %v6875, %v6873
          %v6942 = vpack.c.b16 %v6878, %v6876
          %v6943 = vpack.c.b16 %v6879, %v6877
          %7008 = vmatprep.subr.bf16.mxu0 %v6881
          %7009 = vmatpush1.bf16.msra.mxu0 %v6880
          %7010 = vmatprep.subr.bf16.mxu0 %v6883
          %7011 = vmatpush1.bf16.msra.mxu0 %v6882
          %7012 = vmatprep.subr.bf16.mxu0 %v6885
          %7013 = vmatpush1.bf16.msra.mxu0 %v6884
          %7014 = vmatprep.subr.bf16.mxu0 %v6887
          %7015 = vmatpush1.bf16.msra.mxu0 %v6886
          %7016 = vmatprep.subr.bf16.mxu0 %v6889
          %7017 = vmatpush1.bf16.msra.mxu0 %v6888
          %7018 = vmatprep.subr.bf16.mxu0 %v6891
          %7019 = vmatpush1.bf16.msra.mxu0 %v6890
          %7020 = vmatprep.subr.bf16.mxu0 %v6893
          %7021 = vmatpush1.bf16.msra.mxu0 %v6892
          %7022 = vmatprep.subr.bf16.mxu0 %v6895
          %7023 = vmatpush1.bf16.msra.mxu0 %v6894
          %7024 = vmatprep.subr.bf16.mxu0 %v6897
          %7025 = vmatpush1.bf16.msra.mxu0 %v6896
          %7026 = vmatprep.subr.bf16.mxu0 %v6899
          %7027 = vmatpush1.bf16.msra.mxu0 %v6898
          %7028 = vmatprep.subr.bf16.mxu0 %v6901
          %7029 = vmatpush1.bf16.msra.mxu0 %v6900
          %7030 = vmatprep.subr.bf16.mxu0 %v6903
          %7031 = vmatpush1.bf16.msra.mxu0 %v6902
          %7032 = vmatprep.subr.bf16.mxu0 %v6905
          %7033 = vmatpush1.bf16.msra.mxu0 %v6904
          %7034 = vmatprep.subr.bf16.mxu0 %v6907
          %7035 = vmatpush1.bf16.msra.mxu0 %v6906
          %7036 = vmatprep.subr.bf16.mxu0 %v6909
          %7037 = vmatpush1.bf16.msra.mxu0 %v6908
          %7038 = vmatprep.subr.bf16.mxu0 %v6911
          %7039 = vmatpush1.bf16.msra.mxu0 %v6910
          %7040 = vmatprep.mubr.bf16.mxu0 %v6123
          %7041 = vmatmul.mubr.bf16.gmra.mrb[0].mxu0 %v6122
          %v7042 = vpop.f32.mrb[0].mxu0
          %v7043 = vadd.f32 %v6681, %v7042
          %v7044 = vpop.f32.mrb[0].mxu0
          %v7045 = vadd.f32 %v6685, %v7044
          %v7046 = vpop.f32.mrb[0].mxu0
          %v7047 = vadd.f32 %v6681, %v7046
          %v7048 = vpop.f32.mrb[0].mxu0
          %v7049 = vadd.f32 %v6685, %v7048
          %7050 = vdwg.mxu0
          %7051 = vmatprep.subr.bf16.mxu0 %v6913
          %7052 = vmatpush1.bf16.msra.mxu0 %v6912
          %7053 = vmatprep.subr.bf16.mxu0 %v6915
          %7054 = vmatpush1.bf16.msra.mxu0 %v6914
          %7055 = vmatprep.subr.bf16.mxu0 %v6917
          %7056 = vmatpush1.bf16.msra.mxu0 %v6916
          %7057 = vmatprep.subr.bf16.mxu0 %v6919
          %7058 = vmatpush1.bf16.msra.mxu0 %v6918
          %7059 = vmatprep.subr.bf16.mxu0 %v6921
          %7060 = vmatpush1.bf16.msra.mxu0 %v6920
          %7061 = vmatprep.subr.bf16.mxu0 %v6923
          %7062 = vmatpush1.bf16.msra.mxu0 %v6922
          %7063 = vmatprep.subr.bf16.mxu0 %v6925
          %7064 = vmatpush1.bf16.msra.mxu0 %v6924
          %7065 = vmatprep.subr.bf16.mxu0 %v6927
          %7066 = vmatpush1.bf16.msra.mxu0 %v6926
          %7067 = vmatprep.subr.bf16.mxu0 %v6929
          %7068 = vmatpush1.bf16.msra.mxu0 %v6928
          %7069 = vmatprep.subr.bf16.mxu0 %v6931
          %7070 = vmatpush1.bf16.msra.mxu0 %v6930
          %7071 = vmatprep.subr.bf16.mxu0 %v6933
          %7072 = vmatpush1.bf16.msra.mxu0 %v6932
          %7073 = vmatprep.subr.bf16.mxu0 %v6935
          %7074 = vmatpush1.bf16.msra.mxu0 %v6934
          %7075 = vmatprep.subr.bf16.mxu0 %v6937
          %7076 = vmatpush1.bf16.msra.mxu0 %v6936
          %7077 = vmatprep.subr.bf16.mxu0 %v6939
          %7078 = vmatpush1.bf16.msra.mxu0 %v6938
          %7079 = vmatprep.subr.bf16.mxu0 %v6941
          %7080 = vmatpush1.bf16.msra.mxu0 %v6940
          %7081 = vmatprep.subr.bf16.mxu0 %v6943
          %7082 = vmatpush1.bf16.msra.mxu0 %v6942
          %7083 = vmatprep.mubr.bf16.mxu0 %v6125
          %7084 = vmatmul.mubr.bf16.gmra.mrb[0].mxu0 %v6124
          %v7085 = vpop.f32.mrb[0].mxu0
          %v7086 = vadd.f32 %v7043, %v7085
          %v7087 = vpop.f32.mrb[0].mxu0
          %v7088 = vadd.f32 %v7045, %v7087
          %v7089 = vpop.f32.mrb[0].mxu0
          %v7090 = vadd.f32 %v7047, %v7089
          %v7091 = vpop.f32.mrb[0].mxu0
          %v7092 = vadd.f32 %v7049, %v7091
          %7093 = vdwg.mxu0
          %v7094 = vmul.f32 %v7086, 0.5
          %v7095 = vmul.f32 %v7088, 0.5
          %v7096 = vmul.f32 %v7090, 0.5
          %v7097 = vmul.f32 %v7092, 0.5
          %v7098 = vtanh.pop %v7094
          %v7099 = vtanh.pop %v7095
          %v7100 = vtanh.pop %v7096
          %v7101 = vtanh.pop %v7097
          %v7102 = vadd.f32 %v7098, 1.0
          %v7103 = vadd.f32 %v7099, 1.0
          %v7104 = vadd.f32 %v7100, 1.0
          %v7105 = vadd.f32 %v7101, 1.0
          %v7106 = vmul.f32 %v7102, 0.5
          %v7107 = vmul.f32 %v7103, 0.5
          %v7108 = vmul.f32 %v7104, 0.5
          %v7109 = vmul.f32 %v7105, 0.5
          %v7110 = vmul.f32 %v6608, %v7106
          %v7111 = vmul.f32 %v6609, %v7107
          %v7112 = vmul.f32 %v6610, %v7108
          %v7113 = vmul.f32 %v6611, %v7109
          %v7114 = vld [vmem:[#allocation25] sm:$0x3]
          %v7116 = vlaneseq
          %v7117 = vshrl.u32 %v7116, 7
          %v7118 = vsub.s32 0, %v7117
          %v7119 = vrot.slane %v7114, %v7118
          %v7120 = vlaneseq
          %v7121 = vshrl.u32 %v7120, 7
          %v7122 = vsub.s32 1, %v7121
          %v7123 = vrot.slane %v7114, %v7122
          %v7126 = vmul.f32 %v7110, %v7119
          %v7127 = vmul.f32 %v7111, %v7123
          %v7128 = vmul.f32 %v7112, %v7119
          %v7129 = vmul.f32 %v7113, %v7123
          %v7130 = vadd.f32 %v7126, %v7127
          %7131 = vadd.xlane.f32.xlu0 %v7130
          %v7132 = vpop.xlane.xlu0 %7131
          %v7133 = vadd.f32 %v7128, %v7129
          %7134 = vadd.xlane.f32.xlu0 %v7133
          %v7135 = vpop.xlane.xlu0 %7134
          %v7136 = vlaneseq
          %v7137 = vshrl.u32 %v7136, 7
          %v7138 = vadd.s32 %v7137, 8
          %vm7139 = vcmp.lt.s32.totalorder %v7137, 10
          %vm7140 = vcmp.lt.s32.totalorder %v7138, 10
          %v7141 = vsel %vm7139, %v7132, -1e+30
          %v7142 = vsel %vm7140, %v7135, -1e+30
          %v7143 = vmax.f32 %v7141, %v7142
          %v7144 = vrot.slane %v7143, 4
          %v7145 = vmax.f32 %v7143, %v7144
          %v7146 = vrot.slane %v7145, 2
          %v7147 = vmax.f32 %v7145, %v7146
          %v7148 = vrot.slane %v7147, 1
          %v7149 = vmax.f32 %v7147, %v7148
          %v7150 = vsub.f32 %v7141, %v7149
          %v7151 = vsub.f32 %v7142, %v7149
          %v7152 = vmul.f32 %v7150, 1.442695
          %v7153 = vpow.pop %v7152
          %v7154 = vmul.f32 %v7151, 1.442695
          %v7155 = vpow.pop %v7154
          %v7156 = vadd.f32 %v7153, %v7155
          %v7157 = vrot.slane %v7156, 4
          %v7158 = vadd.f32 %v7156, %v7157
          %v7159 = vrot.slane %v7158, 2
          %v7160 = vadd.f32 %v7158, %v7159
          %v7161 = vrot.slane %v7160, 1
          %v7162 = vadd.f32 %v7160, %v7161
          %v7163 = vrcp.pop %v7162
          %v7164 = vmul.f32 %v7153, %v7163
          %v7165 = vmul.f32 %v7155, %v7163
          %7166 = vxpose.xlu0.b32.start [1/16] %v7164, 128
          %7167 = vxpose.xlu0.b32.cont [2/16] %v7165, 128
          %7168 = vxpose.xlu0.b32.cont [3/16] 0.0, 128
          %7169 = vxpose.xlu0.b32.cont [4/16] 0.0, 128
          %7170 = vxpose.xlu0.b32.cont [5/16] 0.0, 128
          %7171 = vxpose.xlu0.b32.cont [6/16] 0.0, 128
          %7172 = vxpose.xlu0.b32.cont [7/16] 0.0, 128
          %7173 = vxpose.xlu0.b32.cont [8/16] 0.0, 128
          %7174 = vxpose.xlu0.b32.cont [9/16] 0.0, 128
          %7175 = vxpose.xlu0.b32.cont [10/16] 0.0, 128
          %7176 = vxpose.xlu0.b32.cont [11/16] 0.0, 128
          %7177 = vxpose.xlu0.b32.cont [12/16] 0.0, 128
          %7178 = vxpose.xlu0.b32.cont [13/16] 0.0, 128
          %7179 = vxpose.xlu0.b32.cont [14/16] 0.0, 128
          %7180 = vxpose.xlu0.b32.cont [15/16] 0.0, 128
          %7181 = vxpose.xlu0.b32.end [16/16] 0.0, 128
          %v7182 = vpop.trf.xlu0
          %v7183 = vpop.trf.xlu0
          %v7184 = vpop.trf.xlu0
          %v7185 = vpop.trf.xlu0
          %v7186 = vpop.trf.xlu0
          %v7187 = vpop.trf.xlu0
          %v7188 = vpop.trf.xlu0
          %v7189 = vpop.trf.xlu0
          %v7190 = vpop.trf.xlu0
          %v7191 = vpop.trf.xlu0
          %v7192 = vpop.trf.xlu0
          %v7193 = vpop.trf.xlu0
          %v7194 = vpop.trf.xlu0
          %v7195 = vpop.trf.xlu0
          %v7196 = vpop.trf.xlu0
          %v7197 = vpop.trf.xlu0
          %vm7198 = vcmask 130048
          %v7200 = vsel %vm7198, %v7182, 0
          %7202 = vmatprep.subr.mxu0 %v6115
          %7203 = vmatpush1.msra.mxu0 %v6114
          %7204 = vmatprep.subr.mxu0 %v6119
          %7205 = vmatpush1.msra.mxu0 %v6118
          %7206 = vmatprep.subr.mxu0 0.0
          %7207 = vmatpush1.msra.mxu0 0.0
          %7208 = vmatprep.subr.mxu0 0.0
          %7209 = vmatpush1.msra.mxu0 0.0
          %7210 = vmatprep.subr.mxu0 0.0
          %7211 = vmatpush1.msra.mxu0 0.0
          %7212 = vmatprep.subr.mxu0 0.0
          %7213 = vmatpush1.msra.mxu0 0.0
          %7214 = vmatprep.subr.mxu0 0.0
          %7215 = vmatpush1.msra.mxu0 0.0
          %7216 = vmatprep.subr.mxu0 0.0
          %7217 = vmatpush1.msra.mxu0 0.0
          %7218 = vmatprep.subr.mxu0 0.0
          %7219 = vmatpush1.msra.mxu0 0.0
          %7220 = vmatprep.subr.mxu0 0.0
          %7221 = vmatpush1.msra.mxu0 0.0
          %7222 = vmatprep.subr.mxu0 0.0
          %7223 = vmatpush1.msra.mxu0 0.0
          %7224 = vmatprep.subr.mxu0 0.0
          %7225 = vmatpush1.msra.mxu0 0.0
          %7226 = vmatprep.subr.mxu0 0.0
          %7227 = vmatpush1.msra.mxu0 0.0
          %7228 = vmatprep.subr.mxu0 0.0
          %7229 = vmatpush1.msra.mxu0 0.0
          %7230 = vmatprep.subr.mxu0 0.0
          %7231 = vmatpush1.msra.mxu0 0.0
          %7232 = vmatprep.subr.mxu0 0.0
          %7233 = vmatpush1.msra.mxu0 0.0
          %7234 = vmatprep.subr.mxu0 0.0
          %7235 = vmatpush1.msra.mxu0 0.0
          %7236 = vmatprep.subr.mxu0 0.0
          %7237 = vmatpush1.msra.mxu0 0.0
          %7238 = vmatprep.subr.mxu0 0.0
          %7239 = vmatpush1.msra.mxu0 0.0
          %7240 = vmatprep.subr.mxu0 0.0
          %7241 = vmatpush1.msra.mxu0 0.0
          %7242 = vmatprep.subr.mxu0 0.0
          %7243 = vmatpush1.msra.mxu0 0.0
          %7244 = vmatprep.subr.mxu0 0.0
          %7245 = vmatpush1.msra.mxu0 0.0
          %7246 = vmatprep.subr.mxu0 0.0
          %7247 = vmatpush1.msra.mxu0 0.0
          %7248 = vmatprep.subr.mxu0 0.0
          %7249 = vmatpush1.msra.mxu0 0.0
          %7250 = vmatprep.subr.mxu0 0.0
          %7251 = vmatpush1.msra.mxu0 0.0
          %7252 = vmatprep.subr.mxu0 0.0
          %7253 = vmatpush1.msra.mxu0 0.0
          %7254 = vmatprep.subr.mxu0 0.0
          %7255 = vmatpush1.msra.mxu0 0.0
          %7256 = vmatprep.subr.mxu0 0.0
          %7257 = vmatpush1.msra.mxu0 0.0
          %7258 = vmatprep.subr.mxu0 0.0
          %7259 = vmatpush1.msra.mxu0 0.0
          %7260 = vmatprep.subr.mxu0 0.0
          %7261 = vmatpush1.msra.mxu0 0.0
          %7262 = vmatprep.subr.mxu0 0.0
          %7263 = vmatpush1.msra.mxu0 0.0
          %7264 = vmatprep.subr.mxu0 0.0
          %7265 = vmatpush1.msra.mxu0 0.0
          %7266 = vmatprep.mubr.f32.mxu0 0.0
          %7267 = vmatmul.mubr.f32.gmra.mrb[0].mxu0 %v7200
          %v7268 = vpop.f32.mrb[0].mxu0
          %v7269 = vadd.f32 0.0, %v7268
          %v7270 = vpop.f32.mrb[0].mxu0
          %v7271 = vadd.f32 0.0, %v7270
          %7272 = vdwg.mxu0
          %7273 = vmatprep.subr.mxu0 %v6117
          %7274 = vmatpush1.msra.mxu0 %v6116
          %7275 = vmatprep.subr.mxu0 %v6121
          %7276 = vmatpush1.msra.mxu0 %v6120
          %7277 = vmatprep.subr.mxu0 0.0
          %7278 = vmatpush1.msra.mxu0 0.0
          %7279 = vmatprep.subr.mxu0 0.0
          %7280 = vmatpush1.msra.mxu0 0.0
          %7281 = vmatprep.subr.mxu0 0.0
          %7282 = vmatpush1.msra.mxu0 0.0
          %7283 = vmatprep.subr.mxu0 0.0
          %7284 = vmatpush1.msra.mxu0 0.0
          %7285 = vmatprep.subr.mxu0 0.0
          %7286 = vmatpush1.msra.mxu0 0.0
          %7287 = vmatprep.subr.mxu0 0.0
          %7288 = vmatpush1.msra.mxu0 0.0
          %7289 = vmatprep.subr.mxu0 0.0
          %7290 = vmatpush1.msra.mxu0 0.0
          %7291 = vmatprep.subr.mxu0 0.0
          %7292 = vmatpush1.msra.mxu0 0.0
          %7293 = vmatprep.subr.mxu0 0.0
          %7294 = vmatpush1.msra.mxu0 0.0
          %7295 = vmatprep.subr.mxu0 0.0
          %7296 = vmatpush1.msra.mxu0 0.0
          %7297 = vmatprep.subr.mxu0 0.0
          %7298 = vmatpush1.msra.mxu0 0.0
          %7299 = vmatprep.subr.mxu0 0.0
          %7300 = vmatpush1.msra.mxu0 0.0
          %7301 = vmatprep.subr.mxu0 0.0
          %7302 = vmatpush1.msra.mxu0 0.0
          %7303 = vmatprep.subr.mxu0 0.0
          %7304 = vmatpush1.msra.mxu0 0.0
          %7305 = vmatprep.subr.mxu0 0.0
          %7306 = vmatpush1.msra.mxu0 0.0
          %7307 = vmatprep.subr.mxu0 0.0
          %7308 = vmatpush1.msra.mxu0 0.0
          %7309 = vmatprep.subr.mxu0 0.0
          %7310 = vmatpush1.msra.mxu0 0.0
          %7311 = vmatprep.subr.mxu0 0.0
          %7312 = vmatpush1.msra.mxu0 0.0
          %7313 = vmatprep.subr.mxu0 0.0
          %7314 = vmatpush1.msra.mxu0 0.0
          %7315 = vmatprep.subr.mxu0 0.0
          %7316 = vmatpush1.msra.mxu0 0.0
          %7317 = vmatprep.subr.mxu0 0.0
          %7318 = vmatpush1.msra.mxu0 0.0
          %7319 = vmatprep.subr.mxu0 0.0
          %7320 = vmatpush1.msra.mxu0 0.0
          %7321 = vmatprep.subr.mxu0 0.0
          %7322 = vmatpush1.msra.mxu0 0.0
          %7323 = vmatprep.subr.mxu0 0.0
          %7324 = vmatpush1.msra.mxu0 0.0
          %7325 = vmatprep.subr.mxu0 0.0
          %7326 = vmatpush1.msra.mxu0 0.0
          %7327 = vmatprep.subr.mxu0 0.0
          %7328 = vmatpush1.msra.mxu0 0.0
          %7329 = vmatprep.subr.mxu0 0.0
          %7330 = vmatpush1.msra.mxu0 0.0
          %7331 = vmatprep.subr.mxu0 0.0
          %7332 = vmatpush1.msra.mxu0 0.0
          %7333 = vmatprep.subr.mxu0 0.0
          %7334 = vmatpush1.msra.mxu0 0.0
          %7335 = vmatprep.subr.mxu0 0.0
          %7336 = vmatpush1.msra.mxu0 0.0
          %7337 = vmatprep.mubr.f32.mxu0 0.0
          %7338 = vmatmul.mubr.f32.gmra.mrb[0].mxu0 %v7200
          %v7339 = vpop.f32.mrb[0].mxu0
          %v7340 = vadd.f32 0.0, %v7339
          %v7341 = vpop.f32.mrb[0].mxu0
          %v7342 = vadd.f32 0.0, %v7341
          %7343 = vdwg.mxu0
          %v7344 = vpack.c.bf16 %v7269, %v7269
          %v7345 = vpack.c.bf16 %v7271, %v7271
          %v7346 = vpack.c.bf16 %v7340, %v7340
          %v7347 = vpack.c.bf16 %v7342, %v7342
          %v7348 = vld [vmem:[#allocation26] sm:$0xff]
          %v7349 = vld [vmem:[#allocation26 + $0x8] sm:$0xff]
          %v7350 = vld [vmem:[#allocation26 + $0x10] sm:$0xff]
          %v7351 = vld [vmem:[#allocation26 + $0x18] sm:$0xff]
          %v7352 = vld [vmem:[#allocation26 + $0x20] sm:$0xff]
          %v7353 = vld [vmem:[#allocation26 + $0x28] sm:$0xff]
          %v7354 = vld [vmem:[#allocation26 + $0x30] sm:$0xff]
          %v7355 = vld [vmem:[#allocation26 + $0x38] sm:$0xff]
          %v7356 = vld [vmem:[#allocation26 + $0x40] sm:$0xff]
          %v7357 = vld [vmem:[#allocation26 + $0x48] sm:$0xff]
          %v7358 = vld [vmem:[#allocation26 + $0x50] sm:$0xff]
          %v7359 = vld [vmem:[#allocation26 + $0x58] sm:$0xff]
          %v7360 = vld [vmem:[#allocation26 + $0x60] sm:$0xff]
          %v7361 = vld [vmem:[#allocation26 + $0x68] sm:$0xff]
          %v7362 = vld [vmem:[#allocation26 + $0x70] sm:$0xff]
          %v7363 = vld [vmem:[#allocation26 + $0x78] sm:$0xff]
          %v7364 = vld [vmem:[#allocation26 + $0x80] sm:$0xff]
          %v7365 = vld [vmem:[#allocation26 + $0x88] sm:$0xff]
          %v7366 = vld [vmem:[#allocation26 + $0x90] sm:$0xff]
          %v7367 = vld [vmem:[#allocation26 + $0x98] sm:$0xff]
          %v7368 = vld [vmem:[#allocation26 + $0xa0] sm:$0xff]
          %v7369 = vld [vmem:[#allocation26 + $0xa8] sm:$0xff]
          %v7370 = vld [vmem:[#allocation26 + $0xb0] sm:$0xff]
          %v7371 = vld [vmem:[#allocation26 + $0xb8] sm:$0xff]
          %v7372 = vld [vmem:[#allocation26 + $0xc0] sm:$0xff]
          %v7373 = vld [vmem:[#allocation26 + $0xc8] sm:$0xff]
          %v7374 = vld [vmem:[#allocation26 + $0xd0] sm:$0xff]
          %v7375 = vld [vmem:[#allocation26 + $0xd8] sm:$0xff]
          %v7376 = vld [vmem:[#allocation26 + $0xe0] sm:$0xff]
          %v7377 = vld [vmem:[#allocation26 + $0xe8] sm:$0xff]
          %v7378 = vld [vmem:[#allocation26 + $0xf0] sm:$0xff]
          %v7379 = vld [vmem:[#allocation26 + $0xf8] sm:$0xff]
          %v7380 = vld [vmem:[#allocation26 + $0x100] sm:$0xff]
          %v7381 = vld [vmem:[#allocation26 + $0x108] sm:$0xff]
          %v7382 = vld [vmem:[#allocation26 + $0x110] sm:$0xff]
          %v7383 = vld [vmem:[#allocation26 + $0x118] sm:$0xff]
          %v7384 = vld [vmem:[#allocation26 + $0x120] sm:$0xff]
          %v7385 = vld [vmem:[#allocation26 + $0x128] sm:$0xff]
          %v7386 = vld [vmem:[#allocation26 + $0x130] sm:$0xff]
          %v7387 = vld [vmem:[#allocation26 + $0x138] sm:$0xff]
          %v7388 = vld [vmem:[#allocation26 + $0x140] sm:$0xff]
          %v7389 = vld [vmem:[#allocation26 + $0x148] sm:$0xff]
          %v7390 = vld [vmem:[#allocation26 + $0x150] sm:$0xff]
          %v7391 = vld [vmem:[#allocation26 + $0x158] sm:$0xff]
          %v7392 = vld [vmem:[#allocation26 + $0x160] sm:$0xff]
          %v7393 = vld [vmem:[#allocation26 + $0x168] sm:$0xff]
          %v7394 = vld [vmem:[#allocation26 + $0x170] sm:$0xff]
          %v7395 = vld [vmem:[#allocation26 + $0x178] sm:$0xff]
          %v7396 = vld [vmem:[#allocation26 + $0x180] sm:$0xff]
          %v7397 = vld [vmem:[#allocation26 + $0x188] sm:$0xff]
          %v7398 = vld [vmem:[#allocation26 + $0x190] sm:$0xff]
          %v7399 = vld [vmem:[#allocation26 + $0x198] sm:$0xff]
          %v7400 = vld [vmem:[#allocation26 + $0x1a0] sm:$0xff]
          %v7401 = vld [vmem:[#allocation26 + $0x1a8] sm:$0xff]
          %v7402 = vld [vmem:[#allocation26 + $0x1b0] sm:$0xff]
          %v7403 = vld [vmem:[#allocation26 + $0x1b8] sm:$0xff]
          %v7404 = vld [vmem:[#allocation26 + $0x1c0] sm:$0xff]
          %v7405 = vld [vmem:[#allocation26 + $0x1c8] sm:$0xff]
          %v7406 = vld [vmem:[#allocation26 + $0x1d0] sm:$0xff]
          %v7407 = vld [vmem:[#allocation26 + $0x1d8] sm:$0xff]
          %v7408 = vld [vmem:[#allocation26 + $0x1e0] sm:$0xff]
          %v7409 = vld [vmem:[#allocation26 + $0x1e8] sm:$0xff]
          %v7410 = vld [vmem:[#allocation26 + $0x1f0] sm:$0xff]
          %v7411 = vld [vmem:[#allocation26 + $0x1f8] sm:$0xff]
          %v7412 = vld [vmem:[#allocation28] sm:$0x3]
          %v7477 = vunpack.c.l.b16 %v7348
          %v7478 = vunpack.c.h.b16 %v7348
          %v7479 = vunpack.c.l.b16 %v7349
          %v7480 = vunpack.c.h.b16 %v7349
          %v7481 = vunpack.c.l.b16 %v7350
          %v7482 = vunpack.c.h.b16 %v7350
          %v7483 = vunpack.c.l.b16 %v7351
          %v7484 = vunpack.c.h.b16 %v7351
          %v7485 = vunpack.c.l.b16 %v7352
          %v7486 = vunpack.c.h.b16 %v7352
          %v7487 = vunpack.c.l.b16 %v7353
          %v7488 = vunpack.c.h.b16 %v7353
          %v7489 = vunpack.c.l.b16 %v7354
          %v7490 = vunpack.c.h.b16 %v7354
          %v7491 = vunpack.c.l.b16 %v7355
          %v7492 = vunpack.c.h.b16 %v7355
          %v7493 = vunpack.c.l.b16 %v7356
          %v7494 = vunpack.c.h.b16 %v7356
          %v7495 = vunpack.c.l.b16 %v7357
          %v7496 = vunpack.c.h.b16 %v7357
          %v7497 = vunpack.c.l.b16 %v7358
          %v7498 = vunpack.c.h.b16 %v7358
          %v7499 = vunpack.c.l.b16 %v7359
          %v7500 = vunpack.c.h.b16 %v7359
          %v7501 = vunpack.c.l.b16 %v7360
          %v7502 = vunpack.c.h.b16 %v7360
          %v7503 = vunpack.c.l.b16 %v7361
          %v7504 = vunpack.c.h.b16 %v7361
          %v7505 = vunpack.c.l.b16 %v7362
          %v7506 = vunpack.c.h.b16 %v7362
          %v7507 = vunpack.c.l.b16 %v7363
          %v7508 = vunpack.c.h.b16 %v7363
          %v7509 = vunpack.c.l.b16 %v7364
          %v7510 = vunpack.c.h.b16 %v7364
          %v7511 = vunpack.c.l.b16 %v7365
          %v7512 = vunpack.c.h.b16 %v7365
          %v7513 = vunpack.c.l.b16 %v7366
          %v7514 = vunpack.c.h.b16 %v7366
          %v7515 = vunpack.c.l.b16 %v7367
          %v7516 = vunpack.c.h.b16 %v7367
          %v7517 = vunpack.c.l.b16 %v7368
          %v7518 = vunpack.c.h.b16 %v7368
          %v7519 = vunpack.c.l.b16 %v7369
          %v7520 = vunpack.c.h.b16 %v7369
          %v7521 = vunpack.c.l.b16 %v7370
          %v7522 = vunpack.c.h.b16 %v7370
          %v7523 = vunpack.c.l.b16 %v7371
          %v7524 = vunpack.c.h.b16 %v7371
          %v7525 = vunpack.c.l.b16 %v7372
          %v7526 = vunpack.c.h.b16 %v7372
          %v7527 = vunpack.c.l.b16 %v7373
          %v7528 = vunpack.c.h.b16 %v7373
          %v7529 = vunpack.c.l.b16 %v7374
          %v7530 = vunpack.c.h.b16 %v7374
          %v7531 = vunpack.c.l.b16 %v7375
          %v7532 = vunpack.c.h.b16 %v7375
          %v7533 = vunpack.c.l.b16 %v7376
          %v7534 = vunpack.c.h.b16 %v7376
          %v7535 = vunpack.c.l.b16 %v7377
          %v7536 = vunpack.c.h.b16 %v7377
          %v7537 = vunpack.c.l.b16 %v7378
          %v7538 = vunpack.c.h.b16 %v7378
          %v7539 = vunpack.c.l.b16 %v7379
          %v7540 = vunpack.c.h.b16 %v7379
          %v7541 = vunpack.c.l.b16 %v7380
          %v7542 = vunpack.c.h.b16 %v7380
          %v7543 = vunpack.c.l.b16 %v7381
          %v7544 = vunpack.c.h.b16 %v7381
          %v7545 = vunpack.c.l.b16 %v7382
          %v7546 = vunpack.c.h.b16 %v7382
          %v7547 = vunpack.c.l.b16 %v7383
          %v7548 = vunpack.c.h.b16 %v7383
          %v7549 = vunpack.c.l.b16 %v7384
          %v7550 = vunpack.c.h.b16 %v7384
          %v7551 = vunpack.c.l.b16 %v7385
          %v7552 = vunpack.c.h.b16 %v7385
          %v7553 = vunpack.c.l.b16 %v7386
          %v7554 = vunpack.c.h.b16 %v7386
          %v7555 = vunpack.c.l.b16 %v7387
          %v7556 = vunpack.c.h.b16 %v7387
          %v7557 = vunpack.c.l.b16 %v7388
          %v7558 = vunpack.c.h.b16 %v7388
          %v7559 = vunpack.c.l.b16 %v7389
          %v7560 = vunpack.c.h.b16 %v7389
          %v7561 = vunpack.c.l.b16 %v7390
          %v7562 = vunpack.c.h.b16 %v7390
          %v7563 = vunpack.c.l.b16 %v7391
          %v7564 = vunpack.c.h.b16 %v7391
          %v7565 = vunpack.c.l.b16 %v7392
          %v7566 = vunpack.c.h.b16 %v7392
          %v7567 = vunpack.c.l.b16 %v7393
          %v7568 = vunpack.c.h.b16 %v7393
          %v7569 = vunpack.c.l.b16 %v7394
          %v7570 = vunpack.c.h.b16 %v7394
          %v7571 = vunpack.c.l.b16 %v7395
          %v7572 = vunpack.c.h.b16 %v7395
          %v7573 = vunpack.c.l.b16 %v7396
          %v7574 = vunpack.c.h.b16 %v7396
          %v7575 = vunpack.c.l.b16 %v7397
          %v7576 = vunpack.c.h.b16 %v7397
          %v7577 = vunpack.c.l.b16 %v7398
          %v7578 = vunpack.c.h.b16 %v7398
          %v7579 = vunpack.c.l.b16 %v7399
          %v7580 = vunpack.c.h.b16 %v7399
          %v7581 = vunpack.c.l.b16 %v7400
          %v7582 = vunpack.c.h.b16 %v7400
          %v7583 = vunpack.c.l.b16 %v7401
          %v7584 = vunpack.c.h.b16 %v7401
          %v7585 = vunpack.c.l.b16 %v7402
          %v7586 = vunpack.c.h.b16 %v7402
          %v7587 = vunpack.c.l.b16 %v7403
          %v7588 = vunpack.c.h.b16 %v7403
          %v7589 = vunpack.c.l.b16 %v7404
          %v7590 = vunpack.c.h.b16 %v7404
          %v7591 = vunpack.c.l.b16 %v7405
          %v7592 = vunpack.c.h.b16 %v7405
          %v7593 = vunpack.c.l.b16 %v7406
          %v7594 = vunpack.c.h.b16 %v7406
          %v7595 = vunpack.c.l.b16 %v7407
          %v7596 = vunpack.c.h.b16 %v7407
          %v7597 = vunpack.c.l.b16 %v7408
          %v7598 = vunpack.c.h.b16 %v7408
          %v7599 = vunpack.c.l.b16 %v7409
          %v7600 = vunpack.c.h.b16 %v7409
          %v7601 = vunpack.c.l.b16 %v7410
          %v7602 = vunpack.c.h.b16 %v7410
          %v7603 = vunpack.c.l.b16 %v7411
          %v7604 = vunpack.c.h.b16 %v7411
          %v7605 = vpack.c.b16 %v7479, %v7477
          %v7606 = vpack.c.b16 %v7480, %v7478
          %v7607 = vpack.c.b16 %v7483, %v7481
          %v7608 = vpack.c.b16 %v7484, %v7482
          %v7609 = vpack.c.b16 %v7487, %v7485
          %v7610 = vpack.c.b16 %v7488, %v7486
          %v7611 = vpack.c.b16 %v7491, %v7489
          %v7612 = vpack.c.b16 %v7492, %v7490
          %v7613 = vpack.c.b16 %v7495, %v7493
          %v7614 = vpack.c.b16 %v7496, %v7494
          %v7615 = vpack.c.b16 %v7499, %v7497
          %v7616 = vpack.c.b16 %v7500, %v7498
          %v7617 = vpack.c.b16 %v7503, %v7501
          %v7618 = vpack.c.b16 %v7504, %v7502
          %v7619 = vpack.c.b16 %v7507, %v7505
          %v7620 = vpack.c.b16 %v7508, %v7506
          %v7621 = vpack.c.b16 %v7511, %v7509
          %v7622 = vpack.c.b16 %v7512, %v7510
          %v7623 = vpack.c.b16 %v7515, %v7513
          %v7624 = vpack.c.b16 %v7516, %v7514
          %v7625 = vpack.c.b16 %v7519, %v7517
          %v7626 = vpack.c.b16 %v7520, %v7518
          %v7627 = vpack.c.b16 %v7523, %v7521
          %v7628 = vpack.c.b16 %v7524, %v7522
          %v7629 = vpack.c.b16 %v7527, %v7525
          %v7630 = vpack.c.b16 %v7528, %v7526
          %v7631 = vpack.c.b16 %v7531, %v7529
          %v7632 = vpack.c.b16 %v7532, %v7530
          %v7633 = vpack.c.b16 %v7535, %v7533
          %v7634 = vpack.c.b16 %v7536, %v7534
          %v7635 = vpack.c.b16 %v7539, %v7537
          %v7636 = vpack.c.b16 %v7540, %v7538
          %v7637 = vpack.c.b16 %v7543, %v7541
          %v7638 = vpack.c.b16 %v7544, %v7542
          %v7639 = vpack.c.b16 %v7547, %v7545
          %v7640 = vpack.c.b16 %v7548, %v7546
          %v7641 = vpack.c.b16 %v7551, %v7549
          %v7642 = vpack.c.b16 %v7552, %v7550
          %v7643 = vpack.c.b16 %v7555, %v7553
          %v7644 = vpack.c.b16 %v7556, %v7554
          %v7645 = vpack.c.b16 %v7559, %v7557
          %v7646 = vpack.c.b16 %v7560, %v7558
          %v7647 = vpack.c.b16 %v7563, %v7561
          %v7648 = vpack.c.b16 %v7564, %v7562
          %v7649 = vpack.c.b16 %v7567, %v7565
          %v7650 = vpack.c.b16 %v7568, %v7566
          %v7651 = vpack.c.b16 %v7571, %v7569
          %v7652 = vpack.c.b16 %v7572, %v7570
          %v7653 = vpack.c.b16 %v7575, %v7573
          %v7654 = vpack.c.b16 %v7576, %v7574
          %v7655 = vpack.c.b16 %v7579, %v7577
          %v7656 = vpack.c.b16 %v7580, %v7578
          %v7657 = vpack.c.b16 %v7583, %v7581
          %v7658 = vpack.c.b16 %v7584, %v7582
          %v7659 = vpack.c.b16 %v7587, %v7585
          %v7660 = vpack.c.b16 %v7588, %v7586
          %v7661 = vpack.c.b16 %v7591, %v7589
          %v7662 = vpack.c.b16 %v7592, %v7590
          %v7663 = vpack.c.b16 %v7595, %v7593
          %v7664 = vpack.c.b16 %v7596, %v7594
          %v7665 = vpack.c.b16 %v7599, %v7597
          %v7666 = vpack.c.b16 %v7600, %v7598
          %v7667 = vpack.c.b16 %v7603, %v7601
          %v7668 = vpack.c.b16 %v7604, %v7602
          %v7734 = vlaneseq
          %v7735 = vshrl.u32 %v7734, 7
          %v7736 = vsub.s32 0, %v7735
          %v7737 = vrot.slane %v7412, %v7736
          %v7738 = vlaneseq
          %v7739 = vshrl.u32 %v7738, 7
          %v7740 = vsub.s32 1, %v7739
          %v7741 = vrot.slane %v7412, %v7740
          %7744 = vmatprep.subr.bf16.mxu0 %v7606
          %7745 = vmatpush1.bf16.msra.mxu0 %v7605
          %7746 = vmatprep.subr.bf16.mxu0 %v7608
          %7747 = vmatpush1.bf16.msra.mxu0 %v7607
          %7748 = vmatprep.subr.bf16.mxu0 %v7610
          %7749 = vmatpush1.bf16.msra.mxu0 %v7609
          %7750 = vmatprep.subr.bf16.mxu0 %v7612
          %7751 = vmatpush1.bf16.msra.mxu0 %v7611
          %7752 = vmatprep.subr.bf16.mxu0 %v7614
          %7753 = vmatpush1.bf16.msra.mxu0 %v7613
          %7754 = vmatprep.subr.bf16.mxu0 %v7616
          %7755 = vmatpush1.bf16.msra.mxu0 %v7615
          %7756 = vmatprep.subr.bf16.mxu0 %v7618
          %7757 = vmatpush1.bf16.msra.mxu0 %v7617
          %7758 = vmatprep.subr.bf16.mxu0 %v7620
          %7759 = vmatpush1.bf16.msra.mxu0 %v7619
          %7760 = vmatprep.subr.bf16.mxu0 %v7622
          %7761 = vmatpush1.bf16.msra.mxu0 %v7621
          %7762 = vmatprep.subr.bf16.mxu0 %v7624
          %7763 = vmatpush1.bf16.msra.mxu0 %v7623
          %7764 = vmatprep.subr.bf16.mxu0 %v7626
          %7765 = vmatpush1.bf16.msra.mxu0 %v7625
          %7766 = vmatprep.subr.bf16.mxu0 %v7628
          %7767 = vmatpush1.bf16.msra.mxu0 %v7627
          %7768 = vmatprep.subr.bf16.mxu0 %v7630
          %7769 = vmatpush1.bf16.msra.mxu0 %v7629
          %7770 = vmatprep.subr.bf16.mxu0 %v7632
          %7771 = vmatpush1.bf16.msra.mxu0 %v7631
          %7772 = vmatprep.subr.bf16.mxu0 %v7634
          %7773 = vmatpush1.bf16.msra.mxu0 %v7633
          %7774 = vmatprep.subr.bf16.mxu0 %v7636
          %7775 = vmatpush1.bf16.msra.mxu0 %v7635
          %7776 = vmatprep.mubr.bf16.mxu0 %v7345
          %7777 = vmatmul.mubr.bf16.gmra.mrb[0].mxu0 %v7344
          %v7778 = vpop.f32.mrb[0].mxu0
          %v7779 = vadd.f32 %v7737, %v7778
          %v7780 = vpop.f32.mrb[0].mxu0
          %v7781 = vadd.f32 %v7741, %v7780
          %v7782 = vpop.f32.mrb[0].mxu0
          %v7783 = vpop.f32.mrb[0].mxu0
          %7784 = vdwg.mxu0
          %7785 = vmatprep.subr.bf16.mxu0 %v7638
          %7786 = vmatpush1.bf16.msra.mxu0 %v7637
          %7787 = vmatprep.subr.bf16.mxu0 %v7640
          %7788 = vmatpush1.bf16.msra.mxu0 %v7639
          %7789 = vmatprep.subr.bf16.mxu0 %v7642
          %7790 = vmatpush1.bf16.msra.mxu0 %v7641
          %7791 = vmatprep.subr.bf16.mxu0 %v7644
          %7792 = vmatpush1.bf16.msra.mxu0 %v7643
          %7793 = vmatprep.subr.bf16.mxu0 %v7646
          %7794 = vmatpush1.bf16.msra.mxu0 %v7645
          %7795 = vmatprep.subr.bf16.mxu0 %v7648
          %7796 = vmatpush1.bf16.msra.mxu0 %v7647
          %7797 = vmatprep.subr.bf16.mxu0 %v7650
          %7798 = vmatpush1.bf16.msra.mxu0 %v7649
          %7799 = vmatprep.subr.bf16.mxu0 %v7652
          %7800 = vmatpush1.bf16.msra.mxu0 %v7651
          %7801 = vmatprep.subr.bf16.mxu0 %v7654
          %7802 = vmatpush1.bf16.msra.mxu0 %v7653
          %7803 = vmatprep.subr.bf16.mxu0 %v7656
          %7804 = vmatpush1.bf16.msra.mxu0 %v7655
          %7805 = vmatprep.subr.bf16.mxu0 %v7658
          %7806 = vmatpush1.bf16.msra.mxu0 %v7657
          %7807 = vmatprep.subr.bf16.mxu0 %v7660
          %7808 = vmatpush1.bf16.msra.mxu0 %v7659
          %7809 = vmatprep.subr.bf16.mxu0 %v7662
          %7810 = vmatpush1.bf16.msra.mxu0 %v7661
          %7811 = vmatprep.subr.bf16.mxu0 %v7664
          %7812 = vmatpush1.bf16.msra.mxu0 %v7663
          %7813 = vmatprep.subr.bf16.mxu0 %v7666
          %7814 = vmatpush1.bf16.msra.mxu0 %v7665
          %7815 = vmatprep.subr.bf16.mxu0 %v7668
          %7816 = vmatpush1.bf16.msra.mxu0 %v7667
          %7817 = vmatprep.mubr.bf16.mxu0 %v7347
          %7818 = vmatmul.mubr.bf16.gmra.mrb[0].mxu0 %v7346
          %v7819 = vpop.f32.mrb[0].mxu0
          %v7820 = vadd.f32 %v7779, %v7819
          %v7821 = vpop.f32.mrb[0].mxu0
          %v7822 = vadd.f32 %v7781, %v7821
          %v7823 = vpop.f32.mrb[0].mxu0
          %v7824 = vpop.f32.mrb[0].mxu0
          %7825 = vdwg.mxu0
          %v7826 = vmax.f32 %v7820, 0.0
          %v7827 = vmax.f32 %v7822, 0.0
          %v7828 = vld [vmem:[#allocation14] sm:$0x1]
          %v7829 = vpack.c.bf16 %v7828, %v7828
          %v7830 = vld [vmem:[#allocation29] sm:$0xff]
          %v7831 = vld [vmem:[#allocation29 + $0x8] sm:$0xff]
          %v7832 = vld [vmem:[#allocation29 + $0x10] sm:$0xff]
          %v7833 = vld [vmem:[#allocation29 + $0x18] sm:$0xff]
          %v7834 = vld [vmem:[#allocation29 + $0x20] sm:$0xff]
          %v7835 = vld [vmem:[#allocation29 + $0x28] sm:$0xff]
          %v7836 = vld [vmem:[#allocation29 + $0x30] sm:$0xff]
          %v7837 = vld [vmem:[#allocation29 + $0x38] sm:$0xff]
          %v7838 = vld [vmem:[#allocation29 + $0x40] sm:$0xff]
          %v7839 = vld [vmem:[#allocation29 + $0x48] sm:$0xff]
          %v7840 = vld [vmem:[#allocation29 + $0x50] sm:$0xff]
          %v7841 = vld [vmem:[#allocation29 + $0x58] sm:$0xff]
          %v7842 = vld [vmem:[#allocation29 + $0x60] sm:$0xff]
          %v7843 = vld [vmem:[#allocation29 + $0x68] sm:$0xff]
          %v7844 = vld [vmem:[#allocation29 + $0x70] sm:$0xff]
          %v7845 = vld [vmem:[#allocation29 + $0x78] sm:$0xff]
          %v7846 = vld [vmem:[#allocation31] sm:$0x3]
          %v7863 = vunpack.c.l.b16 %v7830
          %v7864 = vunpack.c.h.b16 %v7830
          %v7865 = vunpack.c.l.b16 %v7831
          %v7866 = vunpack.c.h.b16 %v7831
          %v7867 = vunpack.c.l.b16 %v7832
          %v7868 = vunpack.c.h.b16 %v7832
          %v7869 = vunpack.c.l.b16 %v7833
          %v7870 = vunpack.c.h.b16 %v7833
          %v7871 = vunpack.c.l.b16 %v7834
          %v7872 = vunpack.c.h.b16 %v7834
          %v7873 = vunpack.c.l.b16 %v7835
          %v7874 = vunpack.c.h.b16 %v7835
          %v7875 = vunpack.c.l.b16 %v7836
          %v7876 = vunpack.c.h.b16 %v7836
          %v7877 = vunpack.c.l.b16 %v7837
          %v7878 = vunpack.c.h.b16 %v7837
          %v7879 = vunpack.c.l.b16 %v7838
          %v7880 = vunpack.c.h.b16 %v7838
          %v7881 = vunpack.c.l.b16 %v7839
          %v7882 = vunpack.c.h.b16 %v7839
          %v7883 = vunpack.c.l.b16 %v7840
          %v7884 = vunpack.c.h.b16 %v7840
          %v7885 = vunpack.c.l.b16 %v7841
          %v7886 = vunpack.c.h.b16 %v7841
          %v7887 = vunpack.c.l.b16 %v7842
          %v7888 = vunpack.c.h.b16 %v7842
          %v7889 = vunpack.c.l.b16 %v7843
          %v7890 = vunpack.c.h.b16 %v7843
          %v7891 = vunpack.c.l.b16 %v7844
          %v7892 = vunpack.c.h.b16 %v7844
          %v7893 = vunpack.c.l.b16 %v7845
          %v7894 = vunpack.c.h.b16 %v7845
          %v7895 = vpack.c.b16 %v7865, %v7863
          %v7896 = vpack.c.b16 %v7866, %v7864
          %v7897 = vpack.c.b16 %v7869, %v7867
          %v7898 = vpack.c.b16 %v7870, %v7868
          %v7899 = vpack.c.b16 %v7873, %v7871
          %v7900 = vpack.c.b16 %v7874, %v7872
          %v7901 = vpack.c.b16 %v7877, %v7875
          %v7902 = vpack.c.b16 %v7878, %v7876
          %v7903 = vpack.c.b16 %v7881, %v7879
          %v7904 = vpack.c.b16 %v7882, %v7880
          %v7905 = vpack.c.b16 %v7885, %v7883
          %v7906 = vpack.c.b16 %v7886, %v7884
          %v7907 = vpack.c.b16 %v7889, %v7887
          %v7908 = vpack.c.b16 %v7890, %v7888
          %v7909 = vpack.c.b16 %v7893, %v7891
          %v7910 = vpack.c.b16 %v7894, %v7892
          %v7928 = vlaneseq
          %v7929 = vshrl.u32 %v7928, 7
          %v7930 = vsub.s32 0, %v7929
          %v7931 = vrot.slane %v7846, %v7930
          %v7932 = vlaneseq
          %v7933 = vshrl.u32 %v7932, 7
          %v7934 = vsub.s32 1, %v7933
          %v7935 = vrot.slane %v7846, %v7934
          %7938 = vmatprep.subr.bf16.mxu0 %v7896
          %7939 = vmatpush1.bf16.msra.mxu0 %v7895
          %7940 = vmatprep.subr.bf16.mxu0 %v7898
          %7941 = vmatpush1.bf16.msra.mxu0 %v7897
          %7942 = vmatprep.subr.bf16.mxu0 %v7900
          %7943 = vmatpush1.bf16.msra.mxu0 %v7899
          %7944 = vmatprep.subr.bf16.mxu0 %v7902
          %7945 = vmatpush1.bf16.msra.mxu0 %v7901
          %7946 = vmatprep.subr.bf16.mxu0 %v7904
          %7947 = vmatpush1.bf16.msra.mxu0 %v7903
          %7948 = vmatprep.subr.bf16.mxu0 %v7906
          %7949 = vmatpush1.bf16.msra.mxu0 %v7905
          %7950 = vmatprep.subr.bf16.mxu0 %v7908
          %7951 = vmatpush1.bf16.msra.mxu0 %v7907
          %7952 = vmatprep.subr.bf16.mxu0 %v7910
          %7953 = vmatpush1.bf16.msra.mxu0 %v7909
          %7954 = vmatprep.subr.bf16.mxu0 0
          %7955 = vmatpush1.bf16.msra.mxu0 0
          %7956 = vmatprep.subr.bf16.mxu0 0
          %7957 = vmatpush1.bf16.msra.mxu0 0
          %7958 = vmatprep.subr.bf16.mxu0 0
          %7959 = vmatpush1.bf16.msra.mxu0 0
          %7960 = vmatprep.subr.bf16.mxu0 0
          %7961 = vmatpush1.bf16.msra.mxu0 0
          %7962 = vmatprep.subr.bf16.mxu0 0
          %7963 = vmatpush1.bf16.msra.mxu0 0
          %7964 = vmatprep.subr.bf16.mxu0 0
          %7965 = vmatpush1.bf16.msra.mxu0 0
          %7966 = vmatprep.subr.bf16.mxu0 0
          %7967 = vmatpush1.bf16.msra.mxu0 0
          %7968 = vmatprep.subr.bf16.mxu0 0
          %7969 = vmatpush1.bf16.msra.mxu0 0
          %7970 = vmatprep.mubr.bf16.mxu0 0
          %7971 = vmatmul.mubr.bf16.gmra.mrb[0].mxu0 %v7829
          %v7972 = vpop.f32.mrb[0].mxu0
          %v7973 = vadd.f32 %v7931, %v7972
          %v7974 = vpop.f32.mrb[0].mxu0
          %v7975 = vadd.f32 %v7935, %v7974
          %v7976 = vpop.f32.mrb[0].mxu0
          %v7977 = vpop.f32.mrb[0].mxu0
          %7978 = vdwg.mxu0
          %vm7979 = vcmp.gt.f32.partialorder %v7973, 0.0
          %vm7980 = vcmp.gt.f32.partialorder %v7975, 0.0
          %v7981 = vmin.f32 %v7973, 0.0
          %v7982 = vmin.f32 %v7975, 0.0
          %v7983 = vmul.f32 %v7981, 1.442695
          %v7984 = vpow.pop %v7983
          %v7985 = vmul.f32 %v7982, 1.442695
          %v7986 = vpow.pop %v7985
          %v7987 = vsub.f32 %v7984, 1.0
          %v7988 = vsub.f32 %v7986, 1.0
          %v7989 = vsel %vm7979, %v7973, %v7987
          %v7990 = vsel %vm7980, %v7975, %v7988
          %v7991 = vpack.c.bf16 %v7989, %v7989
          %v7992 = vpack.c.bf16 %v7990, %v7990
          %v7993 = vld [vmem:[#allocation32] sm:$0xff]
          %v7994 = vld [vmem:[#allocation32 + $0x8] sm:$0xff]
          %v7995 = vld [vmem:[#allocation32 + $0x10] sm:$0xff]
          %v7996 = vld [vmem:[#allocation32 + $0x18] sm:$0xff]
          %v7997 = vld [vmem:[#allocation32 + $0x20] sm:$0xff]
          %v7998 = vld [vmem:[#allocation32 + $0x28] sm:$0xff]
          %v7999 = vld [vmem:[#allocation32 + $0x30] sm:$0xff]
          %v8000 = vld [vmem:[#allocation32 + $0x38] sm:$0xff]
          %v8001 = vld [vmem:[#allocation32 + $0x40] sm:$0xff]
          %v8002 = vld [vmem:[#allocation32 + $0x48] sm:$0xff]
          %v8003 = vld [vmem:[#allocation32 + $0x50] sm:$0xff]
          %v8004 = vld [vmem:[#allocation32 + $0x58] sm:$0xff]
          %v8005 = vld [vmem:[#allocation32 + $0x60] sm:$0xff]
          %v8006 = vld [vmem:[#allocation32 + $0x68] sm:$0xff]
          %v8007 = vld [vmem:[#allocation32 + $0x70] sm:$0xff]
          %v8008 = vld [vmem:[#allocation32 + $0x78] sm:$0xff]
          %v8009 = vld [vmem:[#allocation32 + $0x80] sm:$0xff]
          %v8010 = vld [vmem:[#allocation32 + $0x88] sm:$0xff]
          %v8011 = vld [vmem:[#allocation32 + $0x90] sm:$0xff]
          %v8012 = vld [vmem:[#allocation32 + $0x98] sm:$0xff]
          %v8013 = vld [vmem:[#allocation32 + $0xa0] sm:$0xff]
          %v8014 = vld [vmem:[#allocation32 + $0xa8] sm:$0xff]
          %v8015 = vld [vmem:[#allocation32 + $0xb0] sm:$0xff]
          %v8016 = vld [vmem:[#allocation32 + $0xb8] sm:$0xff]
          %v8017 = vld [vmem:[#allocation32 + $0xc0] sm:$0xff]
          %v8018 = vld [vmem:[#allocation32 + $0xc8] sm:$0xff]
          %v8019 = vld [vmem:[#allocation32 + $0xd0] sm:$0xff]
          %v8020 = vld [vmem:[#allocation32 + $0xd8] sm:$0xff]
          %v8021 = vld [vmem:[#allocation32 + $0xe0] sm:$0xff]
          %v8022 = vld [vmem:[#allocation32 + $0xe8] sm:$0xff]
          %v8023 = vld [vmem:[#allocation32 + $0xf0] sm:$0xff]
          %v8024 = vld [vmem:[#allocation32 + $0xf8] sm:$0xff]
          %v8025 = vld [vmem:[#allocation34] sm:$0x3]
          %v8058 = vunpack.c.l.b16 %v7993
          %v8059 = vunpack.c.h.b16 %v7993
          %v8060 = vunpack.c.l.b16 %v7994
          %v8061 = vunpack.c.h.b16 %v7994
          %v8062 = vunpack.c.l.b16 %v7995
          %v8063 = vunpack.c.h.b16 %v7995
          %v8064 = vunpack.c.l.b16 %v7996
          %v8065 = vunpack.c.h.b16 %v7996
          %v8066 = vunpack.c.l.b16 %v7997
          %v8067 = vunpack.c.h.b16 %v7997
          %v8068 = vunpack.c.l.b16 %v7998
          %v8069 = vunpack.c.h.b16 %v7998
          %v8070 = vunpack.c.l.b16 %v7999
          %v8071 = vunpack.c.h.b16 %v7999
          %v8072 = vunpack.c.l.b16 %v8000
          %v8073 = vunpack.c.h.b16 %v8000
          %v8074 = vunpack.c.l.b16 %v8001
          %v8075 = vunpack.c.h.b16 %v8001
          %v8076 = vunpack.c.l.b16 %v8002
          %v8077 = vunpack.c.h.b16 %v8002
          %v8078 = vunpack.c.l.b16 %v8003
          %v8079 = vunpack.c.h.b16 %v8003
          %v8080 = vunpack.c.l.b16 %v8004
          %v8081 = vunpack.c.h.b16 %v8004
          %v8082 = vunpack.c.l.b16 %v8005
          %v8083 = vunpack.c.h.b16 %v8005
          %v8084 = vunpack.c.l.b16 %v8006
          %v8085 = vunpack.c.h.b16 %v8006
          %v8086 = vunpack.c.l.b16 %v8007
          %v8087 = vunpack.c.h.b16 %v8007
          %v8088 = vunpack.c.l.b16 %v8008
          %v8089 = vunpack.c.h.b16 %v8008
          %v8090 = vunpack.c.l.b16 %v8009
          %v8091 = vunpack.c.h.b16 %v8009
          %v8092 = vunpack.c.l.b16 %v8010
          %v8093 = vunpack.c.h.b16 %v8010
          %v8094 = vunpack.c.l.b16 %v8011
          %v8095 = vunpack.c.h.b16 %v8011
          %v8096 = vunpack.c.l.b16 %v8012
          %v8097 = vunpack.c.h.b16 %v8012
          %v8098 = vunpack.c.l.b16 %v8013
          %v8099 = vunpack.c.h.b16 %v8013
          %v8100 = vunpack.c.l.b16 %v8014
          %v8101 = vunpack.c.h.b16 %v8014
          %v8102 = vunpack.c.l.b16 %v8015
          %v8103 = vunpack.c.h.b16 %v8015
          %v8104 = vunpack.c.l.b16 %v8016
          %v8105 = vunpack.c.h.b16 %v8016
          %v8106 = vunpack.c.l.b16 %v8017
          %v8107 = vunpack.c.h.b16 %v8017
          %v8108 = vunpack.c.l.b16 %v8018
          %v8109 = vunpack.c.h.b16 %v8018
          %v8110 = vunpack.c.l.b16 %v8019
          %v8111 = vunpack.c.h.b16 %v8019
          %v8112 = vunpack.c.l.b16 %v8020
          %v8113 = vunpack.c.h.b16 %v8020
          %v8114 = vunpack.c.l.b16 %v8021
          %v8115 = vunpack.c.h.b16 %v8021
          %v8116 = vunpack.c.l.b16 %v8022
          %v8117 = vunpack.c.h.b16 %v8022
          %v8118 = vunpack.c.l.b16 %v8023
          %v8119 = vunpack.c.h.b16 %v8023
          %v8120 = vunpack.c.l.b16 %v8024
          %v8121 = vunpack.c.h.b16 %v8024
          %v8122 = vpack.c.b16 %v8060, %v8058
          %v8123 = vpack.c.b16 %v8061, %v8059
          %v8124 = vpack.c.b16 %v8064, %v8062
          %v8125 = vpack.c.b16 %v8065, %v8063
          %v8126 = vpack.c.b16 %v8068, %v8066
          %v8127 = vpack.c.b16 %v8069, %v8067
          %v8128 = vpack.c.b16 %v8072, %v8070
          %v8129 = vpack.c.b16 %v8073, %v8071
          %v8130 = vpack.c.b16 %v8076, %v8074
          %v8131 = vpack.c.b16 %v8077, %v8075
          %v8132 = vpack.c.b16 %v8080, %v8078
          %v8133 = vpack.c.b16 %v8081, %v8079
          %v8134 = vpack.c.b16 %v8084, %v8082
          %v8135 = vpack.c.b16 %v8085, %v8083
          %v8136 = vpack.c.b16 %v8088, %v8086
          %v8137 = vpack.c.b16 %v8089, %v8087
          %v8138 = vpack.c.b16 %v8092, %v8090
          %v8139 = vpack.c.b16 %v8093, %v8091
          %v8140 = vpack.c.b16 %v8096, %v8094
          %v8141 = vpack.c.b16 %v8097, %v8095
          %v8142 = vpack.c.b16 %v8100, %v8098
          %v8143 = vpack.c.b16 %v8101, %v8099
          %v8144 = vpack.c.b16 %v8104, %v8102
          %v8145 = vpack.c.b16 %v8105, %v8103
          %v8146 = vpack.c.b16 %v8108, %v8106
          %v8147 = vpack.c.b16 %v8109, %v8107
          %v8148 = vpack.c.b16 %v8112, %v8110
          %v8149 = vpack.c.b16 %v8113, %v8111
          %v8150 = vpack.c.b16 %v8116, %v8114
          %v8151 = vpack.c.b16 %v8117, %v8115
          %v8152 = vpack.c.b16 %v8120, %v8118
          %v8153 = vpack.c.b16 %v8121, %v8119
          %v8187 = vlaneseq
          %v8188 = vshrl.u32 %v8187, 7
          %v8189 = vsub.s32 0, %v8188
          %v8190 = vrot.slane %v8025, %v8189
          %v8191 = vlaneseq
          %v8192 = vshrl.u32 %v8191, 7
          %v8193 = vsub.s32 1, %v8192
          %v8194 = vrot.slane %v8025, %v8193
          %8197 = vmatprep.subr.bf16.mxu0 %v8123
          %8198 = vmatpush1.bf16.msra.mxu0 %v8122
          %8199 = vmatprep.subr.bf16.mxu0 %v8125
          %8200 = vmatpush1.bf16.msra.mxu0 %v8124
          %8201 = vmatprep.subr.bf16.mxu0 %v8127
          %8202 = vmatpush1.bf16.msra.mxu0 %v8126
          %8203 = vmatprep.subr.bf16.mxu0 %v8129
          %8204 = vmatpush1.bf16.msra.mxu0 %v8128
          %8205 = vmatprep.subr.bf16.mxu0 %v8131
          %8206 = vmatpush1.bf16.msra.mxu0 %v8130
          %8207 = vmatprep.subr.bf16.mxu0 %v8133
          %8208 = vmatpush1.bf16.msra.mxu0 %v8132
          %8209 = vmatprep.subr.bf16.mxu0 %v8135
          %8210 = vmatpush1.bf16.msra.mxu0 %v8134
          %8211 = vmatprep.subr.bf16.mxu0 %v8137
          %8212 = vmatpush1.bf16.msra.mxu0 %v8136
          %8213 = vmatprep.subr.bf16.mxu0 %v8139
          %8214 = vmatpush1.bf16.msra.mxu0 %v8138
          %8215 = vmatprep.subr.bf16.mxu0 %v8141
          %8216 = vmatpush1.bf16.msra.mxu0 %v8140
          %8217 = vmatprep.subr.bf16.mxu0 %v8143
          %8218 = vmatpush1.bf16.msra.mxu0 %v8142
          %8219 = vmatprep.subr.bf16.mxu0 %v8145
          %8220 = vmatpush1.bf16.msra.mxu0 %v8144
          %8221 = vmatprep.subr.bf16.mxu0 %v8147
          %8222 = vmatpush1.bf16.msra.mxu0 %v8146
          %8223 = vmatprep.subr.bf16.mxu0 %v8149
          %8224 = vmatpush1.bf16.msra.mxu0 %v8148
          %8225 = vmatprep.subr.bf16.mxu0 %v8151
          %8226 = vmatpush1.bf16.msra.mxu0 %v8150
          %8227 = vmatprep.subr.bf16.mxu0 %v8153
          %8228 = vmatpush1.bf16.msra.mxu0 %v8152
          %8229 = vmatprep.mubr.bf16.mxu0 %v7992
          %8230 = vmatmul.mubr.bf16.gmra.mrb[0].mxu0 %v7991
          %v8231 = vpop.f32.mrb[0].mxu0
          %v8232 = vadd.f32 %v8190, %v8231
          %v8233 = vpop.f32.mrb[0].mxu0
          %v8234 = vadd.f32 %v8194, %v8233
          %v8235 = vpop.f32.mrb[0].mxu0
          %v8236 = vpop.f32.mrb[0].mxu0
          %8237 = vdwg.mxu0
          %vm8238 = vcmp.gt.f32.partialorder %v8232, 0.0
          %vm8239 = vcmp.gt.f32.partialorder %v8234, 0.0
          %v8240 = vmin.f32 %v8232, 0.0
          %v8241 = vmin.f32 %v8234, 0.0
          %v8242 = vmul.f32 %v8240, 1.442695
          %v8243 = vpow.pop %v8242
          %v8244 = vmul.f32 %v8241, 1.442695
          %v8245 = vpow.pop %v8244
          %v8246 = vsub.f32 %v8243, 1.0
          %v8247 = vsub.f32 %v8245, 1.0
          %v8248 = vsel %vm8238, %v8232, %v8246
          %v8249 = vsel %vm8239, %v8234, %v8247
          %v8250 = vpack.c.bf16 %v7826, %v7826
          %v8251 = vpack.c.bf16 %v7827, %v7827
          %v8252 = vld [vmem:[#allocation35] sm:$0xff]
          %v8253 = vld [vmem:[#allocation35 + $0x8] sm:$0xff]
          %v8254 = vld [vmem:[#allocation35 + $0x10] sm:$0xff]
          %v8255 = vld [vmem:[#allocation35 + $0x18] sm:$0xff]
          %v8256 = vld [vmem:[#allocation35 + $0x20] sm:$0xff]
          %v8257 = vld [vmem:[#allocation35 + $0x28] sm:$0xff]
          %v8258 = vld [vmem:[#allocation35 + $0x30] sm:$0xff]
          %v8259 = vld [vmem:[#allocation35 + $0x38] sm:$0xff]
          %v8260 = vld [vmem:[#allocation35 + $0x40] sm:$0xff]
          %v8261 = vld [vmem:[#allocation35 + $0x48] sm:$0xff]
          %v8262 = vld [vmem:[#allocation35 + $0x50] sm:$0xff]
          %v8263 = vld [vmem:[#allocation35 + $0x58] sm:$0xff]
          %v8264 = vld [vmem:[#allocation35 + $0x60] sm:$0xff]
          %v8265 = vld [vmem:[#allocation35 + $0x68] sm:$0xff]
          %v8266 = vld [vmem:[#allocation35 + $0x70] sm:$0xff]
          %v8267 = vld [vmem:[#allocation35 + $0x78] sm:$0xff]
          %v8268 = vld [vmem:[#allocation35 + $0x80] sm:$0xff]
          %v8269 = vld [vmem:[#allocation35 + $0x88] sm:$0xff]
          %v8270 = vld [vmem:[#allocation35 + $0x90] sm:$0xff]
          %v8271 = vld [vmem:[#allocation35 + $0x98] sm:$0xff]
          %v8272 = vld [vmem:[#allocation35 + $0xa0] sm:$0xff]
          %v8273 = vld [vmem:[#allocation35 + $0xa8] sm:$0xff]
          %v8274 = vld [vmem:[#allocation35 + $0xb0] sm:$0xff]
          %v8275 = vld [vmem:[#allocation35 + $0xb8] sm:$0xff]
          %v8276 = vld [vmem:[#allocation35 + $0xc0] sm:$0xff]
          %v8277 = vld [vmem:[#allocation35 + $0xc8] sm:$0xff]
          %v8278 = vld [vmem:[#allocation35 + $0xd0] sm:$0xff]
          %v8279 = vld [vmem:[#allocation35 + $0xd8] sm:$0xff]
          %v8280 = vld [vmem:[#allocation35 + $0xe0] sm:$0xff]
          %v8281 = vld [vmem:[#allocation35 + $0xe8] sm:$0xff]
          %v8282 = vld [vmem:[#allocation35 + $0xf0] sm:$0xff]
          %v8283 = vld [vmem:[#allocation35 + $0xf8] sm:$0xff]
          %v8284 = vpack.c.bf16 %v8248, %v8248
          %v8285 = vpack.c.bf16 %v8249, %v8249
          %v8286 = vld [vmem:[#allocation37] sm:$0xff]
          %v8287 = vld [vmem:[#allocation37 + $0x8] sm:$0xff]
          %v8288 = vld [vmem:[#allocation37 + $0x10] sm:$0xff]
          %v8289 = vld [vmem:[#allocation37 + $0x18] sm:$0xff]
          %v8290 = vld [vmem:[#allocation37 + $0x20] sm:$0xff]
          %v8291 = vld [vmem:[#allocation37 + $0x28] sm:$0xff]
          %v8292 = vld [vmem:[#allocation37 + $0x30] sm:$0xff]
          %v8293 = vld [vmem:[#allocation37 + $0x38] sm:$0xff]
          %v8294 = vld [vmem:[#allocation37 + $0x40] sm:$0xff]
          %v8295 = vld [vmem:[#allocation37 + $0x48] sm:$0xff]
          %v8296 = vld [vmem:[#allocation37 + $0x50] sm:$0xff]
          %v8297 = vld [vmem:[#allocation37 + $0x58] sm:$0xff]
          %v8298 = vld [vmem:[#allocation37 + $0x60] sm:$0xff]
          %v8299 = vld [vmem:[#allocation37 + $0x68] sm:$0xff]
          %v8300 = vld [vmem:[#allocation37 + $0x70] sm:$0xff]
          %v8301 = vld [vmem:[#allocation37 + $0x78] sm:$0xff]
          %v8302 = vld [vmem:[#allocation37 + $0x80] sm:$0xff]
          %v8303 = vld [vmem:[#allocation37 + $0x88] sm:$0xff]
          %v8304 = vld [vmem:[#allocation37 + $0x90] sm:$0xff]
          %v8305 = vld [vmem:[#allocation37 + $0x98] sm:$0xff]
          %v8306 = vld [vmem:[#allocation37 + $0xa0] sm:$0xff]
          %v8307 = vld [vmem:[#allocation37 + $0xa8] sm:$0xff]
          %v8308 = vld [vmem:[#allocation37 + $0xb0] sm:$0xff]
          %v8309 = vld [vmem:[#allocation37 + $0xb8] sm:$0xff]
          %v8310 = vld [vmem:[#allocation37 + $0xc0] sm:$0xff]
          %v8311 = vld [vmem:[#allocation37 + $0xc8] sm:$0xff]
          %v8312 = vld [vmem:[#allocation37 + $0xd0] sm:$0xff]
          %v8313 = vld [vmem:[#allocation37 + $0xd8] sm:$0xff]
          %v8314 = vld [vmem:[#allocation37 + $0xe0] sm:$0xff]
          %v8315 = vld [vmem:[#allocation37 + $0xe8] sm:$0xff]
          %v8316 = vld [vmem:[#allocation37 + $0xf0] sm:$0xff]
          %v8317 = vld [vmem:[#allocation37 + $0xf8] sm:$0xff]
          %v8350 = vunpack.c.l.b16 %v8286
          %v8351 = vunpack.c.h.b16 %v8286
          %v8352 = vunpack.c.l.b16 %v8287
          %v8353 = vunpack.c.h.b16 %v8287
          %v8354 = vunpack.c.l.b16 %v8288
          %v8355 = vunpack.c.h.b16 %v8288
          %v8356 = vunpack.c.l.b16 %v8289
          %v8357 = vunpack.c.h.b16 %v8289
          %v8358 = vunpack.c.l.b16 %v8290
          %v8359 = vunpack.c.h.b16 %v8290
          %v8360 = vunpack.c.l.b16 %v8291
          %v8361 = vunpack.c.h.b16 %v8291
          %v8362 = vunpack.c.l.b16 %v8292
          %v8363 = vunpack.c.h.b16 %v8292
          %v8364 = vunpack.c.l.b16 %v8293
          %v8365 = vunpack.c.h.b16 %v8293
          %v8366 = vunpack.c.l.b16 %v8294
          %v8367 = vunpack.c.h.b16 %v8294
          %v8368 = vunpack.c.l.b16 %v8295
          %v8369 = vunpack.c.h.b16 %v8295
          %v8370 = vunpack.c.l.b16 %v8296
          %v8371 = vunpack.c.h.b16 %v8296
          %v8372 = vunpack.c.l.b16 %v8297
          %v8373 = vunpack.c.h.b16 %v8297
          %v8374 = vunpack.c.l.b16 %v8298
          %v8375 = vunpack.c.h.b16 %v8298
          %v8376 = vunpack.c.l.b16 %v8299
          %v8377 = vunpack.c.h.b16 %v8299
          %v8378 = vunpack.c.l.b16 %v8300
          %v8379 = vunpack.c.h.b16 %v8300
          %v8380 = vunpack.c.l.b16 %v8301
          %v8381 = vunpack.c.h.b16 %v8301
          %v8382 = vunpack.c.l.b16 %v8302
          %v8383 = vunpack.c.h.b16 %v8302
          %v8384 = vunpack.c.l.b16 %v8303
          %v8385 = vunpack.c.h.b16 %v8303
          %v8386 = vunpack.c.l.b16 %v8304
          %v8387 = vunpack.c.h.b16 %v8304
          %v8388 = vunpack.c.l.b16 %v8305
          %v8389 = vunpack.c.h.b16 %v8305
          %v8390 = vunpack.c.l.b16 %v8306
          %v8391 = vunpack.c.h.b16 %v8306
          %v8392 = vunpack.c.l.b16 %v8307
          %v8393 = vunpack.c.h.b16 %v8307
          %v8394 = vunpack.c.l.b16 %v8308
          %v8395 = vunpack.c.h.b16 %v8308
          %v8396 = vunpack.c.l.b16 %v8309
          %v8397 = vunpack.c.h.b16 %v8309
          %v8398 = vunpack.c.l.b16 %v8310
          %v8399 = vunpack.c.h.b16 %v8310
          %v8400 = vunpack.c.l.b16 %v8311
          %v8401 = vunpack.c.h.b16 %v8311
          %v8402 = vunpack.c.l.b16 %v8312
          %v8403 = vunpack.c.h.b16 %v8312
          %v8404 = vunpack.c.l.b16 %v8313
          %v8405 = vunpack.c.h.b16 %v8313
          %v8406 = vunpack.c.l.b16 %v8314
          %v8407 = vunpack.c.h.b16 %v8314
          %v8408 = vunpack.c.l.b16 %v8315
          %v8409 = vunpack.c.h.b16 %v8315
          %v8410 = vunpack.c.l.b16 %v8316
          %v8411 = vunpack.c.h.b16 %v8316
          %v8412 = vunpack.c.l.b16 %v8317
          %v8413 = vunpack.c.h.b16 %v8317
          %v8414 = vpack.c.b16 %v8352, %v8350
          %v8415 = vpack.c.b16 %v8353, %v8351
          %v8416 = vpack.c.b16 %v8356, %v8354
          %v8417 = vpack.c.b16 %v8357, %v8355
          %v8418 = vpack.c.b16 %v8360, %v8358
          %v8419 = vpack.c.b16 %v8361, %v8359
          %v8420 = vpack.c.b16 %v8364, %v8362
          %v8421 = vpack.c.b16 %v8365, %v8363
          %v8422 = vpack.c.b16 %v8368, %v8366
          %v8423 = vpack.c.b16 %v8369, %v8367
          %v8424 = vpack.c.b16 %v8372, %v8370
          %v8425 = vpack.c.b16 %v8373, %v8371
          %v8426 = vpack.c.b16 %v8376, %v8374
          %v8427 = vpack.c.b16 %v8377, %v8375
          %v8428 = vpack.c.b16 %v8380, %v8378
          %v8429 = vpack.c.b16 %v8381, %v8379
          %v8430 = vpack.c.b16 %v8384, %v8382
          %v8431 = vpack.c.b16 %v8385, %v8383
          %v8432 = vpack.c.b16 %v8388, %v8386
          %v8433 = vpack.c.b16 %v8389, %v8387
          %v8434 = vpack.c.b16 %v8392, %v8390
          %v8435 = vpack.c.b16 %v8393, %v8391
          %v8436 = vpack.c.b16 %v8396, %v8394
          %v8437 = vpack.c.b16 %v8397, %v8395
          %v8438 = vpack.c.b16 %v8400, %v8398
          %v8439 = vpack.c.b16 %v8401, %v8399
          %v8440 = vpack.c.b16 %v8404, %v8402
          %v8441 = vpack.c.b16 %v8405, %v8403
          %v8442 = vpack.c.b16 %v8408, %v8406
          %v8443 = vpack.c.b16 %v8409, %v8407
          %v8444 = vpack.c.b16 %v8412, %v8410
          %v8445 = vpack.c.b16 %v8413, %v8411
          %8478 = vmatprep.subr.bf16.mxu0 %v8415
          %8479 = vmatpush1.bf16.msra.mxu0 %v8414
          %8480 = vmatprep.subr.bf16.mxu0 %v8417
          %8481 = vmatpush1.bf16.msra.mxu0 %v8416
          %8482 = vmatprep.subr.bf16.mxu0 %v8419
          %8483 = vmatpush1.bf16.msra.mxu0 %v8418
          %8484 = vmatprep.subr.bf16.mxu0 %v8421
          %8485 = vmatpush1.bf16.msra.mxu0 %v8420
          %8486 = vmatprep.subr.bf16.mxu0 %v8423
          %8487 = vmatpush1.bf16.msra.mxu0 %v8422
          %8488 = vmatprep.subr.bf16.mxu0 %v8425
          %8489 = vmatpush1.bf16.msra.mxu0 %v8424
          %8490 = vmatprep.subr.bf16.mxu0 %v8427
          %8491 = vmatpush1.bf16.msra.mxu0 %v8426
          %8492 = vmatprep.subr.bf16.mxu0 %v8429
          %8493 = vmatpush1.bf16.msra.mxu0 %v8428
          %8494 = vmatprep.subr.bf16.mxu0 %v8431
          %8495 = vmatpush1.bf16.msra.mxu0 %v8430
          %8496 = vmatprep.subr.bf16.mxu0 %v8433
          %8497 = vmatpush1.bf16.msra.mxu0 %v8432
          %8498 = vmatprep.subr.bf16.mxu0 %v8435
          %8499 = vmatpush1.bf16.msra.mxu0 %v8434
          %8500 = vmatprep.subr.bf16.mxu0 %v8437
          %8501 = vmatpush1.bf16.msra.mxu0 %v8436
          %8502 = vmatprep.subr.bf16.mxu0 %v8439
          %8503 = vmatpush1.bf16.msra.mxu0 %v8438
          %8504 = vmatprep.subr.bf16.mxu0 %v8441
          %8505 = vmatpush1.bf16.msra.mxu0 %v8440
          %8506 = vmatprep.subr.bf16.mxu0 %v8443
          %8507 = vmatpush1.bf16.msra.mxu0 %v8442
          %8508 = vmatprep.subr.bf16.mxu0 %v8445
          %8509 = vmatpush1.bf16.msra.mxu0 %v8444
          %8510 = vmatprep.mubr.bf16.mxu0 %v8285
          %8511 = vmatmul.mubr.bf16.gmra.mrb[0].mxu0 %v8284
          %v8512 = vpop.f32.mrb[0].mxu0
          %v8513 = vadd.f32 0.0, %v8512
          %v8514 = vpop.f32.mrb[0].mxu0
          %v8515 = vadd.f32 0.0, %v8514
          %v8516 = vpop.f32.mrb[0].mxu0
          %v8517 = vpop.f32.mrb[0].mxu0
          %8518 = vdwg.mxu0
          %v8551 = vunpack.c.l.b16 %v8252
          %v8552 = vunpack.c.h.b16 %v8252
          %v8553 = vunpack.c.l.b16 %v8253
          %v8554 = vunpack.c.h.b16 %v8253
          %v8555 = vunpack.c.l.b16 %v8254
          %v8556 = vunpack.c.h.b16 %v8254
          %v8557 = vunpack.c.l.b16 %v8255
          %v8558 = vunpack.c.h.b16 %v8255
          %v8559 = vunpack.c.l.b16 %v8256
          %v8560 = vunpack.c.h.b16 %v8256
          %v8561 = vunpack.c.l.b16 %v8257
          %v8562 = vunpack.c.h.b16 %v8257
          %v8563 = vunpack.c.l.b16 %v8258
          %v8564 = vunpack.c.h.b16 %v8258
          %v8565 = vunpack.c.l.b16 %v8259
          %v8566 = vunpack.c.h.b16 %v8259
          %v8567 = vunpack.c.l.b16 %v8260
          %v8568 = vunpack.c.h.b16 %v8260
          %v8569 = vunpack.c.l.b16 %v8261
          %v8570 = vunpack.c.h.b16 %v8261
          %v8571 = vunpack.c.l.b16 %v8262
          %v8572 = vunpack.c.h.b16 %v8262
          %v8573 = vunpack.c.l.b16 %v8263
          %v8574 = vunpack.c.h.b16 %v8263
          %v8575 = vunpack.c.l.b16 %v8264
          %v8576 = vunpack.c.h.b16 %v8264
          %v8577 = vunpack.c.l.b16 %v8265
          %v8578 = vunpack.c.h.b16 %v8265
          %v8579 = vunpack.c.l.b16 %v8266
          %v8580 = vunpack.c.h.b16 %v8266
          %v8581 = vunpack.c.l.b16 %v8267
          %v8582 = vunpack.c.h.b16 %v8267
          %v8583 = vunpack.c.l.b16 %v8268
          %v8584 = vunpack.c.h.b16 %v8268
          %v8585 = vunpack.c.l.b16 %v8269
          %v8586 = vunpack.c.h.b16 %v8269
          %v8587 = vunpack.c.l.b16 %v8270
          %v8588 = vunpack.c.h.b16 %v8270
          %v8589 = vunpack.c.l.b16 %v8271
          %v8590 = vunpack.c.h.b16 %v8271
          %v8591 = vunpack.c.l.b16 %v8272
          %v8592 = vunpack.c.h.b16 %v8272
          %v8593 = vunpack.c.l.b16 %v8273
          %v8594 = vunpack.c.h.b16 %v8273
          %v8595 = vunpack.c.l.b16 %v8274
          %v8596 = vunpack.c.h.b16 %v8274
          %v8597 = vunpack.c.l.b16 %v8275
          %v8598 = vunpack.c.h.b16 %v8275
          %v8599 = vunpack.c.l.b16 %v8276
          %v8600 = vunpack.c.h.b16 %v8276
          %v8601 = vunpack.c.l.b16 %v8277
          %v8602 = vunpack.c.h.b16 %v8277
          %v8603 = vunpack.c.l.b16 %v8278
          %v8604 = vunpack.c.h.b16 %v8278
          %v8605 = vunpack.c.l.b16 %v8279
          %v8606 = vunpack.c.h.b16 %v8279
          %v8607 = vunpack.c.l.b16 %v8280
          %v8608 = vunpack.c.h.b16 %v8280
          %v8609 = vunpack.c.l.b16 %v8281
          %v8610 = vunpack.c.h.b16 %v8281
          %v8611 = vunpack.c.l.b16 %v8282
          %v8612 = vunpack.c.h.b16 %v8282
          %v8613 = vunpack.c.l.b16 %v8283
          %v8614 = vunpack.c.h.b16 %v8283
          %v8615 = vpack.c.b16 %v8553, %v8551
          %v8616 = vpack.c.b16 %v8554, %v8552
          %v8617 = vpack.c.b16 %v8557, %v8555
          %v8618 = vpack.c.b16 %v8558, %v8556
          %v8619 = vpack.c.b16 %v8561, %v8559
          %v8620 = vpack.c.b16 %v8562, %v8560
          %v8621 = vpack.c.b16 %v8565, %v8563
          %v8622 = vpack.c.b16 %v8566, %v8564
          %v8623 = vpack.c.b16 %v8569, %v8567
          %v8624 = vpack.c.b16 %v8570, %v8568
          %v8625 = vpack.c.b16 %v8573, %v8571
          %v8626 = vpack.c.b16 %v8574, %v8572
          %v8627 = vpack.c.b16 %v8577, %v8575
          %v8628 = vpack.c.b16 %v8578, %v8576
          %v8629 = vpack.c.b16 %v8581, %v8579
          %v8630 = vpack.c.b16 %v8582, %v8580
          %v8631 = vpack.c.b16 %v8585, %v8583
          %v8632 = vpack.c.b16 %v8586, %v8584
          %v8633 = vpack.c.b16 %v8589, %v8587
          %v8634 = vpack.c.b16 %v8590, %v8588
          %v8635 = vpack.c.b16 %v8593, %v8591
          %v8636 = vpack.c.b16 %v8594, %v8592
          %v8637 = vpack.c.b16 %v8597, %v8595
          %v8638 = vpack.c.b16 %v8598, %v8596
          %v8639 = vpack.c.b16 %v8601, %v8599
          %v8640 = vpack.c.b16 %v8602, %v8600
          %v8641 = vpack.c.b16 %v8605, %v8603
          %v8642 = vpack.c.b16 %v8606, %v8604
          %v8643 = vpack.c.b16 %v8609, %v8607
          %v8644 = vpack.c.b16 %v8610, %v8608
          %v8645 = vpack.c.b16 %v8613, %v8611
          %v8646 = vpack.c.b16 %v8614, %v8612
          %8679 = vmatprep.subr.bf16.mxu0 %v8616
          %8680 = vmatpush1.bf16.msra.mxu0 %v8615
          %8681 = vmatprep.subr.bf16.mxu0 %v8618
          %8682 = vmatpush1.bf16.msra.mxu0 %v8617
          %8683 = vmatprep.subr.bf16.mxu0 %v8620
          %8684 = vmatpush1.bf16.msra.mxu0 %v8619
          %8685 = vmatprep.subr.bf16.mxu0 %v8622
          %8686 = vmatpush1.bf16.msra.mxu0 %v8621
          %8687 = vmatprep.subr.bf16.mxu0 %v8624
          %8688 = vmatpush1.bf16.msra.mxu0 %v8623
          %8689 = vmatprep.subr.bf16.mxu0 %v8626
          %8690 = vmatpush1.bf16.msra.mxu0 %v8625
          %8691 = vmatprep.subr.bf16.mxu0 %v8628
          %8692 = vmatpush1.bf16.msra.mxu0 %v8627
          %8693 = vmatprep.subr.bf16.mxu0 %v8630
          %8694 = vmatpush1.bf16.msra.mxu0 %v8629
          %8695 = vmatprep.subr.bf16.mxu0 %v8632
          %8696 = vmatpush1.bf16.msra.mxu0 %v8631
          %8697 = vmatprep.subr.bf16.mxu0 %v8634
          %8698 = vmatpush1.bf16.msra.mxu0 %v8633
          %8699 = vmatprep.subr.bf16.mxu0 %v8636
          %8700 = vmatpush1.bf16.msra.mxu0 %v8635
          %8701 = vmatprep.subr.bf16.mxu0 %v8638
          %8702 = vmatpush1.bf16.msra.mxu0 %v8637
          %8703 = vmatprep.subr.bf16.mxu0 %v8640
          %8704 = vmatpush1.bf16.msra.mxu0 %v8639
          %8705 = vmatprep.subr.bf16.mxu0 %v8642
          %8706 = vmatpush1.bf16.msra.mxu0 %v8641
          %8707 = vmatprep.subr.bf16.mxu0 %v8644
          %8708 = vmatpush1.bf16.msra.mxu0 %v8643
          %8709 = vmatprep.subr.bf16.mxu0 %v8646
          %8710 = vmatpush1.bf16.msra.mxu0 %v8645
          %8711 = vmatprep.mubr.bf16.mxu0 %v8251
          %8712 = vmatmul.mubr.bf16.gmra.mrb[0].mxu0 %v8250
          %v8713 = vpop.f32.mrb[0].mxu0
          %v8714 = vadd.f32 %v8513, %v8713
          %v8715 = vpop.f32.mrb[0].mxu0
          %v8716 = vadd.f32 %v8515, %v8715
          %v8717 = vpop.f32.mrb[0].mxu0
          %v8718 = vpop.f32.mrb[0].mxu0
          %8719 = vdwg.mxu0
          %v8720 = vld [vmem:[#allocation38] sm:$0x3]
          %v8722 = vlaneseq
          %v8723 = vshrl.u32 %v8722, 7
          %v8724 = vsub.s32 0, %v8723
          %v8725 = vrot.slane %v8720, %v8724
          %v8726 = vlaneseq
          %v8727 = vshrl.u32 %v8726, 7
          %v8728 = vsub.s32 1, %v8727
          %v8729 = vrot.slane %v8720, %v8728
          %v8732 = vadd.f32 %v8714, %v8725
          %v8733 = vadd.f32 %v8716, %v8729
          %v8734 = vmax.f32 %v8732, 0.0
          %v8735 = vmax.f32 %v8733, 0.0
          %v8736 = vpack.c.bf16 %v8734, %v8734
          %v8737 = vpack.c.bf16 %v8735, %v8735
          %v8738 = vld [vmem:[#allocation40] sm:$0xff]
          %v8739 = vld [vmem:[#allocation40 + $0x8] sm:$0xff]
          %v8740 = vld [vmem:[#allocation40 + $0x10] sm:$0xff]
          %v8741 = vld [vmem:[#allocation40 + $0x18] sm:$0xff]
          %v8742 = vld [vmem:[#allocation40 + $0x20] sm:$0xff]
          %v8743 = vld [vmem:[#allocation40 + $0x28] sm:$0xff]
          %v8744 = vld [vmem:[#allocation40 + $0x30] sm:$0xff]
          %v8745 = vld [vmem:[#allocation40 + $0x38] sm:$0xff]
          %v8746 = vld [vmem:[#allocation40 + $0x40] sm:$0xff]
          %v8747 = vld [vmem:[#allocation40 + $0x48] sm:$0xff]
          %v8748 = vld [vmem:[#allocation40 + $0x50] sm:$0xff]
          %v8749 = vld [vmem:[#allocation40 + $0x58] sm:$0xff]
          %v8750 = vld [vmem:[#allocation40 + $0x60] sm:$0xff]
          %v8751 = vld [vmem:[#allocation40 + $0x68] sm:$0xff]
          %v8752 = vld [vmem:[#allocation40 + $0x70] sm:$0xff]
          %v8753 = vld [vmem:[#allocation40 + $0x78] sm:$0xff]
          %v8754 = vld [vmem:[#allocation40 + $0x80] sm:$0xff]
          %v8755 = vld [vmem:[#allocation40 + $0x88] sm:$0xff]
          %v8756 = vld [vmem:[#allocation40 + $0x90] sm:$0xff]
          %v8757 = vld [vmem:[#allocation40 + $0x98] sm:$0xff]
          %v8758 = vld [vmem:[#allocation40 + $0xa0] sm:$0xff]
          %v8759 = vld [vmem:[#allocation40 + $0xa8] sm:$0xff]
          %v8760 = vld [vmem:[#allocation40 + $0xb0] sm:$0xff]
          %v8761 = vld [vmem:[#allocation40 + $0xb8] sm:$0xff]
          %v8762 = vld [vmem:[#allocation40 + $0xc0] sm:$0xff]
          %v8763 = vld [vmem:[#allocation40 + $0xc8] sm:$0xff]
          %v8764 = vld [vmem:[#allocation40 + $0xd0] sm:$0xff]
          %v8765 = vld [vmem:[#allocation40 + $0xd8] sm:$0xff]
          %v8766 = vld [vmem:[#allocation40 + $0xe0] sm:$0xff]
          %v8767 = vld [vmem:[#allocation40 + $0xe8] sm:$0xff]
          %v8768 = vld [vmem:[#allocation40 + $0xf0] sm:$0xff]
          %v8769 = vld [vmem:[#allocation40 + $0xf8] sm:$0xff]
          %v8770 = vld [vmem:[#allocation41] sm:$0x3]
          %v8803 = vunpack.c.l.b16 %v8738
          %v8804 = vunpack.c.h.b16 %v8738
          %v8805 = vunpack.c.l.b16 %v8739
          %v8806 = vunpack.c.h.b16 %v8739
          %v8807 = vunpack.c.l.b16 %v8740
          %v8808 = vunpack.c.h.b16 %v8740
          %v8809 = vunpack.c.l.b16 %v8741
          %v8810 = vunpack.c.h.b16 %v8741
          %v8811 = vunpack.c.l.b16 %v8742
          %v8812 = vunpack.c.h.b16 %v8742
          %v8813 = vunpack.c.l.b16 %v8743
          %v8814 = vunpack.c.h.b16 %v8743
          %v8815 = vunpack.c.l.b16 %v8744
          %v8816 = vunpack.c.h.b16 %v8744
          %v8817 = vunpack.c.l.b16 %v8745
          %v8818 = vunpack.c.h.b16 %v8745
          %v8819 = vunpack.c.l.b16 %v8746
          %v8820 = vunpack.c.h.b16 %v8746
          %v8821 = vunpack.c.l.b16 %v8747
          %v8822 = vunpack.c.h.b16 %v8747
          %v8823 = vunpack.c.l.b16 %v8748
          %v8824 = vunpack.c.h.b16 %v8748
          %v8825 = vunpack.c.l.b16 %v8749
          %v8826 = vunpack.c.h.b16 %v8749
          %v8827 = vunpack.c.l.b16 %v8750
          %v8828 = vunpack.c.h.b16 %v8750
          %v8829 = vunpack.c.l.b16 %v8751
          %v8830 = vunpack.c.h.b16 %v8751
          %v8831 = vunpack.c.l.b16 %v8752
          %v8832 = vunpack.c.h.b16 %v8752
          %v8833 = vunpack.c.l.b16 %v8753
          %v8834 = vunpack.c.h.b16 %v8753
          %v8835 = vunpack.c.l.b16 %v8754
          %v8836 = vunpack.c.h.b16 %v8754
          %v8837 = vunpack.c.l.b16 %v8755
          %v8838 = vunpack.c.h.b16 %v8755
          %v8839 = vunpack.c.l.b16 %v8756
          %v8840 = vunpack.c.h.b16 %v8756
          %v8841 = vunpack.c.l.b16 %v8757
          %v8842 = vunpack.c.h.b16 %v8757
          %v8843 = vunpack.c.l.b16 %v8758
          %v8844 = vunpack.c.h.b16 %v8758
          %v8845 = vunpack.c.l.b16 %v8759
          %v8846 = vunpack.c.h.b16 %v8759
          %v8847 = vunpack.c.l.b16 %v8760
          %v8848 = vunpack.c.h.b16 %v8760
          %v8849 = vunpack.c.l.b16 %v8761
          %v8850 = vunpack.c.h.b16 %v8761
          %v8851 = vunpack.c.l.b16 %v8762
          %v8852 = vunpack.c.h.b16 %v8762
          %v8853 = vunpack.c.l.b16 %v8763
          %v8854 = vunpack.c.h.b16 %v8763
          %v8855 = vunpack.c.l.b16 %v8764
          %v8856 = vunpack.c.h.b16 %v8764
          %v8857 = vunpack.c.l.b16 %v8765
          %v8858 = vunpack.c.h.b16 %v8765
          %v8859 = vunpack.c.l.b16 %v8766
          %v8860 = vunpack.c.h.b16 %v8766
          %v8861 = vunpack.c.l.b16 %v8767
          %v8862 = vunpack.c.h.b16 %v8767
          %v8863 = vunpack.c.l.b16 %v8768
          %v8864 = vunpack.c.h.b16 %v8768
          %v8865 = vunpack.c.l.b16 %v8769
          %v8866 = vunpack.c.h.b16 %v8769
          %v8867 = vpack.c.b16 %v8805, %v8803
          %v8868 = vpack.c.b16 %v8806, %v8804
          %v8869 = vpack.c.b16 %v8809, %v8807
          %v8870 = vpack.c.b16 %v8810, %v8808
          %v8871 = vpack.c.b16 %v8813, %v8811
          %v8872 = vpack.c.b16 %v8814, %v8812
          %v8873 = vpack.c.b16 %v8817, %v8815
          %v8874 = vpack.c.b16 %v8818, %v8816
          %v8875 = vpack.c.b16 %v8821, %v8819
          %v8876 = vpack.c.b16 %v8822, %v8820
          %v8877 = vpack.c.b16 %v8825, %v8823
          %v8878 = vpack.c.b16 %v8826, %v8824
          %v8879 = vpack.c.b16 %v8829, %v8827
          %v8880 = vpack.c.b16 %v8830, %v8828
          %v8881 = vpack.c.b16 %v8833, %v8831
          %v8882 = vpack.c.b16 %v8834, %v8832
          %v8883 = vpack.c.b16 %v8837, %v8835
          %v8884 = vpack.c.b16 %v8838, %v8836
          %v8885 = vpack.c.b16 %v8841, %v8839
          %v8886 = vpack.c.b16 %v8842, %v8840
          %v8887 = vpack.c.b16 %v8845, %v8843
          %v8888 = vpack.c.b16 %v8846, %v8844
          %v8889 = vpack.c.b16 %v8849, %v8847
          %v8890 = vpack.c.b16 %v8850, %v8848
          %v8891 = vpack.c.b16 %v8853, %v8851
          %v8892 = vpack.c.b16 %v8854, %v8852
          %v8893 = vpack.c.b16 %v8857, %v8855
          %v8894 = vpack.c.b16 %v8858, %v8856
          %v8895 = vpack.c.b16 %v8861, %v8859
          %v8896 = vpack.c.b16 %v8862, %v8860
          %v8897 = vpack.c.b16 %v8865, %v8863
          %v8898 = vpack.c.b16 %v8866, %v8864
          %v8932 = vlaneseq
          %v8933 = vshrl.u32 %v8932, 7
          %v8934 = vsub.s32 0, %v8933
          %v8935 = vrot.slane %v8770, %v8934
          %v8936 = vlaneseq
          %v8937 = vshrl.u32 %v8936, 7
          %v8938 = vsub.s32 1, %v8937
          %v8939 = vrot.slane %v8770, %v8938
          %8942 = vmatprep.subr.bf16.mxu0 %v8868
          %8943 = vmatpush1.bf16.msra.mxu0 %v8867
          %8944 = vmatprep.subr.bf16.mxu0 %v8870
          %8945 = vmatpush1.bf16.msra.mxu0 %v8869
          %8946 = vmatprep.subr.bf16.mxu0 %v8872
          %8947 = vmatpush1.bf16.msra.mxu0 %v8871
          %8948 = vmatprep.subr.bf16.mxu0 %v8874
          %8949 = vmatpush1.bf16.msra.mxu0 %v8873
          %8950 = vmatprep.subr.bf16.mxu0 %v8876
          %8951 = vmatpush1.bf16.msra.mxu0 %v8875
          %8952 = vmatprep.subr.bf16.mxu0 %v8878
          %8953 = vmatpush1.bf16.msra.mxu0 %v8877
          %8954 = vmatprep.subr.bf16.mxu0 %v8880
          %8955 = vmatpush1.bf16.msra.mxu0 %v8879
          %8956 = vmatprep.subr.bf16.mxu0 %v8882
          %8957 = vmatpush1.bf16.msra.mxu0 %v8881
          %8958 = vmatprep.subr.bf16.mxu0 %v8884
          %8959 = vmatpush1.bf16.msra.mxu0 %v8883
          %8960 = vmatprep.subr.bf16.mxu0 %v8886
          %8961 = vmatpush1.bf16.msra.mxu0 %v8885
          %8962 = vmatprep.subr.bf16.mxu0 %v8888
          %8963 = vmatpush1.bf16.msra.mxu0 %v8887
          %8964 = vmatprep.subr.bf16.mxu0 %v8890
          %8965 = vmatpush1.bf16.msra.mxu0 %v8889
          %8966 = vmatprep.subr.bf16.mxu0 %v8892
          %8967 = vmatpush1.bf16.msra.mxu0 %v8891
          %8968 = vmatprep.subr.bf16.mxu0 %v8894
          %8969 = vmatpush1.bf16.msra.mxu0 %v8893
          %8970 = vmatprep.subr.bf16.mxu0 %v8896
          %8971 = vmatpush1.bf16.msra.mxu0 %v8895
          %8972 = vmatprep.subr.bf16.mxu0 %v8898
          %8973 = vmatpush1.bf16.msra.mxu0 %v8897
          %8974 = vmatprep.mubr.bf16.mxu0 %v8737
          %8975 = vmatmul.mubr.bf16.gmra.mrb[0].mxu0 %v8736
          %v8976 = vpop.f32.mrb[0].mxu0
          %v8977 = vadd.f32 %v8935, %v8976
          %v8978 = vpop.f32.mrb[0].mxu0
          %v8979 = vadd.f32 %v8939, %v8978
          %v8980 = vpop.f32.mrb[0].mxu0
          %v8981 = vpop.f32.mrb[0].mxu0
          %8982 = vdwg.mxu0
          %v8983 = vmax.f32 %v8977, 0.0
          %v8984 = vmax.f32 %v8979, 0.0
          %v8985 = vpack.c.bf16 %v8983, %v8983
          %v8986 = vpack.c.bf16 %v8984, %v8984
          %v8987 = vld [vmem:[#allocation43] sm:$0xf]
          %v8988 = vld [vmem:[#allocation43 + $0x4] sm:$0xf]
          %v8989 = vld [vmem:[#allocation43 + $0x8] sm:$0xf]
          %v8990 = vld [vmem:[#allocation43 + $0xc] sm:$0xf]
          %v8991 = vld [vmem:[#allocation43 + $0x10] sm:$0xf]
          %v8992 = vld [vmem:[#allocation43 + $0x14] sm:$0xf]
          %v8993 = vld [vmem:[#allocation43 + $0x18] sm:$0xf]
          %v8994 = vld [vmem:[#allocation43 + $0x1c] sm:$0xf]
          %v8995 = vld [vmem:[#allocation43 + $0x20] sm:$0xf]
          %v8996 = vld [vmem:[#allocation43 + $0x24] sm:$0xf]
          %v8997 = vld [vmem:[#allocation43 + $0x28] sm:$0xf]
          %v8998 = vld [vmem:[#allocation43 + $0x2c] sm:$0xf]
          %v8999 = vld [vmem:[#allocation43 + $0x30] sm:$0xf]
          %v9000 = vld [vmem:[#allocation43 + $0x34] sm:$0xf]
          %v9001 = vld [vmem:[#allocation43 + $0x38] sm:$0xf]
          %v9002 = vld [vmem:[#allocation43 + $0x3c] sm:$0xf]
          %v9003 = vld [vmem:[#allocation43 + $0x40] sm:$0xf]
          %v9004 = vld [vmem:[#allocation43 + $0x44] sm:$0xf]
          %v9005 = vld [vmem:[#allocation43 + $0x48] sm:$0xf]
          %v9006 = vld [vmem:[#allocation43 + $0x4c] sm:$0xf]
          %v9007 = vld [vmem:[#allocation43 + $0x50] sm:$0xf]
          %v9008 = vld [vmem:[#allocation43 + $0x54] sm:$0xf]
          %v9009 = vld [vmem:[#allocation43 + $0x58] sm:$0xf]
          %v9010 = vld [vmem:[#allocation43 + $0x5c] sm:$0xf]
          %v9011 = vld [vmem:[#allocation43 + $0x60] sm:$0xf]
          %v9012 = vld [vmem:[#allocation43 + $0x64] sm:$0xf]
          %v9013 = vld [vmem:[#allocation43 + $0x68] sm:$0xf]
          %v9014 = vld [vmem:[#allocation43 + $0x6c] sm:$0xf]
          %v9015 = vld [vmem:[#allocation43 + $0x70] sm:$0xf]
          %v9016 = vld [vmem:[#allocation43 + $0x74] sm:$0xf]
          %v9017 = vld [vmem:[#allocation43 + $0x78] sm:$0xf]
          %v9018 = vld [vmem:[#allocation43 + $0x7c] sm:$0xf]
          %v9019 = vld [vmem:[#allocation44] sm:$0x1]
          %v9052 = vunpack.c.l.b16 %v8987
          %v9053 = vunpack.c.l.b16 %v8988
          %v9054 = vunpack.c.l.b16 %v8989
          %v9055 = vunpack.c.l.b16 %v8990
          %v9056 = vunpack.c.l.b16 %v8991
          %v9057 = vunpack.c.l.b16 %v8992
          %v9058 = vunpack.c.l.b16 %v8993
          %v9059 = vunpack.c.l.b16 %v8994
          %v9060 = vunpack.c.l.b16 %v8995
          %v9061 = vunpack.c.l.b16 %v8996
          %v9062 = vunpack.c.l.b16 %v8997
          %v9063 = vunpack.c.l.b16 %v8998
          %v9064 = vunpack.c.l.b16 %v8999
          %v9065 = vunpack.c.l.b16 %v9000
          %v9066 = vunpack.c.l.b16 %v9001
          %v9067 = vunpack.c.l.b16 %v9002
          %v9068 = vunpack.c.l.b16 %v9003
          %v9069 = vunpack.c.l.b16 %v9004
          %v9070 = vunpack.c.l.b16 %v9005
          %v9071 = vunpack.c.l.b16 %v9006
          %v9072 = vunpack.c.l.b16 %v9007
          %v9073 = vunpack.c.l.b16 %v9008
          %v9074 = vunpack.c.l.b16 %v9009
          %v9075 = vunpack.c.l.b16 %v9010
          %v9076 = vunpack.c.l.b16 %v9011
          %v9077 = vunpack.c.l.b16 %v9012
          %v9078 = vunpack.c.l.b16 %v9013
          %v9079 = vunpack.c.l.b16 %v9014
          %v9080 = vunpack.c.l.b16 %v9015
          %v9081 = vunpack.c.l.b16 %v9016
          %v9082 = vunpack.c.l.b16 %v9017
          %v9083 = vunpack.c.l.b16 %v9018
          %v9084 = vpack.c.b16 %v9053, %v9052
          %v9085 = vpack.c.b16 %v9055, %v9054
          %v9086 = vpack.c.b16 %v9057, %v9056
          %v9087 = vpack.c.b16 %v9059, %v9058
          %v9088 = vpack.c.b16 %v9061, %v9060
          %v9089 = vpack.c.b16 %v9063, %v9062
          %v9090 = vpack.c.b16 %v9065, %v9064
          %v9091 = vpack.c.b16 %v9067, %v9066
          %v9092 = vpack.c.b16 %v9069, %v9068
          %v9093 = vpack.c.b16 %v9071, %v9070
          %v9094 = vpack.c.b16 %v9073, %v9072
          %v9095 = vpack.c.b16 %v9075, %v9074
          %v9096 = vpack.c.b16 %v9077, %v9076
          %v9097 = vpack.c.b16 %v9079, %v9078
          %v9098 = vpack.c.b16 %v9081, %v9080
          %v9099 = vpack.c.b16 %v9083, %v9082
          %9116 = vmatprep.subr.bf16.mxu0 0
          %9117 = vmatpush1.bf16.msra.mxu0 %v9084
          %9118 = vmatprep.subr.bf16.mxu0 0
          %9119 = vmatpush1.bf16.msra.mxu0 %v9085
          %9120 = vmatprep.subr.bf16.mxu0 0
          %9121 = vmatpush1.bf16.msra.mxu0 %v9086
          %9122 = vmatprep.subr.bf16.mxu0 0
          %9123 = vmatpush1.bf16.msra.mxu0 %v9087
          %9124 = vmatprep.subr.bf16.mxu0 0
          %9125 = vmatpush1.bf16.msra.mxu0 %v9088
          %9126 = vmatprep.subr.bf16.mxu0 0
          %9127 = vmatpush1.bf16.msra.mxu0 %v9089
          %9128 = vmatprep.subr.bf16.mxu0 0
          %9129 = vmatpush1.bf16.msra.mxu0 %v9090
          %9130 = vmatprep.subr.bf16.mxu0 0
          %9131 = vmatpush1.bf16.msra.mxu0 %v9091
          %9132 = vmatprep.subr.bf16.mxu0 0
          %9133 = vmatpush1.bf16.msra.mxu0 %v9092
          %9134 = vmatprep.subr.bf16.mxu0 0
          %9135 = vmatpush1.bf16.msra.mxu0 %v9093
          %9136 = vmatprep.subr.bf16.mxu0 0
          %9137 = vmatpush1.bf16.msra.mxu0 %v9094
          %9138 = vmatprep.subr.bf16.mxu0 0
          %9139 = vmatpush1.bf16.msra.mxu0 %v9095
          %9140 = vmatprep.subr.bf16.mxu0 0
          %9141 = vmatpush1.bf16.msra.mxu0 %v9096
          %9142 = vmatprep.subr.bf16.mxu0 0
          %9143 = vmatpush1.bf16.msra.mxu0 %v9097
          %9144 = vmatprep.subr.bf16.mxu0 0
          %9145 = vmatpush1.bf16.msra.mxu0 %v9098
          %9146 = vmatprep.subr.bf16.mxu0 0
          %9147 = vmatpush1.bf16.msra.mxu0 %v9099
          %9148 = vmatprep.mubr.bf16.mxu0 %v8986
          %9149 = vmatmul.mubr.bf16.gmra.mrb[0].mxu0 %v8985
          %v9150 = vpop.f32.mrb[0].mxu0
          %v9151 = vadd.f32 %v9019, %v9150
          %v9152 = vpop.f32.mrb[0].mxu0
          %v9153 = vpop.f32.mrb[0].mxu0
          %v9154 = vpop.f32.mrb[0].mxu0
          %9155 = vdwg.mxu0
          %v9156 = vlaneseq
          %v9157 = vshrl.u32 %v9156, 7
          %v9158 = vsub.s32 0, %v9157
          %v9159 = vrot.slane %v9151, %v9158
          %9160 = vst [vmem:[#allocation46] sm:$0xff] %v9159
        $region248: #{tpu_custom_call.1} parent=127 // pred_fallthru
          _
        // Predicated region
        $region249: #{tpu_custom_call.1} parent=127 // pred_check
          %p9161 = pneg %p679
        $region250: #{tpu_custom_call.1} parent=127 // pred_check_branch
          %9163 = sbr.rel (%p9161) target = $region252
        $region251: #{tpu_custom_call.1} parent=127 // pred_region
          %s9165 = ssub.s32 128, 128
          %9166 = vsyncadd [#allocation7], %s9165
          %s9168 = sshll.u32 [#allocation46], 4
          %s9169 = int_to_ptr.vmem [resolvable:$true] %s9168
          %9171 = dma.vmem_to_hbm [thread:$0]  %s9169, 128, %s27, [#allocation7]
        $region252: #{tpu_custom_call.1} parent=127 // pred_fallthru
          _
        // Predicated region
        $region253: #{tpu_custom_call.1} parent=127 // pred_check
          %p9172 = pneg %p679
        $region254: #{tpu_custom_call.1} parent=127 // pred_check_branch
          %9174 = sbr.rel (%p9172) target = $region256
        $region255: #{tpu_custom_call.1} parent=127 // pred_region
          %9175 = dma.done [#allocation7], 128
        $region256: #{tpu_custom_call.1} parent=127 // pred_fallthru
          _
      $region128: #{tpu_custom_call.1} parent=5 // pred_fallthru
        _
      %p9176 = scmp.le.s32.totalorder 2, %s52
      // Predicated region
      $region257: #{tpu_custom_call.1} parent=5 // pred_check
        %p9177 = pneg %p9176
      $region258: #{tpu_custom_call.1} parent=5 // pred_check_branch
        %9179 = sbr.rel (%p9177) target = $region260
      $region259: #{tpu_custom_call.1} parent=5 // pred_region
        %s9180 = ssub.s32 %s52, 2
      $region260: #{tpu_custom_call.1} parent=5 // pred_fallthru
        _
    $region6: #{tpu_custom_call.1} parent=1 // loop_footer
      %s56 = sadd.s32 1, %s52
    $region7: #{tpu_custom_call.1} parent=1 // loop_footer_branch
      %51 = sbr.rel target = $region3
    $region8: #{tpu_custom_call.1} parent=1 // loop_exit
      _
    %9181 = vsyncpa [#allocation6], 1
    %s9182 = scalar_lea.sflag [#allocation6], 1
    %9183 = vsyncpa %s9182, 1
    %9184 = vsyncpa [#allocation9], 1
    %s9185 = scalar_lea.sflag [#allocation9], 1
    %9186 = vsyncpa %s9185, 1
    %9187 = vsyncpa [#allocation12], 1
    %s9188 = scalar_lea.sflag [#allocation12], 1
    %9189 = vsyncpa %s9188, 1
    %9190 = vsyncpa [#allocation15], 1
    %9191 = vsyncpa [#allocation18], 1
    %9192 = vsyncpa [#allocation21], 1
    %9193 = vsyncpa [#allocation24], 1
    %9194 = vsyncpa [#allocation27], 1
    %9195 = vsyncpa [#allocation30], 1
    %9196 = vsyncpa [#allocation33], 1
    %9197 = vsyncpa [#allocation36], 1
    %9198 = vsyncpa [#allocation39], 1
    %9199 = vsyncpa [#allocation42], 1
    %9200 = vsyncpa [#allocation45], 1
    %9201 = vsyncpa [#allocation7], 1
    %s9202 = scalar_lea.sflag [#allocation7], 1
    %9203 = vsyncpa %s9202, 1

</llo_original>
